<compile_context>
chip_gen: v5e
topology: v5e:2x2
jax: 0.10.0
libtpu: 0.0.40
codegen_flags: <defaults>
</compile_context>

<pallas_src>
import jax
import jax.numpy as jnp
import numpy as np
from jax.experimental import pallas as pl
from jax.experimental.pallas import tpu as pltpu


# ----------------------------------------------------------------------------
# Fused kernel: conv1+pool1 -> conv2+pool2 -> FC1 -> ReLU -> FC2
# ----------------------------------------------------------------------------
# Layouts (per batch block of bb images):
#   x_ref  : (bb, 18, 192) f32   input rows pair-folded:  [rp, lr*96+w*3+c]
#   cw1    : (576, 1792)  bf16   rows: rr*96+w_in*3+c (rr=0..5 row offset)
#                                cols: dy*896+dx*448+q*32+n   (pool1 window in cols)
#   cb1    : (1, 448)     f32    b1 tiled over q (14 positions)
#   cw2    : (1344, 768)  bf16   rows: r2*448+q*32+c          (r2=0..2 row offset)
#                                cols: dx2*384+q2*64+n2       (w-pool2 in cols)
#   cb2    : (1, 384)     f32    b2 tiled over q2 (6 positions)
#   fw1    : (2304, 256)  bf16   rows ordered (h, w, c) to match kernel flatten
#   fw2    : (256, 128)   bf16   padded to 128 output lanes (lane-dense store)
def _embedding_net_kernel(x_ref, cw1_ref, cb1_ref, cw2_ref, cb2_ref,
                          fw1_ref, fb1_ref, fw2_ref, fb2_ref, o_ref):
    bb = x_ref.shape[0]

    # ---- conv1 (5x5, 3->32) + 2x2 maxpool + bias + ReLU : one matmul -------
    xp = x_ref[...]                                               # (bb,18,192)
    # pooled-row p needs input rows 2p..2p+5 = row-pairs p, p+1, p+2
    x1 = jnp.concatenate([xp[:, 0:16, :], xp[:, 1:17, :], xp[:, 2:18, :]],
                         axis=-1)                                 # (bb,16,576)
    z1 = jnp.dot(x1.reshape(bb * 16, 576).astype(jnp.bfloat16), cw1_ref[...],
                 preferred_element_type=jnp.float32)              # (bb*16,1792)
    z1 = z1.reshape(bb, 16, 1792)
    # maxpool over the 4 (dy,dx) column slabs, then bias + ReLU (hoisted)
    p1 = jnp.maximum(jnp.maximum(z1[:, :, 0:448], z1[:, :, 448:896]),
                     jnp.maximum(z1[:, :, 896:1344], z1[:, :, 1344:1792]))
    a1 = jnp.maximum(p1 + cb1_ref[...], 0.0)                      # (bb,16,448)

    # ---- conv2 (3x3, 32->64) + maxpool over width + bias + ReLU ------------
    a1x = jnp.concatenate([a1, jnp.zeros((bb, 2, 448), a1.dtype)], axis=1)
    # conv2 output row h2 needs a1 rows h2, h2+1, h2+2
    x2 = jnp.concatenate([a1x[:, 0:16, :], a1x[:, 1:17, :], a1x[:, 2:18, :]],
                         axis=-1)                                 # (bb,16,1344)
    z2 = jnp.dot(x2.reshape(bb * 16, 1344).astype(jnp.bfloat16), cw2_ref[...],
                 preferred_element_type=jnp.float32)              # (bb*16,768)
    z2 = z2.reshape(bb, 16, 768)
    a2 = jnp.maximum(jnp.maximum(z2[:, :, 0:384], z2[:, :, 384:768])
                     + cb2_ref[...], 0.0)                         # (bb,16,384)

    # ---- maxpool over height (static row pairs) + flatten (h, w, c) --------
    rows = [jnp.maximum(a2[:, 2 * r, :], a2[:, 2 * r + 1, :]) for r in range(6)]
    xf = jnp.concatenate(rows, axis=-1).astype(jnp.bfloat16)      # (bb,2304)

    # ---- FC1 + ReLU + FC2 (output padded to 128 lanes) ---------------------
    h = jnp.dot(xf, fw1_ref[...], preferred_element_type=jnp.float32)
    h = jnp.maximum(h + fb1_ref[...], 0.0).astype(jnp.bfloat16)   # (bb,256)
    o = jnp.dot(h, fw2_ref[...], preferred_element_type=jnp.float32)
    o_ref[...] = (o + fb2_ref[...]).astype(o_ref.dtype)           # (bb,128)


def embedding_net_forward_fn(x_nchw, kp):
    B = x_nchw.shape[0]
    Bb = B if B <= 8 else 8
    # NCHW -> NHWC, flatten (W,C) into lanes, pad H 32->36, fold row pairs.
    x = jnp.transpose(x_nchw, (0, 2, 3, 1)).astype(jnp.float32)   # (B,32,32,3)
    x = x.reshape(B, 32, 96)
    x = jnp.pad(x, ((0, 0), (0, 4), (0, 0)))                      # (B,36,96)
    x = x.reshape(B, 18, 192)
    out = pl.pallas_call(
        _embedding_net_kernel,
        out_shape=jax.ShapeDtypeStruct((B, 128), jnp.float32),
        grid=(pl.cdiv(B, Bb),),
        in_specs=[
            pl.BlockSpec((Bb, 18, 192), lambda i: (i, 0, 0)),
            pl.BlockSpec((576, 1792), lambda i: (0, 0)),
            pl.BlockSpec((1, 448), lambda i: (0, 0)),
            pl.BlockSpec((1344, 768), lambda i: (0, 0)),
            pl.BlockSpec((1, 384), lambda i: (0, 0)),
            pl.BlockSpec((2304, 256), lambda i: (0, 0)),
            pl.BlockSpec((1, 256), lambda i: (0, 0)),
            pl.BlockSpec((256, 128), lambda i: (0, 0)),
            pl.BlockSpec((1, 128), lambda i: (0, 0)),
        ],
        out_specs=pl.BlockSpec((Bb, 128), lambda i: (i, 0)),
        compiler_params=pltpu.CompilerParams(
            dimension_semantics=("parallel",),
            vmem_limit_bytes=48 * 1024 * 1024),
    )(x, kp["cw1"], kp["cb1"], kp["cw2"], kp["cb2"],
      kp["fw1"], kp["fb1"], kp["fw2"], kp["fb2"])
    return out[:, :64]


embedding_net_forward = jax.jit(embedding_net_forward_fn)


# ----------------------------------------------------------------------------
# One-time parameter repacking (host side)
# ----------------------------------------------------------------------------
def prepare_params(params):
    bf = jnp.bfloat16
    w1 = np.asarray(params["w1"], np.float32)    # (5,5,3,32)  HWIO
    b1 = np.asarray(params["b1"], np.float32)
    w2 = np.asarray(params["w2"], np.float32)    # (3,3,32,64) HWIO
    b2 = np.asarray(params["b2"], np.float32)
    fw1 = np.asarray(params["fw1"], np.float32)  # (2304,256)
    fb1 = np.asarray(params["fb1"], np.float32)
    fw2 = np.asarray(params["fw2"], np.float32)  # (256,64)
    fb2 = np.asarray(params["fb2"], np.float32)

    # conv1 block-Toeplitz weight: rows rr*96+w_in*3+c, cols dy*896+dx*448+q*32+n
    cw1 = np.zeros((576, 1792), np.float32)
    for i in range(5):
        for j in range(5):
            for dy in range(2):
                for dx in range(2):
                    for q in range(14):
                        r0 = (dy + i) * 96 + (2 * q + dx + j) * 3
                        c0 = dy * 896 + dx * 448 + q * 32
                        cw1[r0:r0 + 3, c0:c0 + 32] = w1[i, j]
    cb1 = np.tile(b1, 14).reshape(1, 448)

    # conv2 block-Toeplitz weight: rows r2*448+q*32+c, cols dx2*384+q2*64+n2
    cw2 = np.zeros((1344, 768), np.float32)
    for i2 in range(3):
        for j2 in range(3):
            for dx2 in range(2):
                for q2 in range(6):
                    q = 2 * q2 + dx2 + j2
                    r0 = i2 * 448 + q * 32
                    c0 = dx2 * 384 + q2 * 64
                    cw2[r0:r0 + 32, c0:c0 + 64] = w2[i2, j2]
    cb2 = np.tile(b2, 6).reshape(1, 384)

    # FC1 rows permuted (c,h,w)->(h,w,c) to match the kernel's flatten order.
    fw1k = fw1.reshape(64, 6, 6, 256).transpose(1, 2, 0, 3).reshape(2304, 256)
    # FC2 padded to 128 output lanes for lane-dense stores.
    fw2p = np.zeros((256, 128), np.float32)
    fw2p[:, :64] = fw2
    fb2p = np.zeros((1, 128), np.float32)
    fb2p[0, :64] = fb2

    return {
        "cw1": jnp.asarray(cw1, bf), "cb1": jnp.asarray(cb1, jnp.float32),
        "cw2": jnp.asarray(cw2, bf), "cb2": jnp.asarray(cb2, jnp.float32),
        "fw1": jnp.asarray(fw1k, bf), "fb1": jnp.asarray(fb1.reshape(1, 256), jnp.float32),
        "fw2": jnp.asarray(fw2p, bf), "fb2": jnp.asarray(fb2p, jnp.float32),
    }


# ----------------------------------------------------------------------------
# Pure-JAX reference (independent path: lax.conv + reduce_window), f32.
# ----------------------------------------------------------------------------
def reference_forward(x_nchw, params):
    hp = jax.lax.Precision.HIGHEST
    x = jnp.transpose(x_nchw, (0, 2, 3, 1))
    y = jax.lax.conv_general_dilated(
        x, params["w1"], (1, 1), "VALID",
        dimension_numbers=("NHWC", "HWIO", "NHWC"), precision=hp) + params["b1"]
    y = jax.nn.relu(y)
    y = jax.lax.reduce_window(y, -jnp.inf, jax.lax.max, (1, 2, 2, 1), (1, 2, 2, 1), "VALID")
    y = jax.lax.conv_general_dilated(
        y, params["w2"], (1, 1), "VALID",
        dimension_numbers=("NHWC", "HWIO", "NHWC"), precision=hp) + params["b2"]
    y = jax.nn.relu(y)
    y = jax.lax.reduce_window(y, -jnp.inf, jax.lax.max, (1, 2, 2, 1), (1, 2, 2, 1), "VALID")
    B = y.shape[0]
    y = jnp.transpose(y, (0, 3, 1, 2)).reshape(B, -1)   # PyTorch (C,H,W) flatten
    y = jax.nn.relu(jnp.dot(y, params["fw1"], precision=hp) + params["fb1"])
    y = jnp.dot(y, params["fw2"], precision=hp) + params["fb2"]
    return y


def init_params(key):
    ks = jax.random.split(key, 8)

    def dense(k, shape, fan_in):
        return (jax.random.normal(k, shape, jnp.float32) / np.sqrt(fan_in)).astype(jnp.float32)

    return {
        "w1": dense(ks[0], (5, 5, 3, 32), 5 * 5 * 3),     # HWIO
        "b1": dense(ks[1], (32,), 32),
        "w2": dense(ks[2], (3, 3, 32, 64), 3 * 3 * 32),   # HWIO
        "b2": dense(ks[3], (64,), 64),
        "fw1": dense(ks[4], (64 * 6 * 6, 256), 64 * 6 * 6),
        "fb1": dense(ks[5], (256,), 256),
        "fw2": dense(ks[6], (256, 64), 256),
        "fb2": dense(ks[7], (64,), 64),
    }


if __name__ == "__main__":
    root = jax.random.PRNGKey(0)
    k_params, k_x = jax.random.split(root)
    params = init_params(k_params)
    kparams = prepare_params(params)

    # Small input consistent with fc_input_size = 64*6*6  ->  32x32 spatial.
    x = jax.random.normal(k_x, (2, 3, 32, 32), jnp.float32)   # NCHW like PyTorch

    out = jax.block_until_ready(embedding_net_forward(x, kparams))
    assert out.shape == (2, 64), out.shape
    assert bool(jnp.all(jnp.isfinite(out)))

    ref = reference_forward(x, params)
    assert jnp.allclose(out, ref, rtol=5e-2, atol=5e-2), (
        float(jnp.max(jnp.abs(out - ref))))

    print("KERNEL_OK")
</pallas_src>

<mosaic_0001>
module attributes {stable_mosaic.version = 11 : i64} {
  func.func @_embedding_net_kernel(%arg0: i32, %arg1: memref<2x18x192xf32, #tpu.memory_space<vmem>>, %arg2: memref<576x1792xbf16, #tpu.memory_space<vmem>>, %arg3: memref<1x448xf32, #tpu.memory_space<vmem>>, %arg4: memref<1344x768xbf16, #tpu.memory_space<vmem>>, %arg5: memref<1x384xf32, #tpu.memory_space<vmem>>, %arg6: memref<2304x256xbf16, #tpu.memory_space<vmem>>, %arg7: memref<1x256xf32, #tpu.memory_space<vmem>>, %arg8: memref<256x128xbf16, #tpu.memory_space<vmem>>, %arg9: memref<1x128xf32, #tpu.memory_space<vmem>>, %arg10: memref<2x128xf32, #tpu.memory_space<vmem>>) attributes {dimension_semantics = [#tpu.dimension_semantics<parallel>], iteration_bounds = array<i64: 1>, scalar_prefetch = 0 : i64, scratch_operands = 0 : i64, tpu.core_type = #tpu.core_type<tc>, window_params = [{transform_indices = @transform_0, window_bounds = array<i64: 2, 18, 192>}, {pipeline_mode = #tpu.pipeline_mode<synchronous>, transform_indices = @transform_1, window_bounds = array<i64: 576, 1792>}, {pipeline_mode = #tpu.pipeline_mode<synchronous>, transform_indices = @transform_2, window_bounds = array<i64: 1, 448>}, {pipeline_mode = #tpu.pipeline_mode<synchronous>, transform_indices = @transform_3, window_bounds = array<i64: 1344, 768>}, {pipeline_mode = #tpu.pipeline_mode<synchronous>, transform_indices = @transform_4, window_bounds = array<i64: 1, 384>}, {pipeline_mode = #tpu.pipeline_mode<synchronous>, transform_indices = @transform_5, window_bounds = array<i64: 2304, 256>}, {pipeline_mode = #tpu.pipeline_mode<synchronous>, transform_indices = @transform_6, window_bounds = array<i64: 1, 256>}, {pipeline_mode = #tpu.pipeline_mode<synchronous>, transform_indices = @transform_7, window_bounds = array<i64: 256, 128>}, {pipeline_mode = #tpu.pipeline_mode<synchronous>, transform_indices = @transform_8, window_bounds = array<i64: 1, 128>}, {transform_indices = @transform_9, window_bounds = array<i64: 2, 128>}]} {
    %c0 = arith.constant 0 : index
    %c0_0 = arith.constant 0 : index
    %c0_1 = arith.constant 0 : index
    %0 = vector.load %arg1[%c0, %c0_0, %c0_1] : memref<2x18x192xf32, #tpu.memory_space<vmem>>, vector<2x18x192xf32>
    %1 = vector.extract_strided_slice %0 {offsets = [0, 0, 0], sizes = [2, 16, 192], strides = [1, 1, 1]} : vector<2x18x192xf32> to vector<2x16x192xf32>
    %2 = vector.extract_strided_slice %0 {offsets = [0, 1, 0], sizes = [2, 16, 192], strides = [1, 1, 1]} : vector<2x18x192xf32> to vector<2x16x192xf32>
    %3 = vector.extract_strided_slice %0 {offsets = [0, 2, 0], sizes = [2, 16, 192], strides = [1, 1, 1]} : vector<2x18x192xf32> to vector<2x16x192xf32>
    %4 = tpu.concatenate %1, %2, %3 in 2 : vector<2x16x192xf32>, vector<2x16x192xf32>, vector<2x16x192xf32> -> vector<2x16x576xf32>
    %5 = vector.shape_cast %4 : vector<2x16x576xf32> to vector<32x576xf32>
    %6 = arith.truncf %5 : vector<32x576xf32> to vector<32x576xbf16>
    %c0_2 = arith.constant 0 : index
    %c0_3 = arith.constant 0 : index
    %7 = vector.load %arg2[%c0_2, %c0_3] : memref<576x1792xbf16, #tpu.memory_space<vmem>>, vector<576x1792xbf16>
    %cst = arith.constant dense<0.000000e+00> : vector<32x1792xf32>
    %8 = tpu.matmul %6, %7, %cst {dimension_numbers = #tpu.dot_dimension_numbers<[1], [0], [0], [1], [0, 0, 1, 1], [], []>} : vector<32x576xbf16>, vector<576x1792xbf16>, vector<32x1792xf32> -> vector<32x1792xf32>
    %9 = vector.shape_cast %8 : vector<32x1792xf32> to vector<2x16x1792xf32>
    %10 = vector.extract_strided_slice %9 {offsets = [0, 0, 0], sizes = [2, 16, 448], strides = [1, 1, 1]} : vector<2x16x1792xf32> to vector<2x16x448xf32>
    %11 = vector.extract_strided_slice %9 {offsets = [0, 0, 448], sizes = [2, 16, 448], strides = [1, 1, 1]} : vector<2x16x1792xf32> to vector<2x16x448xf32>
    %12 = arith.maximumf %10, %11 : vector<2x16x448xf32>
    %13 = vector.extract_strided_slice %9 {offsets = [0, 0, 896], sizes = [2, 16, 448], strides = [1, 1, 1]} : vector<2x16x1792xf32> to vector<2x16x448xf32>
    %14 = vector.extract_strided_slice %9 {offsets = [0, 0, 1344], sizes = [2, 16, 448], strides = [1, 1, 1]} : vector<2x16x1792xf32> to vector<2x16x448xf32>
    %15 = arith.maximumf %13, %14 : vector<2x16x448xf32>
    %16 = arith.maximumf %12, %15 : vector<2x16x448xf32>
    %c0_4 = arith.constant 0 : index
    %c0_5 = arith.constant 0 : index
    %17 = vector.load %arg3[%c0_4, %c0_5] : memref<1x448xf32, #tpu.memory_space<vmem>>, vector<1x448xf32>
    %18 = vector.shape_cast %17 : vector<1x448xf32> to vector<1x1x448xf32>
    %19 = vector.broadcast %18 : vector<1x1x448xf32> to vector<2x16x448xf32>
    %20 = arith.addf %16, %19 : vector<2x16x448xf32>
    %cst_6 = arith.constant 0.000000e+00 : f32
    %21 = vector.broadcast %cst_6 : f32 to vector<2x16x448xf32>
    %22 = arith.maximumf %20, %21 : vector<2x16x448xf32>
    %cst_7 = arith.constant 0.000000e+00 : f32
    %23 = vector.broadcast %cst_7 : f32 to vector<2x2x448xf32>
    %24 = tpu.concatenate %22, %23 in 1 : vector<2x16x448xf32>, vector<2x2x448xf32> -> vector<2x18x448xf32>
    %25 = vector.extract_strided_slice %24 {offsets = [0, 0, 0], sizes = [2, 16, 448], strides = [1, 1, 1]} : vector<2x18x448xf32> to vector<2x16x448xf32>
    %26 = vector.extract_strided_slice %24 {offsets = [0, 1, 0], sizes = [2, 16, 448], strides = [1, 1, 1]} : vector<2x18x448xf32> to vector<2x16x448xf32>
    %27 = vector.extract_strided_slice %24 {offsets = [0, 2, 0], sizes = [2, 16, 448], strides = [1, 1, 1]} : vector<2x18x448xf32> to vector<2x16x448xf32>
    %28 = tpu.concatenate %25, %26, %27 in 2 : vector<2x16x448xf32>, vector<2x16x448xf32>, vector<2x16x448xf32> -> vector<2x16x1344xf32>
    %29 = vector.shape_cast %28 : vector<2x16x1344xf32> to vector<32x1344xf32>
    %30 = arith.truncf %29 : vector<32x1344xf32> to vector<32x1344xbf16>
    %c0_8 = arith.constant 0 : index
    %c0_9 = arith.constant 0 : index
    %31 = vector.load %arg4[%c0_8, %c0_9] : memref<1344x768xbf16, #tpu.memory_space<vmem>>, vector<1344x768xbf16>
    %cst_10 = arith.constant dense<0.000000e+00> : vector<32x768xf32>
    %32 = tpu.matmul %30, %31, %cst_10 {dimension_numbers = #tpu.dot_dimension_numbers<[1], [0], [0], [1], [0, 0, 1, 1], [], []>} : vector<32x1344xbf16>, vector<1344x768xbf16>, vector<32x768xf32> -> vector<32x768xf32>
    %33 = vector.shape_cast %32 : vector<32x768xf32> to vector<2x16x768xf32>
    %34 = vector.extract_strided_slice %33 {offsets = [0, 0, 0], sizes = [2, 16, 384], strides = [1, 1, 1]} : vector<2x16x768xf32> to vector<2x16x384xf32>
    %35 = vector.extract_strided_slice %33 {offsets = [0, 0, 384], sizes = [2, 16, 384], strides = [1, 1, 1]} : vector<2x16x768xf32> to vector<2x16x384xf32>
    %36 = arith.maximumf %34, %35 : vector<2x16x384xf32>
    %c0_11 = arith.constant 0 : index
    %c0_12 = arith.constant 0 : index
    %37 = vector.load %arg5[%c0_11, %c0_12] : memref<1x384xf32, #tpu.memory_space<vmem>>, vector<1x384xf32>
    %38 = vector.shape_cast %37 : vector<1x384xf32> to vector<1x1x384xf32>
    %39 = vector.broadcast %38 : vector<1x1x384xf32> to vector<2x16x384xf32>
    %40 = arith.addf %36, %39 : vector<2x16x384xf32>
    %cst_13 = arith.constant 0.000000e+00 : f32
    %41 = vector.broadcast %cst_13 : f32 to vector<2x16x384xf32>
    %42 = arith.maximumf %40, %41 : vector<2x16x384xf32>
    %43 = vector.extract_strided_slice %42 {offsets = [0, 0, 0], sizes = [2, 1, 384], strides = [1, 1, 1]} : vector<2x16x384xf32> to vector<2x1x384xf32>
    %44 = vector.shape_cast %43 : vector<2x1x384xf32> to vector<2x384xf32>
    %45 = vector.extract_strided_slice %42 {offsets = [0, 1, 0], sizes = [2, 1, 384], strides = [1, 1, 1]} : vector<2x16x384xf32> to vector<2x1x384xf32>
    %46 = vector.shape_cast %45 : vector<2x1x384xf32> to vector<2x384xf32>
    %47 = arith.maximumf %44, %46 : vector<2x384xf32>
    %48 = vector.extract_strided_slice %42 {offsets = [0, 2, 0], sizes = [2, 1, 384], strides = [1, 1, 1]} : vector<2x16x384xf32> to vector<2x1x384xf32>
    %49 = vector.shape_cast %48 : vector<2x1x384xf32> to vector<2x384xf32>
    %50 = vector.extract_strided_slice %42 {offsets = [0, 3, 0], sizes = [2, 1, 384], strides = [1, 1, 1]} : vector<2x16x384xf32> to vector<2x1x384xf32>
    %51 = vector.shape_cast %50 : vector<2x1x384xf32> to vector<2x384xf32>
    %52 = arith.maximumf %49, %51 : vector<2x384xf32>
    %53 = vector.extract_strided_slice %42 {offsets = [0, 4, 0], sizes = [2, 1, 384], strides = [1, 1, 1]} : vector<2x16x384xf32> to vector<2x1x384xf32>
    %54 = vector.shape_cast %53 : vector<2x1x384xf32> to vector<2x384xf32>
    %55 = vector.extract_strided_slice %42 {offsets = [0, 5, 0], sizes = [2, 1, 384], strides = [1, 1, 1]} : vector<2x16x384xf32> to vector<2x1x384xf32>
    %56 = vector.shape_cast %55 : vector<2x1x384xf32> to vector<2x384xf32>
    %57 = arith.maximumf %54, %56 : vector<2x384xf32>
    %58 = vector.extract_strided_slice %42 {offsets = [0, 6, 0], sizes = [2, 1, 384], strides = [1, 1, 1]} : vector<2x16x384xf32> to vector<2x1x384xf32>
    %59 = vector.shape_cast %58 : vector<2x1x384xf32> to vector<2x384xf32>
    %60 = vector.extract_strided_slice %42 {offsets = [0, 7, 0], sizes = [2, 1, 384], strides = [1, 1, 1]} : vector<2x16x384xf32> to vector<2x1x384xf32>
    %61 = vector.shape_cast %60 : vector<2x1x384xf32> to vector<2x384xf32>
    %62 = arith.maximumf %59, %61 : vector<2x384xf32>
    %63 = vector.extract_strided_slice %42 {offsets = [0, 8, 0], sizes = [2, 1, 384], strides = [1, 1, 1]} : vector<2x16x384xf32> to vector<2x1x384xf32>
    %64 = vector.shape_cast %63 : vector<2x1x384xf32> to vector<2x384xf32>
    %65 = vector.extract_strided_slice %42 {offsets = [0, 9, 0], sizes = [2, 1, 384], strides = [1, 1, 1]} : vector<2x16x384xf32> to vector<2x1x384xf32>
    %66 = vector.shape_cast %65 : vector<2x1x384xf32> to vector<2x384xf32>
    %67 = arith.maximumf %64, %66 : vector<2x384xf32>
    %68 = vector.extract_strided_slice %42 {offsets = [0, 10, 0], sizes = [2, 1, 384], strides = [1, 1, 1]} : vector<2x16x384xf32> to vector<2x1x384xf32>
    %69 = vector.shape_cast %68 : vector<2x1x384xf32> to vector<2x384xf32>
    %70 = vector.extract_strided_slice %42 {offsets = [0, 11, 0], sizes = [2, 1, 384], strides = [1, 1, 1]} : vector<2x16x384xf32> to vector<2x1x384xf32>
    %71 = vector.shape_cast %70 : vector<2x1x384xf32> to vector<2x384xf32>
    %72 = arith.maximumf %69, %71 : vector<2x384xf32>
    %73 = tpu.concatenate %47, %52, %57, %62, %67, %72 in 1 : vector<2x384xf32>, vector<2x384xf32>, vector<2x384xf32>, vector<2x384xf32>, vector<2x384xf32>, vector<2x384xf32> -> vector<2x2304xf32>
    %74 = arith.truncf %73 : vector<2x2304xf32> to vector<2x2304xbf16>
    %c0_14 = arith.constant 0 : index
    %c0_15 = arith.constant 0 : index
    %75 = vector.load %arg6[%c0_14, %c0_15] : memref<2304x256xbf16, #tpu.memory_space<vmem>>, vector<2304x256xbf16>
    %cst_16 = arith.constant dense<0.000000e+00> : vector<2x256xf32>
    %76 = tpu.matmul %74, %75, %cst_16 {dimension_numbers = #tpu.dot_dimension_numbers<[1], [0], [0], [1], [0, 0, 1, 1], [], []>} : vector<2x2304xbf16>, vector<2304x256xbf16>, vector<2x256xf32> -> vector<2x256xf32>
    %c0_17 = arith.constant 0 : index
    %c0_18 = arith.constant 0 : index
    %77 = vector.load %arg7[%c0_17, %c0_18] : memref<1x256xf32, #tpu.memory_space<vmem>>, vector<1x256xf32>
    %78 = vector.broadcast %77 : vector<1x256xf32> to vector<2x256xf32>
    %79 = arith.addf %76, %78 : vector<2x256xf32>
    %cst_19 = arith.constant 0.000000e+00 : f32
    %80 = vector.broadcast %cst_19 : f32 to vector<2x256xf32>
    %81 = arith.maximumf %79, %80 : vector<2x256xf32>
    %82 = arith.truncf %81 : vector<2x256xf32> to vector<2x256xbf16>
    %c0_20 = arith.constant 0 : index
    %c0_21 = arith.constant 0 : index
    %83 = vector.load %arg8[%c0_20, %c0_21] : memref<256x128xbf16, #tpu.memory_space<vmem>>, vector<256x128xbf16>
    %cst_22 = arith.constant dense<0.000000e+00> : vector<2x128xf32>
    %84 = tpu.matmul %82, %83, %cst_22 {dimension_numbers = #tpu.dot_dimension_numbers<[1], [0], [0], [1], [0, 0, 1, 1], [], []>} : vector<2x256xbf16>, vector<256x128xbf16>, vector<2x128xf32> -> vector<2x128xf32>
    %c0_23 = arith.constant 0 : index
    %c0_24 = arith.constant 0 : index
    %85 = vector.load %arg9[%c0_23, %c0_24] : memref<1x128xf32, #tpu.memory_space<vmem>>, vector<1x128xf32>
    %86 = vector.broadcast %85 : vector<1x128xf32> to vector<2x128xf32>
    %87 = arith.addf %84, %86 : vector<2x128xf32>
    %c0_25 = arith.constant 0 : index
    %c0_26 = arith.constant 0 : index
    %88 = vector.load %arg10[%c0_25, %c0_26] : memref<2x128xf32, #tpu.memory_space<vmem>>, vector<2x128xf32>
    tpu.vector_store %arg10[%c0_25, %c0_26], %87 {strides = array<i32>} : memref<2x128xf32, #tpu.memory_space<vmem>>, vector<2x128xf32>,
    return
  }
  func.func @transform_0(%arg0: i32) -> (i32, i32, i32) {
    %c0_i32 = arith.constant 0 : i32
    %c0_i32_0 = arith.constant 0 : i32
    %c0_i32_1 = arith.constant 0 : i32
    return %arg0, %c0_i32, %c0_i32_0 : i32, i32, i32
  }
  func.func @transform_1(%arg0: i32) -> (i32, i32) {
    %c0_i32 = arith.constant 0 : i32
    %c0_i32_0 = arith.constant 0 : i32
    %c0_i32_1 = arith.constant 0 : i32
    return %c0_i32, %c0_i32_0 : i32, i32
  }
  func.func @transform_2(%arg0: i32) -> (i32, i32) {
    %c0_i32 = arith.constant 0 : i32
    %c0_i32_0 = arith.constant 0 : i32
    %c0_i32_1 = arith.constant 0 : i32
    return %c0_i32, %c0_i32_0 : i32, i32
  }
  func.func @transform_3(%arg0: i32) -> (i32, i32) {
    %c0_i32 = arith.constant 0 : i32
    %c0_i32_0 = arith.constant 0 : i32
    %c0_i32_1 = arith.constant 0 : i32
    return %c0_i32, %c0_i32_0 : i32, i32
  }
  func.func @transform_4(%arg0: i32) -> (i32, i32) {
    %c0_i32 = arith.constant 0 : i32
    %c0_i32_0 = arith.constant 0 : i32
    %c0_i32_1 = arith.constant 0 : i32
    return %c0_i32, %c0_i32_0 : i32, i32
  }
  func.func @transform_5(%arg0: i32) -> (i32, i32) {
    %c0_i32 = arith.constant 0 : i32
    %c0_i32_0 = arith.constant 0 : i32
    %c0_i32_1 = arith.constant 0 : i32
    return %c0_i32, %c0_i32_0 : i32, i32
  }
  func.func @transform_6(%arg0: i32) -> (i32, i32) {
    %c0_i32 = arith.constant 0 : i32
    %c0_i32_0 = arith.constant 0 : i32
    %c0_i32_1 = arith.constant 0 : i32
    return %c0_i32, %c0_i32_0 : i32, i32
  }
  func.func @transform_7(%arg0: i32) -> (i32, i32) {
    %c0_i32 = arith.constant 0 : i32
    %c0_i32_0 = arith.constant 0 : i32
    %c0_i32_1 = arith.constant 0 : i32
    return %c0_i32, %c0_i32_0 : i32, i32
  }
  func.func @transform_8(%arg0: i32) -> (i32, i32) {
    %c0_i32 = arith.constant 0 : i32
    %c0_i32_0 = arith.constant 0 : i32
    %c0_i32_1 = arith.constant 0 : i32
    return %c0_i32, %c0_i32_0 : i32, i32
  }
  func.func @transform_9(%arg0: i32) -> (i32, i32) {
    %c0_i32 = arith.constant 0 : i32
    %c0_i32_0 = arith.constant 0 : i32
    return %arg0, %c0_i32 : i32, i32
  }
}

</mosaic_0001>

<llo_original>
// kernel: embedding_net_forward_fn.1
$region0: #{embedding_net_forward_fn.1}
  #allocation0 [shape = 'u32[]', space=smem, size = 0x4, offset = 0x4, fixed_abs, tag = 'smem constant byte address 0x4 - core index']
  #allocation1 [shape = 'u32[72,128]{1,0:T(1,128)}', space=vmem, size = 0x9000, scoped, tag = 'internal scratch']
  %s0 = inlined_call_operand.vmem [shape: f32[2,18,192], index: 0, kind: input, shape index: {}]
  %s1 = inlined_call_operand.hbm [shape: bf16[576,1792], index: 1, kind: input, shape index: {}]
  %s2 = inlined_call_operand.hbm [shape: f32[1,448], index: 2, kind: input, shape index: {}]
  %s3 = inlined_call_operand.hbm [shape: bf16[1344,768], index: 3, kind: input, shape index: {}]
  %s4 = inlined_call_operand.hbm [shape: f32[1,384], index: 4, kind: input, shape index: {}]
  %s5 = inlined_call_operand.hbm [shape: bf16[2304,256], index: 5, kind: input, shape index: {}]
  %s6 = inlined_call_operand.hbm [shape: f32[1,256], index: 6, kind: input, shape index: {}]
  %s7 = inlined_call_operand.hbm [shape: bf16[256,128], index: 7, kind: input, shape index: {}]
  %s8 = inlined_call_operand.hbm [shape: f32[1,128], index: 8, kind: input, shape index: {}]
  %s9 = inlined_call_operand.hbm [shape: f32[2,128], index: 9, kind: output, shape index: {}]
  %s10 = sld [smem:[#allocation0]]
  $region78: #{embedding_net_forward_fn.1} parent=0
    _
  %s12 = ssub.s32 1, %s10
  %s13 = scalar_select 0, %s12, %s10
  $region1: #{embedding_net_forward_fn.1} parent=0
    #allocation2 [shape = 'u8[2064384]{0}', space=vmem, size = 0x1f8000, scoped, tag = 'input window, operand 1, single buffered']
    #allocation3 [shape = 's32[1]{0}', space=sflag, size = 0x4, scoped, tag = 'scoped memory for embedding_net_forward_fn.1']
    #allocation4 [shape = 's32[1]{0}', space=sflag, size = 0x4, scoped, tag = 'scoped memory for embedding_net_forward_fn.1']
    #allocation5 [shape = 'u8[2048]{0}', space=vmem, size = 0x800, scoped, tag = 'input window, operand 2, single buffered']
    #allocation6 [shape = 's32[1]{0}', space=sflag, size = 0x4, scoped, tag = 'scoped memory for embedding_net_forward_fn.1']
    #allocation7 [shape = 'u8[2064384]{0}', space=vmem, size = 0x1f8000, scoped, tag = 'input window, operand 3, single buffered']
    #allocation8 [shape = 'u8[1536]{0}', space=vmem, size = 0x800, scoped, tag = 'input window, operand 4, single buffered']
    #allocation9 [shape = 's32[1]{0}', space=sflag, size = 0x4, scoped, tag = 'scoped memory for embedding_net_forward_fn.1']
    #allocation10 [shape = 'u8[1179648]{0}', space=vmem, size = 0x120000, scoped, tag = 'input window, operand 5, single buffered']
    #allocation11 [shape = 'u8[1024]{0}', space=vmem, size = 0x400, scoped, tag = 'input window, operand 6, single buffered']
    #allocation12 [shape = 's32[1]{0}', space=sflag, size = 0x4, scoped, tag = 'scoped memory for embedding_net_forward_fn.1']
    #allocation13 [shape = 'u8[65536]{0}', space=vmem, size = 0x10000, scoped, tag = 'input window, operand 7, single buffered']
    #allocation14 [shape = 'u8[512]{0}', space=vmem, size = 0x400, scoped, tag = 'input window, operand 8, single buffered']
    #allocation15 [shape = 's32[1]{0}', space=sflag, size = 0x4, scoped, tag = 'scoped memory for embedding_net_forward_fn.1']
    #allocation16 [shape = 'u8[1024]{0}', space=vmem, size = 0x400, scoped, tag = 'output window, operand 0, single buffered']
    %14 = vsyncpa [#allocation3], 0
    %15 = vsyncpa [#allocation6], 0
    %16 = vsyncpa [#allocation9], 0
    %17 = vsyncpa [#allocation12], 0
    %18 = vsyncpa [#allocation15], 0
    %19 = vsyncpa [#allocation4], 0
    // Predicated region
    $region2: #{embedding_net_forward_fn.1} parent=1 // pred_check
      _
    $region3: #{embedding_net_forward_fn.1} parent=1 // pred_check_branch
      %21 = sbr.rel (0) target = $region5
    $region4: #{embedding_net_forward_fn.1} parent=1 // pred_region
      _
    $region5: #{embedding_net_forward_fn.1} parent=1 // pred_fallthru
      _
    // Predicated region
    $region6: #{embedding_net_forward_fn.1} parent=1 // pred_check
      _
    $region7: #{embedding_net_forward_fn.1} parent=1 // pred_check_branch
      %23 = sbr.rel (0) target = $region9
    $region8: #{embedding_net_forward_fn.1} parent=1 // pred_region
      %25 = vsyncadd [#allocation3], 0
      %s26 = sshll.u32 %s1, 4
      %s27 = int_to_ptr.hbm [resolvable:$true] %s26
      %s28 = sshll.u32 [#allocation2], 4
      %s29 = int_to_ptr.vmem [resolvable:$true] %s28
      %34 = dma.hbm_to_vmem [thread:$0]  %s27, 64512, %s29, [#allocation3], 896, 896, 56
    $region9: #{embedding_net_forward_fn.1} parent=1 // pred_fallthru
      _
    // Predicated region
    $region10: #{embedding_net_forward_fn.1} parent=1 // pred_check
      _
    $region11: #{embedding_net_forward_fn.1} parent=1 // pred_check_branch
      %36 = sbr.rel (0) target = $region13
    $region12: #{embedding_net_forward_fn.1} parent=1 // pred_region
      %38 = vsyncadd [#allocation6], 0
      %s40 = sshll.u32 %s2, 4
      %s41 = int_to_ptr.hbm [resolvable:$true] %s40
      %s42 = sshll.u32 [#allocation5], 4
      %s43 = int_to_ptr.vmem [resolvable:$true] %s42
      %45 = dma.hbm_to_vmem [thread:$0]  %s41, 64, %s43, [#allocation6]
    $region13: #{embedding_net_forward_fn.1} parent=1 // pred_fallthru
      _
    // Predicated region
    $region14: #{embedding_net_forward_fn.1} parent=1 // pred_check
      _
    $region15: #{embedding_net_forward_fn.1} parent=1 // pred_check_branch
      %47 = sbr.rel (0) target = $region17
    $region16: #{embedding_net_forward_fn.1} parent=1 // pred_region
      %49 = vsyncadd [#allocation6], 0
      %s50 = sshll.u32 %s3, 4
      %s51 = int_to_ptr.hbm [resolvable:$true] %s50
      %s52 = sshll.u32 [#allocation7], 4
      %s53 = int_to_ptr.vmem [resolvable:$true] %s52
      %58 = dma.hbm_to_vmem [thread:$0]  %s51, 64512, %s53, [#allocation6], 384, 384, 24
    $region17: #{embedding_net_forward_fn.1} parent=1 // pred_fallthru
      _
    // Predicated region
    $region18: #{embedding_net_forward_fn.1} parent=1 // pred_check
      _
    $region19: #{embedding_net_forward_fn.1} parent=1 // pred_check_branch
      %60 = sbr.rel (0) target = $region21
    $region20: #{embedding_net_forward_fn.1} parent=1 // pred_region
      %62 = vsyncadd [#allocation9], 0
      %s64 = sshll.u32 %s4, 4
      %s65 = int_to_ptr.hbm [resolvable:$true] %s64
      %s66 = sshll.u32 [#allocation8], 4
      %s67 = int_to_ptr.vmem [resolvable:$true] %s66
      %69 = dma.hbm_to_vmem [thread:$0]  %s65, 48, %s67, [#allocation9]
    $region21: #{embedding_net_forward_fn.1} parent=1 // pred_fallthru
      _
    // Predicated region
    $region22: #{embedding_net_forward_fn.1} parent=1 // pred_check
      _
    $region23: #{embedding_net_forward_fn.1} parent=1 // pred_check_branch
      %71 = sbr.rel (0) target = $region25
    $region24: #{embedding_net_forward_fn.1} parent=1 // pred_region
      %73 = vsyncadd [#allocation9], 0
      %s74 = sshll.u32 %s5, 4
      %s75 = int_to_ptr.hbm [resolvable:$true] %s74
      %s76 = sshll.u32 [#allocation10], 4
      %s77 = int_to_ptr.vmem [resolvable:$true] %s76
      %82 = dma.hbm_to_vmem [thread:$0]  %s75, 36864, %s77, [#allocation9], 128, 128, 8
    $region25: #{embedding_net_forward_fn.1} parent=1 // pred_fallthru
      _
    // Predicated region
    $region26: #{embedding_net_forward_fn.1} parent=1 // pred_check
      _
    $region27: #{embedding_net_forward_fn.1} parent=1 // pred_check_branch
      %84 = sbr.rel (0) target = $region29
    $region28: #{embedding_net_forward_fn.1} parent=1 // pred_region
      %86 = vsyncadd [#allocation12], 0
      %s88 = sshll.u32 %s6, 4
      %s89 = int_to_ptr.hbm [resolvable:$true] %s88
      %s90 = sshll.u32 [#allocation11], 4
      %s91 = int_to_ptr.vmem [resolvable:$true] %s90
      %93 = dma.hbm_to_vmem [thread:$0]  %s89, 32, %s91, [#allocation12]
    $region29: #{embedding_net_forward_fn.1} parent=1 // pred_fallthru
      _
    // Predicated region
    $region30: #{embedding_net_forward_fn.1} parent=1 // pred_check
      _
    $region31: #{embedding_net_forward_fn.1} parent=1 // pred_check_branch
      %95 = sbr.rel (0) target = $region33
    $region32: #{embedding_net_forward_fn.1} parent=1 // pred_region
      %97 = vsyncadd [#allocation12], 0
      %s98 = sshll.u32 %s7, 4
      %s99 = int_to_ptr.hbm [resolvable:$true] %s98
      %s100 = sshll.u32 [#allocation13], 4
      %s101 = int_to_ptr.vmem [resolvable:$true] %s100
      %106 = dma.hbm_to_vmem [thread:$0]  %s99, 2048, %s101, [#allocation12], 64, 64, 4
    $region33: #{embedding_net_forward_fn.1} parent=1 // pred_fallthru
      _
    // Predicated region
    $region34: #{embedding_net_forward_fn.1} parent=1 // pred_check
      _
    $region35: #{embedding_net_forward_fn.1} parent=1 // pred_check_branch
      %108 = sbr.rel (0) target = $region37
    $region36: #{embedding_net_forward_fn.1} parent=1 // pred_region
      %110 = vsyncadd [#allocation15], 0
      %s112 = sshll.u32 %s8, 4
      %s113 = int_to_ptr.hbm [resolvable:$true] %s112
      %s114 = sshll.u32 [#allocation14], 4
      %s115 = int_to_ptr.vmem [resolvable:$true] %s114
      %117 = dma.hbm_to_vmem [thread:$0]  %s113, 16, %s115, [#allocation15]
    $region37: #{embedding_net_forward_fn.1} parent=1 // pred_fallthru
      _
    // Predicated region
    $region38: #{embedding_net_forward_fn.1} parent=1 // pred_check
      _
    $region39: #{embedding_net_forward_fn.1} parent=1 // pred_check_branch
      %119 = sbr.rel (0) target = $region41
    $region40: #{embedding_net_forward_fn.1} parent=1 // pred_region
      %121 = dma.done [#allocation3], 64512
    $region41: #{embedding_net_forward_fn.1} parent=1 // pred_fallthru
      _
    // Predicated region
    $region42: #{embedding_net_forward_fn.1} parent=1 // pred_check
      _
    $region43: #{embedding_net_forward_fn.1} parent=1 // pred_check_branch
      %123 = sbr.rel (0) target = $region45
    $region44: #{embedding_net_forward_fn.1} parent=1 // pred_region
      %125 = dma.done [#allocation6], 64
    $region45: #{embedding_net_forward_fn.1} parent=1 // pred_fallthru
      _
    // Predicated region
    $region46: #{embedding_net_forward_fn.1} parent=1 // pred_check
      _
    $region47: #{embedding_net_forward_fn.1} parent=1 // pred_check_branch
      %127 = sbr.rel (0) target = $region49
    $region48: #{embedding_net_forward_fn.1} parent=1 // pred_region
      %129 = dma.done [#allocation6], 64512
    $region49: #{embedding_net_forward_fn.1} parent=1 // pred_fallthru
      _
    // Predicated region
    $region50: #{embedding_net_forward_fn.1} parent=1 // pred_check
      _
    $region51: #{embedding_net_forward_fn.1} parent=1 // pred_check_branch
      %131 = sbr.rel (0) target = $region53
    $region52: #{embedding_net_forward_fn.1} parent=1 // pred_region
      %133 = dma.done [#allocation9], 48
    $region53: #{embedding_net_forward_fn.1} parent=1 // pred_fallthru
      _
    // Predicated region
    $region54: #{embedding_net_forward_fn.1} parent=1 // pred_check
      _
    $region55: #{embedding_net_forward_fn.1} parent=1 // pred_check_branch
      %135 = sbr.rel (0) target = $region57
    $region56: #{embedding_net_forward_fn.1} parent=1 // pred_region
      %137 = dma.done [#allocation9], 36864
    $region57: #{embedding_net_forward_fn.1} parent=1 // pred_fallthru
      _
    // Predicated region
    $region58: #{embedding_net_forward_fn.1} parent=1 // pred_check
      _
    $region59: #{embedding_net_forward_fn.1} parent=1 // pred_check_branch
      %139 = sbr.rel (0) target = $region61
    $region60: #{embedding_net_forward_fn.1} parent=1 // pred_region
      %141 = dma.done [#allocation12], 32
    $region61: #{embedding_net_forward_fn.1} parent=1 // pred_fallthru
      _
    // Predicated region
    $region62: #{embedding_net_forward_fn.1} parent=1 // pred_check
      _
    $region63: #{embedding_net_forward_fn.1} parent=1 // pred_check_branch
      %143 = sbr.rel (0) target = $region65
    $region64: #{embedding_net_forward_fn.1} parent=1 // pred_region
      %145 = dma.done [#allocation12], 2048
    $region65: #{embedding_net_forward_fn.1} parent=1 // pred_fallthru
      _
    // Predicated region
    $region66: #{embedding_net_forward_fn.1} parent=1 // pred_check
      _
    $region67: #{embedding_net_forward_fn.1} parent=1 // pred_check_branch
      %147 = sbr.rel (0) target = $region69
    $region68: #{embedding_net_forward_fn.1} parent=1 // pred_region
      %149 = dma.done [#allocation15], 16
    $region69: #{embedding_net_forward_fn.1} parent=1 // pred_fallthru
      _
    %v151 = vld [vmem:[%s0] sm:$0xff]
    %v152 = vld [vmem:[%s0 + $0x8] sm:$0xff]
    %v153 = vld [vmem:[%s0 + $0x10] sm:$0xff]
    %v154 = vld [vmem:[%s0 + $0x18] sm:$0xff]
    %v155 = vld [vmem:[%s0 + $0x20] sm:$0x3]
    %v156 = vld [vmem:[%s0 + $0x28] sm:$0x3]
    %v157 = vld [vmem:[%s0 + $0x30] sm:$0xff]
    %v158 = vld [vmem:[%s0 + $0x38] sm:$0xff]
    %v159 = vld [vmem:[%s0 + $0x40] sm:$0xff]
    %v160 = vld [vmem:[%s0 + $0x48] sm:$0xff]
    %v161 = vld [vmem:[%s0 + $0x50] sm:$0x3]
    %v162 = vld [vmem:[%s0 + $0x58] sm:$0x3]
    %vm175 = vcmask 1046528
    %v176 = vrot.slane %v151, 1
    %v177 = vrot.slane %v153, 1
    %v178 = vsel %vm175, %v176, %v177
    %v179 = vrot.slane %v152, 1
    %v180 = vrot.slane %v154, 1
    %v181 = vsel %vm175, %v179, %v180
    %v182 = vrot.slane %v155, 1
    %v183 = vsel %vm175, %v177, %v182
    %v184 = vrot.slane %v156, 1
    %v185 = vsel %vm175, %v180, %v184
    %v186 = vrot.slane %v157, 1
    %v187 = vrot.slane %v159, 1
    %v188 = vsel %vm175, %v186, %v187
    %v189 = vrot.slane %v158, 1
    %v190 = vrot.slane %v160, 1
    %v191 = vsel %vm175, %v189, %v190
    %v192 = vrot.slane %v161, 1
    %v193 = vsel %vm175, %v187, %v192
    %v194 = vrot.slane %v162, 1
    %v195 = vsel %vm175, %v190, %v194
    %196 = vrot.lane.b32.xlu0 %v178, 64
    %v197 = vpop.permute.xlu0 %196
    %198 = vrot.lane.b32.xlu0 %v181, 64
    %v199 = vpop.permute.xlu0 %198
    %200 = vrot.lane.b32.xlu0 %v183, 64
    %v201 = vpop.permute.xlu0 %200
    %202 = vrot.lane.b32.xlu0 %v185, 64
    %v203 = vpop.permute.xlu0 %202
    %204 = vrot.lane.b32.xlu0 %v188, 64
    %v205 = vpop.permute.xlu0 %204
    %206 = vrot.lane.b32.xlu0 %v191, 64
    %v207 = vpop.permute.xlu0 %206
    %208 = vrot.lane.b32.xlu0 %v193, 64
    %v209 = vpop.permute.xlu0 %208
    %210 = vrot.lane.b32.xlu0 %v195, 64
    %v211 = vpop.permute.xlu0 %210
    %vm212 = vcmask 523264
    %v213 = vsel %vm212, %v197, %v199
    %v214 = vsel %vm212, %v201, %v203
    %v215 = vsel %vm212, %v205, %v207
    %v216 = vsel %vm212, %v209, %v211
    %vm225 = vcmask 1045504
    %v226 = vrot.slane %v151, 2
    %v227 = vrot.slane %v153, 2
    %v228 = vsel %vm225, %v226, %v227
    %v229 = vrot.slane %v152, 2
    %v230 = vrot.slane %v154, 2
    %v231 = vsel %vm225, %v229, %v230
    %v232 = vrot.slane %v155, 2
    %v233 = vsel %vm225, %v227, %v232
    %v234 = vrot.slane %v156, 2
    %v235 = vsel %vm225, %v230, %v234
    %v236 = vrot.slane %v157, 2
    %v237 = vrot.slane %v159, 2
    %v238 = vsel %vm225, %v236, %v237
    %v239 = vrot.slane %v158, 2
    %v240 = vrot.slane %v160, 2
    %v241 = vsel %vm225, %v239, %v240
    %v242 = vrot.slane %v161, 2
    %v243 = vsel %vm225, %v237, %v242
    %v244 = vrot.slane %v162, 2
    %v245 = vsel %vm225, %v240, %v244
    %v254 = vsel %vm212, %v152, %v197
    %v255 = vsel %vm212, %v154, %v201
    %v256 = vsel %vm212, %v158, %v205
    %v257 = vsel %vm212, %v160, %v209
    %v258 = vpack.c.bf16 %v153, %v151
    %v259 = vpack.c.bf16 %v255, %v254
    %v260 = vpack.c.bf16 %v214, %v213
    %v261 = vpack.c.bf16 %v233, %v228
    %v262 = vpack.c.bf16 %v235, %v231
    %v263 = vpack.c.bf16 %v159, %v157
    %v264 = vpack.c.bf16 %v257, %v256
    %v265 = vpack.c.bf16 %v216, %v215
    %v266 = vpack.c.bf16 %v243, %v238
    %v267 = vpack.c.bf16 %v245, %v241
    %v268 = vld [vmem:[#allocation2] sm:$0xff]
    %v269 = vld [vmem:[#allocation2 + $0x8] sm:$0xff]
    %v270 = vld [vmem:[#allocation2 + $0x10] sm:$0xff]
    %v271 = vld [vmem:[#allocation2 + $0x18] sm:$0xff]
    %v272 = vld [vmem:[#allocation2 + $0x20] sm:$0xff]
    %v273 = vld [vmem:[#allocation2 + $0x28] sm:$0xff]
    %v274 = vld [vmem:[#allocation2 + $0x30] sm:$0xff]
    %v275 = vld [vmem:[#allocation2 + $0x38] sm:$0xff]
    %v276 = vld [vmem:[#allocation2 + $0x40] sm:$0xff]
    %v277 = vld [vmem:[#allocation2 + $0x48] sm:$0xff]
    %v278 = vld [vmem:[#allocation2 + $0x50] sm:$0xff]
    %v279 = vld [vmem:[#allocation2 + $0x58] sm:$0xff]
    %v280 = vld [vmem:[#allocation2 + $0x60] sm:$0xff]
    %v281 = vld [vmem:[#allocation2 + $0x68] sm:$0xff]
    %v282 = vld [vmem:[#allocation2 + $0x70] sm:$0xff]
    %v283 = vld [vmem:[#allocation2 + $0x78] sm:$0xff]
    %v284 = vld [vmem:[#allocation2 + $0x80] sm:$0xff]
    %v285 = vld [vmem:[#allocation2 + $0x88] sm:$0xff]
    %v286 = vld [vmem:[#allocation2 + $0x90] sm:$0xff]
    %v287 = vld [vmem:[#allocation2 + $0x98] sm:$0xff]
    %v288 = vld [vmem:[#allocation2 + $0xa0] sm:$0xff]
    %v289 = vld [vmem:[#allocation2 + $0xa8] sm:$0xff]
    %v290 = vld [vmem:[#allocation2 + $0xb0] sm:$0xff]
    %v291 = vld [vmem:[#allocation2 + $0xb8] sm:$0xff]
    %v292 = vld [vmem:[#allocation2 + $0xc0] sm:$0xff]
    %v293 = vld [vmem:[#allocation2 + $0xc8] sm:$0xff]
    %v294 = vld [vmem:[#allocation2 + $0xd0] sm:$0xff]
    %v295 = vld [vmem:[#allocation2 + $0xd8] sm:$0xff]
    %v296 = vld [vmem:[#allocation2 + $0xe0] sm:$0xff]
    %v297 = vld [vmem:[#allocation2 + $0xe8] sm:$0xff]
    %v298 = vld [vmem:[#allocation2 + $0xf0] sm:$0xff]
    %v299 = vld [vmem:[#allocation2 + $0xf8] sm:$0xff]
    %v300 = vld [vmem:[#allocation2 + $0x100] sm:$0xff]
    %v301 = vld [vmem:[#allocation2 + $0x108] sm:$0xff]
    %v302 = vld [vmem:[#allocation2 + $0x110] sm:$0xff]
    %v303 = vld [vmem:[#allocation2 + $0x118] sm:$0xff]
    %v304 = vld [vmem:[#allocation2 + $0x120] sm:$0xff]
    %v305 = vld [vmem:[#allocation2 + $0x128] sm:$0xff]
    %v306 = vld [vmem:[#allocation2 + $0x130] sm:$0xff]
    %v307 = vld [vmem:[#allocation2 + $0x138] sm:$0xff]
    %v308 = vld [vmem:[#allocation2 + $0x140] sm:$0xff]
    %v309 = vld [vmem:[#allocation2 + $0x148] sm:$0xff]
    %v310 = vld [vmem:[#allocation2 + $0x150] sm:$0xff]
    %v311 = vld [vmem:[#allocation2 + $0x158] sm:$0xff]
    %v312 = vld [vmem:[#allocation2 + $0x160] sm:$0xff]
    %v313 = vld [vmem:[#allocation2 + $0x168] sm:$0xff]
    %v314 = vld [vmem:[#allocation2 + $0x170] sm:$0xff]
    %v315 = vld [vmem:[#allocation2 + $0x178] sm:$0xff]
    %v316 = vld [vmem:[#allocation2 + $0x180] sm:$0xff]
    %v317 = vld [vmem:[#allocation2 + $0x188] sm:$0xff]
    %v318 = vld [vmem:[#allocation2 + $0x190] sm:$0xff]
    %v319 = vld [vmem:[#allocation2 + $0x198] sm:$0xff]
    %v320 = vld [vmem:[#allocation2 + $0x1a0] sm:$0xff]
    %v321 = vld [vmem:[#allocation2 + $0x1a8] sm:$0xff]
    %v322 = vld [vmem:[#allocation2 + $0x1b0] sm:$0xff]
    %v323 = vld [vmem:[#allocation2 + $0x1b8] sm:$0xff]
    %v324 = vld [vmem:[#allocation2 + $0x1c0] sm:$0xff]
    %v325 = vld [vmem:[#allocation2 + $0x1c8] sm:$0xff]
    %v326 = vld [vmem:[#allocation2 + $0x1d0] sm:$0xff]
    %v327 = vld [vmem:[#allocation2 + $0x1d8] sm:$0xff]
    %v328 = vld [vmem:[#allocation2 + $0x1e0] sm:$0xff]
    %v329 = vld [vmem:[#allocation2 + $0x1e8] sm:$0xff]
    %v330 = vld [vmem:[#allocation2 + $0x1f0] sm:$0xff]
    %v331 = vld [vmem:[#allocation2 + $0x1f8] sm:$0xff]
    %v332 = vld [vmem:[#allocation2 + $0x200] sm:$0xff]
    %v333 = vld [vmem:[#allocation2 + $0x208] sm:$0xff]
    %v334 = vld [vmem:[#allocation2 + $0x210] sm:$0xff]
    %v335 = vld [vmem:[#allocation2 + $0x218] sm:$0xff]
    %v336 = vld [vmem:[#allocation2 + $0x220] sm:$0xff]
    %v337 = vld [vmem:[#allocation2 + $0x228] sm:$0xff]
    %v338 = vld [vmem:[#allocation2 + $0x230] sm:$0xff]
    %v339 = vld [vmem:[#allocation2 + $0x238] sm:$0xff]
    %v340 = vld [vmem:[#allocation2 + $0x240] sm:$0xff]
    %v341 = vld [vmem:[#allocation2 + $0x248] sm:$0xff]
    %v342 = vld [vmem:[#allocation2 + $0x250] sm:$0xff]
    %v343 = vld [vmem:[#allocation2 + $0x258] sm:$0xff]
    %v344 = vld [vmem:[#allocation2 + $0x260] sm:$0xff]
    %v345 = vld [vmem:[#allocation2 + $0x268] sm:$0xff]
    %v346 = vld [vmem:[#allocation2 + $0x270] sm:$0xff]
    %v347 = vld [vmem:[#allocation2 + $0x278] sm:$0xff]
    %v348 = vld [vmem:[#allocation2 + $0x280] sm:$0xff]
    %v349 = vld [vmem:[#allocation2 + $0x288] sm:$0xff]
    %v350 = vld [vmem:[#allocation2 + $0x290] sm:$0xff]
    %v351 = vld [vmem:[#allocation2 + $0x298] sm:$0xff]
    %v352 = vld [vmem:[#allocation2 + $0x2a0] sm:$0xff]
    %v353 = vld [vmem:[#allocation2 + $0x2a8] sm:$0xff]
    %v354 = vld [vmem:[#allocation2 + $0x2b0] sm:$0xff]
    %v355 = vld [vmem:[#allocation2 + $0x2b8] sm:$0xff]
    %v356 = vld [vmem:[#allocation2 + $0x2c0] sm:$0xff]
    %v357 = vld [vmem:[#allocation2 + $0x2c8] sm:$0xff]
    %v358 = vld [vmem:[#allocation2 + $0x2d0] sm:$0xff]
    %v359 = vld [vmem:[#allocation2 + $0x2d8] sm:$0xff]
    %v360 = vld [vmem:[#allocation2 + $0x2e0] sm:$0xff]
    %v361 = vld [vmem:[#allocation2 + $0x2e8] sm:$0xff]
    %v362 = vld [vmem:[#allocation2 + $0x2f0] sm:$0xff]
    %v363 = vld [vmem:[#allocation2 + $0x2f8] sm:$0xff]
    %v364 = vld [vmem:[#allocation2 + $0x300] sm:$0xff]
    %v365 = vld [vmem:[#allocation2 + $0x308] sm:$0xff]
    %v366 = vld [vmem:[#allocation2 + $0x310] sm:$0xff]
    %v367 = vld [vmem:[#allocation2 + $0x318] sm:$0xff]
    %v368 = vld [vmem:[#allocation2 + $0x320] sm:$0xff]
    %v369 = vld [vmem:[#allocation2 + $0x328] sm:$0xff]
    %v370 = vld [vmem:[#allocation2 + $0x330] sm:$0xff]
    %v371 = vld [vmem:[#allocation2 + $0x338] sm:$0xff]
    %v372 = vld [vmem:[#allocation2 + $0x340] sm:$0xff]
    %v373 = vld [vmem:[#allocation2 + $0x348] sm:$0xff]
    %v374 = vld [vmem:[#allocation2 + $0x350] sm:$0xff]
    %v375 = vld [vmem:[#allocation2 + $0x358] sm:$0xff]
    %v376 = vld [vmem:[#allocation2 + $0x360] sm:$0xff]
    %v377 = vld [vmem:[#allocation2 + $0x368] sm:$0xff]
    %v378 = vld [vmem:[#allocation2 + $0x370] sm:$0xff]
    %v379 = vld [vmem:[#allocation2 + $0x378] sm:$0xff]
    %v380 = vld [vmem:[#allocation2 + $0x380] sm:$0xff]
    %v381 = vld [vmem:[#allocation2 + $0x388] sm:$0xff]
    %v382 = vld [vmem:[#allocation2 + $0x390] sm:$0xff]
    %v383 = vld [vmem:[#allocation2 + $0x398] sm:$0xff]
    %v384 = vld [vmem:[#allocation2 + $0x3a0] sm:$0xff]
    %v385 = vld [vmem:[#allocation2 + $0x3a8] sm:$0xff]
    %v386 = vld [vmem:[#allocation2 + $0x3b0] sm:$0xff]
    %v387 = vld [vmem:[#allocation2 + $0x3b8] sm:$0xff]
    %v388 = vld [vmem:[#allocation2 + $0x3c0] sm:$0xff]
    %v389 = vld [vmem:[#allocation2 + $0x3c8] sm:$0xff]
    %v390 = vld [vmem:[#allocation2 + $0x3d0] sm:$0xff]
    %v391 = vld [vmem:[#allocation2 + $0x3d8] sm:$0xff]
    %v392 = vld [vmem:[#allocation2 + $0x3e0] sm:$0xff]
    %v393 = vld [vmem:[#allocation2 + $0x3e8] sm:$0xff]
    %v394 = vld [vmem:[#allocation2 + $0x3f0] sm:$0xff]
    %v395 = vld [vmem:[#allocation2 + $0x3f8] sm:$0xff]
    %v396 = vld [vmem:[#allocation2 + $0x400] sm:$0xff]
    %v397 = vld [vmem:[#allocation2 + $0x408] sm:$0xff]
    %v398 = vld [vmem:[#allocation2 + $0x410] sm:$0xff]
    %v399 = vld [vmem:[#allocation2 + $0x418] sm:$0xff]
    %v400 = vld [vmem:[#allocation2 + $0x420] sm:$0xff]
    %v401 = vld [vmem:[#allocation2 + $0x428] sm:$0xff]
    %v402 = vld [vmem:[#allocation2 + $0x430] sm:$0xff]
    %v403 = vld [vmem:[#allocation2 + $0x438] sm:$0xff]
    %v404 = vld [vmem:[#allocation2 + $0x440] sm:$0xff]
    %v405 = vld [vmem:[#allocation2 + $0x448] sm:$0xff]
    %v406 = vld [vmem:[#allocation2 + $0x450] sm:$0xff]
    %v407 = vld [vmem:[#allocation2 + $0x458] sm:$0xff]
    %v408 = vld [vmem:[#allocation2 + $0x460] sm:$0xff]
    %v409 = vld [vmem:[#allocation2 + $0x468] sm:$0xff]
    %v410 = vld [vmem:[#allocation2 + $0x470] sm:$0xff]
    %v411 = vld [vmem:[#allocation2 + $0x478] sm:$0xff]
    %v412 = vld [vmem:[#allocation2 + $0x480] sm:$0xff]
    %v413 = vld [vmem:[#allocation2 + $0x488] sm:$0xff]
    %v414 = vld [vmem:[#allocation2 + $0x490] sm:$0xff]
    %v415 = vld [vmem:[#allocation2 + $0x498] sm:$0xff]
    %v416 = vld [vmem:[#allocation2 + $0x4a0] sm:$0xff]
    %v417 = vld [vmem:[#allocation2 + $0x4a8] sm:$0xff]
    %v418 = vld [vmem:[#allocation2 + $0x4b0] sm:$0xff]
    %v419 = vld [vmem:[#allocation2 + $0x4b8] sm:$0xff]
    %v420 = vld [vmem:[#allocation2 + $0x4c0] sm:$0xff]
    %v421 = vld [vmem:[#allocation2 + $0x4c8] sm:$0xff]
    %v422 = vld [vmem:[#allocation2 + $0x4d0] sm:$0xff]
    %v423 = vld [vmem:[#allocation2 + $0x4d8] sm:$0xff]
    %v424 = vld [vmem:[#allocation2 + $0x4e0] sm:$0xff]
    %v425 = vld [vmem:[#allocation2 + $0x4e8] sm:$0xff]
    %v426 = vld [vmem:[#allocation2 + $0x4f0] sm:$0xff]
    %v427 = vld [vmem:[#allocation2 + $0x4f8] sm:$0xff]
    %v428 = vld [vmem:[#allocation2 + $0x500] sm:$0xff]
    %v429 = vld [vmem:[#allocation2 + $0x508] sm:$0xff]
    %v430 = vld [vmem:[#allocation2 + $0x510] sm:$0xff]
    %v431 = vld [vmem:[#allocation2 + $0x518] sm:$0xff]
    %v432 = vld [vmem:[#allocation2 + $0x520] sm:$0xff]
    %v433 = vld [vmem:[#allocation2 + $0x528] sm:$0xff]
    %v434 = vld [vmem:[#allocation2 + $0x530] sm:$0xff]
    %v435 = vld [vmem:[#allocation2 + $0x538] sm:$0xff]
    %v436 = vld [vmem:[#allocation2 + $0x540] sm:$0xff]
    %v437 = vld [vmem:[#allocation2 + $0x548] sm:$0xff]
    %v438 = vld [vmem:[#allocation2 + $0x550] sm:$0xff]
    %v439 = vld [vmem:[#allocation2 + $0x558] sm:$0xff]
    %v440 = vld [vmem:[#allocation2 + $0x560] sm:$0xff]
    %v441 = vld [vmem:[#allocation2 + $0x568] sm:$0xff]
    %v442 = vld [vmem:[#allocation2 + $0x570] sm:$0xff]
    %v443 = vld [vmem:[#allocation2 + $0x578] sm:$0xff]
    %v444 = vld [vmem:[#allocation2 + $0x580] sm:$0xff]
    %v445 = vld [vmem:[#allocation2 + $0x588] sm:$0xff]
    %v446 = vld [vmem:[#allocation2 + $0x590] sm:$0xff]
    %v447 = vld [vmem:[#allocation2 + $0x598] sm:$0xff]
    %v448 = vld [vmem:[#allocation2 + $0x5a0] sm:$0xff]
    %v449 = vld [vmem:[#allocation2 + $0x5a8] sm:$0xff]
    %v450 = vld [vmem:[#allocation2 + $0x5b0] sm:$0xff]
    %v451 = vld [vmem:[#allocation2 + $0x5b8] sm:$0xff]
    %v452 = vld [vmem:[#allocation2 + $0x5c0] sm:$0xff]
    %v453 = vld [vmem:[#allocation2 + $0x5c8] sm:$0xff]
    %v454 = vld [vmem:[#allocation2 + $0x5d0] sm:$0xff]
    %v455 = vld [vmem:[#allocation2 + $0x5d8] sm:$0xff]
    %v456 = vld [vmem:[#allocation2 + $0x5e0] sm:$0xff]
    %v457 = vld [vmem:[#allocation2 + $0x5e8] sm:$0xff]
    %v458 = vld [vmem:[#allocation2 + $0x5f0] sm:$0xff]
    %v459 = vld [vmem:[#allocation2 + $0x5f8] sm:$0xff]
    %v460 = vld [vmem:[#allocation2 + $0x600] sm:$0xff]
    %v461 = vld [vmem:[#allocation2 + $0x608] sm:$0xff]
    %v462 = vld [vmem:[#allocation2 + $0x610] sm:$0xff]
    %v463 = vld [vmem:[#allocation2 + $0x618] sm:$0xff]
    %v464 = vld [vmem:[#allocation2 + $0x620] sm:$0xff]
    %v465 = vld [vmem:[#allocation2 + $0x628] sm:$0xff]
    %v466 = vld [vmem:[#allocation2 + $0x630] sm:$0xff]
    %v467 = vld [vmem:[#allocation2 + $0x638] sm:$0xff]
    %v468 = vld [vmem:[#allocation2 + $0x640] sm:$0xff]
    %v469 = vld [vmem:[#allocation2 + $0x648] sm:$0xff]
    %v470 = vld [vmem:[#allocation2 + $0x650] sm:$0xff]
    %v471 = vld [vmem:[#allocation2 + $0x658] sm:$0xff]
    %v472 = vld [vmem:[#allocation2 + $0x660] sm:$0xff]
    %v473 = vld [vmem:[#allocation2 + $0x668] sm:$0xff]
    %v474 = vld [vmem:[#allocation2 + $0x670] sm:$0xff]
    %v475 = vld [vmem:[#allocation2 + $0x678] sm:$0xff]
    %v476 = vld [vmem:[#allocation2 + $0x680] sm:$0xff]
    %v477 = vld [vmem:[#allocation2 + $0x688] sm:$0xff]
    %v478 = vld [vmem:[#allocation2 + $0x690] sm:$0xff]
    %v479 = vld [vmem:[#allocation2 + $0x698] sm:$0xff]
    %v480 = vld [vmem:[#allocation2 + $0x6a0] sm:$0xff]
    %v481 = vld [vmem:[#allocation2 + $0x6a8] sm:$0xff]
    %v482 = vld [vmem:[#allocation2 + $0x6b0] sm:$0xff]
    %v483 = vld [vmem:[#allocation2 + $0x6b8] sm:$0xff]
    %v484 = vld [vmem:[#allocation2 + $0x6c0] sm:$0xff]
    %v485 = vld [vmem:[#allocation2 + $0x6c8] sm:$0xff]
    %v486 = vld [vmem:[#allocation2 + $0x6d0] sm:$0xff]
    %v487 = vld [vmem:[#allocation2 + $0x6d8] sm:$0xff]
    %v488 = vld [vmem:[#allocation2 + $0x6e0] sm:$0xff]
    %v489 = vld [vmem:[#allocation2 + $0x6e8] sm:$0xff]
    %v490 = vld [vmem:[#allocation2 + $0x6f0] sm:$0xff]
    %v491 = vld [vmem:[#allocation2 + $0x6f8] sm:$0xff]
    %v492 = vld [vmem:[#allocation2 + $0x700] sm:$0xff]
    %v493 = vld [vmem:[#allocation2 + $0x708] sm:$0xff]
    %v494 = vld [vmem:[#allocation2 + $0x710] sm:$0xff]
    %v495 = vld [vmem:[#allocation2 + $0x718] sm:$0xff]
    %v496 = vld [vmem:[#allocation2 + $0x720] sm:$0xff]
    %v497 = vld [vmem:[#allocation2 + $0x728] sm:$0xff]
    %v498 = vld [vmem:[#allocation2 + $0x730] sm:$0xff]
    %v499 = vld [vmem:[#allocation2 + $0x738] sm:$0xff]
    %v500 = vld [vmem:[#allocation2 + $0x740] sm:$0xff]
    %v501 = vld [vmem:[#allocation2 + $0x748] sm:$0xff]
    %v502 = vld [vmem:[#allocation2 + $0x750] sm:$0xff]
    %v503 = vld [vmem:[#allocation2 + $0x758] sm:$0xff]
    %v504 = vld [vmem:[#allocation2 + $0x760] sm:$0xff]
    %v505 = vld [vmem:[#allocation2 + $0x768] sm:$0xff]
    %v506 = vld [vmem:[#allocation2 + $0x770] sm:$0xff]
    %v507 = vld [vmem:[#allocation2 + $0x778] sm:$0xff]
    %v508 = vld [vmem:[#allocation2 + $0x780] sm:$0xff]
    %v509 = vld [vmem:[#allocation2 + $0x788] sm:$0xff]
    %v510 = vld [vmem:[#allocation2 + $0x790] sm:$0xff]
    %v511 = vld [vmem:[#allocation2 + $0x798] sm:$0xff]
    %v512 = vld [vmem:[#allocation2 + $0x7a0] sm:$0xff]
    %v513 = vld [vmem:[#allocation2 + $0x7a8] sm:$0xff]
    %v514 = vld [vmem:[#allocation2 + $0x7b0] sm:$0xff]
    %v515 = vld [vmem:[#allocation2 + $0x7b8] sm:$0xff]
    %v516 = vld [vmem:[#allocation2 + $0x7c0] sm:$0xff]
    %v517 = vld [vmem:[#allocation2 + $0x7c8] sm:$0xff]
    %v518 = vld [vmem:[#allocation2 + $0x7d0] sm:$0xff]
    %v519 = vld [vmem:[#allocation2 + $0x7d8] sm:$0xff]
    %v520 = vld [vmem:[#allocation2 + $0x7e0] sm:$0xff]
    %v521 = vld [vmem:[#allocation2 + $0x7e8] sm:$0xff]
    %v522 = vld [vmem:[#allocation2 + $0x7f0] sm:$0xff]
    %v523 = vld [vmem:[#allocation2 + $0x7f8] sm:$0xff]
    %v524 = vld [vmem:[#allocation2 + $0x800] sm:$0xff]
    %v525 = vld [vmem:[#allocation2 + $0x808] sm:$0xff]
    %v526 = vld [vmem:[#allocation2 + $0x810] sm:$0xff]
    %v527 = vld [vmem:[#allocation2 + $0x818] sm:$0xff]
    %v528 = vld [vmem:[#allocation2 + $0x820] sm:$0xff]
    %v529 = vld [vmem:[#allocation2 + $0x828] sm:$0xff]
    %v530 = vld [vmem:[#allocation2 + $0x830] sm:$0xff]
    %v531 = vld [vmem:[#allocation2 + $0x838] sm:$0xff]
    %v532 = vld [vmem:[#allocation2 + $0x840] sm:$0xff]
    %v533 = vld [vmem:[#allocation2 + $0x848] sm:$0xff]
    %v534 = vld [vmem:[#allocation2 + $0x850] sm:$0xff]
    %v535 = vld [vmem:[#allocation2 + $0x858] sm:$0xff]
    %v536 = vld [vmem:[#allocation2 + $0x860] sm:$0xff]
    %v537 = vld [vmem:[#allocation2 + $0x868] sm:$0xff]
    %v538 = vld [vmem:[#allocation2 + $0x870] sm:$0xff]
    %v539 = vld [vmem:[#allocation2 + $0x878] sm:$0xff]
    %v540 = vld [vmem:[#allocation2 + $0x880] sm:$0xff]
    %v541 = vld [vmem:[#allocation2 + $0x888] sm:$0xff]
    %v542 = vld [vmem:[#allocation2 + $0x890] sm:$0xff]
    %v543 = vld [vmem:[#allocation2 + $0x898] sm:$0xff]
    %v544 = vld [vmem:[#allocation2 + $0x8a0] sm:$0xff]
    %v545 = vld [vmem:[#allocation2 + $0x8a8] sm:$0xff]
    %v546 = vld [vmem:[#allocation2 + $0x8b0] sm:$0xff]
    %v547 = vld [vmem:[#allocation2 + $0x8b8] sm:$0xff]
    %v548 = vld [vmem:[#allocation2 + $0x8c0] sm:$0xff]
    %v549 = vld [vmem:[#allocation2 + $0x8c8] sm:$0xff]
    %v550 = vld [vmem:[#allocation2 + $0x8d0] sm:$0xff]
    %v551 = vld [vmem:[#allocation2 + $0x8d8] sm:$0xff]
    %v552 = vld [vmem:[#allocation2 + $0x8e0] sm:$0xff]
    %v553 = vld [vmem:[#allocation2 + $0x8e8] sm:$0xff]
    %v554 = vld [vmem:[#allocation2 + $0x8f0] sm:$0xff]
    %v555 = vld [vmem:[#allocation2 + $0x8f8] sm:$0xff]
    %v556 = vld [vmem:[#allocation2 + $0x900] sm:$0xff]
    %v557 = vld [vmem:[#allocation2 + $0x908] sm:$0xff]
    %v558 = vld [vmem:[#allocation2 + $0x910] sm:$0xff]
    %v559 = vld [vmem:[#allocation2 + $0x918] sm:$0xff]
    %v560 = vld [vmem:[#allocation2 + $0x920] sm:$0xff]
    %v561 = vld [vmem:[#allocation2 + $0x928] sm:$0xff]
    %v562 = vld [vmem:[#allocation2 + $0x930] sm:$0xff]
    %v563 = vld [vmem:[#allocation2 + $0x938] sm:$0xff]
    %v564 = vld [vmem:[#allocation2 + $0x940] sm:$0xff]
    %v565 = vld [vmem:[#allocation2 + $0x948] sm:$0xff]
    %v566 = vld [vmem:[#allocation2 + $0x950] sm:$0xff]
    %v567 = vld [vmem:[#allocation2 + $0x958] sm:$0xff]
    %v568 = vld [vmem:[#allocation2 + $0x960] sm:$0xff]
    %v569 = vld [vmem:[#allocation2 + $0x968] sm:$0xff]
    %v570 = vld [vmem:[#allocation2 + $0x970] sm:$0xff]
    %v571 = vld [vmem:[#allocation2 + $0x978] sm:$0xff]
    %v572 = vld [vmem:[#allocation2 + $0x980] sm:$0xff]
    %v573 = vld [vmem:[#allocation2 + $0x988] sm:$0xff]
    %v574 = vld [vmem:[#allocation2 + $0x990] sm:$0xff]
    %v575 = vld [vmem:[#allocation2 + $0x998] sm:$0xff]
    %v576 = vld [vmem:[#allocation2 + $0x9a0] sm:$0xff]
    %v577 = vld [vmem:[#allocation2 + $0x9a8] sm:$0xff]
    %v578 = vld [vmem:[#allocation2 + $0x9b0] sm:$0xff]
    %v579 = vld [vmem:[#allocation2 + $0x9b8] sm:$0xff]
    %v580 = vld [vmem:[#allocation2 + $0x9c0] sm:$0xff]
    %v581 = vld [vmem:[#allocation2 + $0x9c8] sm:$0xff]
    %v582 = vld [vmem:[#allocation2 + $0x9d0] sm:$0xff]
    %v583 = vld [vmem:[#allocation2 + $0x9d8] sm:$0xff]
    %v584 = vld [vmem:[#allocation2 + $0x9e0] sm:$0xff]
    %v585 = vld [vmem:[#allocation2 + $0x9e8] sm:$0xff]
    %v586 = vld [vmem:[#allocation2 + $0x9f0] sm:$0xff]
    %v587 = vld [vmem:[#allocation2 + $0x9f8] sm:$0xff]
    %v588 = vld [vmem:[#allocation2 + $0xa00] sm:$0xff]
    %v589 = vld [vmem:[#allocation2 + $0xa08] sm:$0xff]
    %v590 = vld [vmem:[#allocation2 + $0xa10] sm:$0xff]
    %v591 = vld [vmem:[#allocation2 + $0xa18] sm:$0xff]
    %v592 = vld [vmem:[#allocation2 + $0xa20] sm:$0xff]
    %v593 = vld [vmem:[#allocation2 + $0xa28] sm:$0xff]
    %v594 = vld [vmem:[#allocation2 + $0xa30] sm:$0xff]
    %v595 = vld [vmem:[#allocation2 + $0xa38] sm:$0xff]
    %v596 = vld [vmem:[#allocation2 + $0xa40] sm:$0xff]
    %v597 = vld [vmem:[#allocation2 + $0xa48] sm:$0xff]
    %v598 = vld [vmem:[#allocation2 + $0xa50] sm:$0xff]
    %v599 = vld [vmem:[#allocation2 + $0xa58] sm:$0xff]
    %v600 = vld [vmem:[#allocation2 + $0xa60] sm:$0xff]
    %v601 = vld [vmem:[#allocation2 + $0xa68] sm:$0xff]
    %v602 = vld [vmem:[#allocation2 + $0xa70] sm:$0xff]
    %v603 = vld [vmem:[#allocation2 + $0xa78] sm:$0xff]
    %v604 = vld [vmem:[#allocation2 + $0xa80] sm:$0xff]
    %v605 = vld [vmem:[#allocation2 + $0xa88] sm:$0xff]
    %v606 = vld [vmem:[#allocation2 + $0xa90] sm:$0xff]
    %v607 = vld [vmem:[#allocation2 + $0xa98] sm:$0xff]
    %v608 = vld [vmem:[#allocation2 + $0xaa0] sm:$0xff]
    %v609 = vld [vmem:[#allocation2 + $0xaa8] sm:$0xff]
    %v610 = vld [vmem:[#allocation2 + $0xab0] sm:$0xff]
    %v611 = vld [vmem:[#allocation2 + $0xab8] sm:$0xff]
    %v612 = vld [vmem:[#allocation2 + $0xac0] sm:$0xff]
    %v613 = vld [vmem:[#allocation2 + $0xac8] sm:$0xff]
    %v614 = vld [vmem:[#allocation2 + $0xad0] sm:$0xff]
    %v615 = vld [vmem:[#allocation2 + $0xad8] sm:$0xff]
    %v616 = vld [vmem:[#allocation2 + $0xae0] sm:$0xff]
    %v617 = vld [vmem:[#allocation2 + $0xae8] sm:$0xff]
    %v618 = vld [vmem:[#allocation2 + $0xaf0] sm:$0xff]
    %v619 = vld [vmem:[#allocation2 + $0xaf8] sm:$0xff]
    %v620 = vld [vmem:[#allocation2 + $0xb00] sm:$0xff]
    %v621 = vld [vmem:[#allocation2 + $0xb08] sm:$0xff]
    %v622 = vld [vmem:[#allocation2 + $0xb10] sm:$0xff]
    %v623 = vld [vmem:[#allocation2 + $0xb18] sm:$0xff]
    %v624 = vld [vmem:[#allocation2 + $0xb20] sm:$0xff]
    %v625 = vld [vmem:[#allocation2 + $0xb28] sm:$0xff]
    %v626 = vld [vmem:[#allocation2 + $0xb30] sm:$0xff]
    %v627 = vld [vmem:[#allocation2 + $0xb38] sm:$0xff]
    %v628 = vld [vmem:[#allocation2 + $0xb40] sm:$0xff]
    %v629 = vld [vmem:[#allocation2 + $0xb48] sm:$0xff]
    %v630 = vld [vmem:[#allocation2 + $0xb50] sm:$0xff]
    %v631 = vld [vmem:[#allocation2 + $0xb58] sm:$0xff]
    %v632 = vld [vmem:[#allocation2 + $0xb60] sm:$0xff]
    %v633 = vld [vmem:[#allocation2 + $0xb68] sm:$0xff]
    %v634 = vld [vmem:[#allocation2 + $0xb70] sm:$0xff]
    %v635 = vld [vmem:[#allocation2 + $0xb78] sm:$0xff]
    %v636 = vld [vmem:[#allocation2 + $0xb80] sm:$0xff]
    %v637 = vld [vmem:[#allocation2 + $0xb88] sm:$0xff]
    %v638 = vld [vmem:[#allocation2 + $0xb90] sm:$0xff]
    %v639 = vld [vmem:[#allocation2 + $0xb98] sm:$0xff]
    %v640 = vld [vmem:[#allocation2 + $0xba0] sm:$0xff]
    %v641 = vld [vmem:[#allocation2 + $0xba8] sm:$0xff]
    %v642 = vld [vmem:[#allocation2 + $0xbb0] sm:$0xff]
    %v643 = vld [vmem:[#allocation2 + $0xbb8] sm:$0xff]
    %v644 = vld [vmem:[#allocation2 + $0xbc0] sm:$0xff]
    %v645 = vld [vmem:[#allocation2 + $0xbc8] sm:$0xff]
    %v646 = vld [vmem:[#allocation2 + $0xbd0] sm:$0xff]
    %v647 = vld [vmem:[#allocation2 + $0xbd8] sm:$0xff]
    %v648 = vld [vmem:[#allocation2 + $0xbe0] sm:$0xff]
    %v649 = vld [vmem:[#allocation2 + $0xbe8] sm:$0xff]
    %v650 = vld [vmem:[#allocation2 + $0xbf0] sm:$0xff]
    %v651 = vld [vmem:[#allocation2 + $0xbf8] sm:$0xff]
    %v652 = vld [vmem:[#allocation2 + $0xc00] sm:$0xff]
    %v653 = vld [vmem:[#allocation2 + $0xc08] sm:$0xff]
    %v654 = vld [vmem:[#allocation2 + $0xc10] sm:$0xff]
    %v655 = vld [vmem:[#allocation2 + $0xc18] sm:$0xff]
    %v656 = vld [vmem:[#allocation2 + $0xc20] sm:$0xff]
    %v657 = vld [vmem:[#allocation2 + $0xc28] sm:$0xff]
    %v658 = vld [vmem:[#allocation2 + $0xc30] sm:$0xff]
    %v659 = vld [vmem:[#allocation2 + $0xc38] sm:$0xff]
    %v660 = vld [vmem:[#allocation2 + $0xc40] sm:$0xff]
    %v661 = vld [vmem:[#allocation2 + $0xc48] sm:$0xff]
    %v662 = vld [vmem:[#allocation2 + $0xc50] sm:$0xff]
    %v663 = vld [vmem:[#allocation2 + $0xc58] sm:$0xff]
    %v664 = vld [vmem:[#allocation2 + $0xc60] sm:$0xff]
    %v665 = vld [vmem:[#allocation2 + $0xc68] sm:$0xff]
    %v666 = vld [vmem:[#allocation2 + $0xc70] sm:$0xff]
    %v667 = vld [vmem:[#allocation2 + $0xc78] sm:$0xff]
    %v668 = vld [vmem:[#allocation2 + $0xc80] sm:$0xff]
    %v669 = vld [vmem:[#allocation2 + $0xc88] sm:$0xff]
    %v670 = vld [vmem:[#allocation2 + $0xc90] sm:$0xff]
    %v671 = vld [vmem:[#allocation2 + $0xc98] sm:$0xff]
    %v672 = vld [vmem:[#allocation2 + $0xca0] sm:$0xff]
    %v673 = vld [vmem:[#allocation2 + $0xca8] sm:$0xff]
    %v674 = vld [vmem:[#allocation2 + $0xcb0] sm:$0xff]
    %v675 = vld [vmem:[#allocation2 + $0xcb8] sm:$0xff]
    %v676 = vld [vmem:[#allocation2 + $0xcc0] sm:$0xff]
    %v677 = vld [vmem:[#allocation2 + $0xcc8] sm:$0xff]
    %v678 = vld [vmem:[#allocation2 + $0xcd0] sm:$0xff]
    %v679 = vld [vmem:[#allocation2 + $0xcd8] sm:$0xff]
    %v680 = vld [vmem:[#allocation2 + $0xce0] sm:$0xff]
    %v681 = vld [vmem:[#allocation2 + $0xce8] sm:$0xff]
    %v682 = vld [vmem:[#allocation2 + $0xcf0] sm:$0xff]
    %v683 = vld [vmem:[#allocation2 + $0xcf8] sm:$0xff]
    %v684 = vld [vmem:[#allocation2 + $0xd00] sm:$0xff]
    %v685 = vld [vmem:[#allocation2 + $0xd08] sm:$0xff]
    %v686 = vld [vmem:[#allocation2 + $0xd10] sm:$0xff]
    %v687 = vld [vmem:[#allocation2 + $0xd18] sm:$0xff]
    %v688 = vld [vmem:[#allocation2 + $0xd20] sm:$0xff]
    %v689 = vld [vmem:[#allocation2 + $0xd28] sm:$0xff]
    %v690 = vld [vmem:[#allocation2 + $0xd30] sm:$0xff]
    %v691 = vld [vmem:[#allocation2 + $0xd38] sm:$0xff]
    %v692 = vld [vmem:[#allocation2 + $0xd40] sm:$0xff]
    %v693 = vld [vmem:[#allocation2 + $0xd48] sm:$0xff]
    %v694 = vld [vmem:[#allocation2 + $0xd50] sm:$0xff]
    %v695 = vld [vmem:[#allocation2 + $0xd58] sm:$0xff]
    %v696 = vld [vmem:[#allocation2 + $0xd60] sm:$0xff]
    %v697 = vld [vmem:[#allocation2 + $0xd68] sm:$0xff]
    %v698 = vld [vmem:[#allocation2 + $0xd70] sm:$0xff]
    %v699 = vld [vmem:[#allocation2 + $0xd78] sm:$0xff]
    %v700 = vld [vmem:[#allocation2 + $0xd80] sm:$0xff]
    %v701 = vld [vmem:[#allocation2 + $0xd88] sm:$0xff]
    %v702 = vld [vmem:[#allocation2 + $0xd90] sm:$0xff]
    %v703 = vld [vmem:[#allocation2 + $0xd98] sm:$0xff]
    %v704 = vld [vmem:[#allocation2 + $0xda0] sm:$0xff]
    %v705 = vld [vmem:[#allocation2 + $0xda8] sm:$0xff]
    %v706 = vld [vmem:[#allocation2 + $0xdb0] sm:$0xff]
    %v707 = vld [vmem:[#allocation2 + $0xdb8] sm:$0xff]
    %v708 = vld [vmem:[#allocation2 + $0xdc0] sm:$0xff]
    %v709 = vld [vmem:[#allocation2 + $0xdc8] sm:$0xff]
    %v710 = vld [vmem:[#allocation2 + $0xdd0] sm:$0xff]
    %v711 = vld [vmem:[#allocation2 + $0xdd8] sm:$0xff]
    %v712 = vld [vmem:[#allocation2 + $0xde0] sm:$0xff]
    %v713 = vld [vmem:[#allocation2 + $0xde8] sm:$0xff]
    %v714 = vld [vmem:[#allocation2 + $0xdf0] sm:$0xff]
    %v715 = vld [vmem:[#allocation2 + $0xdf8] sm:$0xff]
    %v716 = vld [vmem:[#allocation2 + $0xe00] sm:$0xff]
    %v717 = vld [vmem:[#allocation2 + $0xe08] sm:$0xff]
    %v718 = vld [vmem:[#allocation2 + $0xe10] sm:$0xff]
    %v719 = vld [vmem:[#allocation2 + $0xe18] sm:$0xff]
    %v720 = vld [vmem:[#allocation2 + $0xe20] sm:$0xff]
    %v721 = vld [vmem:[#allocation2 + $0xe28] sm:$0xff]
    %v722 = vld [vmem:[#allocation2 + $0xe30] sm:$0xff]
    %v723 = vld [vmem:[#allocation2 + $0xe38] sm:$0xff]
    %v724 = vld [vmem:[#allocation2 + $0xe40] sm:$0xff]
    %v725 = vld [vmem:[#allocation2 + $0xe48] sm:$0xff]
    %v726 = vld [vmem:[#allocation2 + $0xe50] sm:$0xff]
    %v727 = vld [vmem:[#allocation2 + $0xe58] sm:$0xff]
    %v728 = vld [vmem:[#allocation2 + $0xe60] sm:$0xff]
    %v729 = vld [vmem:[#allocation2 + $0xe68] sm:$0xff]
    %v730 = vld [vmem:[#allocation2 + $0xe70] sm:$0xff]
    %v731 = vld [vmem:[#allocation2 + $0xe78] sm:$0xff]
    %v732 = vld [vmem:[#allocation2 + $0xe80] sm:$0xff]
    %v733 = vld [vmem:[#allocation2 + $0xe88] sm:$0xff]
    %v734 = vld [vmem:[#allocation2 + $0xe90] sm:$0xff]
    %v735 = vld [vmem:[#allocation2 + $0xe98] sm:$0xff]
    %v736 = vld [vmem:[#allocation2 + $0xea0] sm:$0xff]
    %v737 = vld [vmem:[#allocation2 + $0xea8] sm:$0xff]
    %v738 = vld [vmem:[#allocation2 + $0xeb0] sm:$0xff]
    %v739 = vld [vmem:[#allocation2 + $0xeb8] sm:$0xff]
    %v740 = vld [vmem:[#allocation2 + $0xec0] sm:$0xff]
    %v741 = vld [vmem:[#allocation2 + $0xec8] sm:$0xff]
    %v742 = vld [vmem:[#allocation2 + $0xed0] sm:$0xff]
    %v743 = vld [vmem:[#allocation2 + $0xed8] sm:$0xff]
    %v744 = vld [vmem:[#allocation2 + $0xee0] sm:$0xff]
    %v745 = vld [vmem:[#allocation2 + $0xee8] sm:$0xff]
    %v746 = vld [vmem:[#allocation2 + $0xef0] sm:$0xff]
    %v747 = vld [vmem:[#allocation2 + $0xef8] sm:$0xff]
    %v748 = vld [vmem:[#allocation2 + $0xf00] sm:$0xff]
    %v749 = vld [vmem:[#allocation2 + $0xf08] sm:$0xff]
    %v750 = vld [vmem:[#allocation2 + $0xf10] sm:$0xff]
    %v751 = vld [vmem:[#allocation2 + $0xf18] sm:$0xff]
    %v752 = vld [vmem:[#allocation2 + $0xf20] sm:$0xff]
    %v753 = vld [vmem:[#allocation2 + $0xf28] sm:$0xff]
    %v754 = vld [vmem:[#allocation2 + $0xf30] sm:$0xff]
    %v755 = vld [vmem:[#allocation2 + $0xf38] sm:$0xff]
    %v756 = vld [vmem:[#allocation2 + $0xf40] sm:$0xff]
    %v757 = vld [vmem:[#allocation2 + $0xf48] sm:$0xff]
    %v758 = vld [vmem:[#allocation2 + $0xf50] sm:$0xff]
    %v759 = vld [vmem:[#allocation2 + $0xf58] sm:$0xff]
    %v760 = vld [vmem:[#allocation2 + $0xf60] sm:$0xff]
    %v761 = vld [vmem:[#allocation2 + $0xf68] sm:$0xff]
    %v762 = vld [vmem:[#allocation2 + $0xf70] sm:$0xff]
    %v763 = vld [vmem:[#allocation2 + $0xf78] sm:$0xff]
    %v764 = vld [vmem:[#allocation2 + $0xf80] sm:$0xff]
    %v765 = vld [vmem:[#allocation2 + $0xf88] sm:$0xff]
    %v766 = vld [vmem:[#allocation2 + $0xf90] sm:$0xff]
    %v767 = vld [vmem:[#allocation2 + $0xf98] sm:$0xff]
    %v768 = vld [vmem:[#allocation2 + $0xfa0] sm:$0xff]
    %v769 = vld [vmem:[#allocation2 + $0xfa8] sm:$0xff]
    %v770 = vld [vmem:[#allocation2 + $0xfb0] sm:$0xff]
    %v771 = vld [vmem:[#allocation2 + $0xfb8] sm:$0xff]
    %v1276 = vunpack.c.l.b16 %v268
    %v1277 = vunpack.c.h.b16 %v268
    %v1278 = vunpack.c.l.b16 %v269
    %v1279 = vunpack.c.h.b16 %v269
    %v1280 = vunpack.c.l.b16 %v270
    %v1281 = vunpack.c.h.b16 %v270
    %v1282 = vunpack.c.l.b16 %v271
    %v1283 = vunpack.c.h.b16 %v271
    %v1284 = vunpack.c.l.b16 %v272
    %v1285 = vunpack.c.h.b16 %v272
    %v1286 = vunpack.c.l.b16 %v273
    %v1287 = vunpack.c.h.b16 %v273
    %v1288 = vunpack.c.l.b16 %v274
    %v1289 = vunpack.c.h.b16 %v274
    %v1290 = vunpack.c.l.b16 %v275
    %v1291 = vunpack.c.h.b16 %v275
    %v1292 = vunpack.c.l.b16 %v276
    %v1293 = vunpack.c.h.b16 %v276
    %v1294 = vunpack.c.l.b16 %v277
    %v1295 = vunpack.c.h.b16 %v277
    %v1296 = vunpack.c.l.b16 %v278
    %v1297 = vunpack.c.h.b16 %v278
    %v1298 = vunpack.c.l.b16 %v279
    %v1299 = vunpack.c.h.b16 %v279
    %v1300 = vunpack.c.l.b16 %v280
    %v1301 = vunpack.c.h.b16 %v280
    %v1302 = vunpack.c.l.b16 %v281
    %v1303 = vunpack.c.h.b16 %v281
    %v1304 = vunpack.c.l.b16 %v282
    %v1305 = vunpack.c.h.b16 %v282
    %v1306 = vunpack.c.l.b16 %v283
    %v1307 = vunpack.c.h.b16 %v283
    %v1308 = vunpack.c.l.b16 %v284
    %v1309 = vunpack.c.h.b16 %v284
    %v1310 = vunpack.c.l.b16 %v285
    %v1311 = vunpack.c.h.b16 %v285
    %v1312 = vunpack.c.l.b16 %v286
    %v1313 = vunpack.c.h.b16 %v286
    %v1314 = vunpack.c.l.b16 %v287
    %v1315 = vunpack.c.h.b16 %v287
    %v1316 = vunpack.c.l.b16 %v288
    %v1317 = vunpack.c.h.b16 %v288
    %v1318 = vunpack.c.l.b16 %v289
    %v1319 = vunpack.c.h.b16 %v289
    %v1320 = vunpack.c.l.b16 %v290
    %v1321 = vunpack.c.h.b16 %v290
    %v1322 = vunpack.c.l.b16 %v291
    %v1323 = vunpack.c.h.b16 %v291
    %v1324 = vunpack.c.l.b16 %v292
    %v1325 = vunpack.c.h.b16 %v292
    %v1326 = vunpack.c.l.b16 %v293
    %v1327 = vunpack.c.h.b16 %v293
    %v1328 = vunpack.c.l.b16 %v294
    %v1329 = vunpack.c.h.b16 %v294
    %v1330 = vunpack.c.l.b16 %v295
    %v1331 = vunpack.c.h.b16 %v295
    %v1332 = vunpack.c.l.b16 %v296
    %v1333 = vunpack.c.h.b16 %v296
    %v1334 = vunpack.c.l.b16 %v297
    %v1335 = vunpack.c.h.b16 %v297
    %v1336 = vunpack.c.l.b16 %v298
    %v1337 = vunpack.c.h.b16 %v298
    %v1338 = vunpack.c.l.b16 %v299
    %v1339 = vunpack.c.h.b16 %v299
    %v1340 = vunpack.c.l.b16 %v300
    %v1341 = vunpack.c.h.b16 %v300
    %v1342 = vunpack.c.l.b16 %v301
    %v1343 = vunpack.c.h.b16 %v301
    %v1344 = vunpack.c.l.b16 %v302
    %v1345 = vunpack.c.h.b16 %v302
    %v1346 = vunpack.c.l.b16 %v303
    %v1347 = vunpack.c.h.b16 %v303
    %v1348 = vunpack.c.l.b16 %v304
    %v1349 = vunpack.c.h.b16 %v304
    %v1350 = vunpack.c.l.b16 %v305
    %v1351 = vunpack.c.h.b16 %v305
    %v1352 = vunpack.c.l.b16 %v306
    %v1353 = vunpack.c.h.b16 %v306
    %v1354 = vunpack.c.l.b16 %v307
    %v1355 = vunpack.c.h.b16 %v307
    %v1356 = vunpack.c.l.b16 %v308
    %v1357 = vunpack.c.h.b16 %v308
    %v1358 = vunpack.c.l.b16 %v309
    %v1359 = vunpack.c.h.b16 %v309
    %v1360 = vunpack.c.l.b16 %v310
    %v1361 = vunpack.c.h.b16 %v310
    %v1362 = vunpack.c.l.b16 %v311
    %v1363 = vunpack.c.h.b16 %v311
    %v1364 = vunpack.c.l.b16 %v312
    %v1365 = vunpack.c.h.b16 %v312
    %v1366 = vunpack.c.l.b16 %v313
    %v1367 = vunpack.c.h.b16 %v313
    %v1368 = vunpack.c.l.b16 %v314
    %v1369 = vunpack.c.h.b16 %v314
    %v1370 = vunpack.c.l.b16 %v315
    %v1371 = vunpack.c.h.b16 %v315
    %v1372 = vunpack.c.l.b16 %v316
    %v1373 = vunpack.c.h.b16 %v316
    %v1374 = vunpack.c.l.b16 %v317
    %v1375 = vunpack.c.h.b16 %v317
    %v1376 = vunpack.c.l.b16 %v318
    %v1377 = vunpack.c.h.b16 %v318
    %v1378 = vunpack.c.l.b16 %v319
    %v1379 = vunpack.c.h.b16 %v319
    %v1380 = vunpack.c.l.b16 %v320
    %v1381 = vunpack.c.h.b16 %v320
    %v1382 = vunpack.c.l.b16 %v321
    %v1383 = vunpack.c.h.b16 %v321
    %v1384 = vunpack.c.l.b16 %v322
    %v1385 = vunpack.c.h.b16 %v322
    %v1386 = vunpack.c.l.b16 %v323
    %v1387 = vunpack.c.h.b16 %v323
    %v1388 = vunpack.c.l.b16 %v324
    %v1389 = vunpack.c.h.b16 %v324
    %v1390 = vunpack.c.l.b16 %v325
    %v1391 = vunpack.c.h.b16 %v325
    %v1392 = vunpack.c.l.b16 %v326
    %v1393 = vunpack.c.h.b16 %v326
    %v1394 = vunpack.c.l.b16 %v327
    %v1395 = vunpack.c.h.b16 %v327
    %v1396 = vunpack.c.l.b16 %v328
    %v1397 = vunpack.c.h.b16 %v328
    %v1398 = vunpack.c.l.b16 %v329
    %v1399 = vunpack.c.h.b16 %v329
    %v1400 = vunpack.c.l.b16 %v330
    %v1401 = vunpack.c.h.b16 %v330
    %v1402 = vunpack.c.l.b16 %v331
    %v1403 = vunpack.c.h.b16 %v331
    %v1404 = vunpack.c.l.b16 %v332
    %v1405 = vunpack.c.h.b16 %v332
    %v1406 = vunpack.c.l.b16 %v333
    %v1407 = vunpack.c.h.b16 %v333
    %v1408 = vunpack.c.l.b16 %v334
    %v1409 = vunpack.c.h.b16 %v334
    %v1410 = vunpack.c.l.b16 %v335
    %v1411 = vunpack.c.h.b16 %v335
    %v1412 = vunpack.c.l.b16 %v336
    %v1413 = vunpack.c.h.b16 %v336
    %v1414 = vunpack.c.l.b16 %v337
    %v1415 = vunpack.c.h.b16 %v337
    %v1416 = vunpack.c.l.b16 %v338
    %v1417 = vunpack.c.h.b16 %v338
    %v1418 = vunpack.c.l.b16 %v339
    %v1419 = vunpack.c.h.b16 %v339
    %v1420 = vunpack.c.l.b16 %v340
    %v1421 = vunpack.c.h.b16 %v340
    %v1422 = vunpack.c.l.b16 %v341
    %v1423 = vunpack.c.h.b16 %v341
    %v1424 = vunpack.c.l.b16 %v342
    %v1425 = vunpack.c.h.b16 %v342
    %v1426 = vunpack.c.l.b16 %v343
    %v1427 = vunpack.c.h.b16 %v343
    %v1428 = vunpack.c.l.b16 %v344
    %v1429 = vunpack.c.h.b16 %v344
    %v1430 = vunpack.c.l.b16 %v345
    %v1431 = vunpack.c.h.b16 %v345
    %v1432 = vunpack.c.l.b16 %v346
    %v1433 = vunpack.c.h.b16 %v346
    %v1434 = vunpack.c.l.b16 %v347
    %v1435 = vunpack.c.h.b16 %v347
    %v1436 = vunpack.c.l.b16 %v348
    %v1437 = vunpack.c.h.b16 %v348
    %v1438 = vunpack.c.l.b16 %v349
    %v1439 = vunpack.c.h.b16 %v349
    %v1440 = vunpack.c.l.b16 %v350
    %v1441 = vunpack.c.h.b16 %v350
    %v1442 = vunpack.c.l.b16 %v351
    %v1443 = vunpack.c.h.b16 %v351
    %v1444 = vunpack.c.l.b16 %v352
    %v1445 = vunpack.c.h.b16 %v352
    %v1446 = vunpack.c.l.b16 %v353
    %v1447 = vunpack.c.h.b16 %v353
    %v1448 = vunpack.c.l.b16 %v354
    %v1449 = vunpack.c.h.b16 %v354
    %v1450 = vunpack.c.l.b16 %v355
    %v1451 = vunpack.c.h.b16 %v355
    %v1452 = vunpack.c.l.b16 %v356
    %v1453 = vunpack.c.h.b16 %v356
    %v1454 = vunpack.c.l.b16 %v357
    %v1455 = vunpack.c.h.b16 %v357
    %v1456 = vunpack.c.l.b16 %v358
    %v1457 = vunpack.c.h.b16 %v358
    %v1458 = vunpack.c.l.b16 %v359
    %v1459 = vunpack.c.h.b16 %v359
    %v1460 = vunpack.c.l.b16 %v360
    %v1461 = vunpack.c.h.b16 %v360
    %v1462 = vunpack.c.l.b16 %v361
    %v1463 = vunpack.c.h.b16 %v361
    %v1464 = vunpack.c.l.b16 %v362
    %v1465 = vunpack.c.h.b16 %v362
    %v1466 = vunpack.c.l.b16 %v363
    %v1467 = vunpack.c.h.b16 %v363
    %v1468 = vunpack.c.l.b16 %v364
    %v1469 = vunpack.c.h.b16 %v364
    %v1470 = vunpack.c.l.b16 %v365
    %v1471 = vunpack.c.h.b16 %v365
    %v1472 = vunpack.c.l.b16 %v366
    %v1473 = vunpack.c.h.b16 %v366
    %v1474 = vunpack.c.l.b16 %v367
    %v1475 = vunpack.c.h.b16 %v367
    %v1476 = vunpack.c.l.b16 %v368
    %v1477 = vunpack.c.h.b16 %v368
    %v1478 = vunpack.c.l.b16 %v369
    %v1479 = vunpack.c.h.b16 %v369
    %v1480 = vunpack.c.l.b16 %v370
    %v1481 = vunpack.c.h.b16 %v370
    %v1482 = vunpack.c.l.b16 %v371
    %v1483 = vunpack.c.h.b16 %v371
    %v1484 = vunpack.c.l.b16 %v372
    %v1485 = vunpack.c.h.b16 %v372
    %v1486 = vunpack.c.l.b16 %v373
    %v1487 = vunpack.c.h.b16 %v373
    %v1488 = vunpack.c.l.b16 %v374
    %v1489 = vunpack.c.h.b16 %v374
    %v1490 = vunpack.c.l.b16 %v375
    %v1491 = vunpack.c.h.b16 %v375
    %v1492 = vunpack.c.l.b16 %v376
    %v1493 = vunpack.c.h.b16 %v376
    %v1494 = vunpack.c.l.b16 %v377
    %v1495 = vunpack.c.h.b16 %v377
    %v1496 = vunpack.c.l.b16 %v378
    %v1497 = vunpack.c.h.b16 %v378
    %v1498 = vunpack.c.l.b16 %v379
    %v1499 = vunpack.c.h.b16 %v379
    %v1500 = vunpack.c.l.b16 %v380
    %v1501 = vunpack.c.h.b16 %v380
    %v1502 = vunpack.c.l.b16 %v381
    %v1503 = vunpack.c.h.b16 %v381
    %v1504 = vunpack.c.l.b16 %v382
    %v1505 = vunpack.c.h.b16 %v382
    %v1506 = vunpack.c.l.b16 %v383
    %v1507 = vunpack.c.h.b16 %v383
    %v1508 = vunpack.c.l.b16 %v384
    %v1509 = vunpack.c.h.b16 %v384
    %v1510 = vunpack.c.l.b16 %v385
    %v1511 = vunpack.c.h.b16 %v385
    %v1512 = vunpack.c.l.b16 %v386
    %v1513 = vunpack.c.h.b16 %v386
    %v1514 = vunpack.c.l.b16 %v387
    %v1515 = vunpack.c.h.b16 %v387
    %v1516 = vunpack.c.l.b16 %v388
    %v1517 = vunpack.c.h.b16 %v388
    %v1518 = vunpack.c.l.b16 %v389
    %v1519 = vunpack.c.h.b16 %v389
    %v1520 = vunpack.c.l.b16 %v390
    %v1521 = vunpack.c.h.b16 %v390
    %v1522 = vunpack.c.l.b16 %v391
    %v1523 = vunpack.c.h.b16 %v391
    %v1524 = vunpack.c.l.b16 %v392
    %v1525 = vunpack.c.h.b16 %v392
    %v1526 = vunpack.c.l.b16 %v393
    %v1527 = vunpack.c.h.b16 %v393
    %v1528 = vunpack.c.l.b16 %v394
    %v1529 = vunpack.c.h.b16 %v394
    %v1530 = vunpack.c.l.b16 %v395
    %v1531 = vunpack.c.h.b16 %v395
    %v1532 = vunpack.c.l.b16 %v396
    %v1533 = vunpack.c.h.b16 %v396
    %v1534 = vunpack.c.l.b16 %v397
    %v1535 = vunpack.c.h.b16 %v397
    %v1536 = vunpack.c.l.b16 %v398
    %v1537 = vunpack.c.h.b16 %v398
    %v1538 = vunpack.c.l.b16 %v399
    %v1539 = vunpack.c.h.b16 %v399
    %v1540 = vunpack.c.l.b16 %v400
    %v1541 = vunpack.c.h.b16 %v400
    %v1542 = vunpack.c.l.b16 %v401
    %v1543 = vunpack.c.h.b16 %v401
    %v1544 = vunpack.c.l.b16 %v402
    %v1545 = vunpack.c.h.b16 %v402
    %v1546 = vunpack.c.l.b16 %v403
    %v1547 = vunpack.c.h.b16 %v403
    %v1548 = vunpack.c.l.b16 %v404
    %v1549 = vunpack.c.h.b16 %v404
    %v1550 = vunpack.c.l.b16 %v405
    %v1551 = vunpack.c.h.b16 %v405
    %v1552 = vunpack.c.l.b16 %v406
    %v1553 = vunpack.c.h.b16 %v406
    %v1554 = vunpack.c.l.b16 %v407
    %v1555 = vunpack.c.h.b16 %v407
    %v1556 = vunpack.c.l.b16 %v408
    %v1557 = vunpack.c.h.b16 %v408
    %v1558 = vunpack.c.l.b16 %v409
    %v1559 = vunpack.c.h.b16 %v409
    %v1560 = vunpack.c.l.b16 %v410
    %v1561 = vunpack.c.h.b16 %v410
    %v1562 = vunpack.c.l.b16 %v411
    %v1563 = vunpack.c.h.b16 %v411
    %v1564 = vunpack.c.l.b16 %v412
    %v1565 = vunpack.c.h.b16 %v412
    %v1566 = vunpack.c.l.b16 %v413
    %v1567 = vunpack.c.h.b16 %v413
    %v1568 = vunpack.c.l.b16 %v414
    %v1569 = vunpack.c.h.b16 %v414
    %v1570 = vunpack.c.l.b16 %v415
    %v1571 = vunpack.c.h.b16 %v415
    %v1572 = vunpack.c.l.b16 %v416
    %v1573 = vunpack.c.h.b16 %v416
    %v1574 = vunpack.c.l.b16 %v417
    %v1575 = vunpack.c.h.b16 %v417
    %v1576 = vunpack.c.l.b16 %v418
    %v1577 = vunpack.c.h.b16 %v418
    %v1578 = vunpack.c.l.b16 %v419
    %v1579 = vunpack.c.h.b16 %v419
    %v1580 = vunpack.c.l.b16 %v420
    %v1581 = vunpack.c.h.b16 %v420
    %v1582 = vunpack.c.l.b16 %v421
    %v1583 = vunpack.c.h.b16 %v421
    %v1584 = vunpack.c.l.b16 %v422
    %v1585 = vunpack.c.h.b16 %v422
    %v1586 = vunpack.c.l.b16 %v423
    %v1587 = vunpack.c.h.b16 %v423
    %v1588 = vunpack.c.l.b16 %v424
    %v1589 = vunpack.c.h.b16 %v424
    %v1590 = vunpack.c.l.b16 %v425
    %v1591 = vunpack.c.h.b16 %v425
    %v1592 = vunpack.c.l.b16 %v426
    %v1593 = vunpack.c.h.b16 %v426
    %v1594 = vunpack.c.l.b16 %v427
    %v1595 = vunpack.c.h.b16 %v427
    %v1596 = vunpack.c.l.b16 %v428
    %v1597 = vunpack.c.h.b16 %v428
    %v1598 = vunpack.c.l.b16 %v429
    %v1599 = vunpack.c.h.b16 %v429
    %v1600 = vunpack.c.l.b16 %v430
    %v1601 = vunpack.c.h.b16 %v430
    %v1602 = vunpack.c.l.b16 %v431
    %v1603 = vunpack.c.h.b16 %v431
    %v1604 = vunpack.c.l.b16 %v432
    %v1605 = vunpack.c.h.b16 %v432
    %v1606 = vunpack.c.l.b16 %v433
    %v1607 = vunpack.c.h.b16 %v433
    %v1608 = vunpack.c.l.b16 %v434
    %v1609 = vunpack.c.h.b16 %v434
    %v1610 = vunpack.c.l.b16 %v435
    %v1611 = vunpack.c.h.b16 %v435
    %v1612 = vunpack.c.l.b16 %v436
    %v1613 = vunpack.c.h.b16 %v436
    %v1614 = vunpack.c.l.b16 %v437
    %v1615 = vunpack.c.h.b16 %v437
    %v1616 = vunpack.c.l.b16 %v438
    %v1617 = vunpack.c.h.b16 %v438
    %v1618 = vunpack.c.l.b16 %v439
    %v1619 = vunpack.c.h.b16 %v439
    %v1620 = vunpack.c.l.b16 %v440
    %v1621 = vunpack.c.h.b16 %v440
    %v1622 = vunpack.c.l.b16 %v441
    %v1623 = vunpack.c.h.b16 %v441
    %v1624 = vunpack.c.l.b16 %v442
    %v1625 = vunpack.c.h.b16 %v442
    %v1626 = vunpack.c.l.b16 %v443
    %v1627 = vunpack.c.h.b16 %v443
    %v1628 = vunpack.c.l.b16 %v444
    %v1629 = vunpack.c.h.b16 %v444
    %v1630 = vunpack.c.l.b16 %v445
    %v1631 = vunpack.c.h.b16 %v445
    %v1632 = vunpack.c.l.b16 %v446
    %v1633 = vunpack.c.h.b16 %v446
    %v1634 = vunpack.c.l.b16 %v447
    %v1635 = vunpack.c.h.b16 %v447
    %v1636 = vunpack.c.l.b16 %v448
    %v1637 = vunpack.c.h.b16 %v448
    %v1638 = vunpack.c.l.b16 %v449
    %v1639 = vunpack.c.h.b16 %v449
    %v1640 = vunpack.c.l.b16 %v450
    %v1641 = vunpack.c.h.b16 %v450
    %v1642 = vunpack.c.l.b16 %v451
    %v1643 = vunpack.c.h.b16 %v451
    %v1644 = vunpack.c.l.b16 %v452
    %v1645 = vunpack.c.h.b16 %v452
    %v1646 = vunpack.c.l.b16 %v453
    %v1647 = vunpack.c.h.b16 %v453
    %v1648 = vunpack.c.l.b16 %v454
    %v1649 = vunpack.c.h.b16 %v454
    %v1650 = vunpack.c.l.b16 %v455
    %v1651 = vunpack.c.h.b16 %v455
    %v1652 = vunpack.c.l.b16 %v456
    %v1653 = vunpack.c.h.b16 %v456
    %v1654 = vunpack.c.l.b16 %v457
    %v1655 = vunpack.c.h.b16 %v457
    %v1656 = vunpack.c.l.b16 %v458
    %v1657 = vunpack.c.h.b16 %v458
    %v1658 = vunpack.c.l.b16 %v459
    %v1659 = vunpack.c.h.b16 %v459
    %v1660 = vunpack.c.l.b16 %v460
    %v1661 = vunpack.c.h.b16 %v460
    %v1662 = vunpack.c.l.b16 %v461
    %v1663 = vunpack.c.h.b16 %v461
    %v1664 = vunpack.c.l.b16 %v462
    %v1665 = vunpack.c.h.b16 %v462
    %v1666 = vunpack.c.l.b16 %v463
    %v1667 = vunpack.c.h.b16 %v463
    %v1668 = vunpack.c.l.b16 %v464
    %v1669 = vunpack.c.h.b16 %v464
    %v1670 = vunpack.c.l.b16 %v465
    %v1671 = vunpack.c.h.b16 %v465
    %v1672 = vunpack.c.l.b16 %v466
    %v1673 = vunpack.c.h.b16 %v466
    %v1674 = vunpack.c.l.b16 %v467
    %v1675 = vunpack.c.h.b16 %v467
    %v1676 = vunpack.c.l.b16 %v468
    %v1677 = vunpack.c.h.b16 %v468
    %v1678 = vunpack.c.l.b16 %v469
    %v1679 = vunpack.c.h.b16 %v469
    %v1680 = vunpack.c.l.b16 %v470
    %v1681 = vunpack.c.h.b16 %v470
    %v1682 = vunpack.c.l.b16 %v471
    %v1683 = vunpack.c.h.b16 %v471
    %v1684 = vunpack.c.l.b16 %v472
    %v1685 = vunpack.c.h.b16 %v472
    %v1686 = vunpack.c.l.b16 %v473
    %v1687 = vunpack.c.h.b16 %v473
    %v1688 = vunpack.c.l.b16 %v474
    %v1689 = vunpack.c.h.b16 %v474
    %v1690 = vunpack.c.l.b16 %v475
    %v1691 = vunpack.c.h.b16 %v475
    %v1692 = vunpack.c.l.b16 %v476
    %v1693 = vunpack.c.h.b16 %v476
    %v1694 = vunpack.c.l.b16 %v477
    %v1695 = vunpack.c.h.b16 %v477
    %v1696 = vunpack.c.l.b16 %v478
    %v1697 = vunpack.c.h.b16 %v478
    %v1698 = vunpack.c.l.b16 %v479
    %v1699 = vunpack.c.h.b16 %v479
    %v1700 = vunpack.c.l.b16 %v480
    %v1701 = vunpack.c.h.b16 %v480
    %v1702 = vunpack.c.l.b16 %v481
    %v1703 = vunpack.c.h.b16 %v481
    %v1704 = vunpack.c.l.b16 %v482
    %v1705 = vunpack.c.h.b16 %v482
    %v1706 = vunpack.c.l.b16 %v483
    %v1707 = vunpack.c.h.b16 %v483
    %v1708 = vunpack.c.l.b16 %v484
    %v1709 = vunpack.c.h.b16 %v484
    %v1710 = vunpack.c.l.b16 %v485
    %v1711 = vunpack.c.h.b16 %v485
    %v1712 = vunpack.c.l.b16 %v486
    %v1713 = vunpack.c.h.b16 %v486
    %v1714 = vunpack.c.l.b16 %v487
    %v1715 = vunpack.c.h.b16 %v487
    %v1716 = vunpack.c.l.b16 %v488
    %v1717 = vunpack.c.h.b16 %v488
    %v1718 = vunpack.c.l.b16 %v489
    %v1719 = vunpack.c.h.b16 %v489
    %v1720 = vunpack.c.l.b16 %v490
    %v1721 = vunpack.c.h.b16 %v490
    %v1722 = vunpack.c.l.b16 %v491
    %v1723 = vunpack.c.h.b16 %v491
    %v1724 = vunpack.c.l.b16 %v492
    %v1725 = vunpack.c.h.b16 %v492
    %v1726 = vunpack.c.l.b16 %v493
    %v1727 = vunpack.c.h.b16 %v493
    %v1728 = vunpack.c.l.b16 %v494
    %v1729 = vunpack.c.h.b16 %v494
    %v1730 = vunpack.c.l.b16 %v495
    %v1731 = vunpack.c.h.b16 %v495
    %v1732 = vunpack.c.l.b16 %v496
    %v1733 = vunpack.c.h.b16 %v496
    %v1734 = vunpack.c.l.b16 %v497
    %v1735 = vunpack.c.h.b16 %v497
    %v1736 = vunpack.c.l.b16 %v498
    %v1737 = vunpack.c.h.b16 %v498
    %v1738 = vunpack.c.l.b16 %v499
    %v1739 = vunpack.c.h.b16 %v499
    %v1740 = vunpack.c.l.b16 %v500
    %v1741 = vunpack.c.h.b16 %v500
    %v1742 = vunpack.c.l.b16 %v501
    %v1743 = vunpack.c.h.b16 %v501
    %v1744 = vunpack.c.l.b16 %v502
    %v1745 = vunpack.c.h.b16 %v502
    %v1746 = vunpack.c.l.b16 %v503
    %v1747 = vunpack.c.h.b16 %v503
    %v1748 = vunpack.c.l.b16 %v504
    %v1749 = vunpack.c.h.b16 %v504
    %v1750 = vunpack.c.l.b16 %v505
    %v1751 = vunpack.c.h.b16 %v505
    %v1752 = vunpack.c.l.b16 %v506
    %v1753 = vunpack.c.h.b16 %v506
    %v1754 = vunpack.c.l.b16 %v507
    %v1755 = vunpack.c.h.b16 %v507
    %v1756 = vunpack.c.l.b16 %v508
    %v1757 = vunpack.c.h.b16 %v508
    %v1758 = vunpack.c.l.b16 %v509
    %v1759 = vunpack.c.h.b16 %v509
    %v1760 = vunpack.c.l.b16 %v510
    %v1761 = vunpack.c.h.b16 %v510
    %v1762 = vunpack.c.l.b16 %v511
    %v1763 = vunpack.c.h.b16 %v511
    %v1764 = vunpack.c.l.b16 %v512
    %v1765 = vunpack.c.h.b16 %v512
    %v1766 = vunpack.c.l.b16 %v513
    %v1767 = vunpack.c.h.b16 %v513
    %v1768 = vunpack.c.l.b16 %v514
    %v1769 = vunpack.c.h.b16 %v514
    %v1770 = vunpack.c.l.b16 %v515
    %v1771 = vunpack.c.h.b16 %v515
    %v1772 = vunpack.c.l.b16 %v516
    %v1773 = vunpack.c.h.b16 %v516
    %v1774 = vunpack.c.l.b16 %v517
    %v1775 = vunpack.c.h.b16 %v517
    %v1776 = vunpack.c.l.b16 %v518
    %v1777 = vunpack.c.h.b16 %v518
    %v1778 = vunpack.c.l.b16 %v519
    %v1779 = vunpack.c.h.b16 %v519
    %v1780 = vunpack.c.l.b16 %v520
    %v1781 = vunpack.c.h.b16 %v520
    %v1782 = vunpack.c.l.b16 %v521
    %v1783 = vunpack.c.h.b16 %v521
    %v1784 = vunpack.c.l.b16 %v522
    %v1785 = vunpack.c.h.b16 %v522
    %v1786 = vunpack.c.l.b16 %v523
    %v1787 = vunpack.c.h.b16 %v523
    %v1788 = vunpack.c.l.b16 %v524
    %v1789 = vunpack.c.h.b16 %v524
    %v1790 = vunpack.c.l.b16 %v525
    %v1791 = vunpack.c.h.b16 %v525
    %v1792 = vunpack.c.l.b16 %v526
    %v1793 = vunpack.c.h.b16 %v526
    %v1794 = vunpack.c.l.b16 %v527
    %v1795 = vunpack.c.h.b16 %v527
    %v1796 = vunpack.c.l.b16 %v528
    %v1797 = vunpack.c.h.b16 %v528
    %v1798 = vunpack.c.l.b16 %v529
    %v1799 = vunpack.c.h.b16 %v529
    %v1800 = vunpack.c.l.b16 %v530
    %v1801 = vunpack.c.h.b16 %v530
    %v1802 = vunpack.c.l.b16 %v531
    %v1803 = vunpack.c.h.b16 %v531
    %v1804 = vunpack.c.l.b16 %v532
    %v1805 = vunpack.c.h.b16 %v532
    %v1806 = vunpack.c.l.b16 %v533
    %v1807 = vunpack.c.h.b16 %v533
    %v1808 = vunpack.c.l.b16 %v534
    %v1809 = vunpack.c.h.b16 %v534
    %v1810 = vunpack.c.l.b16 %v535
    %v1811 = vunpack.c.h.b16 %v535
    %v1812 = vunpack.c.l.b16 %v536
    %v1813 = vunpack.c.h.b16 %v536
    %v1814 = vunpack.c.l.b16 %v537
    %v1815 = vunpack.c.h.b16 %v537
    %v1816 = vunpack.c.l.b16 %v538
    %v1817 = vunpack.c.h.b16 %v538
    %v1818 = vunpack.c.l.b16 %v539
    %v1819 = vunpack.c.h.b16 %v539
    %v1820 = vunpack.c.l.b16 %v540
    %v1821 = vunpack.c.h.b16 %v540
    %v1822 = vunpack.c.l.b16 %v541
    %v1823 = vunpack.c.h.b16 %v541
    %v1824 = vunpack.c.l.b16 %v542
    %v1825 = vunpack.c.h.b16 %v542
    %v1826 = vunpack.c.l.b16 %v543
    %v1827 = vunpack.c.h.b16 %v543
    %v1828 = vunpack.c.l.b16 %v544
    %v1829 = vunpack.c.h.b16 %v544
    %v1830 = vunpack.c.l.b16 %v545
    %v1831 = vunpack.c.h.b16 %v545
    %v1832 = vunpack.c.l.b16 %v546
    %v1833 = vunpack.c.h.b16 %v546
    %v1834 = vunpack.c.l.b16 %v547
    %v1835 = vunpack.c.h.b16 %v547
    %v1836 = vunpack.c.l.b16 %v548
    %v1837 = vunpack.c.h.b16 %v548
    %v1838 = vunpack.c.l.b16 %v549
    %v1839 = vunpack.c.h.b16 %v549
    %v1840 = vunpack.c.l.b16 %v550
    %v1841 = vunpack.c.h.b16 %v550
    %v1842 = vunpack.c.l.b16 %v551
    %v1843 = vunpack.c.h.b16 %v551
    %v1844 = vunpack.c.l.b16 %v552
    %v1845 = vunpack.c.h.b16 %v552
    %v1846 = vunpack.c.l.b16 %v553
    %v1847 = vunpack.c.h.b16 %v553
    %v1848 = vunpack.c.l.b16 %v554
    %v1849 = vunpack.c.h.b16 %v554
    %v1850 = vunpack.c.l.b16 %v555
    %v1851 = vunpack.c.h.b16 %v555
    %v1852 = vunpack.c.l.b16 %v556
    %v1853 = vunpack.c.h.b16 %v556
    %v1854 = vunpack.c.l.b16 %v557
    %v1855 = vunpack.c.h.b16 %v557
    %v1856 = vunpack.c.l.b16 %v558
    %v1857 = vunpack.c.h.b16 %v558
    %v1858 = vunpack.c.l.b16 %v559
    %v1859 = vunpack.c.h.b16 %v559
    %v1860 = vunpack.c.l.b16 %v560
    %v1861 = vunpack.c.h.b16 %v560
    %v1862 = vunpack.c.l.b16 %v561
    %v1863 = vunpack.c.h.b16 %v561
    %v1864 = vunpack.c.l.b16 %v562
    %v1865 = vunpack.c.h.b16 %v562
    %v1866 = vunpack.c.l.b16 %v563
    %v1867 = vunpack.c.h.b16 %v563
    %v1868 = vunpack.c.l.b16 %v564
    %v1869 = vunpack.c.h.b16 %v564
    %v1870 = vunpack.c.l.b16 %v565
    %v1871 = vunpack.c.h.b16 %v565
    %v1872 = vunpack.c.l.b16 %v566
    %v1873 = vunpack.c.h.b16 %v566
    %v1874 = vunpack.c.l.b16 %v567
    %v1875 = vunpack.c.h.b16 %v567
    %v1876 = vunpack.c.l.b16 %v568
    %v1877 = vunpack.c.h.b16 %v568
    %v1878 = vunpack.c.l.b16 %v569
    %v1879 = vunpack.c.h.b16 %v569
    %v1880 = vunpack.c.l.b16 %v570
    %v1881 = vunpack.c.h.b16 %v570
    %v1882 = vunpack.c.l.b16 %v571
    %v1883 = vunpack.c.h.b16 %v571
    %v1884 = vunpack.c.l.b16 %v572
    %v1885 = vunpack.c.h.b16 %v572
    %v1886 = vunpack.c.l.b16 %v573
    %v1887 = vunpack.c.h.b16 %v573
    %v1888 = vunpack.c.l.b16 %v574
    %v1889 = vunpack.c.h.b16 %v574
    %v1890 = vunpack.c.l.b16 %v575
    %v1891 = vunpack.c.h.b16 %v575
    %v1892 = vunpack.c.l.b16 %v576
    %v1893 = vunpack.c.h.b16 %v576
    %v1894 = vunpack.c.l.b16 %v577
    %v1895 = vunpack.c.h.b16 %v577
    %v1896 = vunpack.c.l.b16 %v578
    %v1897 = vunpack.c.h.b16 %v578
    %v1898 = vunpack.c.l.b16 %v579
    %v1899 = vunpack.c.h.b16 %v579
    %v1900 = vunpack.c.l.b16 %v580
    %v1901 = vunpack.c.h.b16 %v580
    %v1902 = vunpack.c.l.b16 %v581
    %v1903 = vunpack.c.h.b16 %v581
    %v1904 = vunpack.c.l.b16 %v582
    %v1905 = vunpack.c.h.b16 %v582
    %v1906 = vunpack.c.l.b16 %v583
    %v1907 = vunpack.c.h.b16 %v583
    %v1908 = vunpack.c.l.b16 %v584
    %v1909 = vunpack.c.h.b16 %v584
    %v1910 = vunpack.c.l.b16 %v585
    %v1911 = vunpack.c.h.b16 %v585
    %v1912 = vunpack.c.l.b16 %v586
    %v1913 = vunpack.c.h.b16 %v586
    %v1914 = vunpack.c.l.b16 %v587
    %v1915 = vunpack.c.h.b16 %v587
    %v1916 = vunpack.c.l.b16 %v588
    %v1917 = vunpack.c.h.b16 %v588
    %v1918 = vunpack.c.l.b16 %v589
    %v1919 = vunpack.c.h.b16 %v589
    %v1920 = vunpack.c.l.b16 %v590
    %v1921 = vunpack.c.h.b16 %v590
    %v1922 = vunpack.c.l.b16 %v591
    %v1923 = vunpack.c.h.b16 %v591
    %v1924 = vunpack.c.l.b16 %v592
    %v1925 = vunpack.c.h.b16 %v592
    %v1926 = vunpack.c.l.b16 %v593
    %v1927 = vunpack.c.h.b16 %v593
    %v1928 = vunpack.c.l.b16 %v594
    %v1929 = vunpack.c.h.b16 %v594
    %v1930 = vunpack.c.l.b16 %v595
    %v1931 = vunpack.c.h.b16 %v595
    %v1932 = vunpack.c.l.b16 %v596
    %v1933 = vunpack.c.h.b16 %v596
    %v1934 = vunpack.c.l.b16 %v597
    %v1935 = vunpack.c.h.b16 %v597
    %v1936 = vunpack.c.l.b16 %v598
    %v1937 = vunpack.c.h.b16 %v598
    %v1938 = vunpack.c.l.b16 %v599
    %v1939 = vunpack.c.h.b16 %v599
    %v1940 = vunpack.c.l.b16 %v600
    %v1941 = vunpack.c.h.b16 %v600
    %v1942 = vunpack.c.l.b16 %v601
    %v1943 = vunpack.c.h.b16 %v601
    %v1944 = vunpack.c.l.b16 %v602
    %v1945 = vunpack.c.h.b16 %v602
    %v1946 = vunpack.c.l.b16 %v603
    %v1947 = vunpack.c.h.b16 %v603
    %v1948 = vunpack.c.l.b16 %v604
    %v1949 = vunpack.c.h.b16 %v604
    %v1950 = vunpack.c.l.b16 %v605
    %v1951 = vunpack.c.h.b16 %v605
    %v1952 = vunpack.c.l.b16 %v606
    %v1953 = vunpack.c.h.b16 %v606
    %v1954 = vunpack.c.l.b16 %v607
    %v1955 = vunpack.c.h.b16 %v607
    %v1956 = vunpack.c.l.b16 %v608
    %v1957 = vunpack.c.h.b16 %v608
    %v1958 = vunpack.c.l.b16 %v609
    %v1959 = vunpack.c.h.b16 %v609
    %v1960 = vunpack.c.l.b16 %v610
    %v1961 = vunpack.c.h.b16 %v610
    %v1962 = vunpack.c.l.b16 %v611
    %v1963 = vunpack.c.h.b16 %v611
    %v1964 = vunpack.c.l.b16 %v612
    %v1965 = vunpack.c.h.b16 %v612
    %v1966 = vunpack.c.l.b16 %v613
    %v1967 = vunpack.c.h.b16 %v613
    %v1968 = vunpack.c.l.b16 %v614
    %v1969 = vunpack.c.h.b16 %v614
    %v1970 = vunpack.c.l.b16 %v615
    %v1971 = vunpack.c.h.b16 %v615
    %v1972 = vunpack.c.l.b16 %v616
    %v1973 = vunpack.c.h.b16 %v616
    %v1974 = vunpack.c.l.b16 %v617
    %v1975 = vunpack.c.h.b16 %v617
    %v1976 = vunpack.c.l.b16 %v618
    %v1977 = vunpack.c.h.b16 %v618
    %v1978 = vunpack.c.l.b16 %v619
    %v1979 = vunpack.c.h.b16 %v619
    %v1980 = vunpack.c.l.b16 %v620
    %v1981 = vunpack.c.h.b16 %v620
    %v1982 = vunpack.c.l.b16 %v621
    %v1983 = vunpack.c.h.b16 %v621
    %v1984 = vunpack.c.l.b16 %v622
    %v1985 = vunpack.c.h.b16 %v622
    %v1986 = vunpack.c.l.b16 %v623
    %v1987 = vunpack.c.h.b16 %v623
    %v1988 = vunpack.c.l.b16 %v624
    %v1989 = vunpack.c.h.b16 %v624
    %v1990 = vunpack.c.l.b16 %v625
    %v1991 = vunpack.c.h.b16 %v625
    %v1992 = vunpack.c.l.b16 %v626
    %v1993 = vunpack.c.h.b16 %v626
    %v1994 = vunpack.c.l.b16 %v627
    %v1995 = vunpack.c.h.b16 %v627
    %v1996 = vunpack.c.l.b16 %v628
    %v1997 = vunpack.c.h.b16 %v628
    %v1998 = vunpack.c.l.b16 %v629
    %v1999 = vunpack.c.h.b16 %v629
    %v2000 = vunpack.c.l.b16 %v630
    %v2001 = vunpack.c.h.b16 %v630
    %v2002 = vunpack.c.l.b16 %v631
    %v2003 = vunpack.c.h.b16 %v631
    %v2004 = vunpack.c.l.b16 %v632
    %v2005 = vunpack.c.h.b16 %v632
    %v2006 = vunpack.c.l.b16 %v633
    %v2007 = vunpack.c.h.b16 %v633
    %v2008 = vunpack.c.l.b16 %v634
    %v2009 = vunpack.c.h.b16 %v634
    %v2010 = vunpack.c.l.b16 %v635
    %v2011 = vunpack.c.h.b16 %v635
    %v2012 = vunpack.c.l.b16 %v636
    %v2013 = vunpack.c.h.b16 %v636
    %v2014 = vunpack.c.l.b16 %v637
    %v2015 = vunpack.c.h.b16 %v637
    %v2016 = vunpack.c.l.b16 %v638
    %v2017 = vunpack.c.h.b16 %v638
    %v2018 = vunpack.c.l.b16 %v639
    %v2019 = vunpack.c.h.b16 %v639
    %v2020 = vunpack.c.l.b16 %v640
    %v2021 = vunpack.c.h.b16 %v640
    %v2022 = vunpack.c.l.b16 %v641
    %v2023 = vunpack.c.h.b16 %v641
    %v2024 = vunpack.c.l.b16 %v642
    %v2025 = vunpack.c.h.b16 %v642
    %v2026 = vunpack.c.l.b16 %v643
    %v2027 = vunpack.c.h.b16 %v643
    %v2028 = vunpack.c.l.b16 %v644
    %v2029 = vunpack.c.h.b16 %v644
    %v2030 = vunpack.c.l.b16 %v645
    %v2031 = vunpack.c.h.b16 %v645
    %v2032 = vunpack.c.l.b16 %v646
    %v2033 = vunpack.c.h.b16 %v646
    %v2034 = vunpack.c.l.b16 %v647
    %v2035 = vunpack.c.h.b16 %v647
    %v2036 = vunpack.c.l.b16 %v648
    %v2037 = vunpack.c.h.b16 %v648
    %v2038 = vunpack.c.l.b16 %v649
    %v2039 = vunpack.c.h.b16 %v649
    %v2040 = vunpack.c.l.b16 %v650
    %v2041 = vunpack.c.h.b16 %v650
    %v2042 = vunpack.c.l.b16 %v651
    %v2043 = vunpack.c.h.b16 %v651
    %v2044 = vunpack.c.l.b16 %v652
    %v2045 = vunpack.c.h.b16 %v652
    %v2046 = vunpack.c.l.b16 %v653
    %v2047 = vunpack.c.h.b16 %v653
    %v2048 = vunpack.c.l.b16 %v654
    %v2049 = vunpack.c.h.b16 %v654
    %v2050 = vunpack.c.l.b16 %v655
    %v2051 = vunpack.c.h.b16 %v655
    %v2052 = vunpack.c.l.b16 %v656
    %v2053 = vunpack.c.h.b16 %v656
    %v2054 = vunpack.c.l.b16 %v657
    %v2055 = vunpack.c.h.b16 %v657
    %v2056 = vunpack.c.l.b16 %v658
    %v2057 = vunpack.c.h.b16 %v658
    %v2058 = vunpack.c.l.b16 %v659
    %v2059 = vunpack.c.h.b16 %v659
    %v2060 = vunpack.c.l.b16 %v660
    %v2061 = vunpack.c.h.b16 %v660
    %v2062 = vunpack.c.l.b16 %v661
    %v2063 = vunpack.c.h.b16 %v661
    %v2064 = vunpack.c.l.b16 %v662
    %v2065 = vunpack.c.h.b16 %v662
    %v2066 = vunpack.c.l.b16 %v663
    %v2067 = vunpack.c.h.b16 %v663
    %v2068 = vunpack.c.l.b16 %v664
    %v2069 = vunpack.c.h.b16 %v664
    %v2070 = vunpack.c.l.b16 %v665
    %v2071 = vunpack.c.h.b16 %v665
    %v2072 = vunpack.c.l.b16 %v666
    %v2073 = vunpack.c.h.b16 %v666
    %v2074 = vunpack.c.l.b16 %v667
    %v2075 = vunpack.c.h.b16 %v667
    %v2076 = vunpack.c.l.b16 %v668
    %v2077 = vunpack.c.h.b16 %v668
    %v2078 = vunpack.c.l.b16 %v669
    %v2079 = vunpack.c.h.b16 %v669
    %v2080 = vunpack.c.l.b16 %v670
    %v2081 = vunpack.c.h.b16 %v670
    %v2082 = vunpack.c.l.b16 %v671
    %v2083 = vunpack.c.h.b16 %v671
    %v2084 = vunpack.c.l.b16 %v672
    %v2085 = vunpack.c.h.b16 %v672
    %v2086 = vunpack.c.l.b16 %v673
    %v2087 = vunpack.c.h.b16 %v673
    %v2088 = vunpack.c.l.b16 %v674
    %v2089 = vunpack.c.h.b16 %v674
    %v2090 = vunpack.c.l.b16 %v675
    %v2091 = vunpack.c.h.b16 %v675
    %v2092 = vunpack.c.l.b16 %v676
    %v2093 = vunpack.c.h.b16 %v676
    %v2094 = vunpack.c.l.b16 %v677
    %v2095 = vunpack.c.h.b16 %v677
    %v2096 = vunpack.c.l.b16 %v678
    %v2097 = vunpack.c.h.b16 %v678
    %v2098 = vunpack.c.l.b16 %v679
    %v2099 = vunpack.c.h.b16 %v679
    %v2100 = vunpack.c.l.b16 %v680
    %v2101 = vunpack.c.h.b16 %v680
    %v2102 = vunpack.c.l.b16 %v681
    %v2103 = vunpack.c.h.b16 %v681
    %v2104 = vunpack.c.l.b16 %v682
    %v2105 = vunpack.c.h.b16 %v682
    %v2106 = vunpack.c.l.b16 %v683
    %v2107 = vunpack.c.h.b16 %v683
    %v2108 = vunpack.c.l.b16 %v684
    %v2109 = vunpack.c.h.b16 %v684
    %v2110 = vunpack.c.l.b16 %v685
    %v2111 = vunpack.c.h.b16 %v685
    %v2112 = vunpack.c.l.b16 %v686
    %v2113 = vunpack.c.h.b16 %v686
    %v2114 = vunpack.c.l.b16 %v687
    %v2115 = vunpack.c.h.b16 %v687
    %v2116 = vunpack.c.l.b16 %v688
    %v2117 = vunpack.c.h.b16 %v688
    %v2118 = vunpack.c.l.b16 %v689
    %v2119 = vunpack.c.h.b16 %v689
    %v2120 = vunpack.c.l.b16 %v690
    %v2121 = vunpack.c.h.b16 %v690
    %v2122 = vunpack.c.l.b16 %v691
    %v2123 = vunpack.c.h.b16 %v691
    %v2124 = vunpack.c.l.b16 %v692
    %v2125 = vunpack.c.h.b16 %v692
    %v2126 = vunpack.c.l.b16 %v693
    %v2127 = vunpack.c.h.b16 %v693
    %v2128 = vunpack.c.l.b16 %v694
    %v2129 = vunpack.c.h.b16 %v694
    %v2130 = vunpack.c.l.b16 %v695
    %v2131 = vunpack.c.h.b16 %v695
    %v2132 = vunpack.c.l.b16 %v696
    %v2133 = vunpack.c.h.b16 %v696
    %v2134 = vunpack.c.l.b16 %v697
    %v2135 = vunpack.c.h.b16 %v697
    %v2136 = vunpack.c.l.b16 %v698
    %v2137 = vunpack.c.h.b16 %v698
    %v2138 = vunpack.c.l.b16 %v699
    %v2139 = vunpack.c.h.b16 %v699
    %v2140 = vunpack.c.l.b16 %v700
    %v2141 = vunpack.c.h.b16 %v700
    %v2142 = vunpack.c.l.b16 %v701
    %v2143 = vunpack.c.h.b16 %v701
    %v2144 = vunpack.c.l.b16 %v702
    %v2145 = vunpack.c.h.b16 %v702
    %v2146 = vunpack.c.l.b16 %v703
    %v2147 = vunpack.c.h.b16 %v703
    %v2148 = vunpack.c.l.b16 %v704
    %v2149 = vunpack.c.h.b16 %v704
    %v2150 = vunpack.c.l.b16 %v705
    %v2151 = vunpack.c.h.b16 %v705
    %v2152 = vunpack.c.l.b16 %v706
    %v2153 = vunpack.c.h.b16 %v706
    %v2154 = vunpack.c.l.b16 %v707
    %v2155 = vunpack.c.h.b16 %v707
    %v2156 = vunpack.c.l.b16 %v708
    %v2157 = vunpack.c.h.b16 %v708
    %v2158 = vunpack.c.l.b16 %v709
    %v2159 = vunpack.c.h.b16 %v709
    %v2160 = vunpack.c.l.b16 %v710
    %v2161 = vunpack.c.h.b16 %v710
    %v2162 = vunpack.c.l.b16 %v711
    %v2163 = vunpack.c.h.b16 %v711
    %v2164 = vunpack.c.l.b16 %v712
    %v2165 = vunpack.c.h.b16 %v712
    %v2166 = vunpack.c.l.b16 %v713
    %v2167 = vunpack.c.h.b16 %v713
    %v2168 = vunpack.c.l.b16 %v714
    %v2169 = vunpack.c.h.b16 %v714
    %v2170 = vunpack.c.l.b16 %v715
    %v2171 = vunpack.c.h.b16 %v715
    %v2172 = vunpack.c.l.b16 %v716
    %v2173 = vunpack.c.h.b16 %v716
    %v2174 = vunpack.c.l.b16 %v717
    %v2175 = vunpack.c.h.b16 %v717
    %v2176 = vunpack.c.l.b16 %v718
    %v2177 = vunpack.c.h.b16 %v718
    %v2178 = vunpack.c.l.b16 %v719
    %v2179 = vunpack.c.h.b16 %v719
    %v2180 = vunpack.c.l.b16 %v720
    %v2181 = vunpack.c.h.b16 %v720
    %v2182 = vunpack.c.l.b16 %v721
    %v2183 = vunpack.c.h.b16 %v721
    %v2184 = vunpack.c.l.b16 %v722
    %v2185 = vunpack.c.h.b16 %v722
    %v2186 = vunpack.c.l.b16 %v723
    %v2187 = vunpack.c.h.b16 %v723
    %v2188 = vunpack.c.l.b16 %v724
    %v2189 = vunpack.c.h.b16 %v724
    %v2190 = vunpack.c.l.b16 %v725
    %v2191 = vunpack.c.h.b16 %v725
    %v2192 = vunpack.c.l.b16 %v726
    %v2193 = vunpack.c.h.b16 %v726
    %v2194 = vunpack.c.l.b16 %v727
    %v2195 = vunpack.c.h.b16 %v727
    %v2196 = vunpack.c.l.b16 %v728
    %v2197 = vunpack.c.h.b16 %v728
    %v2198 = vunpack.c.l.b16 %v729
    %v2199 = vunpack.c.h.b16 %v729
    %v2200 = vunpack.c.l.b16 %v730
    %v2201 = vunpack.c.h.b16 %v730
    %v2202 = vunpack.c.l.b16 %v731
    %v2203 = vunpack.c.h.b16 %v731
    %v2204 = vunpack.c.l.b16 %v732
    %v2205 = vunpack.c.h.b16 %v732
    %v2206 = vunpack.c.l.b16 %v733
    %v2207 = vunpack.c.h.b16 %v733
    %v2208 = vunpack.c.l.b16 %v734
    %v2209 = vunpack.c.h.b16 %v734
    %v2210 = vunpack.c.l.b16 %v735
    %v2211 = vunpack.c.h.b16 %v735
    %v2212 = vunpack.c.l.b16 %v736
    %v2213 = vunpack.c.h.b16 %v736
    %v2214 = vunpack.c.l.b16 %v737
    %v2215 = vunpack.c.h.b16 %v737
    %v2216 = vunpack.c.l.b16 %v738
    %v2217 = vunpack.c.h.b16 %v738
    %v2218 = vunpack.c.l.b16 %v739
    %v2219 = vunpack.c.h.b16 %v739
    %v2220 = vunpack.c.l.b16 %v740
    %v2221 = vunpack.c.h.b16 %v740
    %v2222 = vunpack.c.l.b16 %v741
    %v2223 = vunpack.c.h.b16 %v741
    %v2224 = vunpack.c.l.b16 %v742
    %v2225 = vunpack.c.h.b16 %v742
    %v2226 = vunpack.c.l.b16 %v743
    %v2227 = vunpack.c.h.b16 %v743
    %v2228 = vunpack.c.l.b16 %v744
    %v2229 = vunpack.c.h.b16 %v744
    %v2230 = vunpack.c.l.b16 %v745
    %v2231 = vunpack.c.h.b16 %v745
    %v2232 = vunpack.c.l.b16 %v746
    %v2233 = vunpack.c.h.b16 %v746
    %v2234 = vunpack.c.l.b16 %v747
    %v2235 = vunpack.c.h.b16 %v747
    %v2236 = vunpack.c.l.b16 %v748
    %v2237 = vunpack.c.h.b16 %v748
    %v2238 = vunpack.c.l.b16 %v749
    %v2239 = vunpack.c.h.b16 %v749
    %v2240 = vunpack.c.l.b16 %v750
    %v2241 = vunpack.c.h.b16 %v750
    %v2242 = vunpack.c.l.b16 %v751
    %v2243 = vunpack.c.h.b16 %v751
    %v2244 = vunpack.c.l.b16 %v752
    %v2245 = vunpack.c.h.b16 %v752
    %v2246 = vunpack.c.l.b16 %v753
    %v2247 = vunpack.c.h.b16 %v753
    %v2248 = vunpack.c.l.b16 %v754
    %v2249 = vunpack.c.h.b16 %v754
    %v2250 = vunpack.c.l.b16 %v755
    %v2251 = vunpack.c.h.b16 %v755
    %v2252 = vunpack.c.l.b16 %v756
    %v2253 = vunpack.c.h.b16 %v756
    %v2254 = vunpack.c.l.b16 %v757
    %v2255 = vunpack.c.h.b16 %v757
    %v2256 = vunpack.c.l.b16 %v758
    %v2257 = vunpack.c.h.b16 %v758
    %v2258 = vunpack.c.l.b16 %v759
    %v2259 = vunpack.c.h.b16 %v759
    %v2260 = vunpack.c.l.b16 %v760
    %v2261 = vunpack.c.h.b16 %v760
    %v2262 = vunpack.c.l.b16 %v761
    %v2263 = vunpack.c.h.b16 %v761
    %v2264 = vunpack.c.l.b16 %v762
    %v2265 = vunpack.c.h.b16 %v762
    %v2266 = vunpack.c.l.b16 %v763
    %v2267 = vunpack.c.h.b16 %v763
    %v2268 = vunpack.c.l.b16 %v764
    %v2269 = vunpack.c.h.b16 %v764
    %v2270 = vunpack.c.l.b16 %v765
    %v2271 = vunpack.c.h.b16 %v765
    %v2272 = vunpack.c.l.b16 %v766
    %v2273 = vunpack.c.h.b16 %v766
    %v2274 = vunpack.c.l.b16 %v767
    %v2275 = vunpack.c.h.b16 %v767
    %v2276 = vunpack.c.l.b16 %v768
    %v2277 = vunpack.c.h.b16 %v768
    %v2278 = vunpack.c.l.b16 %v769
    %v2279 = vunpack.c.h.b16 %v769
    %v2280 = vunpack.c.l.b16 %v770
    %v2281 = vunpack.c.h.b16 %v770
    %v2282 = vunpack.c.l.b16 %v771
    %v2283 = vunpack.c.h.b16 %v771
    %v2284 = vpack.c.b16 %v1290, %v1276
    %v2285 = vpack.c.b16 %v1291, %v1277
    %v2286 = vpack.c.b16 %v1292, %v1278
    %v2287 = vpack.c.b16 %v1293, %v1279
    %v2288 = vpack.c.b16 %v1294, %v1280
    %v2289 = vpack.c.b16 %v1295, %v1281
    %v2290 = vpack.c.b16 %v1296, %v1282
    %v2291 = vpack.c.b16 %v1297, %v1283
    %v2292 = vpack.c.b16 %v1298, %v1284
    %v2293 = vpack.c.b16 %v1299, %v1285
    %v2294 = vpack.c.b16 %v1300, %v1286
    %v2295 = vpack.c.b16 %v1301, %v1287
    %v2296 = vpack.c.b16 %v1302, %v1288
    %v2297 = vpack.c.b16 %v1303, %v1289
    %v2298 = vpack.c.b16 %v1318, %v1304
    %v2299 = vpack.c.b16 %v1319, %v1305
    %v2300 = vpack.c.b16 %v1320, %v1306
    %v2301 = vpack.c.b16 %v1321, %v1307
    %v2302 = vpack.c.b16 %v1322, %v1308
    %v2303 = vpack.c.b16 %v1323, %v1309
    %v2304 = vpack.c.b16 %v1324, %v1310
    %v2305 = vpack.c.b16 %v1325, %v1311
    %v2306 = vpack.c.b16 %v1326, %v1312
    %v2307 = vpack.c.b16 %v1327, %v1313
    %v2308 = vpack.c.b16 %v1328, %v1314
    %v2309 = vpack.c.b16 %v1329, %v1315
    %v2310 = vpack.c.b16 %v1330, %v1316
    %v2311 = vpack.c.b16 %v1331, %v1317
    %v2312 = vpack.c.b16 %v1346, %v1332
    %v2313 = vpack.c.b16 %v1347, %v1333
    %v2314 = vpack.c.b16 %v1348, %v1334
    %v2315 = vpack.c.b16 %v1349, %v1335
    %v2316 = vpack.c.b16 %v1350, %v1336
    %v2317 = vpack.c.b16 %v1351, %v1337
    %v2318 = vpack.c.b16 %v1352, %v1338
    %v2319 = vpack.c.b16 %v1353, %v1339
    %v2320 = vpack.c.b16 %v1354, %v1340
    %v2321 = vpack.c.b16 %v1355, %v1341
    %v2322 = vpack.c.b16 %v1356, %v1342
    %v2323 = vpack.c.b16 %v1357, %v1343
    %v2324 = vpack.c.b16 %v1358, %v1344
    %v2325 = vpack.c.b16 %v1359, %v1345
    %v2326 = vpack.c.b16 %v1374, %v1360
    %v2327 = vpack.c.b16 %v1375, %v1361
    %v2328 = vpack.c.b16 %v1376, %v1362
    %v2329 = vpack.c.b16 %v1377, %v1363
    %v2330 = vpack.c.b16 %v1378, %v1364
    %v2331 = vpack.c.b16 %v1379, %v1365
    %v2332 = vpack.c.b16 %v1380, %v1366
    %v2333 = vpack.c.b16 %v1381, %v1367
    %v2334 = vpack.c.b16 %v1382, %v1368
    %v2335 = vpack.c.b16 %v1383, %v1369
    %v2336 = vpack.c.b16 %v1384, %v1370
    %v2337 = vpack.c.b16 %v1385, %v1371
    %v2338 = vpack.c.b16 %v1386, %v1372
    %v2339 = vpack.c.b16 %v1387, %v1373
    %v2340 = vpack.c.b16 %v1402, %v1388
    %v2341 = vpack.c.b16 %v1403, %v1389
    %v2342 = vpack.c.b16 %v1404, %v1390
    %v2343 = vpack.c.b16 %v1405, %v1391
    %v2344 = vpack.c.b16 %v1406, %v1392
    %v2345 = vpack.c.b16 %v1407, %v1393
    %v2346 = vpack.c.b16 %v1408, %v1394
    %v2347 = vpack.c.b16 %v1409, %v1395
    %v2348 = vpack.c.b16 %v1410, %v1396
    %v2349 = vpack.c.b16 %v1411, %v1397
    %v2350 = vpack.c.b16 %v1412, %v1398
    %v2351 = vpack.c.b16 %v1413, %v1399
    %v2352 = vpack.c.b16 %v1414, %v1400
    %v2353 = vpack.c.b16 %v1415, %v1401
    %v2354 = vpack.c.b16 %v1430, %v1416
    %v2355 = vpack.c.b16 %v1431, %v1417
    %v2356 = vpack.c.b16 %v1432, %v1418
    %v2357 = vpack.c.b16 %v1433, %v1419
    %v2358 = vpack.c.b16 %v1434, %v1420
    %v2359 = vpack.c.b16 %v1435, %v1421
    %v2360 = vpack.c.b16 %v1436, %v1422
    %v2361 = vpack.c.b16 %v1437, %v1423
    %v2362 = vpack.c.b16 %v1438, %v1424
    %v2363 = vpack.c.b16 %v1439, %v1425
    %v2364 = vpack.c.b16 %v1440, %v1426
    %v2365 = vpack.c.b16 %v1441, %v1427
    %v2366 = vpack.c.b16 %v1442, %v1428
    %v2367 = vpack.c.b16 %v1443, %v1429
    %v2368 = vpack.c.b16 %v1458, %v1444
    %v2369 = vpack.c.b16 %v1459, %v1445
    %v2370 = vpack.c.b16 %v1460, %v1446
    %v2371 = vpack.c.b16 %v1461, %v1447
    %v2372 = vpack.c.b16 %v1462, %v1448
    %v2373 = vpack.c.b16 %v1463, %v1449
    %v2374 = vpack.c.b16 %v1464, %v1450
    %v2375 = vpack.c.b16 %v1465, %v1451
    %v2376 = vpack.c.b16 %v1466, %v1452
    %v2377 = vpack.c.b16 %v1467, %v1453
    %v2378 = vpack.c.b16 %v1468, %v1454
    %v2379 = vpack.c.b16 %v1469, %v1455
    %v2380 = vpack.c.b16 %v1470, %v1456
    %v2381 = vpack.c.b16 %v1471, %v1457
    %v2382 = vpack.c.b16 %v1486, %v1472
    %v2383 = vpack.c.b16 %v1487, %v1473
    %v2384 = vpack.c.b16 %v1488, %v1474
    %v2385 = vpack.c.b16 %v1489, %v1475
    %v2386 = vpack.c.b16 %v1490, %v1476
    %v2387 = vpack.c.b16 %v1491, %v1477
    %v2388 = vpack.c.b16 %v1492, %v1478
    %v2389 = vpack.c.b16 %v1493, %v1479
    %v2390 = vpack.c.b16 %v1494, %v1480
    %v2391 = vpack.c.b16 %v1495, %v1481
    %v2392 = vpack.c.b16 %v1496, %v1482
    %v2393 = vpack.c.b16 %v1497, %v1483
    %v2394 = vpack.c.b16 %v1498, %v1484
    %v2395 = vpack.c.b16 %v1499, %v1485
    %v2396 = vpack.c.b16 %v1514, %v1500
    %v2397 = vpack.c.b16 %v1515, %v1501
    %v2398 = vpack.c.b16 %v1516, %v1502
    %v2399 = vpack.c.b16 %v1517, %v1503
    %v2400 = vpack.c.b16 %v1518, %v1504
    %v2401 = vpack.c.b16 %v1519, %v1505
    %v2402 = vpack.c.b16 %v1520, %v1506
    %v2403 = vpack.c.b16 %v1521, %v1507
    %v2404 = vpack.c.b16 %v1522, %v1508
    %v2405 = vpack.c.b16 %v1523, %v1509
    %v2406 = vpack.c.b16 %v1524, %v1510
    %v2407 = vpack.c.b16 %v1525, %v1511
    %v2408 = vpack.c.b16 %v1526, %v1512
    %v2409 = vpack.c.b16 %v1527, %v1513
    %v2410 = vpack.c.b16 %v1542, %v1528
    %v2411 = vpack.c.b16 %v1543, %v1529
    %v2412 = vpack.c.b16 %v1544, %v1530
    %v2413 = vpack.c.b16 %v1545, %v1531
    %v2414 = vpack.c.b16 %v1546, %v1532
    %v2415 = vpack.c.b16 %v1547, %v1533
    %v2416 = vpack.c.b16 %v1548, %v1534
    %v2417 = vpack.c.b16 %v1549, %v1535
    %v2418 = vpack.c.b16 %v1550, %v1536
    %v2419 = vpack.c.b16 %v1551, %v1537
    %v2420 = vpack.c.b16 %v1552, %v1538
    %v2421 = vpack.c.b16 %v1553, %v1539
    %v2422 = vpack.c.b16 %v1554, %v1540
    %v2423 = vpack.c.b16 %v1555, %v1541
    %v2424 = vpack.c.b16 %v1570, %v1556
    %v2425 = vpack.c.b16 %v1571, %v1557
    %v2426 = vpack.c.b16 %v1572, %v1558
    %v2427 = vpack.c.b16 %v1573, %v1559
    %v2428 = vpack.c.b16 %v1574, %v1560
    %v2429 = vpack.c.b16 %v1575, %v1561
    %v2430 = vpack.c.b16 %v1576, %v1562
    %v2431 = vpack.c.b16 %v1577, %v1563
    %v2432 = vpack.c.b16 %v1578, %v1564
    %v2433 = vpack.c.b16 %v1579, %v1565
    %v2434 = vpack.c.b16 %v1580, %v1566
    %v2435 = vpack.c.b16 %v1581, %v1567
    %v2436 = vpack.c.b16 %v1582, %v1568
    %v2437 = vpack.c.b16 %v1583, %v1569
    %v2438 = vpack.c.b16 %v1598, %v1584
    %v2439 = vpack.c.b16 %v1599, %v1585
    %v2440 = vpack.c.b16 %v1600, %v1586
    %v2441 = vpack.c.b16 %v1601, %v1587
    %v2442 = vpack.c.b16 %v1602, %v1588
    %v2443 = vpack.c.b16 %v1603, %v1589
    %v2444 = vpack.c.b16 %v1604, %v1590
    %v2445 = vpack.c.b16 %v1605, %v1591
    %v2446 = vpack.c.b16 %v1606, %v1592
    %v2447 = vpack.c.b16 %v1607, %v1593
    %v2448 = vpack.c.b16 %v1608, %v1594
    %v2449 = vpack.c.b16 %v1609, %v1595
    %v2450 = vpack.c.b16 %v1610, %v1596
    %v2451 = vpack.c.b16 %v1611, %v1597
    %v2452 = vpack.c.b16 %v1626, %v1612
    %v2453 = vpack.c.b16 %v1627, %v1613
    %v2454 = vpack.c.b16 %v1628, %v1614
    %v2455 = vpack.c.b16 %v1629, %v1615
    %v2456 = vpack.c.b16 %v1630, %v1616
    %v2457 = vpack.c.b16 %v1631, %v1617
    %v2458 = vpack.c.b16 %v1632, %v1618
    %v2459 = vpack.c.b16 %v1633, %v1619
    %v2460 = vpack.c.b16 %v1634, %v1620
    %v2461 = vpack.c.b16 %v1635, %v1621
    %v2462 = vpack.c.b16 %v1636, %v1622
    %v2463 = vpack.c.b16 %v1637, %v1623
    %v2464 = vpack.c.b16 %v1638, %v1624
    %v2465 = vpack.c.b16 %v1639, %v1625
    %v2466 = vpack.c.b16 %v1654, %v1640
    %v2467 = vpack.c.b16 %v1655, %v1641
    %v2468 = vpack.c.b16 %v1656, %v1642
    %v2469 = vpack.c.b16 %v1657, %v1643
    %v2470 = vpack.c.b16 %v1658, %v1644
    %v2471 = vpack.c.b16 %v1659, %v1645
    %v2472 = vpack.c.b16 %v1660, %v1646
    %v2473 = vpack.c.b16 %v1661, %v1647
    %v2474 = vpack.c.b16 %v1662, %v1648
    %v2475 = vpack.c.b16 %v1663, %v1649
    %v2476 = vpack.c.b16 %v1664, %v1650
    %v2477 = vpack.c.b16 %v1665, %v1651
    %v2478 = vpack.c.b16 %v1666, %v1652
    %v2479 = vpack.c.b16 %v1667, %v1653
    %v2480 = vpack.c.b16 %v1682, %v1668
    %v2481 = vpack.c.b16 %v1683, %v1669
    %v2482 = vpack.c.b16 %v1684, %v1670
    %v2483 = vpack.c.b16 %v1685, %v1671
    %v2484 = vpack.c.b16 %v1686, %v1672
    %v2485 = vpack.c.b16 %v1687, %v1673
    %v2486 = vpack.c.b16 %v1688, %v1674
    %v2487 = vpack.c.b16 %v1689, %v1675
    %v2488 = vpack.c.b16 %v1690, %v1676
    %v2489 = vpack.c.b16 %v1691, %v1677
    %v2490 = vpack.c.b16 %v1692, %v1678
    %v2491 = vpack.c.b16 %v1693, %v1679
    %v2492 = vpack.c.b16 %v1694, %v1680
    %v2493 = vpack.c.b16 %v1695, %v1681
    %v2494 = vpack.c.b16 %v1710, %v1696
    %v2495 = vpack.c.b16 %v1711, %v1697
    %v2496 = vpack.c.b16 %v1712, %v1698
    %v2497 = vpack.c.b16 %v1713, %v1699
    %v2498 = vpack.c.b16 %v1714, %v1700
    %v2499 = vpack.c.b16 %v1715, %v1701
    %v2500 = vpack.c.b16 %v1716, %v1702
    %v2501 = vpack.c.b16 %v1717, %v1703
    %v2502 = vpack.c.b16 %v1718, %v1704
    %v2503 = vpack.c.b16 %v1719, %v1705
    %v2504 = vpack.c.b16 %v1720, %v1706
    %v2505 = vpack.c.b16 %v1721, %v1707
    %v2506 = vpack.c.b16 %v1722, %v1708
    %v2507 = vpack.c.b16 %v1723, %v1709
    %v2508 = vpack.c.b16 %v1738, %v1724
    %v2509 = vpack.c.b16 %v1739, %v1725
    %v2510 = vpack.c.b16 %v1740, %v1726
    %v2511 = vpack.c.b16 %v1741, %v1727
    %v2512 = vpack.c.b16 %v1742, %v1728
    %v2513 = vpack.c.b16 %v1743, %v1729
    %v2514 = vpack.c.b16 %v1744, %v1730
    %v2515 = vpack.c.b16 %v1745, %v1731
    %v2516 = vpack.c.b16 %v1746, %v1732
    %v2517 = vpack.c.b16 %v1747, %v1733
    %v2518 = vpack.c.b16 %v1748, %v1734
    %v2519 = vpack.c.b16 %v1749, %v1735
    %v2520 = vpack.c.b16 %v1750, %v1736
    %v2521 = vpack.c.b16 %v1751, %v1737
    %v2522 = vpack.c.b16 %v1766, %v1752
    %v2523 = vpack.c.b16 %v1767, %v1753
    %v2524 = vpack.c.b16 %v1768, %v1754
    %v2525 = vpack.c.b16 %v1769, %v1755
    %v2526 = vpack.c.b16 %v1770, %v1756
    %v2527 = vpack.c.b16 %v1771, %v1757
    %v2528 = vpack.c.b16 %v1772, %v1758
    %v2529 = vpack.c.b16 %v1773, %v1759
    %v2530 = vpack.c.b16 %v1774, %v1760
    %v2531 = vpack.c.b16 %v1775, %v1761
    %v2532 = vpack.c.b16 %v1776, %v1762
    %v2533 = vpack.c.b16 %v1777, %v1763
    %v2534 = vpack.c.b16 %v1778, %v1764
    %v2535 = vpack.c.b16 %v1779, %v1765
    %v2536 = vpack.c.b16 %v1794, %v1780
    %v2537 = vpack.c.b16 %v1795, %v1781
    %v2538 = vpack.c.b16 %v1796, %v1782
    %v2539 = vpack.c.b16 %v1797, %v1783
    %v2540 = vpack.c.b16 %v1798, %v1784
    %v2541 = vpack.c.b16 %v1799, %v1785
    %v2542 = vpack.c.b16 %v1800, %v1786
    %v2543 = vpack.c.b16 %v1801, %v1787
    %v2544 = vpack.c.b16 %v1802, %v1788
    %v2545 = vpack.c.b16 %v1803, %v1789
    %v2546 = vpack.c.b16 %v1804, %v1790
    %v2547 = vpack.c.b16 %v1805, %v1791
    %v2548 = vpack.c.b16 %v1806, %v1792
    %v2549 = vpack.c.b16 %v1807, %v1793
    %v2550 = vpack.c.b16 %v1822, %v1808
    %v2551 = vpack.c.b16 %v1823, %v1809
    %v2552 = vpack.c.b16 %v1824, %v1810
    %v2553 = vpack.c.b16 %v1825, %v1811
    %v2554 = vpack.c.b16 %v1826, %v1812
    %v2555 = vpack.c.b16 %v1827, %v1813
    %v2556 = vpack.c.b16 %v1828, %v1814
    %v2557 = vpack.c.b16 %v1829, %v1815
    %v2558 = vpack.c.b16 %v1830, %v1816
    %v2559 = vpack.c.b16 %v1831, %v1817
    %v2560 = vpack.c.b16 %v1832, %v1818
    %v2561 = vpack.c.b16 %v1833, %v1819
    %v2562 = vpack.c.b16 %v1834, %v1820
    %v2563 = vpack.c.b16 %v1835, %v1821
    %v2564 = vpack.c.b16 %v1850, %v1836
    %v2565 = vpack.c.b16 %v1851, %v1837
    %v2566 = vpack.c.b16 %v1852, %v1838
    %v2567 = vpack.c.b16 %v1853, %v1839
    %v2568 = vpack.c.b16 %v1854, %v1840
    %v2569 = vpack.c.b16 %v1855, %v1841
    %v2570 = vpack.c.b16 %v1856, %v1842
    %v2571 = vpack.c.b16 %v1857, %v1843
    %v2572 = vpack.c.b16 %v1858, %v1844
    %v2573 = vpack.c.b16 %v1859, %v1845
    %v2574 = vpack.c.b16 %v1860, %v1846
    %v2575 = vpack.c.b16 %v1861, %v1847
    %v2576 = vpack.c.b16 %v1862, %v1848
    %v2577 = vpack.c.b16 %v1863, %v1849
    %v2578 = vpack.c.b16 %v1878, %v1864
    %v2579 = vpack.c.b16 %v1879, %v1865
    %v2580 = vpack.c.b16 %v1880, %v1866
    %v2581 = vpack.c.b16 %v1881, %v1867
    %v2582 = vpack.c.b16 %v1882, %v1868
    %v2583 = vpack.c.b16 %v1883, %v1869
    %v2584 = vpack.c.b16 %v1884, %v1870
    %v2585 = vpack.c.b16 %v1885, %v1871
    %v2586 = vpack.c.b16 %v1886, %v1872
    %v2587 = vpack.c.b16 %v1887, %v1873
    %v2588 = vpack.c.b16 %v1888, %v1874
    %v2589 = vpack.c.b16 %v1889, %v1875
    %v2590 = vpack.c.b16 %v1890, %v1876
    %v2591 = vpack.c.b16 %v1891, %v1877
    %v2592 = vpack.c.b16 %v1906, %v1892
    %v2593 = vpack.c.b16 %v1907, %v1893
    %v2594 = vpack.c.b16 %v1908, %v1894
    %v2595 = vpack.c.b16 %v1909, %v1895
    %v2596 = vpack.c.b16 %v1910, %v1896
    %v2597 = vpack.c.b16 %v1911, %v1897
    %v2598 = vpack.c.b16 %v1912, %v1898
    %v2599 = vpack.c.b16 %v1913, %v1899
    %v2600 = vpack.c.b16 %v1914, %v1900
    %v2601 = vpack.c.b16 %v1915, %v1901
    %v2602 = vpack.c.b16 %v1916, %v1902
    %v2603 = vpack.c.b16 %v1917, %v1903
    %v2604 = vpack.c.b16 %v1918, %v1904
    %v2605 = vpack.c.b16 %v1919, %v1905
    %v2606 = vpack.c.b16 %v1934, %v1920
    %v2607 = vpack.c.b16 %v1935, %v1921
    %v2608 = vpack.c.b16 %v1936, %v1922
    %v2609 = vpack.c.b16 %v1937, %v1923
    %v2610 = vpack.c.b16 %v1938, %v1924
    %v2611 = vpack.c.b16 %v1939, %v1925
    %v2612 = vpack.c.b16 %v1940, %v1926
    %v2613 = vpack.c.b16 %v1941, %v1927
    %v2614 = vpack.c.b16 %v1942, %v1928
    %v2615 = vpack.c.b16 %v1943, %v1929
    %v2616 = vpack.c.b16 %v1944, %v1930
    %v2617 = vpack.c.b16 %v1945, %v1931
    %v2618 = vpack.c.b16 %v1946, %v1932
    %v2619 = vpack.c.b16 %v1947, %v1933
    %v2620 = vpack.c.b16 %v1962, %v1948
    %v2621 = vpack.c.b16 %v1963, %v1949
    %v2622 = vpack.c.b16 %v1964, %v1950
    %v2623 = vpack.c.b16 %v1965, %v1951
    %v2624 = vpack.c.b16 %v1966, %v1952
    %v2625 = vpack.c.b16 %v1967, %v1953
    %v2626 = vpack.c.b16 %v1968, %v1954
    %v2627 = vpack.c.b16 %v1969, %v1955
    %v2628 = vpack.c.b16 %v1970, %v1956
    %v2629 = vpack.c.b16 %v1971, %v1957
    %v2630 = vpack.c.b16 %v1972, %v1958
    %v2631 = vpack.c.b16 %v1973, %v1959
    %v2632 = vpack.c.b16 %v1974, %v1960
    %v2633 = vpack.c.b16 %v1975, %v1961
    %v2634 = vpack.c.b16 %v1990, %v1976
    %v2635 = vpack.c.b16 %v1991, %v1977
    %v2636 = vpack.c.b16 %v1992, %v1978
    %v2637 = vpack.c.b16 %v1993, %v1979
    %v2638 = vpack.c.b16 %v1994, %v1980
    %v2639 = vpack.c.b16 %v1995, %v1981
    %v2640 = vpack.c.b16 %v1996, %v1982
    %v2641 = vpack.c.b16 %v1997, %v1983
    %v2642 = vpack.c.b16 %v1998, %v1984
    %v2643 = vpack.c.b16 %v1999, %v1985
    %v2644 = vpack.c.b16 %v2000, %v1986
    %v2645 = vpack.c.b16 %v2001, %v1987
    %v2646 = vpack.c.b16 %v2002, %v1988
    %v2647 = vpack.c.b16 %v2003, %v1989
    %v2648 = vpack.c.b16 %v2018, %v2004
    %v2649 = vpack.c.b16 %v2019, %v2005
    %v2650 = vpack.c.b16 %v2020, %v2006
    %v2651 = vpack.c.b16 %v2021, %v2007
    %v2652 = vpack.c.b16 %v2022, %v2008
    %v2653 = vpack.c.b16 %v2023, %v2009
    %v2654 = vpack.c.b16 %v2024, %v2010
    %v2655 = vpack.c.b16 %v2025, %v2011
    %v2656 = vpack.c.b16 %v2026, %v2012
    %v2657 = vpack.c.b16 %v2027, %v2013
    %v2658 = vpack.c.b16 %v2028, %v2014
    %v2659 = vpack.c.b16 %v2029, %v2015
    %v2660 = vpack.c.b16 %v2030, %v2016
    %v2661 = vpack.c.b16 %v2031, %v2017
    %v2662 = vpack.c.b16 %v2046, %v2032
    %v2663 = vpack.c.b16 %v2047, %v2033
    %v2664 = vpack.c.b16 %v2048, %v2034
    %v2665 = vpack.c.b16 %v2049, %v2035
    %v2666 = vpack.c.b16 %v2050, %v2036
    %v2667 = vpack.c.b16 %v2051, %v2037
    %v2668 = vpack.c.b16 %v2052, %v2038
    %v2669 = vpack.c.b16 %v2053, %v2039
    %v2670 = vpack.c.b16 %v2054, %v2040
    %v2671 = vpack.c.b16 %v2055, %v2041
    %v2672 = vpack.c.b16 %v2056, %v2042
    %v2673 = vpack.c.b16 %v2057, %v2043
    %v2674 = vpack.c.b16 %v2058, %v2044
    %v2675 = vpack.c.b16 %v2059, %v2045
    %v2676 = vpack.c.b16 %v2074, %v2060
    %v2677 = vpack.c.b16 %v2075, %v2061
    %v2678 = vpack.c.b16 %v2076, %v2062
    %v2679 = vpack.c.b16 %v2077, %v2063
    %v2680 = vpack.c.b16 %v2078, %v2064
    %v2681 = vpack.c.b16 %v2079, %v2065
    %v2682 = vpack.c.b16 %v2080, %v2066
    %v2683 = vpack.c.b16 %v2081, %v2067
    %v2684 = vpack.c.b16 %v2082, %v2068
    %v2685 = vpack.c.b16 %v2083, %v2069
    %v2686 = vpack.c.b16 %v2084, %v2070
    %v2687 = vpack.c.b16 %v2085, %v2071
    %v2688 = vpack.c.b16 %v2086, %v2072
    %v2689 = vpack.c.b16 %v2087, %v2073
    %v2690 = vpack.c.b16 %v2102, %v2088
    %v2691 = vpack.c.b16 %v2103, %v2089
    %v2692 = vpack.c.b16 %v2104, %v2090
    %v2693 = vpack.c.b16 %v2105, %v2091
    %v2694 = vpack.c.b16 %v2106, %v2092
    %v2695 = vpack.c.b16 %v2107, %v2093
    %v2696 = vpack.c.b16 %v2108, %v2094
    %v2697 = vpack.c.b16 %v2109, %v2095
    %v2698 = vpack.c.b16 %v2110, %v2096
    %v2699 = vpack.c.b16 %v2111, %v2097
    %v2700 = vpack.c.b16 %v2112, %v2098
    %v2701 = vpack.c.b16 %v2113, %v2099
    %v2702 = vpack.c.b16 %v2114, %v2100
    %v2703 = vpack.c.b16 %v2115, %v2101
    %v2704 = vpack.c.b16 %v2130, %v2116
    %v2705 = vpack.c.b16 %v2131, %v2117
    %v2706 = vpack.c.b16 %v2132, %v2118
    %v2707 = vpack.c.b16 %v2133, %v2119
    %v2708 = vpack.c.b16 %v2134, %v2120
    %v2709 = vpack.c.b16 %v2135, %v2121
    %v2710 = vpack.c.b16 %v2136, %v2122
    %v2711 = vpack.c.b16 %v2137, %v2123
    %v2712 = vpack.c.b16 %v2138, %v2124
    %v2713 = vpack.c.b16 %v2139, %v2125
    %v2714 = vpack.c.b16 %v2140, %v2126
    %v2715 = vpack.c.b16 %v2141, %v2127
    %v2716 = vpack.c.b16 %v2142, %v2128
    %v2717 = vpack.c.b16 %v2143, %v2129
    %v2718 = vpack.c.b16 %v2158, %v2144
    %v2719 = vpack.c.b16 %v2159, %v2145
    %v2720 = vpack.c.b16 %v2160, %v2146
    %v2721 = vpack.c.b16 %v2161, %v2147
    %v2722 = vpack.c.b16 %v2162, %v2148
    %v2723 = vpack.c.b16 %v2163, %v2149
    %v2724 = vpack.c.b16 %v2164, %v2150
    %v2725 = vpack.c.b16 %v2165, %v2151
    %v2726 = vpack.c.b16 %v2166, %v2152
    %v2727 = vpack.c.b16 %v2167, %v2153
    %v2728 = vpack.c.b16 %v2168, %v2154
    %v2729 = vpack.c.b16 %v2169, %v2155
    %v2730 = vpack.c.b16 %v2170, %v2156
    %v2731 = vpack.c.b16 %v2171, %v2157
    %v2732 = vpack.c.b16 %v2186, %v2172
    %v2733 = vpack.c.b16 %v2187, %v2173
    %v2734 = vpack.c.b16 %v2188, %v2174
    %v2735 = vpack.c.b16 %v2189, %v2175
    %v2736 = vpack.c.b16 %v2190, %v2176
    %v2737 = vpack.c.b16 %v2191, %v2177
    %v2738 = vpack.c.b16 %v2192, %v2178
    %v2739 = vpack.c.b16 %v2193, %v2179
    %v2740 = vpack.c.b16 %v2194, %v2180
    %v2741 = vpack.c.b16 %v2195, %v2181
    %v2742 = vpack.c.b16 %v2196, %v2182
    %v2743 = vpack.c.b16 %v2197, %v2183
    %v2744 = vpack.c.b16 %v2198, %v2184
    %v2745 = vpack.c.b16 %v2199, %v2185
    %v2746 = vpack.c.b16 %v2214, %v2200
    %v2747 = vpack.c.b16 %v2215, %v2201
    %v2748 = vpack.c.b16 %v2216, %v2202
    %v2749 = vpack.c.b16 %v2217, %v2203
    %v2750 = vpack.c.b16 %v2218, %v2204
    %v2751 = vpack.c.b16 %v2219, %v2205
    %v2752 = vpack.c.b16 %v2220, %v2206
    %v2753 = vpack.c.b16 %v2221, %v2207
    %v2754 = vpack.c.b16 %v2222, %v2208
    %v2755 = vpack.c.b16 %v2223, %v2209
    %v2756 = vpack.c.b16 %v2224, %v2210
    %v2757 = vpack.c.b16 %v2225, %v2211
    %v2758 = vpack.c.b16 %v2226, %v2212
    %v2759 = vpack.c.b16 %v2227, %v2213
    %v2760 = vpack.c.b16 %v2242, %v2228
    %v2761 = vpack.c.b16 %v2243, %v2229
    %v2762 = vpack.c.b16 %v2244, %v2230
    %v2763 = vpack.c.b16 %v2245, %v2231
    %v2764 = vpack.c.b16 %v2246, %v2232
    %v2765 = vpack.c.b16 %v2247, %v2233
    %v2766 = vpack.c.b16 %v2248, %v2234
    %v2767 = vpack.c.b16 %v2249, %v2235
    %v2768 = vpack.c.b16 %v2250, %v2236
    %v2769 = vpack.c.b16 %v2251, %v2237
    %v2770 = vpack.c.b16 %v2252, %v2238
    %v2771 = vpack.c.b16 %v2253, %v2239
    %v2772 = vpack.c.b16 %v2254, %v2240
    %v2773 = vpack.c.b16 %v2255, %v2241
    %v2774 = vpack.c.b16 %v2270, %v2256
    %v2775 = vpack.c.b16 %v2271, %v2257
    %v2776 = vpack.c.b16 %v2272, %v2258
    %v2777 = vpack.c.b16 %v2273, %v2259
    %v2778 = vpack.c.b16 %v2274, %v2260
    %v2779 = vpack.c.b16 %v2275, %v2261
    %v2780 = vpack.c.b16 %v2276, %v2262
    %v2781 = vpack.c.b16 %v2277, %v2263
    %v2782 = vpack.c.b16 %v2278, %v2264
    %v2783 = vpack.c.b16 %v2279, %v2265
    %v2784 = vpack.c.b16 %v2280, %v2266
    %v2785 = vpack.c.b16 %v2281, %v2267
    %v2786 = vpack.c.b16 %v2282, %v2268
    %v2787 = vpack.c.b16 %v2283, %v2269
    %v3293 = vsel %vm212, %v262, 0
    %v3296 = vsel %vm212, %v267, 0
    %3298 = vmatpush.bf16.msra.mxu0 %v2382
    %3299 = vmatpush.bf16.msra.mxu0 %v2368
    %3300 = vmatpush.bf16.msra.mxu0 %v2354
    %3301 = vmatpush.bf16.msra.mxu0 %v2340
    %3302 = vmatpush.bf16.msra.mxu0 %v2326
    %3303 = vmatpush.bf16.msra.mxu0 %v2312
    %3304 = vmatpush.bf16.msra.mxu0 %v2298
    %3305 = vmatpush.bf16.msra.mxu0 %v2284
    %3306 = vmatmul.bf16.gmra.mxu0 %v258
    %v3307 = vpop.f32.mrf.mxu0
    %v3308 = vadd.f32 0.0, %v3307
    %v3309 = vpop.f32.mrf.mxu0
    %v3310 = vadd.f32 0.0, %v3309
    %3311 = vmatmul.bf16.gmra.mxu0 %v263
    %v3312 = vpop.f32.mrf.mxu0
    %v3313 = vadd.f32 0.0, %v3312
    %v3314 = vpop.f32.mrf.mxu0
    %v3315 = vadd.f32 0.0, %v3314
    %3316 = vdwg.mxu0
    %3317 = vmatpush.bf16.msra.mxu0 %v2494
    %3318 = vmatpush.bf16.msra.mxu0 %v2480
    %3319 = vmatpush.bf16.msra.mxu0 %v2466
    %3320 = vmatpush.bf16.msra.mxu0 %v2452
    %3321 = vmatpush.bf16.msra.mxu0 %v2438
    %3322 = vmatpush.bf16.msra.mxu0 %v2424
    %3323 = vmatpush.bf16.msra.mxu0 %v2410
    %3324 = vmatpush.bf16.msra.mxu0 %v2396
    %3325 = vmatmul.bf16.gmra.mxu0 %v259
    %v3326 = vpop.f32.mrf.mxu0
    %v3327 = vadd.f32 %v3308, %v3326
    %v3328 = vpop.f32.mrf.mxu0
    %v3329 = vadd.f32 %v3310, %v3328
    %3330 = vmatmul.bf16.gmra.mxu0 %v264
    %v3331 = vpop.f32.mrf.mxu0
    %v3332 = vadd.f32 %v3313, %v3331
    %v3333 = vpop.f32.mrf.mxu0
    %v3334 = vadd.f32 %v3315, %v3333
    %3335 = vdwg.mxu0
    %3336 = vmatpush.bf16.msra.mxu0 %v2606
    %3337 = vmatpush.bf16.msra.mxu0 %v2592
    %3338 = vmatpush.bf16.msra.mxu0 %v2578
    %3339 = vmatpush.bf16.msra.mxu0 %v2564
    %3340 = vmatpush.bf16.msra.mxu0 %v2550
    %3341 = vmatpush.bf16.msra.mxu0 %v2536
    %3342 = vmatpush.bf16.msra.mxu0 %v2522
    %3343 = vmatpush.bf16.msra.mxu0 %v2508
    %3344 = vmatmul.bf16.gmra.mxu0 %v260
    %v3345 = vpop.f32.mrf.mxu0
    %v3346 = vadd.f32 %v3327, %v3345
    %v3347 = vpop.f32.mrf.mxu0
    %v3348 = vadd.f32 %v3329, %v3347
    %3349 = vmatmul.bf16.gmra.mxu0 %v265
    %v3350 = vpop.f32.mrf.mxu0
    %v3351 = vadd.f32 %v3332, %v3350
    %v3352 = vpop.f32.mrf.mxu0
    %v3353 = vadd.f32 %v3334, %v3352
    %3354 = vdwg.mxu0
    %3355 = vmatpush.bf16.msra.mxu0 %v2718
    %3356 = vmatpush.bf16.msra.mxu0 %v2704
    %3357 = vmatpush.bf16.msra.mxu0 %v2690
    %3358 = vmatpush.bf16.msra.mxu0 %v2676
    %3359 = vmatpush.bf16.msra.mxu0 %v2662
    %3360 = vmatpush.bf16.msra.mxu0 %v2648
    %3361 = vmatpush.bf16.msra.mxu0 %v2634
    %3362 = vmatpush.bf16.msra.mxu0 %v2620
    %3363 = vmatmul.bf16.gmra.mxu0 %v261
    %v3364 = vpop.f32.mrf.mxu0
    %v3365 = vadd.f32 %v3346, %v3364
    %v3366 = vpop.f32.mrf.mxu0
    %v3367 = vadd.f32 %v3348, %v3366
    %3368 = vmatmul.bf16.gmra.mxu0 %v266
    %v3369 = vpop.f32.mrf.mxu0
    %v3370 = vadd.f32 %v3351, %v3369
    %v3371 = vpop.f32.mrf.mxu0
    %v3372 = vadd.f32 %v3353, %v3371
    %3373 = vdwg.mxu0
    %3374 = vmatpush.bf16.msra.mxu0 0
    %3375 = vmatpush.bf16.msra.mxu0 0
    %3376 = vmatpush.bf16.msra.mxu0 0
    %3377 = vmatpush.bf16.msra.mxu0 0
    %3378 = vmatpush.bf16.msra.mxu0 %v2774
    %3379 = vmatpush.bf16.msra.mxu0 %v2760
    %3380 = vmatpush.bf16.msra.mxu0 %v2746
    %3381 = vmatpush.bf16.msra.mxu0 %v2732
    %3382 = vmatmul.bf16.gmra.mxu0 %v3293
    %v3383 = vpop.f32.mrf.mxu0
    %v3384 = vadd.f32 %v3365, %v3383
    %v3385 = vpop.f32.mrf.mxu0
    %v3386 = vadd.f32 %v3367, %v3385
    %3387 = vmatmul.bf16.gmra.mxu0 %v3296
    %v3388 = vpop.f32.mrf.mxu0
    %v3389 = vadd.f32 %v3370, %v3388
    %v3390 = vpop.f32.mrf.mxu0
    %v3391 = vadd.f32 %v3372, %v3390
    %3392 = vdwg.mxu0
    %3393 = vmatpush.bf16.msra.mxu0 %v2383
    %3394 = vmatpush.bf16.msra.mxu0 %v2369
    %3395 = vmatpush.bf16.msra.mxu0 %v2355
    %3396 = vmatpush.bf16.msra.mxu0 %v2341
    %3397 = vmatpush.bf16.msra.mxu0 %v2327
    %3398 = vmatpush.bf16.msra.mxu0 %v2313
    %3399 = vmatpush.bf16.msra.mxu0 %v2299
    %3400 = vmatpush.bf16.msra.mxu0 %v2285
    %3401 = vmatmul.bf16.gmra.mxu0 %v258
    %v3402 = vpop.f32.mrf.mxu0
    %v3403 = vadd.f32 0.0, %v3402
    %v3404 = vpop.f32.mrf.mxu0
    %v3405 = vadd.f32 0.0, %v3404
    %3406 = vmatmul.bf16.gmra.mxu0 %v263
    %v3407 = vpop.f32.mrf.mxu0
    %v3408 = vadd.f32 0.0, %v3407
    %v3409 = vpop.f32.mrf.mxu0
    %v3410 = vadd.f32 0.0, %v3409
    %3411 = vdwg.mxu0
    %3412 = vmatpush.bf16.msra.mxu0 %v2495
    %3413 = vmatpush.bf16.msra.mxu0 %v2481
    %3414 = vmatpush.bf16.msra.mxu0 %v2467
    %3415 = vmatpush.bf16.msra.mxu0 %v2453
    %3416 = vmatpush.bf16.msra.mxu0 %v2439
    %3417 = vmatpush.bf16.msra.mxu0 %v2425
    %3418 = vmatpush.bf16.msra.mxu0 %v2411
    %3419 = vmatpush.bf16.msra.mxu0 %v2397
    %3420 = vmatmul.bf16.gmra.mxu0 %v259
    %v3421 = vpop.f32.mrf.mxu0
    %v3422 = vadd.f32 %v3403, %v3421
    %v3423 = vpop.f32.mrf.mxu0
    %v3424 = vadd.f32 %v3405, %v3423
    %3425 = vmatmul.bf16.gmra.mxu0 %v264
    %v3426 = vpop.f32.mrf.mxu0
    %v3427 = vadd.f32 %v3408, %v3426
    %v3428 = vpop.f32.mrf.mxu0
    %v3429 = vadd.f32 %v3410, %v3428
    %3430 = vdwg.mxu0
    %3431 = vmatpush.bf16.msra.mxu0 %v2607
    %3432 = vmatpush.bf16.msra.mxu0 %v2593
    %3433 = vmatpush.bf16.msra.mxu0 %v2579
    %3434 = vmatpush.bf16.msra.mxu0 %v2565
    %3435 = vmatpush.bf16.msra.mxu0 %v2551
    %3436 = vmatpush.bf16.msra.mxu0 %v2537
    %3437 = vmatpush.bf16.msra.mxu0 %v2523
    %3438 = vmatpush.bf16.msra.mxu0 %v2509
    %3439 = vmatmul.bf16.gmra.mxu0 %v260
    %v3440 = vpop.f32.mrf.mxu0
    %v3441 = vadd.f32 %v3422, %v3440
    %v3442 = vpop.f32.mrf.mxu0
    %v3443 = vadd.f32 %v3424, %v3442
    %3444 = vmatmul.bf16.gmra.mxu0 %v265
    %v3445 = vpop.f32.mrf.mxu0
    %v3446 = vadd.f32 %v3427, %v3445
    %v3447 = vpop.f32.mrf.mxu0
    %v3448 = vadd.f32 %v3429, %v3447
    %3449 = vdwg.mxu0
    %3450 = vmatpush.bf16.msra.mxu0 %v2719
    %3451 = vmatpush.bf16.msra.mxu0 %v2705
    %3452 = vmatpush.bf16.msra.mxu0 %v2691
    %3453 = vmatpush.bf16.msra.mxu0 %v2677
    %3454 = vmatpush.bf16.msra.mxu0 %v2663
    %3455 = vmatpush.bf16.msra.mxu0 %v2649
    %3456 = vmatpush.bf16.msra.mxu0 %v2635
    %3457 = vmatpush.bf16.msra.mxu0 %v2621
    %3458 = vmatmul.bf16.gmra.mxu0 %v261
    %v3459 = vpop.f32.mrf.mxu0
    %v3460 = vadd.f32 %v3441, %v3459
    %v3461 = vpop.f32.mrf.mxu0
    %v3462 = vadd.f32 %v3443, %v3461
    %3463 = vmatmul.bf16.gmra.mxu0 %v266
    %v3464 = vpop.f32.mrf.mxu0
    %v3465 = vadd.f32 %v3446, %v3464
    %v3466 = vpop.f32.mrf.mxu0
    %v3467 = vadd.f32 %v3448, %v3466
    %3468 = vdwg.mxu0
    %3469 = vmatpush.bf16.msra.mxu0 0
    %3470 = vmatpush.bf16.msra.mxu0 0
    %3471 = vmatpush.bf16.msra.mxu0 0
    %3472 = vmatpush.bf16.msra.mxu0 0
    %3473 = vmatpush.bf16.msra.mxu0 %v2775
    %3474 = vmatpush.bf16.msra.mxu0 %v2761
    %3475 = vmatpush.bf16.msra.mxu0 %v2747
    %3476 = vmatpush.bf16.msra.mxu0 %v2733
    %3477 = vmatmul.bf16.gmra.mxu0 %v3293
    %v3478 = vpop.f32.mrf.mxu0
    %v3479 = vadd.f32 %v3460, %v3478
    %v3480 = vpop.f32.mrf.mxu0
    %v3481 = vadd.f32 %v3462, %v3480
    %3482 = vmatmul.bf16.gmra.mxu0 %v3296
    %v3483 = vpop.f32.mrf.mxu0
    %v3484 = vadd.f32 %v3465, %v3483
    %v3485 = vpop.f32.mrf.mxu0
    %v3486 = vadd.f32 %v3467, %v3485
    %3487 = vdwg.mxu0
    %3488 = vmatpush.bf16.msra.mxu0 %v2384
    %3489 = vmatpush.bf16.msra.mxu0 %v2370
    %3490 = vmatpush.bf16.msra.mxu0 %v2356
    %3491 = vmatpush.bf16.msra.mxu0 %v2342
    %3492 = vmatpush.bf16.msra.mxu0 %v2328
    %3493 = vmatpush.bf16.msra.mxu0 %v2314
    %3494 = vmatpush.bf16.msra.mxu0 %v2300
    %3495 = vmatpush.bf16.msra.mxu0 %v2286
    %3496 = vmatmul.bf16.gmra.mxu0 %v258
    %v3497 = vpop.f32.mrf.mxu0
    %v3498 = vadd.f32 0.0, %v3497
    %v3499 = vpop.f32.mrf.mxu0
    %v3500 = vadd.f32 0.0, %v3499
    %3501 = vmatmul.bf16.gmra.mxu0 %v263
    %v3502 = vpop.f32.mrf.mxu0
    %v3503 = vadd.f32 0.0, %v3502
    %v3504 = vpop.f32.mrf.mxu0
    %v3505 = vadd.f32 0.0, %v3504
    %3506 = vdwg.mxu0
    %3507 = vmatpush.bf16.msra.mxu0 %v2496
    %3508 = vmatpush.bf16.msra.mxu0 %v2482
    %3509 = vmatpush.bf16.msra.mxu0 %v2468
    %3510 = vmatpush.bf16.msra.mxu0 %v2454
    %3511 = vmatpush.bf16.msra.mxu0 %v2440
    %3512 = vmatpush.bf16.msra.mxu0 %v2426
    %3513 = vmatpush.bf16.msra.mxu0 %v2412
    %3514 = vmatpush.bf16.msra.mxu0 %v2398
    %3515 = vmatmul.bf16.gmra.mxu0 %v259
    %v3516 = vpop.f32.mrf.mxu0
    %v3517 = vadd.f32 %v3498, %v3516
    %v3518 = vpop.f32.mrf.mxu0
    %v3519 = vadd.f32 %v3500, %v3518
    %3520 = vmatmul.bf16.gmra.mxu0 %v264
    %v3521 = vpop.f32.mrf.mxu0
    %v3522 = vadd.f32 %v3503, %v3521
    %v3523 = vpop.f32.mrf.mxu0
    %v3524 = vadd.f32 %v3505, %v3523
    %3525 = vdwg.mxu0
    %3526 = vmatpush.bf16.msra.mxu0 %v2608
    %3527 = vmatpush.bf16.msra.mxu0 %v2594
    %3528 = vmatpush.bf16.msra.mxu0 %v2580
    %3529 = vmatpush.bf16.msra.mxu0 %v2566
    %3530 = vmatpush.bf16.msra.mxu0 %v2552
    %3531 = vmatpush.bf16.msra.mxu0 %v2538
    %3532 = vmatpush.bf16.msra.mxu0 %v2524
    %3533 = vmatpush.bf16.msra.mxu0 %v2510
    %3534 = vmatmul.bf16.gmra.mxu0 %v260
    %v3535 = vpop.f32.mrf.mxu0
    %v3536 = vadd.f32 %v3517, %v3535
    %v3537 = vpop.f32.mrf.mxu0
    %v3538 = vadd.f32 %v3519, %v3537
    %3539 = vmatmul.bf16.gmra.mxu0 %v265
    %v3540 = vpop.f32.mrf.mxu0
    %v3541 = vadd.f32 %v3522, %v3540
    %v3542 = vpop.f32.mrf.mxu0
    %v3543 = vadd.f32 %v3524, %v3542
    %3544 = vdwg.mxu0
    %3545 = vmatpush.bf16.msra.mxu0 %v2720
    %3546 = vmatpush.bf16.msra.mxu0 %v2706
    %3547 = vmatpush.bf16.msra.mxu0 %v2692
    %3548 = vmatpush.bf16.msra.mxu0 %v2678
    %3549 = vmatpush.bf16.msra.mxu0 %v2664
    %3550 = vmatpush.bf16.msra.mxu0 %v2650
    %3551 = vmatpush.bf16.msra.mxu0 %v2636
    %3552 = vmatpush.bf16.msra.mxu0 %v2622
    %3553 = vmatmul.bf16.gmra.mxu0 %v261
    %v3554 = vpop.f32.mrf.mxu0
    %v3555 = vadd.f32 %v3536, %v3554
    %v3556 = vpop.f32.mrf.mxu0
    %v3557 = vadd.f32 %v3538, %v3556
    %3558 = vmatmul.bf16.gmra.mxu0 %v266
    %v3559 = vpop.f32.mrf.mxu0
    %v3560 = vadd.f32 %v3541, %v3559
    %v3561 = vpop.f32.mrf.mxu0
    %v3562 = vadd.f32 %v3543, %v3561
    %3563 = vdwg.mxu0
    %3564 = vmatpush.bf16.msra.mxu0 0
    %3565 = vmatpush.bf16.msra.mxu0 0
    %3566 = vmatpush.bf16.msra.mxu0 0
    %3567 = vmatpush.bf16.msra.mxu0 0
    %3568 = vmatpush.bf16.msra.mxu0 %v2776
    %3569 = vmatpush.bf16.msra.mxu0 %v2762
    %3570 = vmatpush.bf16.msra.mxu0 %v2748
    %3571 = vmatpush.bf16.msra.mxu0 %v2734
    %3572 = vmatmul.bf16.gmra.mxu0 %v3293
    %v3573 = vpop.f32.mrf.mxu0
    %v3574 = vadd.f32 %v3555, %v3573
    %v3575 = vpop.f32.mrf.mxu0
    %v3576 = vadd.f32 %v3557, %v3575
    %3577 = vmatmul.bf16.gmra.mxu0 %v3296
    %v3578 = vpop.f32.mrf.mxu0
    %v3579 = vadd.f32 %v3560, %v3578
    %v3580 = vpop.f32.mrf.mxu0
    %v3581 = vadd.f32 %v3562, %v3580
    %3582 = vdwg.mxu0
    %3583 = vmatpush.bf16.msra.mxu0 %v2385
    %3584 = vmatpush.bf16.msra.mxu0 %v2371
    %3585 = vmatpush.bf16.msra.mxu0 %v2357
    %3586 = vmatpush.bf16.msra.mxu0 %v2343
    %3587 = vmatpush.bf16.msra.mxu0 %v2329
    %3588 = vmatpush.bf16.msra.mxu0 %v2315
    %3589 = vmatpush.bf16.msra.mxu0 %v2301
    %3590 = vmatpush.bf16.msra.mxu0 %v2287
    %3591 = vmatmul.bf16.gmra.mxu0 %v258
    %v3592 = vpop.f32.mrf.mxu0
    %v3593 = vadd.f32 0.0, %v3592
    %v3594 = vpop.f32.mrf.mxu0
    %v3595 = vadd.f32 0.0, %v3594
    %3596 = vmatmul.bf16.gmra.mxu0 %v263
    %v3597 = vpop.f32.mrf.mxu0
    %v3598 = vadd.f32 0.0, %v3597
    %v3599 = vpop.f32.mrf.mxu0
    %v3600 = vadd.f32 0.0, %v3599
    %3601 = vdwg.mxu0
    %3602 = vmatpush.bf16.msra.mxu0 %v2497
    %3603 = vmatpush.bf16.msra.mxu0 %v2483
    %3604 = vmatpush.bf16.msra.mxu0 %v2469
    %3605 = vmatpush.bf16.msra.mxu0 %v2455
    %3606 = vmatpush.bf16.msra.mxu0 %v2441
    %3607 = vmatpush.bf16.msra.mxu0 %v2427
    %3608 = vmatpush.bf16.msra.mxu0 %v2413
    %3609 = vmatpush.bf16.msra.mxu0 %v2399
    %3610 = vmatmul.bf16.gmra.mxu0 %v259
    %v3611 = vpop.f32.mrf.mxu0
    %v3612 = vadd.f32 %v3593, %v3611
    %v3613 = vpop.f32.mrf.mxu0
    %v3614 = vadd.f32 %v3595, %v3613
    %3615 = vmatmul.bf16.gmra.mxu0 %v264
    %v3616 = vpop.f32.mrf.mxu0
    %v3617 = vadd.f32 %v3598, %v3616
    %v3618 = vpop.f32.mrf.mxu0
    %v3619 = vadd.f32 %v3600, %v3618
    %3620 = vdwg.mxu0
    %3621 = vmatpush.bf16.msra.mxu0 %v2609
    %3622 = vmatpush.bf16.msra.mxu0 %v2595
    %3623 = vmatpush.bf16.msra.mxu0 %v2581
    %3624 = vmatpush.bf16.msra.mxu0 %v2567
    %3625 = vmatpush.bf16.msra.mxu0 %v2553
    %3626 = vmatpush.bf16.msra.mxu0 %v2539
    %3627 = vmatpush.bf16.msra.mxu0 %v2525
    %3628 = vmatpush.bf16.msra.mxu0 %v2511
    %3629 = vmatmul.bf16.gmra.mxu0 %v260
    %v3630 = vpop.f32.mrf.mxu0
    %v3631 = vadd.f32 %v3612, %v3630
    %v3632 = vpop.f32.mrf.mxu0
    %v3633 = vadd.f32 %v3614, %v3632
    %3634 = vmatmul.bf16.gmra.mxu0 %v265
    %v3635 = vpop.f32.mrf.mxu0
    %v3636 = vadd.f32 %v3617, %v3635
    %v3637 = vpop.f32.mrf.mxu0
    %v3638 = vadd.f32 %v3619, %v3637
    %3639 = vdwg.mxu0
    %3640 = vmatpush.bf16.msra.mxu0 %v2721
    %3641 = vmatpush.bf16.msra.mxu0 %v2707
    %3642 = vmatpush.bf16.msra.mxu0 %v2693
    %3643 = vmatpush.bf16.msra.mxu0 %v2679
    %3644 = vmatpush.bf16.msra.mxu0 %v2665
    %3645 = vmatpush.bf16.msra.mxu0 %v2651
    %3646 = vmatpush.bf16.msra.mxu0 %v2637
    %3647 = vmatpush.bf16.msra.mxu0 %v2623
    %3648 = vmatmul.bf16.gmra.mxu0 %v261
    %v3649 = vpop.f32.mrf.mxu0
    %v3650 = vadd.f32 %v3631, %v3649
    %v3651 = vpop.f32.mrf.mxu0
    %v3652 = vadd.f32 %v3633, %v3651
    %3653 = vmatmul.bf16.gmra.mxu0 %v266
    %v3654 = vpop.f32.mrf.mxu0
    %v3655 = vadd.f32 %v3636, %v3654
    %v3656 = vpop.f32.mrf.mxu0
    %v3657 = vadd.f32 %v3638, %v3656
    %3658 = vdwg.mxu0
    %3659 = vmatpush.bf16.msra.mxu0 0
    %3660 = vmatpush.bf16.msra.mxu0 0
    %3661 = vmatpush.bf16.msra.mxu0 0
    %3662 = vmatpush.bf16.msra.mxu0 0
    %3663 = vmatpush.bf16.msra.mxu0 %v2777
    %3664 = vmatpush.bf16.msra.mxu0 %v2763
    %3665 = vmatpush.bf16.msra.mxu0 %v2749
    %3666 = vmatpush.bf16.msra.mxu0 %v2735
    %3667 = vmatmul.bf16.gmra.mxu0 %v3293
    %v3668 = vpop.f32.mrf.mxu0
    %v3669 = vadd.f32 %v3650, %v3668
    %v3670 = vpop.f32.mrf.mxu0
    %v3671 = vadd.f32 %v3652, %v3670
    %3672 = vmatmul.bf16.gmra.mxu0 %v3296
    %v3673 = vpop.f32.mrf.mxu0
    %v3674 = vadd.f32 %v3655, %v3673
    %v3675 = vpop.f32.mrf.mxu0
    %v3676 = vadd.f32 %v3657, %v3675
    %3677 = vdwg.mxu0
    %3678 = vmatpush.bf16.msra.mxu0 %v2386
    %3679 = vmatpush.bf16.msra.mxu0 %v2372
    %3680 = vmatpush.bf16.msra.mxu0 %v2358
    %3681 = vmatpush.bf16.msra.mxu0 %v2344
    %3682 = vmatpush.bf16.msra.mxu0 %v2330
    %3683 = vmatpush.bf16.msra.mxu0 %v2316
    %3684 = vmatpush.bf16.msra.mxu0 %v2302
    %3685 = vmatpush.bf16.msra.mxu0 %v2288
    %3686 = vmatmul.bf16.gmra.mxu0 %v258
    %v3687 = vpop.f32.mrf.mxu0
    %v3688 = vadd.f32 0.0, %v3687
    %v3689 = vpop.f32.mrf.mxu0
    %v3690 = vadd.f32 0.0, %v3689
    %3691 = vmatmul.bf16.gmra.mxu0 %v263
    %v3692 = vpop.f32.mrf.mxu0
    %v3693 = vadd.f32 0.0, %v3692
    %v3694 = vpop.f32.mrf.mxu0
    %v3695 = vadd.f32 0.0, %v3694
    %3696 = vdwg.mxu0
    %3697 = vmatpush.bf16.msra.mxu0 %v2498
    %3698 = vmatpush.bf16.msra.mxu0 %v2484
    %3699 = vmatpush.bf16.msra.mxu0 %v2470
    %3700 = vmatpush.bf16.msra.mxu0 %v2456
    %3701 = vmatpush.bf16.msra.mxu0 %v2442
    %3702 = vmatpush.bf16.msra.mxu0 %v2428
    %3703 = vmatpush.bf16.msra.mxu0 %v2414
    %3704 = vmatpush.bf16.msra.mxu0 %v2400
    %3705 = vmatmul.bf16.gmra.mxu0 %v259
    %v3706 = vpop.f32.mrf.mxu0
    %v3707 = vadd.f32 %v3688, %v3706
    %v3708 = vpop.f32.mrf.mxu0
    %v3709 = vadd.f32 %v3690, %v3708
    %3710 = vmatmul.bf16.gmra.mxu0 %v264
    %v3711 = vpop.f32.mrf.mxu0
    %v3712 = vadd.f32 %v3693, %v3711
    %v3713 = vpop.f32.mrf.mxu0
    %v3714 = vadd.f32 %v3695, %v3713
    %3715 = vdwg.mxu0
    %3716 = vmatpush.bf16.msra.mxu0 %v2610
    %3717 = vmatpush.bf16.msra.mxu0 %v2596
    %3718 = vmatpush.bf16.msra.mxu0 %v2582
    %3719 = vmatpush.bf16.msra.mxu0 %v2568
    %3720 = vmatpush.bf16.msra.mxu0 %v2554
    %3721 = vmatpush.bf16.msra.mxu0 %v2540
    %3722 = vmatpush.bf16.msra.mxu0 %v2526
    %3723 = vmatpush.bf16.msra.mxu0 %v2512
    %3724 = vmatmul.bf16.gmra.mxu0 %v260
    %v3725 = vpop.f32.mrf.mxu0
    %v3726 = vadd.f32 %v3707, %v3725
    %v3727 = vpop.f32.mrf.mxu0
    %v3728 = vadd.f32 %v3709, %v3727
    %3729 = vmatmul.bf16.gmra.mxu0 %v265
    %v3730 = vpop.f32.mrf.mxu0
    %v3731 = vadd.f32 %v3712, %v3730
    %v3732 = vpop.f32.mrf.mxu0
    %v3733 = vadd.f32 %v3714, %v3732
    %3734 = vdwg.mxu0
    %3735 = vmatpush.bf16.msra.mxu0 %v2722
    %3736 = vmatpush.bf16.msra.mxu0 %v2708
    %3737 = vmatpush.bf16.msra.mxu0 %v2694
    %3738 = vmatpush.bf16.msra.mxu0 %v2680
    %3739 = vmatpush.bf16.msra.mxu0 %v2666
    %3740 = vmatpush.bf16.msra.mxu0 %v2652
    %3741 = vmatpush.bf16.msra.mxu0 %v2638
    %3742 = vmatpush.bf16.msra.mxu0 %v2624
    %3743 = vmatmul.bf16.gmra.mxu0 %v261
    %v3744 = vpop.f32.mrf.mxu0
    %v3745 = vadd.f32 %v3726, %v3744
    %v3746 = vpop.f32.mrf.mxu0
    %v3747 = vadd.f32 %v3728, %v3746
    %3748 = vmatmul.bf16.gmra.mxu0 %v266
    %v3749 = vpop.f32.mrf.mxu0
    %v3750 = vadd.f32 %v3731, %v3749
    %v3751 = vpop.f32.mrf.mxu0
    %v3752 = vadd.f32 %v3733, %v3751
    %3753 = vdwg.mxu0
    %3754 = vmatpush.bf16.msra.mxu0 0
    %3755 = vmatpush.bf16.msra.mxu0 0
    %3756 = vmatpush.bf16.msra.mxu0 0
    %3757 = vmatpush.bf16.msra.mxu0 0
    %3758 = vmatpush.bf16.msra.mxu0 %v2778
    %3759 = vmatpush.bf16.msra.mxu0 %v2764
    %3760 = vmatpush.bf16.msra.mxu0 %v2750
    %3761 = vmatpush.bf16.msra.mxu0 %v2736
    %3762 = vmatmul.bf16.gmra.mxu0 %v3293
    %v3763 = vpop.f32.mrf.mxu0
    %v3764 = vadd.f32 %v3745, %v3763
    %v3765 = vpop.f32.mrf.mxu0
    %v3766 = vadd.f32 %v3747, %v3765
    %3767 = vmatmul.bf16.gmra.mxu0 %v3296
    %v3768 = vpop.f32.mrf.mxu0
    %v3769 = vadd.f32 %v3750, %v3768
    %v3770 = vpop.f32.mrf.mxu0
    %v3771 = vadd.f32 %v3752, %v3770
    %3772 = vdwg.mxu0
    %3773 = vmatpush.bf16.msra.mxu0 %v2387
    %3774 = vmatpush.bf16.msra.mxu0 %v2373
    %3775 = vmatpush.bf16.msra.mxu0 %v2359
    %3776 = vmatpush.bf16.msra.mxu0 %v2345
    %3777 = vmatpush.bf16.msra.mxu0 %v2331
    %3778 = vmatpush.bf16.msra.mxu0 %v2317
    %3779 = vmatpush.bf16.msra.mxu0 %v2303
    %3780 = vmatpush.bf16.msra.mxu0 %v2289
    %3781 = vmatmul.bf16.gmra.mxu0 %v258
    %v3782 = vpop.f32.mrf.mxu0
    %v3783 = vadd.f32 0.0, %v3782
    %v3784 = vpop.f32.mrf.mxu0
    %v3785 = vadd.f32 0.0, %v3784
    %3786 = vmatmul.bf16.gmra.mxu0 %v263
    %v3787 = vpop.f32.mrf.mxu0
    %v3788 = vadd.f32 0.0, %v3787
    %v3789 = vpop.f32.mrf.mxu0
    %v3790 = vadd.f32 0.0, %v3789
    %3791 = vdwg.mxu0
    %3792 = vmatpush.bf16.msra.mxu0 %v2499
    %3793 = vmatpush.bf16.msra.mxu0 %v2485
    %3794 = vmatpush.bf16.msra.mxu0 %v2471
    %3795 = vmatpush.bf16.msra.mxu0 %v2457
    %3796 = vmatpush.bf16.msra.mxu0 %v2443
    %3797 = vmatpush.bf16.msra.mxu0 %v2429
    %3798 = vmatpush.bf16.msra.mxu0 %v2415
    %3799 = vmatpush.bf16.msra.mxu0 %v2401
    %3800 = vmatmul.bf16.gmra.mxu0 %v259
    %v3801 = vpop.f32.mrf.mxu0
    %v3802 = vadd.f32 %v3783, %v3801
    %v3803 = vpop.f32.mrf.mxu0
    %v3804 = vadd.f32 %v3785, %v3803
    %3805 = vmatmul.bf16.gmra.mxu0 %v264
    %v3806 = vpop.f32.mrf.mxu0
    %v3807 = vadd.f32 %v3788, %v3806
    %v3808 = vpop.f32.mrf.mxu0
    %v3809 = vadd.f32 %v3790, %v3808
    %3810 = vdwg.mxu0
    %3811 = vmatpush.bf16.msra.mxu0 %v2611
    %3812 = vmatpush.bf16.msra.mxu0 %v2597
    %3813 = vmatpush.bf16.msra.mxu0 %v2583
    %3814 = vmatpush.bf16.msra.mxu0 %v2569
    %3815 = vmatpush.bf16.msra.mxu0 %v2555
    %3816 = vmatpush.bf16.msra.mxu0 %v2541
    %3817 = vmatpush.bf16.msra.mxu0 %v2527
    %3818 = vmatpush.bf16.msra.mxu0 %v2513
    %3819 = vmatmul.bf16.gmra.mxu0 %v260
    %v3820 = vpop.f32.mrf.mxu0
    %v3821 = vadd.f32 %v3802, %v3820
    %v3822 = vpop.f32.mrf.mxu0
    %v3823 = vadd.f32 %v3804, %v3822
    %3824 = vmatmul.bf16.gmra.mxu0 %v265
    %v3825 = vpop.f32.mrf.mxu0
    %v3826 = vadd.f32 %v3807, %v3825
    %v3827 = vpop.f32.mrf.mxu0
    %v3828 = vadd.f32 %v3809, %v3827
    %3829 = vdwg.mxu0
    %3830 = vmatpush.bf16.msra.mxu0 %v2723
    %3831 = vmatpush.bf16.msra.mxu0 %v2709
    %3832 = vmatpush.bf16.msra.mxu0 %v2695
    %3833 = vmatpush.bf16.msra.mxu0 %v2681
    %3834 = vmatpush.bf16.msra.mxu0 %v2667
    %3835 = vmatpush.bf16.msra.mxu0 %v2653
    %3836 = vmatpush.bf16.msra.mxu0 %v2639
    %3837 = vmatpush.bf16.msra.mxu0 %v2625
    %3838 = vmatmul.bf16.gmra.mxu0 %v261
    %v3839 = vpop.f32.mrf.mxu0
    %v3840 = vadd.f32 %v3821, %v3839
    %v3841 = vpop.f32.mrf.mxu0
    %v3842 = vadd.f32 %v3823, %v3841
    %3843 = vmatmul.bf16.gmra.mxu0 %v266
    %v3844 = vpop.f32.mrf.mxu0
    %v3845 = vadd.f32 %v3826, %v3844
    %v3846 = vpop.f32.mrf.mxu0
    %v3847 = vadd.f32 %v3828, %v3846
    %3848 = vdwg.mxu0
    %3849 = vmatpush.bf16.msra.mxu0 0
    %3850 = vmatpush.bf16.msra.mxu0 0
    %3851 = vmatpush.bf16.msra.mxu0 0
    %3852 = vmatpush.bf16.msra.mxu0 0
    %3853 = vmatpush.bf16.msra.mxu0 %v2779
    %3854 = vmatpush.bf16.msra.mxu0 %v2765
    %3855 = vmatpush.bf16.msra.mxu0 %v2751
    %3856 = vmatpush.bf16.msra.mxu0 %v2737
    %3857 = vmatmul.bf16.gmra.mxu0 %v3293
    %v3858 = vpop.f32.mrf.mxu0
    %v3859 = vadd.f32 %v3840, %v3858
    %v3860 = vpop.f32.mrf.mxu0
    %v3861 = vadd.f32 %v3842, %v3860
    %3862 = vmatmul.bf16.gmra.mxu0 %v3296
    %v3863 = vpop.f32.mrf.mxu0
    %v3864 = vadd.f32 %v3845, %v3863
    %v3865 = vpop.f32.mrf.mxu0
    %v3866 = vadd.f32 %v3847, %v3865
    %3867 = vdwg.mxu0
    %3868 = vmatpush.bf16.msra.mxu0 %v2388
    %3869 = vmatpush.bf16.msra.mxu0 %v2374
    %3870 = vmatpush.bf16.msra.mxu0 %v2360
    %3871 = vmatpush.bf16.msra.mxu0 %v2346
    %3872 = vmatpush.bf16.msra.mxu0 %v2332
    %3873 = vmatpush.bf16.msra.mxu0 %v2318
    %3874 = vmatpush.bf16.msra.mxu0 %v2304
    %3875 = vmatpush.bf16.msra.mxu0 %v2290
    %3876 = vmatmul.bf16.gmra.mxu0 %v258
    %v3877 = vpop.f32.mrf.mxu0
    %v3878 = vadd.f32 0.0, %v3877
    %v3879 = vpop.f32.mrf.mxu0
    %v3880 = vadd.f32 0.0, %v3879
    %3881 = vmatmul.bf16.gmra.mxu0 %v263
    %v3882 = vpop.f32.mrf.mxu0
    %v3883 = vadd.f32 0.0, %v3882
    %v3884 = vpop.f32.mrf.mxu0
    %v3885 = vadd.f32 0.0, %v3884
    %3886 = vdwg.mxu0
    %3887 = vmatpush.bf16.msra.mxu0 %v2500
    %3888 = vmatpush.bf16.msra.mxu0 %v2486
    %3889 = vmatpush.bf16.msra.mxu0 %v2472
    %3890 = vmatpush.bf16.msra.mxu0 %v2458
    %3891 = vmatpush.bf16.msra.mxu0 %v2444
    %3892 = vmatpush.bf16.msra.mxu0 %v2430
    %3893 = vmatpush.bf16.msra.mxu0 %v2416
    %3894 = vmatpush.bf16.msra.mxu0 %v2402
    %3895 = vmatmul.bf16.gmra.mxu0 %v259
    %v3896 = vpop.f32.mrf.mxu0
    %v3897 = vadd.f32 %v3878, %v3896
    %v3898 = vpop.f32.mrf.mxu0
    %v3899 = vadd.f32 %v3880, %v3898
    %3900 = vmatmul.bf16.gmra.mxu0 %v264
    %v3901 = vpop.f32.mrf.mxu0
    %v3902 = vadd.f32 %v3883, %v3901
    %v3903 = vpop.f32.mrf.mxu0
    %v3904 = vadd.f32 %v3885, %v3903
    %3905 = vdwg.mxu0
    %3906 = vmatpush.bf16.msra.mxu0 %v2612
    %3907 = vmatpush.bf16.msra.mxu0 %v2598
    %3908 = vmatpush.bf16.msra.mxu0 %v2584
    %3909 = vmatpush.bf16.msra.mxu0 %v2570
    %3910 = vmatpush.bf16.msra.mxu0 %v2556
    %3911 = vmatpush.bf16.msra.mxu0 %v2542
    %3912 = vmatpush.bf16.msra.mxu0 %v2528
    %3913 = vmatpush.bf16.msra.mxu0 %v2514
    %3914 = vmatmul.bf16.gmra.mxu0 %v260
    %v3915 = vpop.f32.mrf.mxu0
    %v3916 = vadd.f32 %v3897, %v3915
    %v3917 = vpop.f32.mrf.mxu0
    %v3918 = vadd.f32 %v3899, %v3917
    %3919 = vmatmul.bf16.gmra.mxu0 %v265
    %v3920 = vpop.f32.mrf.mxu0
    %v3921 = vadd.f32 %v3902, %v3920
    %v3922 = vpop.f32.mrf.mxu0
    %v3923 = vadd.f32 %v3904, %v3922
    %3924 = vdwg.mxu0
    %3925 = vmatpush.bf16.msra.mxu0 %v2724
    %3926 = vmatpush.bf16.msra.mxu0 %v2710
    %3927 = vmatpush.bf16.msra.mxu0 %v2696
    %3928 = vmatpush.bf16.msra.mxu0 %v2682
    %3929 = vmatpush.bf16.msra.mxu0 %v2668
    %3930 = vmatpush.bf16.msra.mxu0 %v2654
    %3931 = vmatpush.bf16.msra.mxu0 %v2640
    %3932 = vmatpush.bf16.msra.mxu0 %v2626
    %3933 = vmatmul.bf16.gmra.mxu0 %v261
    %v3934 = vpop.f32.mrf.mxu0
    %v3935 = vadd.f32 %v3916, %v3934
    %v3936 = vpop.f32.mrf.mxu0
    %v3937 = vadd.f32 %v3918, %v3936
    %3938 = vmatmul.bf16.gmra.mxu0 %v266
    %v3939 = vpop.f32.mrf.mxu0
    %v3940 = vadd.f32 %v3921, %v3939
    %v3941 = vpop.f32.mrf.mxu0
    %v3942 = vadd.f32 %v3923, %v3941
    %3943 = vdwg.mxu0
    %3944 = vmatpush.bf16.msra.mxu0 0
    %3945 = vmatpush.bf16.msra.mxu0 0
    %3946 = vmatpush.bf16.msra.mxu0 0
    %3947 = vmatpush.bf16.msra.mxu0 0
    %3948 = vmatpush.bf16.msra.mxu0 %v2780
    %3949 = vmatpush.bf16.msra.mxu0 %v2766
    %3950 = vmatpush.bf16.msra.mxu0 %v2752
    %3951 = vmatpush.bf16.msra.mxu0 %v2738
    %3952 = vmatmul.bf16.gmra.mxu0 %v3293
    %v3953 = vpop.f32.mrf.mxu0
    %v3954 = vadd.f32 %v3935, %v3953
    %v3955 = vpop.f32.mrf.mxu0
    %v3956 = vadd.f32 %v3937, %v3955
    %3957 = vmatmul.bf16.gmra.mxu0 %v3296
    %v3958 = vpop.f32.mrf.mxu0
    %v3959 = vadd.f32 %v3940, %v3958
    %v3960 = vpop.f32.mrf.mxu0
    %v3961 = vadd.f32 %v3942, %v3960
    %3962 = vdwg.mxu0
    %3963 = vmatpush.bf16.msra.mxu0 %v2389
    %3964 = vmatpush.bf16.msra.mxu0 %v2375
    %3965 = vmatpush.bf16.msra.mxu0 %v2361
    %3966 = vmatpush.bf16.msra.mxu0 %v2347
    %3967 = vmatpush.bf16.msra.mxu0 %v2333
    %3968 = vmatpush.bf16.msra.mxu0 %v2319
    %3969 = vmatpush.bf16.msra.mxu0 %v2305
    %3970 = vmatpush.bf16.msra.mxu0 %v2291
    %3971 = vmatmul.bf16.gmra.mxu0 %v258
    %v3972 = vpop.f32.mrf.mxu0
    %v3973 = vadd.f32 0.0, %v3972
    %v3974 = vpop.f32.mrf.mxu0
    %v3975 = vadd.f32 0.0, %v3974
    %3976 = vmatmul.bf16.gmra.mxu0 %v263
    %v3977 = vpop.f32.mrf.mxu0
    %v3978 = vadd.f32 0.0, %v3977
    %v3979 = vpop.f32.mrf.mxu0
    %v3980 = vadd.f32 0.0, %v3979
    %3981 = vdwg.mxu0
    %3982 = vmatpush.bf16.msra.mxu0 %v2501
    %3983 = vmatpush.bf16.msra.mxu0 %v2487
    %3984 = vmatpush.bf16.msra.mxu0 %v2473
    %3985 = vmatpush.bf16.msra.mxu0 %v2459
    %3986 = vmatpush.bf16.msra.mxu0 %v2445
    %3987 = vmatpush.bf16.msra.mxu0 %v2431
    %3988 = vmatpush.bf16.msra.mxu0 %v2417
    %3989 = vmatpush.bf16.msra.mxu0 %v2403
    %3990 = vmatmul.bf16.gmra.mxu0 %v259
    %v3991 = vpop.f32.mrf.mxu0
    %v3992 = vadd.f32 %v3973, %v3991
    %v3993 = vpop.f32.mrf.mxu0
    %v3994 = vadd.f32 %v3975, %v3993
    %3995 = vmatmul.bf16.gmra.mxu0 %v264
    %v3996 = vpop.f32.mrf.mxu0
    %v3997 = vadd.f32 %v3978, %v3996
    %v3998 = vpop.f32.mrf.mxu0
    %v3999 = vadd.f32 %v3980, %v3998
    %4000 = vdwg.mxu0
    %4001 = vmatpush.bf16.msra.mxu0 %v2613
    %4002 = vmatpush.bf16.msra.mxu0 %v2599
    %4003 = vmatpush.bf16.msra.mxu0 %v2585
    %4004 = vmatpush.bf16.msra.mxu0 %v2571
    %4005 = vmatpush.bf16.msra.mxu0 %v2557
    %4006 = vmatpush.bf16.msra.mxu0 %v2543
    %4007 = vmatpush.bf16.msra.mxu0 %v2529
    %4008 = vmatpush.bf16.msra.mxu0 %v2515
    %4009 = vmatmul.bf16.gmra.mxu0 %v260
    %v4010 = vpop.f32.mrf.mxu0
    %v4011 = vadd.f32 %v3992, %v4010
    %v4012 = vpop.f32.mrf.mxu0
    %v4013 = vadd.f32 %v3994, %v4012
    %4014 = vmatmul.bf16.gmra.mxu0 %v265
    %v4015 = vpop.f32.mrf.mxu0
    %v4016 = vadd.f32 %v3997, %v4015
    %v4017 = vpop.f32.mrf.mxu0
    %v4018 = vadd.f32 %v3999, %v4017
    %4019 = vdwg.mxu0
    %4020 = vmatpush.bf16.msra.mxu0 %v2725
    %4021 = vmatpush.bf16.msra.mxu0 %v2711
    %4022 = vmatpush.bf16.msra.mxu0 %v2697
    %4023 = vmatpush.bf16.msra.mxu0 %v2683
    %4024 = vmatpush.bf16.msra.mxu0 %v2669
    %4025 = vmatpush.bf16.msra.mxu0 %v2655
    %4026 = vmatpush.bf16.msra.mxu0 %v2641
    %4027 = vmatpush.bf16.msra.mxu0 %v2627
    %4028 = vmatmul.bf16.gmra.mxu0 %v261
    %v4029 = vpop.f32.mrf.mxu0
    %v4030 = vadd.f32 %v4011, %v4029
    %v4031 = vpop.f32.mrf.mxu0
    %v4032 = vadd.f32 %v4013, %v4031
    %4033 = vmatmul.bf16.gmra.mxu0 %v266
    %v4034 = vpop.f32.mrf.mxu0
    %v4035 = vadd.f32 %v4016, %v4034
    %v4036 = vpop.f32.mrf.mxu0
    %v4037 = vadd.f32 %v4018, %v4036
    %4038 = vdwg.mxu0
    %4039 = vmatpush.bf16.msra.mxu0 0
    %4040 = vmatpush.bf16.msra.mxu0 0
    %4041 = vmatpush.bf16.msra.mxu0 0
    %4042 = vmatpush.bf16.msra.mxu0 0
    %4043 = vmatpush.bf16.msra.mxu0 %v2781
    %4044 = vmatpush.bf16.msra.mxu0 %v2767
    %4045 = vmatpush.bf16.msra.mxu0 %v2753
    %4046 = vmatpush.bf16.msra.mxu0 %v2739
    %4047 = vmatmul.bf16.gmra.mxu0 %v3293
    %v4048 = vpop.f32.mrf.mxu0
    %v4049 = vadd.f32 %v4030, %v4048
    %v4050 = vpop.f32.mrf.mxu0
    %v4051 = vadd.f32 %v4032, %v4050
    %4052 = vmatmul.bf16.gmra.mxu0 %v3296
    %v4053 = vpop.f32.mrf.mxu0
    %v4054 = vadd.f32 %v4035, %v4053
    %v4055 = vpop.f32.mrf.mxu0
    %v4056 = vadd.f32 %v4037, %v4055
    %4057 = vdwg.mxu0
    %4058 = vmatpush.bf16.msra.mxu0 %v2390
    %4059 = vmatpush.bf16.msra.mxu0 %v2376
    %4060 = vmatpush.bf16.msra.mxu0 %v2362
    %4061 = vmatpush.bf16.msra.mxu0 %v2348
    %4062 = vmatpush.bf16.msra.mxu0 %v2334
    %4063 = vmatpush.bf16.msra.mxu0 %v2320
    %4064 = vmatpush.bf16.msra.mxu0 %v2306
    %4065 = vmatpush.bf16.msra.mxu0 %v2292
    %4066 = vmatmul.bf16.gmra.mxu0 %v258
    %v4067 = vpop.f32.mrf.mxu0
    %v4068 = vadd.f32 0.0, %v4067
    %v4069 = vpop.f32.mrf.mxu0
    %v4070 = vadd.f32 0.0, %v4069
    %4071 = vmatmul.bf16.gmra.mxu0 %v263
    %v4072 = vpop.f32.mrf.mxu0
    %v4073 = vadd.f32 0.0, %v4072
    %v4074 = vpop.f32.mrf.mxu0
    %v4075 = vadd.f32 0.0, %v4074
    %4076 = vdwg.mxu0
    %4077 = vmatpush.bf16.msra.mxu0 %v2502
    %4078 = vmatpush.bf16.msra.mxu0 %v2488
    %4079 = vmatpush.bf16.msra.mxu0 %v2474
    %4080 = vmatpush.bf16.msra.mxu0 %v2460
    %4081 = vmatpush.bf16.msra.mxu0 %v2446
    %4082 = vmatpush.bf16.msra.mxu0 %v2432
    %4083 = vmatpush.bf16.msra.mxu0 %v2418
    %4084 = vmatpush.bf16.msra.mxu0 %v2404
    %4085 = vmatmul.bf16.gmra.mxu0 %v259
    %v4086 = vpop.f32.mrf.mxu0
    %v4087 = vadd.f32 %v4068, %v4086
    %v4088 = vpop.f32.mrf.mxu0
    %v4089 = vadd.f32 %v4070, %v4088
    %4090 = vmatmul.bf16.gmra.mxu0 %v264
    %v4091 = vpop.f32.mrf.mxu0
    %v4092 = vadd.f32 %v4073, %v4091
    %v4093 = vpop.f32.mrf.mxu0
    %v4094 = vadd.f32 %v4075, %v4093
    %4095 = vdwg.mxu0
    %4096 = vmatpush.bf16.msra.mxu0 %v2614
    %4097 = vmatpush.bf16.msra.mxu0 %v2600
    %4098 = vmatpush.bf16.msra.mxu0 %v2586
    %4099 = vmatpush.bf16.msra.mxu0 %v2572
    %4100 = vmatpush.bf16.msra.mxu0 %v2558
    %4101 = vmatpush.bf16.msra.mxu0 %v2544
    %4102 = vmatpush.bf16.msra.mxu0 %v2530
    %4103 = vmatpush.bf16.msra.mxu0 %v2516
    %4104 = vmatmul.bf16.gmra.mxu0 %v260
    %v4105 = vpop.f32.mrf.mxu0
    %v4106 = vadd.f32 %v4087, %v4105
    %v4107 = vpop.f32.mrf.mxu0
    %v4108 = vadd.f32 %v4089, %v4107
    %4109 = vmatmul.bf16.gmra.mxu0 %v265
    %v4110 = vpop.f32.mrf.mxu0
    %v4111 = vadd.f32 %v4092, %v4110
    %v4112 = vpop.f32.mrf.mxu0
    %v4113 = vadd.f32 %v4094, %v4112
    %4114 = vdwg.mxu0
    %4115 = vmatpush.bf16.msra.mxu0 %v2726
    %4116 = vmatpush.bf16.msra.mxu0 %v2712
    %4117 = vmatpush.bf16.msra.mxu0 %v2698
    %4118 = vmatpush.bf16.msra.mxu0 %v2684
    %4119 = vmatpush.bf16.msra.mxu0 %v2670
    %4120 = vmatpush.bf16.msra.mxu0 %v2656
    %4121 = vmatpush.bf16.msra.mxu0 %v2642
    %4122 = vmatpush.bf16.msra.mxu0 %v2628
    %4123 = vmatmul.bf16.gmra.mxu0 %v261
    %v4124 = vpop.f32.mrf.mxu0
    %v4125 = vadd.f32 %v4106, %v4124
    %v4126 = vpop.f32.mrf.mxu0
    %v4127 = vadd.f32 %v4108, %v4126
    %4128 = vmatmul.bf16.gmra.mxu0 %v266
    %v4129 = vpop.f32.mrf.mxu0
    %v4130 = vadd.f32 %v4111, %v4129
    %v4131 = vpop.f32.mrf.mxu0
    %v4132 = vadd.f32 %v4113, %v4131
    %4133 = vdwg.mxu0
    %4134 = vmatpush.bf16.msra.mxu0 0
    %4135 = vmatpush.bf16.msra.mxu0 0
    %4136 = vmatpush.bf16.msra.mxu0 0
    %4137 = vmatpush.bf16.msra.mxu0 0
    %4138 = vmatpush.bf16.msra.mxu0 %v2782
    %4139 = vmatpush.bf16.msra.mxu0 %v2768
    %4140 = vmatpush.bf16.msra.mxu0 %v2754
    %4141 = vmatpush.bf16.msra.mxu0 %v2740
    %4142 = vmatmul.bf16.gmra.mxu0 %v3293
    %v4143 = vpop.f32.mrf.mxu0
    %v4144 = vadd.f32 %v4125, %v4143
    %v4145 = vpop.f32.mrf.mxu0
    %v4146 = vadd.f32 %v4127, %v4145
    %4147 = vmatmul.bf16.gmra.mxu0 %v3296
    %v4148 = vpop.f32.mrf.mxu0
    %v4149 = vadd.f32 %v4130, %v4148
    %v4150 = vpop.f32.mrf.mxu0
    %v4151 = vadd.f32 %v4132, %v4150
    %4152 = vdwg.mxu0
    %4153 = vmatpush.bf16.msra.mxu0 %v2391
    %4154 = vmatpush.bf16.msra.mxu0 %v2377
    %4155 = vmatpush.bf16.msra.mxu0 %v2363
    %4156 = vmatpush.bf16.msra.mxu0 %v2349
    %4157 = vmatpush.bf16.msra.mxu0 %v2335
    %4158 = vmatpush.bf16.msra.mxu0 %v2321
    %4159 = vmatpush.bf16.msra.mxu0 %v2307
    %4160 = vmatpush.bf16.msra.mxu0 %v2293
    %4161 = vmatmul.bf16.gmra.mxu0 %v258
    %v4162 = vpop.f32.mrf.mxu0
    %v4163 = vadd.f32 0.0, %v4162
    %v4164 = vpop.f32.mrf.mxu0
    %v4165 = vadd.f32 0.0, %v4164
    %4166 = vmatmul.bf16.gmra.mxu0 %v263
    %v4167 = vpop.f32.mrf.mxu0
    %v4168 = vadd.f32 0.0, %v4167
    %v4169 = vpop.f32.mrf.mxu0
    %v4170 = vadd.f32 0.0, %v4169
    %4171 = vdwg.mxu0
    %4172 = vmatpush.bf16.msra.mxu0 %v2503
    %4173 = vmatpush.bf16.msra.mxu0 %v2489
    %4174 = vmatpush.bf16.msra.mxu0 %v2475
    %4175 = vmatpush.bf16.msra.mxu0 %v2461
    %4176 = vmatpush.bf16.msra.mxu0 %v2447
    %4177 = vmatpush.bf16.msra.mxu0 %v2433
    %4178 = vmatpush.bf16.msra.mxu0 %v2419
    %4179 = vmatpush.bf16.msra.mxu0 %v2405
    %4180 = vmatmul.bf16.gmra.mxu0 %v259
    %v4181 = vpop.f32.mrf.mxu0
    %v4182 = vadd.f32 %v4163, %v4181
    %v4183 = vpop.f32.mrf.mxu0
    %v4184 = vadd.f32 %v4165, %v4183
    %4185 = vmatmul.bf16.gmra.mxu0 %v264
    %v4186 = vpop.f32.mrf.mxu0
    %v4187 = vadd.f32 %v4168, %v4186
    %v4188 = vpop.f32.mrf.mxu0
    %v4189 = vadd.f32 %v4170, %v4188
    %4190 = vdwg.mxu0
    %4191 = vmatpush.bf16.msra.mxu0 %v2615
    %4192 = vmatpush.bf16.msra.mxu0 %v2601
    %4193 = vmatpush.bf16.msra.mxu0 %v2587
    %4194 = vmatpush.bf16.msra.mxu0 %v2573
    %4195 = vmatpush.bf16.msra.mxu0 %v2559
    %4196 = vmatpush.bf16.msra.mxu0 %v2545
    %4197 = vmatpush.bf16.msra.mxu0 %v2531
    %4198 = vmatpush.bf16.msra.mxu0 %v2517
    %4199 = vmatmul.bf16.gmra.mxu0 %v260
    %v4200 = vpop.f32.mrf.mxu0
    %v4201 = vadd.f32 %v4182, %v4200
    %v4202 = vpop.f32.mrf.mxu0
    %v4203 = vadd.f32 %v4184, %v4202
    %4204 = vmatmul.bf16.gmra.mxu0 %v265
    %v4205 = vpop.f32.mrf.mxu0
    %v4206 = vadd.f32 %v4187, %v4205
    %v4207 = vpop.f32.mrf.mxu0
    %v4208 = vadd.f32 %v4189, %v4207
    %4209 = vdwg.mxu0
    %4210 = vmatpush.bf16.msra.mxu0 %v2727
    %4211 = vmatpush.bf16.msra.mxu0 %v2713
    %4212 = vmatpush.bf16.msra.mxu0 %v2699
    %4213 = vmatpush.bf16.msra.mxu0 %v2685
    %4214 = vmatpush.bf16.msra.mxu0 %v2671
    %4215 = vmatpush.bf16.msra.mxu0 %v2657
    %4216 = vmatpush.bf16.msra.mxu0 %v2643
    %4217 = vmatpush.bf16.msra.mxu0 %v2629
    %4218 = vmatmul.bf16.gmra.mxu0 %v261
    %v4219 = vpop.f32.mrf.mxu0
    %v4220 = vadd.f32 %v4201, %v4219
    %v4221 = vpop.f32.mrf.mxu0
    %v4222 = vadd.f32 %v4203, %v4221
    %4223 = vmatmul.bf16.gmra.mxu0 %v266
    %v4224 = vpop.f32.mrf.mxu0
    %v4225 = vadd.f32 %v4206, %v4224
    %v4226 = vpop.f32.mrf.mxu0
    %v4227 = vadd.f32 %v4208, %v4226
    %4228 = vdwg.mxu0
    %4229 = vmatpush.bf16.msra.mxu0 0
    %4230 = vmatpush.bf16.msra.mxu0 0
    %4231 = vmatpush.bf16.msra.mxu0 0
    %4232 = vmatpush.bf16.msra.mxu0 0
    %4233 = vmatpush.bf16.msra.mxu0 %v2783
    %4234 = vmatpush.bf16.msra.mxu0 %v2769
    %4235 = vmatpush.bf16.msra.mxu0 %v2755
    %4236 = vmatpush.bf16.msra.mxu0 %v2741
    %4237 = vmatmul.bf16.gmra.mxu0 %v3293
    %v4238 = vpop.f32.mrf.mxu0
    %v4239 = vadd.f32 %v4220, %v4238
    %v4240 = vpop.f32.mrf.mxu0
    %v4241 = vadd.f32 %v4222, %v4240
    %4242 = vmatmul.bf16.gmra.mxu0 %v3296
    %v4243 = vpop.f32.mrf.mxu0
    %v4244 = vadd.f32 %v4225, %v4243
    %v4245 = vpop.f32.mrf.mxu0
    %v4246 = vadd.f32 %v4227, %v4245
    %4247 = vdwg.mxu0
    %4248 = vmatpush.bf16.msra.mxu0 %v2392
    %4249 = vmatpush.bf16.msra.mxu0 %v2378
    %4250 = vmatpush.bf16.msra.mxu0 %v2364
    %4251 = vmatpush.bf16.msra.mxu0 %v2350
    %4252 = vmatpush.bf16.msra.mxu0 %v2336
    %4253 = vmatpush.bf16.msra.mxu0 %v2322
    %4254 = vmatpush.bf16.msra.mxu0 %v2308
    %4255 = vmatpush.bf16.msra.mxu0 %v2294
    %4256 = vmatmul.bf16.gmra.mxu0 %v258
    %v4257 = vpop.f32.mrf.mxu0
    %v4258 = vadd.f32 0.0, %v4257
    %v4259 = vpop.f32.mrf.mxu0
    %v4260 = vadd.f32 0.0, %v4259
    %4261 = vmatmul.bf16.gmra.mxu0 %v263
    %v4262 = vpop.f32.mrf.mxu0
    %v4263 = vadd.f32 0.0, %v4262
    %v4264 = vpop.f32.mrf.mxu0
    %v4265 = vadd.f32 0.0, %v4264
    %4266 = vdwg.mxu0
    %4267 = vmatpush.bf16.msra.mxu0 %v2504
    %4268 = vmatpush.bf16.msra.mxu0 %v2490
    %4269 = vmatpush.bf16.msra.mxu0 %v2476
    %4270 = vmatpush.bf16.msra.mxu0 %v2462
    %4271 = vmatpush.bf16.msra.mxu0 %v2448
    %4272 = vmatpush.bf16.msra.mxu0 %v2434
    %4273 = vmatpush.bf16.msra.mxu0 %v2420
    %4274 = vmatpush.bf16.msra.mxu0 %v2406
    %4275 = vmatmul.bf16.gmra.mxu0 %v259
    %v4276 = vpop.f32.mrf.mxu0
    %v4277 = vadd.f32 %v4258, %v4276
    %v4278 = vpop.f32.mrf.mxu0
    %v4279 = vadd.f32 %v4260, %v4278
    %4280 = vmatmul.bf16.gmra.mxu0 %v264
    %v4281 = vpop.f32.mrf.mxu0
    %v4282 = vadd.f32 %v4263, %v4281
    %v4283 = vpop.f32.mrf.mxu0
    %v4284 = vadd.f32 %v4265, %v4283
    %4285 = vdwg.mxu0
    %4286 = vmatpush.bf16.msra.mxu0 %v2616
    %4287 = vmatpush.bf16.msra.mxu0 %v2602
    %4288 = vmatpush.bf16.msra.mxu0 %v2588
    %4289 = vmatpush.bf16.msra.mxu0 %v2574
    %4290 = vmatpush.bf16.msra.mxu0 %v2560
    %4291 = vmatpush.bf16.msra.mxu0 %v2546
    %4292 = vmatpush.bf16.msra.mxu0 %v2532
    %4293 = vmatpush.bf16.msra.mxu0 %v2518
    %4294 = vmatmul.bf16.gmra.mxu0 %v260
    %v4295 = vpop.f32.mrf.mxu0
    %v4296 = vadd.f32 %v4277, %v4295
    %v4297 = vpop.f32.mrf.mxu0
    %v4298 = vadd.f32 %v4279, %v4297
    %4299 = vmatmul.bf16.gmra.mxu0 %v265
    %v4300 = vpop.f32.mrf.mxu0
    %v4301 = vadd.f32 %v4282, %v4300
    %v4302 = vpop.f32.mrf.mxu0
    %v4303 = vadd.f32 %v4284, %v4302
    %4304 = vdwg.mxu0
    %4305 = vmatpush.bf16.msra.mxu0 %v2728
    %4306 = vmatpush.bf16.msra.mxu0 %v2714
    %4307 = vmatpush.bf16.msra.mxu0 %v2700
    %4308 = vmatpush.bf16.msra.mxu0 %v2686
    %4309 = vmatpush.bf16.msra.mxu0 %v2672
    %4310 = vmatpush.bf16.msra.mxu0 %v2658
    %4311 = vmatpush.bf16.msra.mxu0 %v2644
    %4312 = vmatpush.bf16.msra.mxu0 %v2630
    %4313 = vmatmul.bf16.gmra.mxu0 %v261
    %v4314 = vpop.f32.mrf.mxu0
    %v4315 = vadd.f32 %v4296, %v4314
    %v4316 = vpop.f32.mrf.mxu0
    %v4317 = vadd.f32 %v4298, %v4316
    %4318 = vmatmul.bf16.gmra.mxu0 %v266
    %v4319 = vpop.f32.mrf.mxu0
    %v4320 = vadd.f32 %v4301, %v4319
    %v4321 = vpop.f32.mrf.mxu0
    %v4322 = vadd.f32 %v4303, %v4321
    %4323 = vdwg.mxu0
    %4324 = vmatpush.bf16.msra.mxu0 0
    %4325 = vmatpush.bf16.msra.mxu0 0
    %4326 = vmatpush.bf16.msra.mxu0 0
    %4327 = vmatpush.bf16.msra.mxu0 0
    %4328 = vmatpush.bf16.msra.mxu0 %v2784
    %4329 = vmatpush.bf16.msra.mxu0 %v2770
    %4330 = vmatpush.bf16.msra.mxu0 %v2756
    %4331 = vmatpush.bf16.msra.mxu0 %v2742
    %4332 = vmatmul.bf16.gmra.mxu0 %v3293
    %v4333 = vpop.f32.mrf.mxu0
    %v4334 = vadd.f32 %v4315, %v4333
    %v4335 = vpop.f32.mrf.mxu0
    %v4336 = vadd.f32 %v4317, %v4335
    %4337 = vmatmul.bf16.gmra.mxu0 %v3296
    %v4338 = vpop.f32.mrf.mxu0
    %v4339 = vadd.f32 %v4320, %v4338
    %v4340 = vpop.f32.mrf.mxu0
    %v4341 = vadd.f32 %v4322, %v4340
    %4342 = vdwg.mxu0
    %4343 = vmatpush.bf16.msra.mxu0 %v2393
    %4344 = vmatpush.bf16.msra.mxu0 %v2379
    %4345 = vmatpush.bf16.msra.mxu0 %v2365
    %4346 = vmatpush.bf16.msra.mxu0 %v2351
    %4347 = vmatpush.bf16.msra.mxu0 %v2337
    %4348 = vmatpush.bf16.msra.mxu0 %v2323
    %4349 = vmatpush.bf16.msra.mxu0 %v2309
    %4350 = vmatpush.bf16.msra.mxu0 %v2295
    %4351 = vmatmul.bf16.gmra.mxu0 %v258
    %v4352 = vpop.f32.mrf.mxu0
    %v4353 = vadd.f32 0.0, %v4352
    %v4354 = vpop.f32.mrf.mxu0
    %v4355 = vadd.f32 0.0, %v4354
    %4356 = vmatmul.bf16.gmra.mxu0 %v263
    %v4357 = vpop.f32.mrf.mxu0
    %v4358 = vadd.f32 0.0, %v4357
    %v4359 = vpop.f32.mrf.mxu0
    %v4360 = vadd.f32 0.0, %v4359
    %4361 = vdwg.mxu0
    %4362 = vmatpush.bf16.msra.mxu0 %v2505
    %4363 = vmatpush.bf16.msra.mxu0 %v2491
    %4364 = vmatpush.bf16.msra.mxu0 %v2477
    %4365 = vmatpush.bf16.msra.mxu0 %v2463
    %4366 = vmatpush.bf16.msra.mxu0 %v2449
    %4367 = vmatpush.bf16.msra.mxu0 %v2435
    %4368 = vmatpush.bf16.msra.mxu0 %v2421
    %4369 = vmatpush.bf16.msra.mxu0 %v2407
    %4370 = vmatmul.bf16.gmra.mxu0 %v259
    %v4371 = vpop.f32.mrf.mxu0
    %v4372 = vadd.f32 %v4353, %v4371
    %v4373 = vpop.f32.mrf.mxu0
    %v4374 = vadd.f32 %v4355, %v4373
    %4375 = vmatmul.bf16.gmra.mxu0 %v264
    %v4376 = vpop.f32.mrf.mxu0
    %v4377 = vadd.f32 %v4358, %v4376
    %v4378 = vpop.f32.mrf.mxu0
    %v4379 = vadd.f32 %v4360, %v4378
    %4380 = vdwg.mxu0
    %4381 = vmatpush.bf16.msra.mxu0 %v2617
    %4382 = vmatpush.bf16.msra.mxu0 %v2603
    %4383 = vmatpush.bf16.msra.mxu0 %v2589
    %4384 = vmatpush.bf16.msra.mxu0 %v2575
    %4385 = vmatpush.bf16.msra.mxu0 %v2561
    %4386 = vmatpush.bf16.msra.mxu0 %v2547
    %4387 = vmatpush.bf16.msra.mxu0 %v2533
    %4388 = vmatpush.bf16.msra.mxu0 %v2519
    %4389 = vmatmul.bf16.gmra.mxu0 %v260
    %v4390 = vpop.f32.mrf.mxu0
    %v4391 = vadd.f32 %v4372, %v4390
    %v4392 = vpop.f32.mrf.mxu0
    %v4393 = vadd.f32 %v4374, %v4392
    %4394 = vmatmul.bf16.gmra.mxu0 %v265
    %v4395 = vpop.f32.mrf.mxu0
    %v4396 = vadd.f32 %v4377, %v4395
    %v4397 = vpop.f32.mrf.mxu0
    %v4398 = vadd.f32 %v4379, %v4397
    %4399 = vdwg.mxu0
    %4400 = vmatpush.bf16.msra.mxu0 %v2729
    %4401 = vmatpush.bf16.msra.mxu0 %v2715
    %4402 = vmatpush.bf16.msra.mxu0 %v2701
    %4403 = vmatpush.bf16.msra.mxu0 %v2687
    %4404 = vmatpush.bf16.msra.mxu0 %v2673
    %4405 = vmatpush.bf16.msra.mxu0 %v2659
    %4406 = vmatpush.bf16.msra.mxu0 %v2645
    %4407 = vmatpush.bf16.msra.mxu0 %v2631
    %4408 = vmatmul.bf16.gmra.mxu0 %v261
    %v4409 = vpop.f32.mrf.mxu0
    %v4410 = vadd.f32 %v4391, %v4409
    %v4411 = vpop.f32.mrf.mxu0
    %v4412 = vadd.f32 %v4393, %v4411
    %4413 = vmatmul.bf16.gmra.mxu0 %v266
    %v4414 = vpop.f32.mrf.mxu0
    %v4415 = vadd.f32 %v4396, %v4414
    %v4416 = vpop.f32.mrf.mxu0
    %v4417 = vadd.f32 %v4398, %v4416
    %4418 = vdwg.mxu0
    %4419 = vmatpush.bf16.msra.mxu0 0
    %4420 = vmatpush.bf16.msra.mxu0 0
    %4421 = vmatpush.bf16.msra.mxu0 0
    %4422 = vmatpush.bf16.msra.mxu0 0
    %4423 = vmatpush.bf16.msra.mxu0 %v2785
    %4424 = vmatpush.bf16.msra.mxu0 %v2771
    %4425 = vmatpush.bf16.msra.mxu0 %v2757
    %4426 = vmatpush.bf16.msra.mxu0 %v2743
    %4427 = vmatmul.bf16.gmra.mxu0 %v3293
    %v4428 = vpop.f32.mrf.mxu0
    %v4429 = vadd.f32 %v4410, %v4428
    %v4430 = vpop.f32.mrf.mxu0
    %v4431 = vadd.f32 %v4412, %v4430
    %4432 = vmatmul.bf16.gmra.mxu0 %v3296
    %v4433 = vpop.f32.mrf.mxu0
    %v4434 = vadd.f32 %v4415, %v4433
    %v4435 = vpop.f32.mrf.mxu0
    %v4436 = vadd.f32 %v4417, %v4435
    %4437 = vdwg.mxu0
    %4438 = vmatpush.bf16.msra.mxu0 %v2394
    %4439 = vmatpush.bf16.msra.mxu0 %v2380
    %4440 = vmatpush.bf16.msra.mxu0 %v2366
    %4441 = vmatpush.bf16.msra.mxu0 %v2352
    %4442 = vmatpush.bf16.msra.mxu0 %v2338
    %4443 = vmatpush.bf16.msra.mxu0 %v2324
    %4444 = vmatpush.bf16.msra.mxu0 %v2310
    %4445 = vmatpush.bf16.msra.mxu0 %v2296
    %4446 = vmatmul.bf16.gmra.mxu0 %v258
    %v4447 = vpop.f32.mrf.mxu0
    %v4448 = vadd.f32 0.0, %v4447
    %v4449 = vpop.f32.mrf.mxu0
    %v4450 = vadd.f32 0.0, %v4449
    %4451 = vmatmul.bf16.gmra.mxu0 %v263
    %v4452 = vpop.f32.mrf.mxu0
    %v4453 = vadd.f32 0.0, %v4452
    %v4454 = vpop.f32.mrf.mxu0
    %v4455 = vadd.f32 0.0, %v4454
    %4456 = vdwg.mxu0
    %4457 = vmatpush.bf16.msra.mxu0 %v2506
    %4458 = vmatpush.bf16.msra.mxu0 %v2492
    %4459 = vmatpush.bf16.msra.mxu0 %v2478
    %4460 = vmatpush.bf16.msra.mxu0 %v2464
    %4461 = vmatpush.bf16.msra.mxu0 %v2450
    %4462 = vmatpush.bf16.msra.mxu0 %v2436
    %4463 = vmatpush.bf16.msra.mxu0 %v2422
    %4464 = vmatpush.bf16.msra.mxu0 %v2408
    %4465 = vmatmul.bf16.gmra.mxu0 %v259
    %v4466 = vpop.f32.mrf.mxu0
    %v4467 = vadd.f32 %v4448, %v4466
    %v4468 = vpop.f32.mrf.mxu0
    %v4469 = vadd.f32 %v4450, %v4468
    %4470 = vmatmul.bf16.gmra.mxu0 %v264
    %v4471 = vpop.f32.mrf.mxu0
    %v4472 = vadd.f32 %v4453, %v4471
    %v4473 = vpop.f32.mrf.mxu0
    %v4474 = vadd.f32 %v4455, %v4473
    %4475 = vdwg.mxu0
    %4476 = vmatpush.bf16.msra.mxu0 %v2618
    %4477 = vmatpush.bf16.msra.mxu0 %v2604
    %4478 = vmatpush.bf16.msra.mxu0 %v2590
    %4479 = vmatpush.bf16.msra.mxu0 %v2576
    %4480 = vmatpush.bf16.msra.mxu0 %v2562
    %4481 = vmatpush.bf16.msra.mxu0 %v2548
    %4482 = vmatpush.bf16.msra.mxu0 %v2534
    %4483 = vmatpush.bf16.msra.mxu0 %v2520
    %4484 = vmatmul.bf16.gmra.mxu0 %v260
    %v4485 = vpop.f32.mrf.mxu0
    %v4486 = vadd.f32 %v4467, %v4485
    %v4487 = vpop.f32.mrf.mxu0
    %v4488 = vadd.f32 %v4469, %v4487
    %4489 = vmatmul.bf16.gmra.mxu0 %v265
    %v4490 = vpop.f32.mrf.mxu0
    %v4491 = vadd.f32 %v4472, %v4490
    %v4492 = vpop.f32.mrf.mxu0
    %v4493 = vadd.f32 %v4474, %v4492
    %4494 = vdwg.mxu0
    %4495 = vmatpush.bf16.msra.mxu0 %v2730
    %4496 = vmatpush.bf16.msra.mxu0 %v2716
    %4497 = vmatpush.bf16.msra.mxu0 %v2702
    %4498 = vmatpush.bf16.msra.mxu0 %v2688
    %4499 = vmatpush.bf16.msra.mxu0 %v2674
    %4500 = vmatpush.bf16.msra.mxu0 %v2660
    %4501 = vmatpush.bf16.msra.mxu0 %v2646
    %4502 = vmatpush.bf16.msra.mxu0 %v2632
    %4503 = vmatmul.bf16.gmra.mxu0 %v261
    %v4504 = vpop.f32.mrf.mxu0
    %v4505 = vadd.f32 %v4486, %v4504
    %v4506 = vpop.f32.mrf.mxu0
    %v4507 = vadd.f32 %v4488, %v4506
    %4508 = vmatmul.bf16.gmra.mxu0 %v266
    %v4509 = vpop.f32.mrf.mxu0
    %v4510 = vadd.f32 %v4491, %v4509
    %v4511 = vpop.f32.mrf.mxu0
    %v4512 = vadd.f32 %v4493, %v4511
    %4513 = vdwg.mxu0
    %4514 = vmatpush.bf16.msra.mxu0 0
    %4515 = vmatpush.bf16.msra.mxu0 0
    %4516 = vmatpush.bf16.msra.mxu0 0
    %4517 = vmatpush.bf16.msra.mxu0 0
    %4518 = vmatpush.bf16.msra.mxu0 %v2786
    %4519 = vmatpush.bf16.msra.mxu0 %v2772
    %4520 = vmatpush.bf16.msra.mxu0 %v2758
    %4521 = vmatpush.bf16.msra.mxu0 %v2744
    %4522 = vmatmul.bf16.gmra.mxu0 %v3293
    %v4523 = vpop.f32.mrf.mxu0
    %v4524 = vadd.f32 %v4505, %v4523
    %v4525 = vpop.f32.mrf.mxu0
    %v4526 = vadd.f32 %v4507, %v4525
    %4527 = vmatmul.bf16.gmra.mxu0 %v3296
    %v4528 = vpop.f32.mrf.mxu0
    %v4529 = vadd.f32 %v4510, %v4528
    %v4530 = vpop.f32.mrf.mxu0
    %v4531 = vadd.f32 %v4512, %v4530
    %4532 = vdwg.mxu0
    %4533 = vmatpush.bf16.msra.mxu0 %v2395
    %4534 = vmatpush.bf16.msra.mxu0 %v2381
    %4535 = vmatpush.bf16.msra.mxu0 %v2367
    %4536 = vmatpush.bf16.msra.mxu0 %v2353
    %4537 = vmatpush.bf16.msra.mxu0 %v2339
    %4538 = vmatpush.bf16.msra.mxu0 %v2325
    %4539 = vmatpush.bf16.msra.mxu0 %v2311
    %4540 = vmatpush.bf16.msra.mxu0 %v2297
    %4541 = vmatmul.bf16.gmra.mxu0 %v258
    %v4542 = vpop.f32.mrf.mxu0
    %v4543 = vadd.f32 0.0, %v4542
    %v4544 = vpop.f32.mrf.mxu0
    %v4545 = vadd.f32 0.0, %v4544
    %4546 = vmatmul.bf16.gmra.mxu0 %v263
    %v4547 = vpop.f32.mrf.mxu0
    %v4548 = vadd.f32 0.0, %v4547
    %v4549 = vpop.f32.mrf.mxu0
    %v4550 = vadd.f32 0.0, %v4549
    %4551 = vdwg.mxu0
    %4552 = vmatpush.bf16.msra.mxu0 %v2507
    %4553 = vmatpush.bf16.msra.mxu0 %v2493
    %4554 = vmatpush.bf16.msra.mxu0 %v2479
    %4555 = vmatpush.bf16.msra.mxu0 %v2465
    %4556 = vmatpush.bf16.msra.mxu0 %v2451
    %4557 = vmatpush.bf16.msra.mxu0 %v2437
    %4558 = vmatpush.bf16.msra.mxu0 %v2423
    %4559 = vmatpush.bf16.msra.mxu0 %v2409
    %4560 = vmatmul.bf16.gmra.mxu0 %v259
    %v4561 = vpop.f32.mrf.mxu0
    %v4562 = vadd.f32 %v4543, %v4561
    %v4563 = vpop.f32.mrf.mxu0
    %v4564 = vadd.f32 %v4545, %v4563
    %4565 = vmatmul.bf16.gmra.mxu0 %v264
    %v4566 = vpop.f32.mrf.mxu0
    %v4567 = vadd.f32 %v4548, %v4566
    %v4568 = vpop.f32.mrf.mxu0
    %v4569 = vadd.f32 %v4550, %v4568
    %4570 = vdwg.mxu0
    %4571 = vmatpush.bf16.msra.mxu0 %v2619
    %4572 = vmatpush.bf16.msra.mxu0 %v2605
    %4573 = vmatpush.bf16.msra.mxu0 %v2591
    %4574 = vmatpush.bf16.msra.mxu0 %v2577
    %4575 = vmatpush.bf16.msra.mxu0 %v2563
    %4576 = vmatpush.bf16.msra.mxu0 %v2549
    %4577 = vmatpush.bf16.msra.mxu0 %v2535
    %4578 = vmatpush.bf16.msra.mxu0 %v2521
    %4579 = vmatmul.bf16.gmra.mxu0 %v260
    %v4580 = vpop.f32.mrf.mxu0
    %v4581 = vadd.f32 %v4562, %v4580
    %v4582 = vpop.f32.mrf.mxu0
    %v4583 = vadd.f32 %v4564, %v4582
    %4584 = vmatmul.bf16.gmra.mxu0 %v265
    %v4585 = vpop.f32.mrf.mxu0
    %v4586 = vadd.f32 %v4567, %v4585
    %v4587 = vpop.f32.mrf.mxu0
    %v4588 = vadd.f32 %v4569, %v4587
    %4589 = vdwg.mxu0
    %4590 = vmatpush.bf16.msra.mxu0 %v2731
    %4591 = vmatpush.bf16.msra.mxu0 %v2717
    %4592 = vmatpush.bf16.msra.mxu0 %v2703
    %4593 = vmatpush.bf16.msra.mxu0 %v2689
    %4594 = vmatpush.bf16.msra.mxu0 %v2675
    %4595 = vmatpush.bf16.msra.mxu0 %v2661
    %4596 = vmatpush.bf16.msra.mxu0 %v2647
    %4597 = vmatpush.bf16.msra.mxu0 %v2633
    %4598 = vmatmul.bf16.gmra.mxu0 %v261
    %v4599 = vpop.f32.mrf.mxu0
    %v4600 = vadd.f32 %v4581, %v4599
    %v4601 = vpop.f32.mrf.mxu0
    %v4602 = vadd.f32 %v4583, %v4601
    %4603 = vmatmul.bf16.gmra.mxu0 %v266
    %v4604 = vpop.f32.mrf.mxu0
    %v4605 = vadd.f32 %v4586, %v4604
    %v4606 = vpop.f32.mrf.mxu0
    %v4607 = vadd.f32 %v4588, %v4606
    %4608 = vdwg.mxu0
    %4609 = vmatpush.bf16.msra.mxu0 0
    %4610 = vmatpush.bf16.msra.mxu0 0
    %4611 = vmatpush.bf16.msra.mxu0 0
    %4612 = vmatpush.bf16.msra.mxu0 0
    %4613 = vmatpush.bf16.msra.mxu0 %v2787
    %4614 = vmatpush.bf16.msra.mxu0 %v2773
    %4615 = vmatpush.bf16.msra.mxu0 %v2759
    %4616 = vmatpush.bf16.msra.mxu0 %v2745
    %4617 = vmatmul.bf16.gmra.mxu0 %v3293
    %v4618 = vpop.f32.mrf.mxu0
    %v4619 = vadd.f32 %v4600, %v4618
    %v4620 = vpop.f32.mrf.mxu0
    %v4621 = vadd.f32 %v4602, %v4620
    %4622 = vmatmul.bf16.gmra.mxu0 %v3296
    %v4623 = vpop.f32.mrf.mxu0
    %v4624 = vadd.f32 %v4605, %v4623
    %v4625 = vpop.f32.mrf.mxu0
    %v4626 = vadd.f32 %v4607, %v4625
    %4627 = vdwg.mxu0
    %4644 = vrot.lane.b32.xlu0 %v3669, 64
    %v4645 = vpop.permute.xlu0 %4644
    %4646 = vrot.lane.b32.xlu0 %v3764, 64
    %v4647 = vpop.permute.xlu0 %4646
    %4648 = vrot.lane.b32.xlu0 %v3859, 64
    %v4649 = vpop.permute.xlu0 %4648
    %4650 = vrot.lane.b32.xlu0 %v3954, 64
    %v4651 = vpop.permute.xlu0 %4650
    %4652 = vrot.lane.b32.xlu0 %v3671, 64
    %v4653 = vpop.permute.xlu0 %4652
    %4654 = vrot.lane.b32.xlu0 %v3766, 64
    %v4655 = vpop.permute.xlu0 %4654
    %4656 = vrot.lane.b32.xlu0 %v3861, 64
    %v4657 = vpop.permute.xlu0 %4656
    %4658 = vrot.lane.b32.xlu0 %v3956, 64
    %v4659 = vpop.permute.xlu0 %4658
    %4660 = vrot.lane.b32.xlu0 %v3674, 64
    %v4661 = vpop.permute.xlu0 %4660
    %4662 = vrot.lane.b32.xlu0 %v3769, 64
    %v4663 = vpop.permute.xlu0 %4662
    %4664 = vrot.lane.b32.xlu0 %v3864, 64
    %v4665 = vpop.permute.xlu0 %4664
    %4666 = vrot.lane.b32.xlu0 %v3959, 64
    %v4667 = vpop.permute.xlu0 %4666
    %4668 = vrot.lane.b32.xlu0 %v3676, 64
    %v4669 = vpop.permute.xlu0 %4668
    %4670 = vrot.lane.b32.xlu0 %v3771, 64
    %v4671 = vpop.permute.xlu0 %4670
    %4672 = vrot.lane.b32.xlu0 %v3866, 64
    %v4673 = vpop.permute.xlu0 %4672
    %4674 = vrot.lane.b32.xlu0 %v3961, 64
    %v4675 = vpop.permute.xlu0 %4674
    %v4676 = vsel %vm212, %v4645, %v4647
    %v4677 = vsel %vm212, %v4647, %v4649
    %v4678 = vsel %vm212, %v4649, %v4651
    %v4679 = vsel %vm212, %v4653, %v4655
    %v4680 = vsel %vm212, %v4655, %v4657
    %v4681 = vsel %vm212, %v4657, %v4659
    %v4682 = vsel %vm212, %v4661, %v4663
    %v4683 = vsel %vm212, %v4663, %v4665
    %v4684 = vsel %vm212, %v4665, %v4667
    %v4685 = vsel %vm212, %v4669, %v4671
    %v4686 = vsel %vm212, %v4671, %v4673
    %v4687 = vsel %vm212, %v4673, %v4675
    %v4704 = vmax.f32 %v3384, %v4676
    %v4705 = vmax.f32 %v3479, %v4677
    %v4706 = vmax.f32 %v3574, %v4678
    %v4707 = vmax.f32 %v3669, %v4651
    %v4708 = vmax.f32 %v3386, %v4679
    %v4709 = vmax.f32 %v3481, %v4680
    %v4710 = vmax.f32 %v3576, %v4681
    %v4711 = vmax.f32 %v3671, %v4659
    %v4712 = vmax.f32 %v3389, %v4682
    %v4713 = vmax.f32 %v3484, %v4683
    %v4714 = vmax.f32 %v3579, %v4684
    %v4715 = vmax.f32 %v3674, %v4667
    %v4716 = vmax.f32 %v3391, %v4685
    %v4717 = vmax.f32 %v3486, %v4686
    %v4718 = vmax.f32 %v3581, %v4687
    %v4719 = vmax.f32 %v3676, %v4675
    %4736 = vrot.lane.b32.xlu0 %v4334, 64
    %v4737 = vpop.permute.xlu0 %4736
    %4738 = vrot.lane.b32.xlu0 %v4429, 64
    %v4739 = vpop.permute.xlu0 %4738
    %4740 = vrot.lane.b32.xlu0 %v4524, 64
    %v4741 = vpop.permute.xlu0 %4740
    %4742 = vrot.lane.b32.xlu0 %v4619, 64
    %v4743 = vpop.permute.xlu0 %4742
    %4744 = vrot.lane.b32.xlu0 %v4336, 64
    %v4745 = vpop.permute.xlu0 %4744
    %4746 = vrot.lane.b32.xlu0 %v4431, 64
    %v4747 = vpop.permute.xlu0 %4746
    %4748 = vrot.lane.b32.xlu0 %v4526, 64
    %v4749 = vpop.permute.xlu0 %4748
    %4750 = vrot.lane.b32.xlu0 %v4621, 64
    %v4751 = vpop.permute.xlu0 %4750
    %4752 = vrot.lane.b32.xlu0 %v4339, 64
    %v4753 = vpop.permute.xlu0 %4752
    %4754 = vrot.lane.b32.xlu0 %v4434, 64
    %v4755 = vpop.permute.xlu0 %4754
    %4756 = vrot.lane.b32.xlu0 %v4529, 64
    %v4757 = vpop.permute.xlu0 %4756
    %4758 = vrot.lane.b32.xlu0 %v4624, 64
    %v4759 = vpop.permute.xlu0 %4758
    %4760 = vrot.lane.b32.xlu0 %v4341, 64
    %v4761 = vpop.permute.xlu0 %4760
    %4762 = vrot.lane.b32.xlu0 %v4436, 64
    %v4763 = vpop.permute.xlu0 %4762
    %4764 = vrot.lane.b32.xlu0 %v4531, 64
    %v4765 = vpop.permute.xlu0 %4764
    %4766 = vrot.lane.b32.xlu0 %v4626, 64
    %v4767 = vpop.permute.xlu0 %4766
    %v4768 = vsel %vm212, %v4737, %v4739
    %v4769 = vsel %vm212, %v4739, %v4741
    %v4770 = vsel %vm212, %v4741, %v4743
    %v4771 = vsel %vm212, %v4745, %v4747
    %v4772 = vsel %vm212, %v4747, %v4749
    %v4773 = vsel %vm212, %v4749, %v4751
    %v4774 = vsel %vm212, %v4753, %v4755
    %v4775 = vsel %vm212, %v4755, %v4757
    %v4776 = vsel %vm212, %v4757, %v4759
    %v4777 = vsel %vm212, %v4761, %v4763
    %v4778 = vsel %vm212, %v4763, %v4765
    %v4779 = vsel %vm212, %v4765, %v4767
    %v4796 = vmax.f32 %v4049, %v4768
    %v4797 = vmax.f32 %v4144, %v4769
    %v4798 = vmax.f32 %v4239, %v4770
    %v4799 = vmax.f32 %v4334, %v4743
    %v4800 = vmax.f32 %v4051, %v4771
    %v4801 = vmax.f32 %v4146, %v4772
    %v4802 = vmax.f32 %v4241, %v4773
    %v4803 = vmax.f32 %v4336, %v4751
    %v4804 = vmax.f32 %v4054, %v4774
    %v4805 = vmax.f32 %v4149, %v4775
    %v4806 = vmax.f32 %v4244, %v4776
    %v4807 = vmax.f32 %v4339, %v4759
    %v4808 = vmax.f32 %v4056, %v4777
    %v4809 = vmax.f32 %v4151, %v4778
    %v4810 = vmax.f32 %v4246, %v4779
    %v4811 = vmax.f32 %v4341, %v4767
    %v4812 = vmax.f32 %v4704, %v4796
    %v4813 = vmax.f32 %v4705, %v4797
    %v4814 = vmax.f32 %v4706, %v4798
    %v4815 = vmax.f32 %v4707, %v4799
    %v4816 = vmax.f32 %v4708, %v4800
    %v4817 = vmax.f32 %v4709, %v4801
    %v4818 = vmax.f32 %v4710, %v4802
    %v4819 = vmax.f32 %v4711, %v4803
    %v4820 = vmax.f32 %v4712, %v4804
    %v4821 = vmax.f32 %v4713, %v4805
    %v4822 = vmax.f32 %v4714, %v4806
    %v4823 = vmax.f32 %v4715, %v4807
    %v4824 = vmax.f32 %v4716, %v4808
    %v4825 = vmax.f32 %v4717, %v4809
    %v4826 = vmax.f32 %v4718, %v4810
    %v4827 = vmax.f32 %v4719, %v4811
    %v4828 = vld [vmem:[#allocation5] sm:$0xf]
    %v4830 = vperm.slane %v4828, 0
    %v4831 = vperm.slane %v4828, 1
    %v4832 = vperm.slane %v4828, 2
    %v4833 = vperm.slane %v4828, 3
    %v4838 = vadd.f32 %v4812, %v4830
    %v4839 = vadd.f32 %v4813, %v4831
    %v4840 = vadd.f32 %v4814, %v4832
    %v4841 = vadd.f32 %v4815, %v4833
    %v4842 = vadd.f32 %v4816, %v4830
    %v4843 = vadd.f32 %v4817, %v4831
    %v4844 = vadd.f32 %v4818, %v4832
    %v4845 = vadd.f32 %v4819, %v4833
    %v4846 = vadd.f32 %v4820, %v4830
    %v4847 = vadd.f32 %v4821, %v4831
    %v4848 = vadd.f32 %v4822, %v4832
    %v4849 = vadd.f32 %v4823, %v4833
    %v4850 = vadd.f32 %v4824, %v4830
    %v4851 = vadd.f32 %v4825, %v4831
    %v4852 = vadd.f32 %v4826, %v4832
    %v4853 = vadd.f32 %v4827, %v4833
    %v4854 = vmax.f32 %v4838, 0.0
    %v4855 = vmax.f32 %v4839, 0.0
    %v4856 = vmax.f32 %v4840, 0.0
    %v4857 = vmax.f32 %v4841, 0.0
    %v4858 = vmax.f32 %v4842, 0.0
    %v4859 = vmax.f32 %v4843, 0.0
    %v4860 = vmax.f32 %v4844, 0.0
    %v4861 = vmax.f32 %v4845, 0.0
    %v4862 = vmax.f32 %v4846, 0.0
    %v4863 = vmax.f32 %v4847, 0.0
    %v4864 = vmax.f32 %v4848, 0.0
    %v4865 = vmax.f32 %v4849, 0.0
    %v4866 = vmax.f32 %v4850, 0.0
    %v4867 = vmax.f32 %v4851, 0.0
    %v4868 = vmax.f32 %v4852, 0.0
    %v4869 = vmax.f32 %v4853, 0.0
    %v4887 = vrot.slane %v4854, 1
    %v4888 = vrot.slane %v4858, 1
    %v4889 = vsel %vm175, %v4887, %v4888
    %v4890 = vrot.slane %v4855, 1
    %v4891 = vrot.slane %v4859, 1
    %v4892 = vsel %vm175, %v4890, %v4891
    %v4893 = vrot.slane %v4856, 1
    %v4894 = vrot.slane %v4860, 1
    %v4895 = vsel %vm175, %v4893, %v4894
    %v4896 = vrot.slane %v4857, 1
    %v4897 = vrot.slane %v4861, 1
    %v4898 = vsel %vm175, %v4896, %v4897
    %v4899 = vrot.slane 0.0, 1
    %v4900 = vsel %vm175, %v4888, %v4899
    %v4901 = vsel %vm175, %v4891, %v4899
    %v4902 = vsel %vm175, %v4894, %v4899
    %v4903 = vsel %vm175, %v4897, %v4899
    %v4904 = vrot.slane %v4862, 1
    %v4905 = vrot.slane %v4866, 1
    %v4906 = vsel %vm175, %v4904, %v4905
    %v4907 = vrot.slane %v4863, 1
    %v4908 = vrot.slane %v4867, 1
    %v4909 = vsel %vm175, %v4907, %v4908
    %v4910 = vrot.slane %v4864, 1
    %v4911 = vrot.slane %v4868, 1
    %v4912 = vsel %vm175, %v4910, %v4911
    %v4913 = vrot.slane %v4865, 1
    %v4914 = vrot.slane %v4869, 1
    %v4915 = vsel %vm175, %v4913, %v4914
    %v4916 = vsel %vm175, %v4905, %v4899
    %v4917 = vsel %vm175, %v4908, %v4899
    %v4918 = vsel %vm175, %v4911, %v4899
    %v4919 = vsel %vm175, %v4914, %v4899
    %4920 = vrot.lane.b32.xlu0 %v4889, 64
    %v4921 = vpop.permute.xlu0 %4920
    %4922 = vrot.lane.b32.xlu0 %v4892, 64
    %v4923 = vpop.permute.xlu0 %4922
    %4924 = vrot.lane.b32.xlu0 %v4895, 64
    %v4925 = vpop.permute.xlu0 %4924
    %4926 = vrot.lane.b32.xlu0 %v4898, 64
    %v4927 = vpop.permute.xlu0 %4926
    %4928 = vrot.lane.b32.xlu0 %v4900, 64
    %v4929 = vpop.permute.xlu0 %4928
    %4930 = vrot.lane.b32.xlu0 %v4901, 64
    %v4931 = vpop.permute.xlu0 %4930
    %4932 = vrot.lane.b32.xlu0 %v4902, 64
    %v4933 = vpop.permute.xlu0 %4932
    %4934 = vrot.lane.b32.xlu0 %v4903, 64
    %v4935 = vpop.permute.xlu0 %4934
    %4936 = vrot.lane.b32.xlu0 %v4906, 64
    %v4937 = vpop.permute.xlu0 %4936
    %4938 = vrot.lane.b32.xlu0 %v4909, 64
    %v4939 = vpop.permute.xlu0 %4938
    %4940 = vrot.lane.b32.xlu0 %v4912, 64
    %v4941 = vpop.permute.xlu0 %4940
    %4942 = vrot.lane.b32.xlu0 %v4915, 64
    %v4943 = vpop.permute.xlu0 %4942
    %4944 = vrot.lane.b32.xlu0 %v4916, 64
    %v4945 = vpop.permute.xlu0 %4944
    %4946 = vrot.lane.b32.xlu0 %v4917, 64
    %v4947 = vpop.permute.xlu0 %4946
    %4948 = vrot.lane.b32.xlu0 %v4918, 64
    %v4949 = vpop.permute.xlu0 %4948
    %4950 = vrot.lane.b32.xlu0 %v4919, 64
    %v4951 = vpop.permute.xlu0 %4950
    %v4952 = vsel %vm212, %v4921, %v4923
    %v4953 = vsel %vm212, %v4923, %v4925
    %v4954 = vsel %vm212, %v4925, %v4927
    %v4955 = vsel %vm212, %v4929, %v4931
    %v4956 = vsel %vm212, %v4931, %v4933
    %v4957 = vsel %vm212, %v4933, %v4935
    %v4958 = vsel %vm212, %v4937, %v4939
    %v4959 = vsel %vm212, %v4939, %v4941
    %v4960 = vsel %vm212, %v4941, %v4943
    %v4961 = vsel %vm212, %v4945, %v4947
    %v4962 = vsel %vm212, %v4947, %v4949
    %v4963 = vsel %vm212, %v4949, %v4951
    %v4980 = vrot.slane %v4854, 2
    %v4981 = vrot.slane %v4858, 2
    %v4982 = vsel %vm225, %v4980, %v4981
    %v4983 = vrot.slane %v4855, 2
    %v4984 = vrot.slane %v4859, 2
    %v4985 = vsel %vm225, %v4983, %v4984
    %v4986 = vrot.slane %v4856, 2
    %v4987 = vrot.slane %v4860, 2
    %v4988 = vsel %vm225, %v4986, %v4987
    %v4989 = vrot.slane %v4857, 2
    %v4990 = vrot.slane %v4861, 2
    %v4991 = vsel %vm225, %v4989, %v4990
    %v4992 = vrot.slane 0.0, 2
    %v4993 = vsel %vm225, %v4981, %v4992
    %v4994 = vsel %vm225, %v4984, %v4992
    %v4995 = vsel %vm225, %v4987, %v4992
    %v4996 = vsel %vm225, %v4990, %v4992
    %v4997 = vrot.slane %v4862, 2
    %v4998 = vrot.slane %v4866, 2
    %v4999 = vsel %vm225, %v4997, %v4998
    %v5000 = vrot.slane %v4863, 2
    %v5001 = vrot.slane %v4867, 2
    %v5002 = vsel %vm225, %v5000, %v5001
    %v5003 = vrot.slane %v4864, 2
    %v5004 = vrot.slane %v4868, 2
    %v5005 = vsel %vm225, %v5003, %v5004
    %v5006 = vrot.slane %v4865, 2
    %v5007 = vrot.slane %v4869, 2
    %v5008 = vsel %vm225, %v5006, %v5007
    %v5009 = vsel %vm225, %v4998, %v4992
    %v5010 = vsel %vm225, %v5001, %v4992
    %v5011 = vsel %vm225, %v5004, %v4992
    %v5012 = vsel %vm225, %v5007, %v4992
    %v5029 = vsel %vm212, %v4857, %v4921
    %v5030 = vsel %vm212, %v4861, %v4929
    %v5031 = vsel %vm212, %v4865, %v4937
    %v5032 = vsel %vm212, %v4869, %v4945
    %v5033 = vpack.c.bf16 %v4858, %v4854
    %v5034 = vpack.c.bf16 %v4859, %v4855
    %v5035 = vpack.c.bf16 %v4860, %v4856
    %v5036 = vpack.c.bf16 %v5030, %v5029
    %v5037 = vpack.c.bf16 %v4955, %v4952
    %v5038 = vpack.c.bf16 %v4956, %v4953
    %v5039 = vpack.c.bf16 %v4957, %v4954
    %v5040 = vpack.c.bf16 %v4993, %v4982
    %v5041 = vpack.c.bf16 %v4994, %v4985
    %v5042 = vpack.c.bf16 %v4995, %v4988
    %v5043 = vpack.c.bf16 %v4996, %v4991
    %v5044 = vpack.c.bf16 %v4866, %v4862
    %v5045 = vpack.c.bf16 %v4867, %v4863
    %v5046 = vpack.c.bf16 %v4868, %v4864
    %v5047 = vpack.c.bf16 %v5032, %v5031
    %v5048 = vpack.c.bf16 %v4961, %v4958
    %v5049 = vpack.c.bf16 %v4962, %v4959
    %v5050 = vpack.c.bf16 %v4963, %v4960
    %v5051 = vpack.c.bf16 %v5009, %v4999
    %v5052 = vpack.c.bf16 %v5010, %v5002
    %v5053 = vpack.c.bf16 %v5011, %v5005
    %v5054 = vpack.c.bf16 %v5012, %v5008
    %v5055 = vld [vmem:[#allocation7] sm:$0xff]
    %v5056 = vld [vmem:[#allocation7 + $0x8] sm:$0xff]
    %v5057 = vld [vmem:[#allocation7 + $0x10] sm:$0xff]
    %v5058 = vld [vmem:[#allocation7 + $0x18] sm:$0xff]
    %v5059 = vld [vmem:[#allocation7 + $0x20] sm:$0xff]
    %v5060 = vld [vmem:[#allocation7 + $0x28] sm:$0xff]
    %v5061 = vld [vmem:[#allocation7 + $0x30] sm:$0xff]
    %v5062 = vld [vmem:[#allocation7 + $0x38] sm:$0xff]
    %v5063 = vld [vmem:[#allocation7 + $0x40] sm:$0xff]
    %v5064 = vld [vmem:[#allocation7 + $0x48] sm:$0xff]
    %v5065 = vld [vmem:[#allocation7 + $0x50] sm:$0xff]
    %v5066 = vld [vmem:[#allocation7 + $0x58] sm:$0xff]
    %v5067 = vld [vmem:[#allocation7 + $0x60] sm:$0xff]
    %v5068 = vld [vmem:[#allocation7 + $0x68] sm:$0xff]
    %v5069 = vld [vmem:[#allocation7 + $0x70] sm:$0xff]
    %v5070 = vld [vmem:[#allocation7 + $0x78] sm:$0xff]
    %v5071 = vld [vmem:[#allocation7 + $0x80] sm:$0xff]
    %v5072 = vld [vmem:[#allocation7 + $0x88] sm:$0xff]
    %v5073 = vld [vmem:[#allocation7 + $0x90] sm:$0xff]
    %v5074 = vld [vmem:[#allocation7 + $0x98] sm:$0xff]
    %v5075 = vld [vmem:[#allocation7 + $0xa0] sm:$0xff]
    %v5076 = vld [vmem:[#allocation7 + $0xa8] sm:$0xff]
    %v5077 = vld [vmem:[#allocation7 + $0xb0] sm:$0xff]
    %v5078 = vld [vmem:[#allocation7 + $0xb8] sm:$0xff]
    %v5079 = vld [vmem:[#allocation7 + $0xc0] sm:$0xff]
    %v5080 = vld [vmem:[#allocation7 + $0xc8] sm:$0xff]
    %v5081 = vld [vmem:[#allocation7 + $0xd0] sm:$0xff]
    %v5082 = vld [vmem:[#allocation7 + $0xd8] sm:$0xff]
    %v5083 = vld [vmem:[#allocation7 + $0xe0] sm:$0xff]
    %v5084 = vld [vmem:[#allocation7 + $0xe8] sm:$0xff]
    %v5085 = vld [vmem:[#allocation7 + $0xf0] sm:$0xff]
    %v5086 = vld [vmem:[#allocation7 + $0xf8] sm:$0xff]
    %v5087 = vld [vmem:[#allocation7 + $0x100] sm:$0xff]
    %v5088 = vld [vmem:[#allocation7 + $0x108] sm:$0xff]
    %v5089 = vld [vmem:[#allocation7 + $0x110] sm:$0xff]
    %v5090 = vld [vmem:[#allocation7 + $0x118] sm:$0xff]
    %v5091 = vld [vmem:[#allocation7 + $0x120] sm:$0xff]
    %v5092 = vld [vmem:[#allocation7 + $0x128] sm:$0xff]
    %v5093 = vld [vmem:[#allocation7 + $0x130] sm:$0xff]
    %v5094 = vld [vmem:[#allocation7 + $0x138] sm:$0xff]
    %v5095 = vld [vmem:[#allocation7 + $0x140] sm:$0xff]
    %v5096 = vld [vmem:[#allocation7 + $0x148] sm:$0xff]
    %v5097 = vld [vmem:[#allocation7 + $0x150] sm:$0xff]
    %v5098 = vld [vmem:[#allocation7 + $0x158] sm:$0xff]
    %v5099 = vld [vmem:[#allocation7 + $0x160] sm:$0xff]
    %v5100 = vld [vmem:[#allocation7 + $0x168] sm:$0xff]
    %v5101 = vld [vmem:[#allocation7 + $0x170] sm:$0xff]
    %v5102 = vld [vmem:[#allocation7 + $0x178] sm:$0xff]
    %v5103 = vld [vmem:[#allocation7 + $0x180] sm:$0xff]
    %v5104 = vld [vmem:[#allocation7 + $0x188] sm:$0xff]
    %v5105 = vld [vmem:[#allocation7 + $0x190] sm:$0xff]
    %v5106 = vld [vmem:[#allocation7 + $0x198] sm:$0xff]
    %v5107 = vld [vmem:[#allocation7 + $0x1a0] sm:$0xff]
    %v5108 = vld [vmem:[#allocation7 + $0x1a8] sm:$0xff]
    %v5109 = vld [vmem:[#allocation7 + $0x1b0] sm:$0xff]
    %v5110 = vld [vmem:[#allocation7 + $0x1b8] sm:$0xff]
    %v5111 = vld [vmem:[#allocation7 + $0x1c0] sm:$0xff]
    %v5112 = vld [vmem:[#allocation7 + $0x1c8] sm:$0xff]
    %v5113 = vld [vmem:[#allocation7 + $0x1d0] sm:$0xff]
    %v5114 = vld [vmem:[#allocation7 + $0x1d8] sm:$0xff]
    %v5115 = vld [vmem:[#allocation7 + $0x1e0] sm:$0xff]
    %v5116 = vld [vmem:[#allocation7 + $0x1e8] sm:$0xff]
    %v5117 = vld [vmem:[#allocation7 + $0x1f0] sm:$0xff]
    %v5118 = vld [vmem:[#allocation7 + $0x1f8] sm:$0xff]
    %v5119 = vld [vmem:[#allocation7 + $0x200] sm:$0xff]
    %v5120 = vld [vmem:[#allocation7 + $0x208] sm:$0xff]
    %v5121 = vld [vmem:[#allocation7 + $0x210] sm:$0xff]
    %v5122 = vld [vmem:[#allocation7 + $0x218] sm:$0xff]
    %v5123 = vld [vmem:[#allocation7 + $0x220] sm:$0xff]
    %v5124 = vld [vmem:[#allocation7 + $0x228] sm:$0xff]
    %v5125 = vld [vmem:[#allocation7 + $0x230] sm:$0xff]
    %v5126 = vld [vmem:[#allocation7 + $0x238] sm:$0xff]
    %v5127 = vld [vmem:[#allocation7 + $0x240] sm:$0xff]
    %v5128 = vld [vmem:[#allocation7 + $0x248] sm:$0xff]
    %v5129 = vld [vmem:[#allocation7 + $0x250] sm:$0xff]
    %v5130 = vld [vmem:[#allocation7 + $0x258] sm:$0xff]
    %v5131 = vld [vmem:[#allocation7 + $0x260] sm:$0xff]
    %v5132 = vld [vmem:[#allocation7 + $0x268] sm:$0xff]
    %v5133 = vld [vmem:[#allocation7 + $0x270] sm:$0xff]
    %v5134 = vld [vmem:[#allocation7 + $0x278] sm:$0xff]
    %v5135 = vld [vmem:[#allocation7 + $0x280] sm:$0xff]
    %v5136 = vld [vmem:[#allocation7 + $0x288] sm:$0xff]
    %v5137 = vld [vmem:[#allocation7 + $0x290] sm:$0xff]
    %v5138 = vld [vmem:[#allocation7 + $0x298] sm:$0xff]
    %v5139 = vld [vmem:[#allocation7 + $0x2a0] sm:$0xff]
    %v5140 = vld [vmem:[#allocation7 + $0x2a8] sm:$0xff]
    %v5141 = vld [vmem:[#allocation7 + $0x2b0] sm:$0xff]
    %v5142 = vld [vmem:[#allocation7 + $0x2b8] sm:$0xff]
    %v5143 = vld [vmem:[#allocation7 + $0x2c0] sm:$0xff]
    %v5144 = vld [vmem:[#allocation7 + $0x2c8] sm:$0xff]
    %v5145 = vld [vmem:[#allocation7 + $0x2d0] sm:$0xff]
    %v5146 = vld [vmem:[#allocation7 + $0x2d8] sm:$0xff]
    %v5147 = vld [vmem:[#allocation7 + $0x2e0] sm:$0xff]
    %v5148 = vld [vmem:[#allocation7 + $0x2e8] sm:$0xff]
    %v5149 = vld [vmem:[#allocation7 + $0x2f0] sm:$0xff]
    %v5150 = vld [vmem:[#allocation7 + $0x2f8] sm:$0xff]
    %v5151 = vld [vmem:[#allocation7 + $0x300] sm:$0xff]
    %v5152 = vld [vmem:[#allocation7 + $0x308] sm:$0xff]
    %v5153 = vld [vmem:[#allocation7 + $0x310] sm:$0xff]
    %v5154 = vld [vmem:[#allocation7 + $0x318] sm:$0xff]
    %v5155 = vld [vmem:[#allocation7 + $0x320] sm:$0xff]
    %v5156 = vld [vmem:[#allocation7 + $0x328] sm:$0xff]
    %v5157 = vld [vmem:[#allocation7 + $0x330] sm:$0xff]
    %v5158 = vld [vmem:[#allocation7 + $0x338] sm:$0xff]
    %v5159 = vld [vmem:[#allocation7 + $0x340] sm:$0xff]
    %v5160 = vld [vmem:[#allocation7 + $0x348] sm:$0xff]
    %v5161 = vld [vmem:[#allocation7 + $0x350] sm:$0xff]
    %v5162 = vld [vmem:[#allocation7 + $0x358] sm:$0xff]
    %v5163 = vld [vmem:[#allocation7 + $0x360] sm:$0xff]
    %v5164 = vld [vmem:[#allocation7 + $0x368] sm:$0xff]
    %v5165 = vld [vmem:[#allocation7 + $0x370] sm:$0xff]
    %v5166 = vld [vmem:[#allocation7 + $0x378] sm:$0xff]
    %v5167 = vld [vmem:[#allocation7 + $0x380] sm:$0xff]
    %v5168 = vld [vmem:[#allocation7 + $0x388] sm:$0xff]
    %v5169 = vld [vmem:[#allocation7 + $0x390] sm:$0xff]
    %v5170 = vld [vmem:[#allocation7 + $0x398] sm:$0xff]
    %v5171 = vld [vmem:[#allocation7 + $0x3a0] sm:$0xff]
    %v5172 = vld [vmem:[#allocation7 + $0x3a8] sm:$0xff]
    %v5173 = vld [vmem:[#allocation7 + $0x3b0] sm:$0xff]
    %v5174 = vld [vmem:[#allocation7 + $0x3b8] sm:$0xff]
    %v5175 = vld [vmem:[#allocation7 + $0x3c0] sm:$0xff]
    %v5176 = vld [vmem:[#allocation7 + $0x3c8] sm:$0xff]
    %v5177 = vld [vmem:[#allocation7 + $0x3d0] sm:$0xff]
    %v5178 = vld [vmem:[#allocation7 + $0x3d8] sm:$0xff]
    %v5179 = vld [vmem:[#allocation7 + $0x3e0] sm:$0xff]
    %v5180 = vld [vmem:[#allocation7 + $0x3e8] sm:$0xff]
    %v5181 = vld [vmem:[#allocation7 + $0x3f0] sm:$0xff]
    %v5182 = vld [vmem:[#allocation7 + $0x3f8] sm:$0xff]
    %v5183 = vld [vmem:[#allocation7 + $0x400] sm:$0xff]
    %v5184 = vld [vmem:[#allocation7 + $0x408] sm:$0xff]
    %v5185 = vld [vmem:[#allocation7 + $0x410] sm:$0xff]
    %v5186 = vld [vmem:[#allocation7 + $0x418] sm:$0xff]
    %v5187 = vld [vmem:[#allocation7 + $0x420] sm:$0xff]
    %v5188 = vld [vmem:[#allocation7 + $0x428] sm:$0xff]
    %v5189 = vld [vmem:[#allocation7 + $0x430] sm:$0xff]
    %v5190 = vld [vmem:[#allocation7 + $0x438] sm:$0xff]
    %v5191 = vld [vmem:[#allocation7 + $0x440] sm:$0xff]
    %v5192 = vld [vmem:[#allocation7 + $0x448] sm:$0xff]
    %v5193 = vld [vmem:[#allocation7 + $0x450] sm:$0xff]
    %v5194 = vld [vmem:[#allocation7 + $0x458] sm:$0xff]
    %v5195 = vld [vmem:[#allocation7 + $0x460] sm:$0xff]
    %v5196 = vld [vmem:[#allocation7 + $0x468] sm:$0xff]
    %v5197 = vld [vmem:[#allocation7 + $0x470] sm:$0xff]
    %v5198 = vld [vmem:[#allocation7 + $0x478] sm:$0xff]
    %v5199 = vld [vmem:[#allocation7 + $0x480] sm:$0xff]
    %v5200 = vld [vmem:[#allocation7 + $0x488] sm:$0xff]
    %v5201 = vld [vmem:[#allocation7 + $0x490] sm:$0xff]
    %v5202 = vld [vmem:[#allocation7 + $0x498] sm:$0xff]
    %v5203 = vld [vmem:[#allocation7 + $0x4a0] sm:$0xff]
    %v5204 = vld [vmem:[#allocation7 + $0x4a8] sm:$0xff]
    %v5205 = vld [vmem:[#allocation7 + $0x4b0] sm:$0xff]
    %v5206 = vld [vmem:[#allocation7 + $0x4b8] sm:$0xff]
    %v5207 = vld [vmem:[#allocation7 + $0x4c0] sm:$0xff]
    %v5208 = vld [vmem:[#allocation7 + $0x4c8] sm:$0xff]
    %v5209 = vld [vmem:[#allocation7 + $0x4d0] sm:$0xff]
    %v5210 = vld [vmem:[#allocation7 + $0x4d8] sm:$0xff]
    %v5211 = vld [vmem:[#allocation7 + $0x4e0] sm:$0xff]
    %v5212 = vld [vmem:[#allocation7 + $0x4e8] sm:$0xff]
    %v5213 = vld [vmem:[#allocation7 + $0x4f0] sm:$0xff]
    %v5214 = vld [vmem:[#allocation7 + $0x4f8] sm:$0xff]
    %v5215 = vld [vmem:[#allocation7 + $0x500] sm:$0xff]
    %v5216 = vld [vmem:[#allocation7 + $0x508] sm:$0xff]
    %v5217 = vld [vmem:[#allocation7 + $0x510] sm:$0xff]
    %v5218 = vld [vmem:[#allocation7 + $0x518] sm:$0xff]
    %v5219 = vld [vmem:[#allocation7 + $0x520] sm:$0xff]
    %v5220 = vld [vmem:[#allocation7 + $0x528] sm:$0xff]
    %v5221 = vld [vmem:[#allocation7 + $0x530] sm:$0xff]
    %v5222 = vld [vmem:[#allocation7 + $0x538] sm:$0xff]
    %v5223 = vld [vmem:[#allocation7 + $0x540] sm:$0xff]
    %v5224 = vld [vmem:[#allocation7 + $0x548] sm:$0xff]
    %v5225 = vld [vmem:[#allocation7 + $0x550] sm:$0xff]
    %v5226 = vld [vmem:[#allocation7 + $0x558] sm:$0xff]
    %v5227 = vld [vmem:[#allocation7 + $0x560] sm:$0xff]
    %v5228 = vld [vmem:[#allocation7 + $0x568] sm:$0xff]
    %v5229 = vld [vmem:[#allocation7 + $0x570] sm:$0xff]
    %v5230 = vld [vmem:[#allocation7 + $0x578] sm:$0xff]
    %v5231 = vld [vmem:[#allocation7 + $0x580] sm:$0xff]
    %v5232 = vld [vmem:[#allocation7 + $0x588] sm:$0xff]
    %v5233 = vld [vmem:[#allocation7 + $0x590] sm:$0xff]
    %v5234 = vld [vmem:[#allocation7 + $0x598] sm:$0xff]
    %v5235 = vld [vmem:[#allocation7 + $0x5a0] sm:$0xff]
    %v5236 = vld [vmem:[#allocation7 + $0x5a8] sm:$0xff]
    %v5237 = vld [vmem:[#allocation7 + $0x5b0] sm:$0xff]
    %v5238 = vld [vmem:[#allocation7 + $0x5b8] sm:$0xff]
    %v5239 = vld [vmem:[#allocation7 + $0x5c0] sm:$0xff]
    %v5240 = vld [vmem:[#allocation7 + $0x5c8] sm:$0xff]
    %v5241 = vld [vmem:[#allocation7 + $0x5d0] sm:$0xff]
    %v5242 = vld [vmem:[#allocation7 + $0x5d8] sm:$0xff]
    %v5243 = vld [vmem:[#allocation7 + $0x5e0] sm:$0xff]
    %v5244 = vld [vmem:[#allocation7 + $0x5e8] sm:$0xff]
    %v5245 = vld [vmem:[#allocation7 + $0x5f0] sm:$0xff]
    %v5246 = vld [vmem:[#allocation7 + $0x5f8] sm:$0xff]
    %v5247 = vld [vmem:[#allocation7 + $0x600] sm:$0xff]
    %v5248 = vld [vmem:[#allocation7 + $0x608] sm:$0xff]
    %v5249 = vld [vmem:[#allocation7 + $0x610] sm:$0xff]
    %v5250 = vld [vmem:[#allocation7 + $0x618] sm:$0xff]
    %v5251 = vld [vmem:[#allocation7 + $0x620] sm:$0xff]
    %v5252 = vld [vmem:[#allocation7 + $0x628] sm:$0xff]
    %v5253 = vld [vmem:[#allocation7 + $0x630] sm:$0xff]
    %v5254 = vld [vmem:[#allocation7 + $0x638] sm:$0xff]
    %v5255 = vld [vmem:[#allocation7 + $0x640] sm:$0xff]
    %v5256 = vld [vmem:[#allocation7 + $0x648] sm:$0xff]
    %v5257 = vld [vmem:[#allocation7 + $0x650] sm:$0xff]
    %v5258 = vld [vmem:[#allocation7 + $0x658] sm:$0xff]
    %v5259 = vld [vmem:[#allocation7 + $0x660] sm:$0xff]
    %v5260 = vld [vmem:[#allocation7 + $0x668] sm:$0xff]
    %v5261 = vld [vmem:[#allocation7 + $0x670] sm:$0xff]
    %v5262 = vld [vmem:[#allocation7 + $0x678] sm:$0xff]
    %v5263 = vld [vmem:[#allocation7 + $0x680] sm:$0xff]
    %v5264 = vld [vmem:[#allocation7 + $0x688] sm:$0xff]
    %v5265 = vld [vmem:[#allocation7 + $0x690] sm:$0xff]
    %v5266 = vld [vmem:[#allocation7 + $0x698] sm:$0xff]
    %v5267 = vld [vmem:[#allocation7 + $0x6a0] sm:$0xff]
    %v5268 = vld [vmem:[#allocation7 + $0x6a8] sm:$0xff]
    %v5269 = vld [vmem:[#allocation7 + $0x6b0] sm:$0xff]
    %v5270 = vld [vmem:[#allocation7 + $0x6b8] sm:$0xff]
    %v5271 = vld [vmem:[#allocation7 + $0x6c0] sm:$0xff]
    %v5272 = vld [vmem:[#allocation7 + $0x6c8] sm:$0xff]
    %v5273 = vld [vmem:[#allocation7 + $0x6d0] sm:$0xff]
    %v5274 = vld [vmem:[#allocation7 + $0x6d8] sm:$0xff]
    %v5275 = vld [vmem:[#allocation7 + $0x6e0] sm:$0xff]
    %v5276 = vld [vmem:[#allocation7 + $0x6e8] sm:$0xff]
    %v5277 = vld [vmem:[#allocation7 + $0x6f0] sm:$0xff]
    %v5278 = vld [vmem:[#allocation7 + $0x6f8] sm:$0xff]
    %v5279 = vld [vmem:[#allocation7 + $0x700] sm:$0xff]
    %v5280 = vld [vmem:[#allocation7 + $0x708] sm:$0xff]
    %v5281 = vld [vmem:[#allocation7 + $0x710] sm:$0xff]
    %v5282 = vld [vmem:[#allocation7 + $0x718] sm:$0xff]
    %v5283 = vld [vmem:[#allocation7 + $0x720] sm:$0xff]
    %v5284 = vld [vmem:[#allocation7 + $0x728] sm:$0xff]
    %v5285 = vld [vmem:[#allocation7 + $0x730] sm:$0xff]
    %v5286 = vld [vmem:[#allocation7 + $0x738] sm:$0xff]
    %v5287 = vld [vmem:[#allocation7 + $0x740] sm:$0xff]
    %v5288 = vld [vmem:[#allocation7 + $0x748] sm:$0xff]
    %v5289 = vld [vmem:[#allocation7 + $0x750] sm:$0xff]
    %v5290 = vld [vmem:[#allocation7 + $0x758] sm:$0xff]
    %v5291 = vld [vmem:[#allocation7 + $0x760] sm:$0xff]
    %v5292 = vld [vmem:[#allocation7 + $0x768] sm:$0xff]
    %v5293 = vld [vmem:[#allocation7 + $0x770] sm:$0xff]
    %v5294 = vld [vmem:[#allocation7 + $0x778] sm:$0xff]
    %v5295 = vld [vmem:[#allocation7 + $0x780] sm:$0xff]
    %v5296 = vld [vmem:[#allocation7 + $0x788] sm:$0xff]
    %v5297 = vld [vmem:[#allocation7 + $0x790] sm:$0xff]
    %v5298 = vld [vmem:[#allocation7 + $0x798] sm:$0xff]
    %v5299 = vld [vmem:[#allocation7 + $0x7a0] sm:$0xff]
    %v5300 = vld [vmem:[#allocation7 + $0x7a8] sm:$0xff]
    %v5301 = vld [vmem:[#allocation7 + $0x7b0] sm:$0xff]
    %v5302 = vld [vmem:[#allocation7 + $0x7b8] sm:$0xff]
    %v5303 = vld [vmem:[#allocation7 + $0x7c0] sm:$0xff]
    %v5304 = vld [vmem:[#allocation7 + $0x7c8] sm:$0xff]
    %v5305 = vld [vmem:[#allocation7 + $0x7d0] sm:$0xff]
    %v5306 = vld [vmem:[#allocation7 + $0x7d8] sm:$0xff]
    %v5307 = vld [vmem:[#allocation7 + $0x7e0] sm:$0xff]
    %v5308 = vld [vmem:[#allocation7 + $0x7e8] sm:$0xff]
    %v5309 = vld [vmem:[#allocation7 + $0x7f0] sm:$0xff]
    %v5310 = vld [vmem:[#allocation7 + $0x7f8] sm:$0xff]
    %v5311 = vld [vmem:[#allocation7 + $0x800] sm:$0xff]
    %v5312 = vld [vmem:[#allocation7 + $0x808] sm:$0xff]
    %v5313 = vld [vmem:[#allocation7 + $0x810] sm:$0xff]
    %v5314 = vld [vmem:[#allocation7 + $0x818] sm:$0xff]
    %v5315 = vld [vmem:[#allocation7 + $0x820] sm:$0xff]
    %v5316 = vld [vmem:[#allocation7 + $0x828] sm:$0xff]
    %v5317 = vld [vmem:[#allocation7 + $0x830] sm:$0xff]
    %v5318 = vld [vmem:[#allocation7 + $0x838] sm:$0xff]
    %v5319 = vld [vmem:[#allocation7 + $0x840] sm:$0xff]
    %v5320 = vld [vmem:[#allocation7 + $0x848] sm:$0xff]
    %v5321 = vld [vmem:[#allocation7 + $0x850] sm:$0xff]
    %v5322 = vld [vmem:[#allocation7 + $0x858] sm:$0xff]
    %v5323 = vld [vmem:[#allocation7 + $0x860] sm:$0xff]
    %v5324 = vld [vmem:[#allocation7 + $0x868] sm:$0xff]
    %v5325 = vld [vmem:[#allocation7 + $0x870] sm:$0xff]
    %v5326 = vld [vmem:[#allocation7 + $0x878] sm:$0xff]
    %v5327 = vld [vmem:[#allocation7 + $0x880] sm:$0xff]
    %v5328 = vld [vmem:[#allocation7 + $0x888] sm:$0xff]
    %v5329 = vld [vmem:[#allocation7 + $0x890] sm:$0xff]
    %v5330 = vld [vmem:[#allocation7 + $0x898] sm:$0xff]
    %v5331 = vld [vmem:[#allocation7 + $0x8a0] sm:$0xff]
    %v5332 = vld [vmem:[#allocation7 + $0x8a8] sm:$0xff]
    %v5333 = vld [vmem:[#allocation7 + $0x8b0] sm:$0xff]
    %v5334 = vld [vmem:[#allocation7 + $0x8b8] sm:$0xff]
    %v5335 = vld [vmem:[#allocation7 + $0x8c0] sm:$0xff]
    %v5336 = vld [vmem:[#allocation7 + $0x8c8] sm:$0xff]
    %v5337 = vld [vmem:[#allocation7 + $0x8d0] sm:$0xff]
    %v5338 = vld [vmem:[#allocation7 + $0x8d8] sm:$0xff]
    %v5339 = vld [vmem:[#allocation7 + $0x8e0] sm:$0xff]
    %v5340 = vld [vmem:[#allocation7 + $0x8e8] sm:$0xff]
    %v5341 = vld [vmem:[#allocation7 + $0x8f0] sm:$0xff]
    %v5342 = vld [vmem:[#allocation7 + $0x8f8] sm:$0xff]
    %v5343 = vld [vmem:[#allocation7 + $0x900] sm:$0xff]
    %v5344 = vld [vmem:[#allocation7 + $0x908] sm:$0xff]
    %v5345 = vld [vmem:[#allocation7 + $0x910] sm:$0xff]
    %v5346 = vld [vmem:[#allocation7 + $0x918] sm:$0xff]
    %v5347 = vld [vmem:[#allocation7 + $0x920] sm:$0xff]
    %v5348 = vld [vmem:[#allocation7 + $0x928] sm:$0xff]
    %v5349 = vld [vmem:[#allocation7 + $0x930] sm:$0xff]
    %v5350 = vld [vmem:[#allocation7 + $0x938] sm:$0xff]
    %v5351 = vld [vmem:[#allocation7 + $0x940] sm:$0xff]
    %v5352 = vld [vmem:[#allocation7 + $0x948] sm:$0xff]
    %v5353 = vld [vmem:[#allocation7 + $0x950] sm:$0xff]
    %v5354 = vld [vmem:[#allocation7 + $0x958] sm:$0xff]
    %v5355 = vld [vmem:[#allocation7 + $0x960] sm:$0xff]
    %v5356 = vld [vmem:[#allocation7 + $0x968] sm:$0xff]
    %v5357 = vld [vmem:[#allocation7 + $0x970] sm:$0xff]
    %v5358 = vld [vmem:[#allocation7 + $0x978] sm:$0xff]
    %v5359 = vld [vmem:[#allocation7 + $0x980] sm:$0xff]
    %v5360 = vld [vmem:[#allocation7 + $0x988] sm:$0xff]
    %v5361 = vld [vmem:[#allocation7 + $0x990] sm:$0xff]
    %v5362 = vld [vmem:[#allocation7 + $0x998] sm:$0xff]
    %v5363 = vld [vmem:[#allocation7 + $0x9a0] sm:$0xff]
    %v5364 = vld [vmem:[#allocation7 + $0x9a8] sm:$0xff]
    %v5365 = vld [vmem:[#allocation7 + $0x9b0] sm:$0xff]
    %v5366 = vld [vmem:[#allocation7 + $0x9b8] sm:$0xff]
    %v5367 = vld [vmem:[#allocation7 + $0x9c0] sm:$0xff]
    %v5368 = vld [vmem:[#allocation7 + $0x9c8] sm:$0xff]
    %v5369 = vld [vmem:[#allocation7 + $0x9d0] sm:$0xff]
    %v5370 = vld [vmem:[#allocation7 + $0x9d8] sm:$0xff]
    %v5371 = vld [vmem:[#allocation7 + $0x9e0] sm:$0xff]
    %v5372 = vld [vmem:[#allocation7 + $0x9e8] sm:$0xff]
    %v5373 = vld [vmem:[#allocation7 + $0x9f0] sm:$0xff]
    %v5374 = vld [vmem:[#allocation7 + $0x9f8] sm:$0xff]
    %v5375 = vld [vmem:[#allocation7 + $0xa00] sm:$0xff]
    %v5376 = vld [vmem:[#allocation7 + $0xa08] sm:$0xff]
    %v5377 = vld [vmem:[#allocation7 + $0xa10] sm:$0xff]
    %v5378 = vld [vmem:[#allocation7 + $0xa18] sm:$0xff]
    %v5379 = vld [vmem:[#allocation7 + $0xa20] sm:$0xff]
    %v5380 = vld [vmem:[#allocation7 + $0xa28] sm:$0xff]
    %v5381 = vld [vmem:[#allocation7 + $0xa30] sm:$0xff]
    %v5382 = vld [vmem:[#allocation7 + $0xa38] sm:$0xff]
    %v5383 = vld [vmem:[#allocation7 + $0xa40] sm:$0xff]
    %v5384 = vld [vmem:[#allocation7 + $0xa48] sm:$0xff]
    %v5385 = vld [vmem:[#allocation7 + $0xa50] sm:$0xff]
    %v5386 = vld [vmem:[#allocation7 + $0xa58] sm:$0xff]
    %v5387 = vld [vmem:[#allocation7 + $0xa60] sm:$0xff]
    %v5388 = vld [vmem:[#allocation7 + $0xa68] sm:$0xff]
    %v5389 = vld [vmem:[#allocation7 + $0xa70] sm:$0xff]
    %v5390 = vld [vmem:[#allocation7 + $0xa78] sm:$0xff]
    %v5391 = vld [vmem:[#allocation7 + $0xa80] sm:$0xff]
    %v5392 = vld [vmem:[#allocation7 + $0xa88] sm:$0xff]
    %v5393 = vld [vmem:[#allocation7 + $0xa90] sm:$0xff]
    %v5394 = vld [vmem:[#allocation7 + $0xa98] sm:$0xff]
    %v5395 = vld [vmem:[#allocation7 + $0xaa0] sm:$0xff]
    %v5396 = vld [vmem:[#allocation7 + $0xaa8] sm:$0xff]
    %v5397 = vld [vmem:[#allocation7 + $0xab0] sm:$0xff]
    %v5398 = vld [vmem:[#allocation7 + $0xab8] sm:$0xff]
    %v5399 = vld [vmem:[#allocation7 + $0xac0] sm:$0xff]
    %v5400 = vld [vmem:[#allocation7 + $0xac8] sm:$0xff]
    %v5401 = vld [vmem:[#allocation7 + $0xad0] sm:$0xff]
    %v5402 = vld [vmem:[#allocation7 + $0xad8] sm:$0xff]
    %v5403 = vld [vmem:[#allocation7 + $0xae0] sm:$0xff]
    %v5404 = vld [vmem:[#allocation7 + $0xae8] sm:$0xff]
    %v5405 = vld [vmem:[#allocation7 + $0xaf0] sm:$0xff]
    %v5406 = vld [vmem:[#allocation7 + $0xaf8] sm:$0xff]
    %v5407 = vld [vmem:[#allocation7 + $0xb00] sm:$0xff]
    %v5408 = vld [vmem:[#allocation7 + $0xb08] sm:$0xff]
    %v5409 = vld [vmem:[#allocation7 + $0xb10] sm:$0xff]
    %v5410 = vld [vmem:[#allocation7 + $0xb18] sm:$0xff]
    %v5411 = vld [vmem:[#allocation7 + $0xb20] sm:$0xff]
    %v5412 = vld [vmem:[#allocation7 + $0xb28] sm:$0xff]
    %v5413 = vld [vmem:[#allocation7 + $0xb30] sm:$0xff]
    %v5414 = vld [vmem:[#allocation7 + $0xb38] sm:$0xff]
    %v5415 = vld [vmem:[#allocation7 + $0xb40] sm:$0xff]
    %v5416 = vld [vmem:[#allocation7 + $0xb48] sm:$0xff]
    %v5417 = vld [vmem:[#allocation7 + $0xb50] sm:$0xff]
    %v5418 = vld [vmem:[#allocation7 + $0xb58] sm:$0xff]
    %v5419 = vld [vmem:[#allocation7 + $0xb60] sm:$0xff]
    %v5420 = vld [vmem:[#allocation7 + $0xb68] sm:$0xff]
    %v5421 = vld [vmem:[#allocation7 + $0xb70] sm:$0xff]
    %v5422 = vld [vmem:[#allocation7 + $0xb78] sm:$0xff]
    %v5423 = vld [vmem:[#allocation7 + $0xb80] sm:$0xff]
    %v5424 = vld [vmem:[#allocation7 + $0xb88] sm:$0xff]
    %v5425 = vld [vmem:[#allocation7 + $0xb90] sm:$0xff]
    %v5426 = vld [vmem:[#allocation7 + $0xb98] sm:$0xff]
    %v5427 = vld [vmem:[#allocation7 + $0xba0] sm:$0xff]
    %v5428 = vld [vmem:[#allocation7 + $0xba8] sm:$0xff]
    %v5429 = vld [vmem:[#allocation7 + $0xbb0] sm:$0xff]
    %v5430 = vld [vmem:[#allocation7 + $0xbb8] sm:$0xff]
    %v5431 = vld [vmem:[#allocation7 + $0xbc0] sm:$0xff]
    %v5432 = vld [vmem:[#allocation7 + $0xbc8] sm:$0xff]
    %v5433 = vld [vmem:[#allocation7 + $0xbd0] sm:$0xff]
    %v5434 = vld [vmem:[#allocation7 + $0xbd8] sm:$0xff]
    %v5435 = vld [vmem:[#allocation7 + $0xbe0] sm:$0xff]
    %v5436 = vld [vmem:[#allocation7 + $0xbe8] sm:$0xff]
    %v5437 = vld [vmem:[#allocation7 + $0xbf0] sm:$0xff]
    %v5438 = vld [vmem:[#allocation7 + $0xbf8] sm:$0xff]
    %v5439 = vld [vmem:[#allocation7 + $0xc00] sm:$0xff]
    %v5440 = vld [vmem:[#allocation7 + $0xc08] sm:$0xff]
    %v5441 = vld [vmem:[#allocation7 + $0xc10] sm:$0xff]
    %v5442 = vld [vmem:[#allocation7 + $0xc18] sm:$0xff]
    %v5443 = vld [vmem:[#allocation7 + $0xc20] sm:$0xff]
    %v5444 = vld [vmem:[#allocation7 + $0xc28] sm:$0xff]
    %v5445 = vld [vmem:[#allocation7 + $0xc30] sm:$0xff]
    %v5446 = vld [vmem:[#allocation7 + $0xc38] sm:$0xff]
    %v5447 = vld [vmem:[#allocation7 + $0xc40] sm:$0xff]
    %v5448 = vld [vmem:[#allocation7 + $0xc48] sm:$0xff]
    %v5449 = vld [vmem:[#allocation7 + $0xc50] sm:$0xff]
    %v5450 = vld [vmem:[#allocation7 + $0xc58] sm:$0xff]
    %v5451 = vld [vmem:[#allocation7 + $0xc60] sm:$0xff]
    %v5452 = vld [vmem:[#allocation7 + $0xc68] sm:$0xff]
    %v5453 = vld [vmem:[#allocation7 + $0xc70] sm:$0xff]
    %v5454 = vld [vmem:[#allocation7 + $0xc78] sm:$0xff]
    %v5455 = vld [vmem:[#allocation7 + $0xc80] sm:$0xff]
    %v5456 = vld [vmem:[#allocation7 + $0xc88] sm:$0xff]
    %v5457 = vld [vmem:[#allocation7 + $0xc90] sm:$0xff]
    %v5458 = vld [vmem:[#allocation7 + $0xc98] sm:$0xff]
    %v5459 = vld [vmem:[#allocation7 + $0xca0] sm:$0xff]
    %v5460 = vld [vmem:[#allocation7 + $0xca8] sm:$0xff]
    %v5461 = vld [vmem:[#allocation7 + $0xcb0] sm:$0xff]
    %v5462 = vld [vmem:[#allocation7 + $0xcb8] sm:$0xff]
    %v5463 = vld [vmem:[#allocation7 + $0xcc0] sm:$0xff]
    %v5464 = vld [vmem:[#allocation7 + $0xcc8] sm:$0xff]
    %v5465 = vld [vmem:[#allocation7 + $0xcd0] sm:$0xff]
    %v5466 = vld [vmem:[#allocation7 + $0xcd8] sm:$0xff]
    %v5467 = vld [vmem:[#allocation7 + $0xce0] sm:$0xff]
    %v5468 = vld [vmem:[#allocation7 + $0xce8] sm:$0xff]
    %v5469 = vld [vmem:[#allocation7 + $0xcf0] sm:$0xff]
    %v5470 = vld [vmem:[#allocation7 + $0xcf8] sm:$0xff]
    %v5471 = vld [vmem:[#allocation7 + $0xd00] sm:$0xff]
    %v5472 = vld [vmem:[#allocation7 + $0xd08] sm:$0xff]
    %v5473 = vld [vmem:[#allocation7 + $0xd10] sm:$0xff]
    %v5474 = vld [vmem:[#allocation7 + $0xd18] sm:$0xff]
    %v5475 = vld [vmem:[#allocation7 + $0xd20] sm:$0xff]
    %v5476 = vld [vmem:[#allocation7 + $0xd28] sm:$0xff]
    %v5477 = vld [vmem:[#allocation7 + $0xd30] sm:$0xff]
    %v5478 = vld [vmem:[#allocation7 + $0xd38] sm:$0xff]
    %v5479 = vld [vmem:[#allocation7 + $0xd40] sm:$0xff]
    %v5480 = vld [vmem:[#allocation7 + $0xd48] sm:$0xff]
    %v5481 = vld [vmem:[#allocation7 + $0xd50] sm:$0xff]
    %v5482 = vld [vmem:[#allocation7 + $0xd58] sm:$0xff]
    %v5483 = vld [vmem:[#allocation7 + $0xd60] sm:$0xff]
    %v5484 = vld [vmem:[#allocation7 + $0xd68] sm:$0xff]
    %v5485 = vld [vmem:[#allocation7 + $0xd70] sm:$0xff]
    %v5486 = vld [vmem:[#allocation7 + $0xd78] sm:$0xff]
    %v5487 = vld [vmem:[#allocation7 + $0xd80] sm:$0xff]
    %v5488 = vld [vmem:[#allocation7 + $0xd88] sm:$0xff]
    %v5489 = vld [vmem:[#allocation7 + $0xd90] sm:$0xff]
    %v5490 = vld [vmem:[#allocation7 + $0xd98] sm:$0xff]
    %v5491 = vld [vmem:[#allocation7 + $0xda0] sm:$0xff]
    %v5492 = vld [vmem:[#allocation7 + $0xda8] sm:$0xff]
    %v5493 = vld [vmem:[#allocation7 + $0xdb0] sm:$0xff]
    %v5494 = vld [vmem:[#allocation7 + $0xdb8] sm:$0xff]
    %v5495 = vld [vmem:[#allocation7 + $0xdc0] sm:$0xff]
    %v5496 = vld [vmem:[#allocation7 + $0xdc8] sm:$0xff]
    %v5497 = vld [vmem:[#allocation7 + $0xdd0] sm:$0xff]
    %v5498 = vld [vmem:[#allocation7 + $0xdd8] sm:$0xff]
    %v5499 = vld [vmem:[#allocation7 + $0xde0] sm:$0xff]
    %v5500 = vld [vmem:[#allocation7 + $0xde8] sm:$0xff]
    %v5501 = vld [vmem:[#allocation7 + $0xdf0] sm:$0xff]
    %v5502 = vld [vmem:[#allocation7 + $0xdf8] sm:$0xff]
    %v5503 = vld [vmem:[#allocation7 + $0xe00] sm:$0xff]
    %v5504 = vld [vmem:[#allocation7 + $0xe08] sm:$0xff]
    %v5505 = vld [vmem:[#allocation7 + $0xe10] sm:$0xff]
    %v5506 = vld [vmem:[#allocation7 + $0xe18] sm:$0xff]
    %v5507 = vld [vmem:[#allocation7 + $0xe20] sm:$0xff]
    %v5508 = vld [vmem:[#allocation7 + $0xe28] sm:$0xff]
    %v5509 = vld [vmem:[#allocation7 + $0xe30] sm:$0xff]
    %v5510 = vld [vmem:[#allocation7 + $0xe38] sm:$0xff]
    %v5511 = vld [vmem:[#allocation7 + $0xe40] sm:$0xff]
    %v5512 = vld [vmem:[#allocation7 + $0xe48] sm:$0xff]
    %v5513 = vld [vmem:[#allocation7 + $0xe50] sm:$0xff]
    %v5514 = vld [vmem:[#allocation7 + $0xe58] sm:$0xff]
    %v5515 = vld [vmem:[#allocation7 + $0xe60] sm:$0xff]
    %v5516 = vld [vmem:[#allocation7 + $0xe68] sm:$0xff]
    %v5517 = vld [vmem:[#allocation7 + $0xe70] sm:$0xff]
    %v5518 = vld [vmem:[#allocation7 + $0xe78] sm:$0xff]
    %v5519 = vld [vmem:[#allocation7 + $0xe80] sm:$0xff]
    %v5520 = vld [vmem:[#allocation7 + $0xe88] sm:$0xff]
    %v5521 = vld [vmem:[#allocation7 + $0xe90] sm:$0xff]
    %v5522 = vld [vmem:[#allocation7 + $0xe98] sm:$0xff]
    %v5523 = vld [vmem:[#allocation7 + $0xea0] sm:$0xff]
    %v5524 = vld [vmem:[#allocation7 + $0xea8] sm:$0xff]
    %v5525 = vld [vmem:[#allocation7 + $0xeb0] sm:$0xff]
    %v5526 = vld [vmem:[#allocation7 + $0xeb8] sm:$0xff]
    %v5527 = vld [vmem:[#allocation7 + $0xec0] sm:$0xff]
    %v5528 = vld [vmem:[#allocation7 + $0xec8] sm:$0xff]
    %v5529 = vld [vmem:[#allocation7 + $0xed0] sm:$0xff]
    %v5530 = vld [vmem:[#allocation7 + $0xed8] sm:$0xff]
    %v5531 = vld [vmem:[#allocation7 + $0xee0] sm:$0xff]
    %v5532 = vld [vmem:[#allocation7 + $0xee8] sm:$0xff]
    %v5533 = vld [vmem:[#allocation7 + $0xef0] sm:$0xff]
    %v5534 = vld [vmem:[#allocation7 + $0xef8] sm:$0xff]
    %v5535 = vld [vmem:[#allocation7 + $0xf00] sm:$0xff]
    %v5536 = vld [vmem:[#allocation7 + $0xf08] sm:$0xff]
    %v5537 = vld [vmem:[#allocation7 + $0xf10] sm:$0xff]
    %v5538 = vld [vmem:[#allocation7 + $0xf18] sm:$0xff]
    %v5539 = vld [vmem:[#allocation7 + $0xf20] sm:$0xff]
    %v5540 = vld [vmem:[#allocation7 + $0xf28] sm:$0xff]
    %v5541 = vld [vmem:[#allocation7 + $0xf30] sm:$0xff]
    %v5542 = vld [vmem:[#allocation7 + $0xf38] sm:$0xff]
    %v5543 = vld [vmem:[#allocation7 + $0xf40] sm:$0xff]
    %v5544 = vld [vmem:[#allocation7 + $0xf48] sm:$0xff]
    %v5545 = vld [vmem:[#allocation7 + $0xf50] sm:$0xff]
    %v5546 = vld [vmem:[#allocation7 + $0xf58] sm:$0xff]
    %v5547 = vld [vmem:[#allocation7 + $0xf60] sm:$0xff]
    %v5548 = vld [vmem:[#allocation7 + $0xf68] sm:$0xff]
    %v5549 = vld [vmem:[#allocation7 + $0xf70] sm:$0xff]
    %v5550 = vld [vmem:[#allocation7 + $0xf78] sm:$0xff]
    %v5551 = vld [vmem:[#allocation7 + $0xf80] sm:$0xff]
    %v5552 = vld [vmem:[#allocation7 + $0xf88] sm:$0xff]
    %v5553 = vld [vmem:[#allocation7 + $0xf90] sm:$0xff]
    %v5554 = vld [vmem:[#allocation7 + $0xf98] sm:$0xff]
    %v5555 = vld [vmem:[#allocation7 + $0xfa0] sm:$0xff]
    %v5556 = vld [vmem:[#allocation7 + $0xfa8] sm:$0xff]
    %v5557 = vld [vmem:[#allocation7 + $0xfb0] sm:$0xff]
    %v5558 = vld [vmem:[#allocation7 + $0xfb8] sm:$0xff]
    %v6063 = vunpack.c.l.b16 %v5055
    %v6064 = vunpack.c.h.b16 %v5055
    %v6065 = vunpack.c.l.b16 %v5056
    %v6066 = vunpack.c.h.b16 %v5056
    %v6067 = vunpack.c.l.b16 %v5057
    %v6068 = vunpack.c.h.b16 %v5057
    %v6069 = vunpack.c.l.b16 %v5058
    %v6070 = vunpack.c.h.b16 %v5058
    %v6071 = vunpack.c.l.b16 %v5059
    %v6072 = vunpack.c.h.b16 %v5059
    %v6073 = vunpack.c.l.b16 %v5060
    %v6074 = vunpack.c.h.b16 %v5060
    %v6075 = vunpack.c.l.b16 %v5061
    %v6076 = vunpack.c.h.b16 %v5061
    %v6077 = vunpack.c.l.b16 %v5062
    %v6078 = vunpack.c.h.b16 %v5062
    %v6079 = vunpack.c.l.b16 %v5063
    %v6080 = vunpack.c.h.b16 %v5063
    %v6081 = vunpack.c.l.b16 %v5064
    %v6082 = vunpack.c.h.b16 %v5064
    %v6083 = vunpack.c.l.b16 %v5065
    %v6084 = vunpack.c.h.b16 %v5065
    %v6085 = vunpack.c.l.b16 %v5066
    %v6086 = vunpack.c.h.b16 %v5066
    %v6087 = vunpack.c.l.b16 %v5067
    %v6088 = vunpack.c.h.b16 %v5067
    %v6089 = vunpack.c.l.b16 %v5068
    %v6090 = vunpack.c.h.b16 %v5068
    %v6091 = vunpack.c.l.b16 %v5069
    %v6092 = vunpack.c.h.b16 %v5069
    %v6093 = vunpack.c.l.b16 %v5070
    %v6094 = vunpack.c.h.b16 %v5070
    %v6095 = vunpack.c.l.b16 %v5071
    %v6096 = vunpack.c.h.b16 %v5071
    %v6097 = vunpack.c.l.b16 %v5072
    %v6098 = vunpack.c.h.b16 %v5072
    %v6099 = vunpack.c.l.b16 %v5073
    %v6100 = vunpack.c.h.b16 %v5073
    %v6101 = vunpack.c.l.b16 %v5074
    %v6102 = vunpack.c.h.b16 %v5074
    %v6103 = vunpack.c.l.b16 %v5075
    %v6104 = vunpack.c.h.b16 %v5075
    %v6105 = vunpack.c.l.b16 %v5076
    %v6106 = vunpack.c.h.b16 %v5076
    %v6107 = vunpack.c.l.b16 %v5077
    %v6108 = vunpack.c.h.b16 %v5077
    %v6109 = vunpack.c.l.b16 %v5078
    %v6110 = vunpack.c.h.b16 %v5078
    %v6111 = vunpack.c.l.b16 %v5079
    %v6112 = vunpack.c.h.b16 %v5079
    %v6113 = vunpack.c.l.b16 %v5080
    %v6114 = vunpack.c.h.b16 %v5080
    %v6115 = vunpack.c.l.b16 %v5081
    %v6116 = vunpack.c.h.b16 %v5081
    %v6117 = vunpack.c.l.b16 %v5082
    %v6118 = vunpack.c.h.b16 %v5082
    %v6119 = vunpack.c.l.b16 %v5083
    %v6120 = vunpack.c.h.b16 %v5083
    %v6121 = vunpack.c.l.b16 %v5084
    %v6122 = vunpack.c.h.b16 %v5084
    %v6123 = vunpack.c.l.b16 %v5085
    %v6124 = vunpack.c.h.b16 %v5085
    %v6125 = vunpack.c.l.b16 %v5086
    %v6126 = vunpack.c.h.b16 %v5086
    %v6127 = vunpack.c.l.b16 %v5087
    %v6128 = vunpack.c.h.b16 %v5087
    %v6129 = vunpack.c.l.b16 %v5088
    %v6130 = vunpack.c.h.b16 %v5088
    %v6131 = vunpack.c.l.b16 %v5089
    %v6132 = vunpack.c.h.b16 %v5089
    %v6133 = vunpack.c.l.b16 %v5090
    %v6134 = vunpack.c.h.b16 %v5090
    %v6135 = vunpack.c.l.b16 %v5091
    %v6136 = vunpack.c.h.b16 %v5091
    %v6137 = vunpack.c.l.b16 %v5092
    %v6138 = vunpack.c.h.b16 %v5092
    %v6139 = vunpack.c.l.b16 %v5093
    %v6140 = vunpack.c.h.b16 %v5093
    %v6141 = vunpack.c.l.b16 %v5094
    %v6142 = vunpack.c.h.b16 %v5094
    %v6143 = vunpack.c.l.b16 %v5095
    %v6144 = vunpack.c.h.b16 %v5095
    %v6145 = vunpack.c.l.b16 %v5096
    %v6146 = vunpack.c.h.b16 %v5096
    %v6147 = vunpack.c.l.b16 %v5097
    %v6148 = vunpack.c.h.b16 %v5097
    %v6149 = vunpack.c.l.b16 %v5098
    %v6150 = vunpack.c.h.b16 %v5098
    %v6151 = vunpack.c.l.b16 %v5099
    %v6152 = vunpack.c.h.b16 %v5099
    %v6153 = vunpack.c.l.b16 %v5100
    %v6154 = vunpack.c.h.b16 %v5100
    %v6155 = vunpack.c.l.b16 %v5101
    %v6156 = vunpack.c.h.b16 %v5101
    %v6157 = vunpack.c.l.b16 %v5102
    %v6158 = vunpack.c.h.b16 %v5102
    %v6159 = vunpack.c.l.b16 %v5103
    %v6160 = vunpack.c.h.b16 %v5103
    %v6161 = vunpack.c.l.b16 %v5104
    %v6162 = vunpack.c.h.b16 %v5104
    %v6163 = vunpack.c.l.b16 %v5105
    %v6164 = vunpack.c.h.b16 %v5105
    %v6165 = vunpack.c.l.b16 %v5106
    %v6166 = vunpack.c.h.b16 %v5106
    %v6167 = vunpack.c.l.b16 %v5107
    %v6168 = vunpack.c.h.b16 %v5107
    %v6169 = vunpack.c.l.b16 %v5108
    %v6170 = vunpack.c.h.b16 %v5108
    %v6171 = vunpack.c.l.b16 %v5109
    %v6172 = vunpack.c.h.b16 %v5109
    %v6173 = vunpack.c.l.b16 %v5110
    %v6174 = vunpack.c.h.b16 %v5110
    %v6175 = vunpack.c.l.b16 %v5111
    %v6176 = vunpack.c.h.b16 %v5111
    %v6177 = vunpack.c.l.b16 %v5112
    %v6178 = vunpack.c.h.b16 %v5112
    %v6179 = vunpack.c.l.b16 %v5113
    %v6180 = vunpack.c.h.b16 %v5113
    %v6181 = vunpack.c.l.b16 %v5114
    %v6182 = vunpack.c.h.b16 %v5114
    %v6183 = vunpack.c.l.b16 %v5115
    %v6184 = vunpack.c.h.b16 %v5115
    %v6185 = vunpack.c.l.b16 %v5116
    %v6186 = vunpack.c.h.b16 %v5116
    %v6187 = vunpack.c.l.b16 %v5117
    %v6188 = vunpack.c.h.b16 %v5117
    %v6189 = vunpack.c.l.b16 %v5118
    %v6190 = vunpack.c.h.b16 %v5118
    %v6191 = vunpack.c.l.b16 %v5119
    %v6192 = vunpack.c.h.b16 %v5119
    %v6193 = vunpack.c.l.b16 %v5120
    %v6194 = vunpack.c.h.b16 %v5120
    %v6195 = vunpack.c.l.b16 %v5121
    %v6196 = vunpack.c.h.b16 %v5121
    %v6197 = vunpack.c.l.b16 %v5122
    %v6198 = vunpack.c.h.b16 %v5122
    %v6199 = vunpack.c.l.b16 %v5123
    %v6200 = vunpack.c.h.b16 %v5123
    %v6201 = vunpack.c.l.b16 %v5124
    %v6202 = vunpack.c.h.b16 %v5124
    %v6203 = vunpack.c.l.b16 %v5125
    %v6204 = vunpack.c.h.b16 %v5125
    %v6205 = vunpack.c.l.b16 %v5126
    %v6206 = vunpack.c.h.b16 %v5126
    %v6207 = vunpack.c.l.b16 %v5127
    %v6208 = vunpack.c.h.b16 %v5127
    %v6209 = vunpack.c.l.b16 %v5128
    %v6210 = vunpack.c.h.b16 %v5128
    %v6211 = vunpack.c.l.b16 %v5129
    %v6212 = vunpack.c.h.b16 %v5129
    %v6213 = vunpack.c.l.b16 %v5130
    %v6214 = vunpack.c.h.b16 %v5130
    %v6215 = vunpack.c.l.b16 %v5131
    %v6216 = vunpack.c.h.b16 %v5131
    %v6217 = vunpack.c.l.b16 %v5132
    %v6218 = vunpack.c.h.b16 %v5132
    %v6219 = vunpack.c.l.b16 %v5133
    %v6220 = vunpack.c.h.b16 %v5133
    %v6221 = vunpack.c.l.b16 %v5134
    %v6222 = vunpack.c.h.b16 %v5134
    %v6223 = vunpack.c.l.b16 %v5135
    %v6224 = vunpack.c.h.b16 %v5135
    %v6225 = vunpack.c.l.b16 %v5136
    %v6226 = vunpack.c.h.b16 %v5136
    %v6227 = vunpack.c.l.b16 %v5137
    %v6228 = vunpack.c.h.b16 %v5137
    %v6229 = vunpack.c.l.b16 %v5138
    %v6230 = vunpack.c.h.b16 %v5138
    %v6231 = vunpack.c.l.b16 %v5139
    %v6232 = vunpack.c.h.b16 %v5139
    %v6233 = vunpack.c.l.b16 %v5140
    %v6234 = vunpack.c.h.b16 %v5140
    %v6235 = vunpack.c.l.b16 %v5141
    %v6236 = vunpack.c.h.b16 %v5141
    %v6237 = vunpack.c.l.b16 %v5142
    %v6238 = vunpack.c.h.b16 %v5142
    %v6239 = vunpack.c.l.b16 %v5143
    %v6240 = vunpack.c.h.b16 %v5143
    %v6241 = vunpack.c.l.b16 %v5144
    %v6242 = vunpack.c.h.b16 %v5144
    %v6243 = vunpack.c.l.b16 %v5145
    %v6244 = vunpack.c.h.b16 %v5145
    %v6245 = vunpack.c.l.b16 %v5146
    %v6246 = vunpack.c.h.b16 %v5146
    %v6247 = vunpack.c.l.b16 %v5147
    %v6248 = vunpack.c.h.b16 %v5147
    %v6249 = vunpack.c.l.b16 %v5148
    %v6250 = vunpack.c.h.b16 %v5148
    %v6251 = vunpack.c.l.b16 %v5149
    %v6252 = vunpack.c.h.b16 %v5149
    %v6253 = vunpack.c.l.b16 %v5150
    %v6254 = vunpack.c.h.b16 %v5150
    %v6255 = vunpack.c.l.b16 %v5151
    %v6256 = vunpack.c.h.b16 %v5151
    %v6257 = vunpack.c.l.b16 %v5152
    %v6258 = vunpack.c.h.b16 %v5152
    %v6259 = vunpack.c.l.b16 %v5153
    %v6260 = vunpack.c.h.b16 %v5153
    %v6261 = vunpack.c.l.b16 %v5154
    %v6262 = vunpack.c.h.b16 %v5154
    %v6263 = vunpack.c.l.b16 %v5155
    %v6264 = vunpack.c.h.b16 %v5155
    %v6265 = vunpack.c.l.b16 %v5156
    %v6266 = vunpack.c.h.b16 %v5156
    %v6267 = vunpack.c.l.b16 %v5157
    %v6268 = vunpack.c.h.b16 %v5157
    %v6269 = vunpack.c.l.b16 %v5158
    %v6270 = vunpack.c.h.b16 %v5158
    %v6271 = vunpack.c.l.b16 %v5159
    %v6272 = vunpack.c.h.b16 %v5159
    %v6273 = vunpack.c.l.b16 %v5160
    %v6274 = vunpack.c.h.b16 %v5160
    %v6275 = vunpack.c.l.b16 %v5161
    %v6276 = vunpack.c.h.b16 %v5161
    %v6277 = vunpack.c.l.b16 %v5162
    %v6278 = vunpack.c.h.b16 %v5162
    %v6279 = vunpack.c.l.b16 %v5163
    %v6280 = vunpack.c.h.b16 %v5163
    %v6281 = vunpack.c.l.b16 %v5164
    %v6282 = vunpack.c.h.b16 %v5164
    %v6283 = vunpack.c.l.b16 %v5165
    %v6284 = vunpack.c.h.b16 %v5165
    %v6285 = vunpack.c.l.b16 %v5166
    %v6286 = vunpack.c.h.b16 %v5166
    %v6287 = vunpack.c.l.b16 %v5167
    %v6288 = vunpack.c.h.b16 %v5167
    %v6289 = vunpack.c.l.b16 %v5168
    %v6290 = vunpack.c.h.b16 %v5168
    %v6291 = vunpack.c.l.b16 %v5169
    %v6292 = vunpack.c.h.b16 %v5169
    %v6293 = vunpack.c.l.b16 %v5170
    %v6294 = vunpack.c.h.b16 %v5170
    %v6295 = vunpack.c.l.b16 %v5171
    %v6296 = vunpack.c.h.b16 %v5171
    %v6297 = vunpack.c.l.b16 %v5172
    %v6298 = vunpack.c.h.b16 %v5172
    %v6299 = vunpack.c.l.b16 %v5173
    %v6300 = vunpack.c.h.b16 %v5173
    %v6301 = vunpack.c.l.b16 %v5174
    %v6302 = vunpack.c.h.b16 %v5174
    %v6303 = vunpack.c.l.b16 %v5175
    %v6304 = vunpack.c.h.b16 %v5175
    %v6305 = vunpack.c.l.b16 %v5176
    %v6306 = vunpack.c.h.b16 %v5176
    %v6307 = vunpack.c.l.b16 %v5177
    %v6308 = vunpack.c.h.b16 %v5177
    %v6309 = vunpack.c.l.b16 %v5178
    %v6310 = vunpack.c.h.b16 %v5178
    %v6311 = vunpack.c.l.b16 %v5179
    %v6312 = vunpack.c.h.b16 %v5179
    %v6313 = vunpack.c.l.b16 %v5180
    %v6314 = vunpack.c.h.b16 %v5180
    %v6315 = vunpack.c.l.b16 %v5181
    %v6316 = vunpack.c.h.b16 %v5181
    %v6317 = vunpack.c.l.b16 %v5182
    %v6318 = vunpack.c.h.b16 %v5182
    %v6319 = vunpack.c.l.b16 %v5183
    %v6320 = vunpack.c.h.b16 %v5183
    %v6321 = vunpack.c.l.b16 %v5184
    %v6322 = vunpack.c.h.b16 %v5184
    %v6323 = vunpack.c.l.b16 %v5185
    %v6324 = vunpack.c.h.b16 %v5185
    %v6325 = vunpack.c.l.b16 %v5186
    %v6326 = vunpack.c.h.b16 %v5186
    %v6327 = vunpack.c.l.b16 %v5187
    %v6328 = vunpack.c.h.b16 %v5187
    %v6329 = vunpack.c.l.b16 %v5188
    %v6330 = vunpack.c.h.b16 %v5188
    %v6331 = vunpack.c.l.b16 %v5189
    %v6332 = vunpack.c.h.b16 %v5189
    %v6333 = vunpack.c.l.b16 %v5190
    %v6334 = vunpack.c.h.b16 %v5190
    %v6335 = vunpack.c.l.b16 %v5191
    %v6336 = vunpack.c.h.b16 %v5191
    %v6337 = vunpack.c.l.b16 %v5192
    %v6338 = vunpack.c.h.b16 %v5192
    %v6339 = vunpack.c.l.b16 %v5193
    %v6340 = vunpack.c.h.b16 %v5193
    %v6341 = vunpack.c.l.b16 %v5194
    %v6342 = vunpack.c.h.b16 %v5194
    %v6343 = vunpack.c.l.b16 %v5195
    %v6344 = vunpack.c.h.b16 %v5195
    %v6345 = vunpack.c.l.b16 %v5196
    %v6346 = vunpack.c.h.b16 %v5196
    %v6347 = vunpack.c.l.b16 %v5197
    %v6348 = vunpack.c.h.b16 %v5197
    %v6349 = vunpack.c.l.b16 %v5198
    %v6350 = vunpack.c.h.b16 %v5198
    %v6351 = vunpack.c.l.b16 %v5199
    %v6352 = vunpack.c.h.b16 %v5199
    %v6353 = vunpack.c.l.b16 %v5200
    %v6354 = vunpack.c.h.b16 %v5200
    %v6355 = vunpack.c.l.b16 %v5201
    %v6356 = vunpack.c.h.b16 %v5201
    %v6357 = vunpack.c.l.b16 %v5202
    %v6358 = vunpack.c.h.b16 %v5202
    %v6359 = vunpack.c.l.b16 %v5203
    %v6360 = vunpack.c.h.b16 %v5203
    %v6361 = vunpack.c.l.b16 %v5204
    %v6362 = vunpack.c.h.b16 %v5204
    %v6363 = vunpack.c.l.b16 %v5205
    %v6364 = vunpack.c.h.b16 %v5205
    %v6365 = vunpack.c.l.b16 %v5206
    %v6366 = vunpack.c.h.b16 %v5206
    %v6367 = vunpack.c.l.b16 %v5207
    %v6368 = vunpack.c.h.b16 %v5207
    %v6369 = vunpack.c.l.b16 %v5208
    %v6370 = vunpack.c.h.b16 %v5208
    %v6371 = vunpack.c.l.b16 %v5209
    %v6372 = vunpack.c.h.b16 %v5209
    %v6373 = vunpack.c.l.b16 %v5210
    %v6374 = vunpack.c.h.b16 %v5210
    %v6375 = vunpack.c.l.b16 %v5211
    %v6376 = vunpack.c.h.b16 %v5211
    %v6377 = vunpack.c.l.b16 %v5212
    %v6378 = vunpack.c.h.b16 %v5212
    %v6379 = vunpack.c.l.b16 %v5213
    %v6380 = vunpack.c.h.b16 %v5213
    %v6381 = vunpack.c.l.b16 %v5214
    %v6382 = vunpack.c.h.b16 %v5214
    %v6383 = vunpack.c.l.b16 %v5215
    %v6384 = vunpack.c.h.b16 %v5215
    %v6385 = vunpack.c.l.b16 %v5216
    %v6386 = vunpack.c.h.b16 %v5216
    %v6387 = vunpack.c.l.b16 %v5217
    %v6388 = vunpack.c.h.b16 %v5217
    %v6389 = vunpack.c.l.b16 %v5218
    %v6390 = vunpack.c.h.b16 %v5218
    %v6391 = vunpack.c.l.b16 %v5219
    %v6392 = vunpack.c.h.b16 %v5219
    %v6393 = vunpack.c.l.b16 %v5220
    %v6394 = vunpack.c.h.b16 %v5220
    %v6395 = vunpack.c.l.b16 %v5221
    %v6396 = vunpack.c.h.b16 %v5221
    %v6397 = vunpack.c.l.b16 %v5222
    %v6398 = vunpack.c.h.b16 %v5222
    %v6399 = vunpack.c.l.b16 %v5223
    %v6400 = vunpack.c.h.b16 %v5223
    %v6401 = vunpack.c.l.b16 %v5224
    %v6402 = vunpack.c.h.b16 %v5224
    %v6403 = vunpack.c.l.b16 %v5225
    %v6404 = vunpack.c.h.b16 %v5225
    %v6405 = vunpack.c.l.b16 %v5226
    %v6406 = vunpack.c.h.b16 %v5226
    %v6407 = vunpack.c.l.b16 %v5227
    %v6408 = vunpack.c.h.b16 %v5227
    %v6409 = vunpack.c.l.b16 %v5228
    %v6410 = vunpack.c.h.b16 %v5228
    %v6411 = vunpack.c.l.b16 %v5229
    %v6412 = vunpack.c.h.b16 %v5229
    %v6413 = vunpack.c.l.b16 %v5230
    %v6414 = vunpack.c.h.b16 %v5230
    %v6415 = vunpack.c.l.b16 %v5231
    %v6416 = vunpack.c.h.b16 %v5231
    %v6417 = vunpack.c.l.b16 %v5232
    %v6418 = vunpack.c.h.b16 %v5232
    %v6419 = vunpack.c.l.b16 %v5233
    %v6420 = vunpack.c.h.b16 %v5233
    %v6421 = vunpack.c.l.b16 %v5234
    %v6422 = vunpack.c.h.b16 %v5234
    %v6423 = vunpack.c.l.b16 %v5235
    %v6424 = vunpack.c.h.b16 %v5235
    %v6425 = vunpack.c.l.b16 %v5236
    %v6426 = vunpack.c.h.b16 %v5236
    %v6427 = vunpack.c.l.b16 %v5237
    %v6428 = vunpack.c.h.b16 %v5237
    %v6429 = vunpack.c.l.b16 %v5238
    %v6430 = vunpack.c.h.b16 %v5238
    %v6431 = vunpack.c.l.b16 %v5239
    %v6432 = vunpack.c.h.b16 %v5239
    %v6433 = vunpack.c.l.b16 %v5240
    %v6434 = vunpack.c.h.b16 %v5240
    %v6435 = vunpack.c.l.b16 %v5241
    %v6436 = vunpack.c.h.b16 %v5241
    %v6437 = vunpack.c.l.b16 %v5242
    %v6438 = vunpack.c.h.b16 %v5242
    %v6439 = vunpack.c.l.b16 %v5243
    %v6440 = vunpack.c.h.b16 %v5243
    %v6441 = vunpack.c.l.b16 %v5244
    %v6442 = vunpack.c.h.b16 %v5244
    %v6443 = vunpack.c.l.b16 %v5245
    %v6444 = vunpack.c.h.b16 %v5245
    %v6445 = vunpack.c.l.b16 %v5246
    %v6446 = vunpack.c.h.b16 %v5246
    %v6447 = vunpack.c.l.b16 %v5247
    %v6448 = vunpack.c.h.b16 %v5247
    %v6449 = vunpack.c.l.b16 %v5248
    %v6450 = vunpack.c.h.b16 %v5248
    %v6451 = vunpack.c.l.b16 %v5249
    %v6452 = vunpack.c.h.b16 %v5249
    %v6453 = vunpack.c.l.b16 %v5250
    %v6454 = vunpack.c.h.b16 %v5250
    %v6455 = vunpack.c.l.b16 %v5251
    %v6456 = vunpack.c.h.b16 %v5251
    %v6457 = vunpack.c.l.b16 %v5252
    %v6458 = vunpack.c.h.b16 %v5252
    %v6459 = vunpack.c.l.b16 %v5253
    %v6460 = vunpack.c.h.b16 %v5253
    %v6461 = vunpack.c.l.b16 %v5254
    %v6462 = vunpack.c.h.b16 %v5254
    %v6463 = vunpack.c.l.b16 %v5255
    %v6464 = vunpack.c.h.b16 %v5255
    %v6465 = vunpack.c.l.b16 %v5256
    %v6466 = vunpack.c.h.b16 %v5256
    %v6467 = vunpack.c.l.b16 %v5257
    %v6468 = vunpack.c.h.b16 %v5257
    %v6469 = vunpack.c.l.b16 %v5258
    %v6470 = vunpack.c.h.b16 %v5258
    %v6471 = vunpack.c.l.b16 %v5259
    %v6472 = vunpack.c.h.b16 %v5259
    %v6473 = vunpack.c.l.b16 %v5260
    %v6474 = vunpack.c.h.b16 %v5260
    %v6475 = vunpack.c.l.b16 %v5261
    %v6476 = vunpack.c.h.b16 %v5261
    %v6477 = vunpack.c.l.b16 %v5262
    %v6478 = vunpack.c.h.b16 %v5262
    %v6479 = vunpack.c.l.b16 %v5263
    %v6480 = vunpack.c.h.b16 %v5263
    %v6481 = vunpack.c.l.b16 %v5264
    %v6482 = vunpack.c.h.b16 %v5264
    %v6483 = vunpack.c.l.b16 %v5265
    %v6484 = vunpack.c.h.b16 %v5265
    %v6485 = vunpack.c.l.b16 %v5266
    %v6486 = vunpack.c.h.b16 %v5266
    %v6487 = vunpack.c.l.b16 %v5267
    %v6488 = vunpack.c.h.b16 %v5267
    %v6489 = vunpack.c.l.b16 %v5268
    %v6490 = vunpack.c.h.b16 %v5268
    %v6491 = vunpack.c.l.b16 %v5269
    %v6492 = vunpack.c.h.b16 %v5269
    %v6493 = vunpack.c.l.b16 %v5270
    %v6494 = vunpack.c.h.b16 %v5270
    %v6495 = vunpack.c.l.b16 %v5271
    %v6496 = vunpack.c.h.b16 %v5271
    %v6497 = vunpack.c.l.b16 %v5272
    %v6498 = vunpack.c.h.b16 %v5272
    %v6499 = vunpack.c.l.b16 %v5273
    %v6500 = vunpack.c.h.b16 %v5273
    %v6501 = vunpack.c.l.b16 %v5274
    %v6502 = vunpack.c.h.b16 %v5274
    %v6503 = vunpack.c.l.b16 %v5275
    %v6504 = vunpack.c.h.b16 %v5275
    %v6505 = vunpack.c.l.b16 %v5276
    %v6506 = vunpack.c.h.b16 %v5276
    %v6507 = vunpack.c.l.b16 %v5277
    %v6508 = vunpack.c.h.b16 %v5277
    %v6509 = vunpack.c.l.b16 %v5278
    %v6510 = vunpack.c.h.b16 %v5278
    %v6511 = vunpack.c.l.b16 %v5279
    %v6512 = vunpack.c.h.b16 %v5279
    %v6513 = vunpack.c.l.b16 %v5280
    %v6514 = vunpack.c.h.b16 %v5280
    %v6515 = vunpack.c.l.b16 %v5281
    %v6516 = vunpack.c.h.b16 %v5281
    %v6517 = vunpack.c.l.b16 %v5282
    %v6518 = vunpack.c.h.b16 %v5282
    %v6519 = vunpack.c.l.b16 %v5283
    %v6520 = vunpack.c.h.b16 %v5283
    %v6521 = vunpack.c.l.b16 %v5284
    %v6522 = vunpack.c.h.b16 %v5284
    %v6523 = vunpack.c.l.b16 %v5285
    %v6524 = vunpack.c.h.b16 %v5285
    %v6525 = vunpack.c.l.b16 %v5286
    %v6526 = vunpack.c.h.b16 %v5286
    %v6527 = vunpack.c.l.b16 %v5287
    %v6528 = vunpack.c.h.b16 %v5287
    %v6529 = vunpack.c.l.b16 %v5288
    %v6530 = vunpack.c.h.b16 %v5288
    %v6531 = vunpack.c.l.b16 %v5289
    %v6532 = vunpack.c.h.b16 %v5289
    %v6533 = vunpack.c.l.b16 %v5290
    %v6534 = vunpack.c.h.b16 %v5290
    %v6535 = vunpack.c.l.b16 %v5291
    %v6536 = vunpack.c.h.b16 %v5291
    %v6537 = vunpack.c.l.b16 %v5292
    %v6538 = vunpack.c.h.b16 %v5292
    %v6539 = vunpack.c.l.b16 %v5293
    %v6540 = vunpack.c.h.b16 %v5293
    %v6541 = vunpack.c.l.b16 %v5294
    %v6542 = vunpack.c.h.b16 %v5294
    %v6543 = vunpack.c.l.b16 %v5295
    %v6544 = vunpack.c.h.b16 %v5295
    %v6545 = vunpack.c.l.b16 %v5296
    %v6546 = vunpack.c.h.b16 %v5296
    %v6547 = vunpack.c.l.b16 %v5297
    %v6548 = vunpack.c.h.b16 %v5297
    %v6549 = vunpack.c.l.b16 %v5298
    %v6550 = vunpack.c.h.b16 %v5298
    %v6551 = vunpack.c.l.b16 %v5299
    %v6552 = vunpack.c.h.b16 %v5299
    %v6553 = vunpack.c.l.b16 %v5300
    %v6554 = vunpack.c.h.b16 %v5300
    %v6555 = vunpack.c.l.b16 %v5301
    %v6556 = vunpack.c.h.b16 %v5301
    %v6557 = vunpack.c.l.b16 %v5302
    %v6558 = vunpack.c.h.b16 %v5302
    %v6559 = vunpack.c.l.b16 %v5303
    %v6560 = vunpack.c.h.b16 %v5303
    %v6561 = vunpack.c.l.b16 %v5304
    %v6562 = vunpack.c.h.b16 %v5304
    %v6563 = vunpack.c.l.b16 %v5305
    %v6564 = vunpack.c.h.b16 %v5305
    %v6565 = vunpack.c.l.b16 %v5306
    %v6566 = vunpack.c.h.b16 %v5306
    %v6567 = vunpack.c.l.b16 %v5307
    %v6568 = vunpack.c.h.b16 %v5307
    %v6569 = vunpack.c.l.b16 %v5308
    %v6570 = vunpack.c.h.b16 %v5308
    %v6571 = vunpack.c.l.b16 %v5309
    %v6572 = vunpack.c.h.b16 %v5309
    %v6573 = vunpack.c.l.b16 %v5310
    %v6574 = vunpack.c.h.b16 %v5310
    %v6575 = vunpack.c.l.b16 %v5311
    %v6576 = vunpack.c.h.b16 %v5311
    %v6577 = vunpack.c.l.b16 %v5312
    %v6578 = vunpack.c.h.b16 %v5312
    %v6579 = vunpack.c.l.b16 %v5313
    %v6580 = vunpack.c.h.b16 %v5313
    %v6581 = vunpack.c.l.b16 %v5314
    %v6582 = vunpack.c.h.b16 %v5314
    %v6583 = vunpack.c.l.b16 %v5315
    %v6584 = vunpack.c.h.b16 %v5315
    %v6585 = vunpack.c.l.b16 %v5316
    %v6586 = vunpack.c.h.b16 %v5316
    %v6587 = vunpack.c.l.b16 %v5317
    %v6588 = vunpack.c.h.b16 %v5317
    %v6589 = vunpack.c.l.b16 %v5318
    %v6590 = vunpack.c.h.b16 %v5318
    %v6591 = vunpack.c.l.b16 %v5319
    %v6592 = vunpack.c.h.b16 %v5319
    %v6593 = vunpack.c.l.b16 %v5320
    %v6594 = vunpack.c.h.b16 %v5320
    %v6595 = vunpack.c.l.b16 %v5321
    %v6596 = vunpack.c.h.b16 %v5321
    %v6597 = vunpack.c.l.b16 %v5322
    %v6598 = vunpack.c.h.b16 %v5322
    %v6599 = vunpack.c.l.b16 %v5323
    %v6600 = vunpack.c.h.b16 %v5323
    %v6601 = vunpack.c.l.b16 %v5324
    %v6602 = vunpack.c.h.b16 %v5324
    %v6603 = vunpack.c.l.b16 %v5325
    %v6604 = vunpack.c.h.b16 %v5325
    %v6605 = vunpack.c.l.b16 %v5326
    %v6606 = vunpack.c.h.b16 %v5326
    %v6607 = vunpack.c.l.b16 %v5327
    %v6608 = vunpack.c.h.b16 %v5327
    %v6609 = vunpack.c.l.b16 %v5328
    %v6610 = vunpack.c.h.b16 %v5328
    %v6611 = vunpack.c.l.b16 %v5329
    %v6612 = vunpack.c.h.b16 %v5329
    %v6613 = vunpack.c.l.b16 %v5330
    %v6614 = vunpack.c.h.b16 %v5330
    %v6615 = vunpack.c.l.b16 %v5331
    %v6616 = vunpack.c.h.b16 %v5331
    %v6617 = vunpack.c.l.b16 %v5332
    %v6618 = vunpack.c.h.b16 %v5332
    %v6619 = vunpack.c.l.b16 %v5333
    %v6620 = vunpack.c.h.b16 %v5333
    %v6621 = vunpack.c.l.b16 %v5334
    %v6622 = vunpack.c.h.b16 %v5334
    %v6623 = vunpack.c.l.b16 %v5335
    %v6624 = vunpack.c.h.b16 %v5335
    %v6625 = vunpack.c.l.b16 %v5336
    %v6626 = vunpack.c.h.b16 %v5336
    %v6627 = vunpack.c.l.b16 %v5337
    %v6628 = vunpack.c.h.b16 %v5337
    %v6629 = vunpack.c.l.b16 %v5338
    %v6630 = vunpack.c.h.b16 %v5338
    %v6631 = vunpack.c.l.b16 %v5339
    %v6632 = vunpack.c.h.b16 %v5339
    %v6633 = vunpack.c.l.b16 %v5340
    %v6634 = vunpack.c.h.b16 %v5340
    %v6635 = vunpack.c.l.b16 %v5341
    %v6636 = vunpack.c.h.b16 %v5341
    %v6637 = vunpack.c.l.b16 %v5342
    %v6638 = vunpack.c.h.b16 %v5342
    %v6639 = vunpack.c.l.b16 %v5343
    %v6640 = vunpack.c.h.b16 %v5343
    %v6641 = vunpack.c.l.b16 %v5344
    %v6642 = vunpack.c.h.b16 %v5344
    %v6643 = vunpack.c.l.b16 %v5345
    %v6644 = vunpack.c.h.b16 %v5345
    %v6645 = vunpack.c.l.b16 %v5346
    %v6646 = vunpack.c.h.b16 %v5346
    %v6647 = vunpack.c.l.b16 %v5347
    %v6648 = vunpack.c.h.b16 %v5347
    %v6649 = vunpack.c.l.b16 %v5348
    %v6650 = vunpack.c.h.b16 %v5348
    %v6651 = vunpack.c.l.b16 %v5349
    %v6652 = vunpack.c.h.b16 %v5349
    %v6653 = vunpack.c.l.b16 %v5350
    %v6654 = vunpack.c.h.b16 %v5350
    %v6655 = vunpack.c.l.b16 %v5351
    %v6656 = vunpack.c.h.b16 %v5351
    %v6657 = vunpack.c.l.b16 %v5352
    %v6658 = vunpack.c.h.b16 %v5352
    %v6659 = vunpack.c.l.b16 %v5353
    %v6660 = vunpack.c.h.b16 %v5353
    %v6661 = vunpack.c.l.b16 %v5354
    %v6662 = vunpack.c.h.b16 %v5354
    %v6663 = vunpack.c.l.b16 %v5355
    %v6664 = vunpack.c.h.b16 %v5355
    %v6665 = vunpack.c.l.b16 %v5356
    %v6666 = vunpack.c.h.b16 %v5356
    %v6667 = vunpack.c.l.b16 %v5357
    %v6668 = vunpack.c.h.b16 %v5357
    %v6669 = vunpack.c.l.b16 %v5358
    %v6670 = vunpack.c.h.b16 %v5358
    %v6671 = vunpack.c.l.b16 %v5359
    %v6672 = vunpack.c.h.b16 %v5359
    %v6673 = vunpack.c.l.b16 %v5360
    %v6674 = vunpack.c.h.b16 %v5360
    %v6675 = vunpack.c.l.b16 %v5361
    %v6676 = vunpack.c.h.b16 %v5361
    %v6677 = vunpack.c.l.b16 %v5362
    %v6678 = vunpack.c.h.b16 %v5362
    %v6679 = vunpack.c.l.b16 %v5363
    %v6680 = vunpack.c.h.b16 %v5363
    %v6681 = vunpack.c.l.b16 %v5364
    %v6682 = vunpack.c.h.b16 %v5364
    %v6683 = vunpack.c.l.b16 %v5365
    %v6684 = vunpack.c.h.b16 %v5365
    %v6685 = vunpack.c.l.b16 %v5366
    %v6686 = vunpack.c.h.b16 %v5366
    %v6687 = vunpack.c.l.b16 %v5367
    %v6688 = vunpack.c.h.b16 %v5367
    %v6689 = vunpack.c.l.b16 %v5368
    %v6690 = vunpack.c.h.b16 %v5368
    %v6691 = vunpack.c.l.b16 %v5369
    %v6692 = vunpack.c.h.b16 %v5369
    %v6693 = vunpack.c.l.b16 %v5370
    %v6694 = vunpack.c.h.b16 %v5370
    %v6695 = vunpack.c.l.b16 %v5371
    %v6696 = vunpack.c.h.b16 %v5371
    %v6697 = vunpack.c.l.b16 %v5372
    %v6698 = vunpack.c.h.b16 %v5372
    %v6699 = vunpack.c.l.b16 %v5373
    %v6700 = vunpack.c.h.b16 %v5373
    %v6701 = vunpack.c.l.b16 %v5374
    %v6702 = vunpack.c.h.b16 %v5374
    %v6703 = vunpack.c.l.b16 %v5375
    %v6704 = vunpack.c.h.b16 %v5375
    %v6705 = vunpack.c.l.b16 %v5376
    %v6706 = vunpack.c.h.b16 %v5376
    %v6707 = vunpack.c.l.b16 %v5377
    %v6708 = vunpack.c.h.b16 %v5377
    %v6709 = vunpack.c.l.b16 %v5378
    %v6710 = vunpack.c.h.b16 %v5378
    %v6711 = vunpack.c.l.b16 %v5379
    %v6712 = vunpack.c.h.b16 %v5379
    %v6713 = vunpack.c.l.b16 %v5380
    %v6714 = vunpack.c.h.b16 %v5380
    %v6715 = vunpack.c.l.b16 %v5381
    %v6716 = vunpack.c.h.b16 %v5381
    %v6717 = vunpack.c.l.b16 %v5382
    %v6718 = vunpack.c.h.b16 %v5382
    %v6719 = vunpack.c.l.b16 %v5383
    %v6720 = vunpack.c.h.b16 %v5383
    %v6721 = vunpack.c.l.b16 %v5384
    %v6722 = vunpack.c.h.b16 %v5384
    %v6723 = vunpack.c.l.b16 %v5385
    %v6724 = vunpack.c.h.b16 %v5385
    %v6725 = vunpack.c.l.b16 %v5386
    %v6726 = vunpack.c.h.b16 %v5386
    %v6727 = vunpack.c.l.b16 %v5387
    %v6728 = vunpack.c.h.b16 %v5387
    %v6729 = vunpack.c.l.b16 %v5388
    %v6730 = vunpack.c.h.b16 %v5388
    %v6731 = vunpack.c.l.b16 %v5389
    %v6732 = vunpack.c.h.b16 %v5389
    %v6733 = vunpack.c.l.b16 %v5390
    %v6734 = vunpack.c.h.b16 %v5390
    %v6735 = vunpack.c.l.b16 %v5391
    %v6736 = vunpack.c.h.b16 %v5391
    %v6737 = vunpack.c.l.b16 %v5392
    %v6738 = vunpack.c.h.b16 %v5392
    %v6739 = vunpack.c.l.b16 %v5393
    %v6740 = vunpack.c.h.b16 %v5393
    %v6741 = vunpack.c.l.b16 %v5394
    %v6742 = vunpack.c.h.b16 %v5394
    %v6743 = vunpack.c.l.b16 %v5395
    %v6744 = vunpack.c.h.b16 %v5395
    %v6745 = vunpack.c.l.b16 %v5396
    %v6746 = vunpack.c.h.b16 %v5396
    %v6747 = vunpack.c.l.b16 %v5397
    %v6748 = vunpack.c.h.b16 %v5397
    %v6749 = vunpack.c.l.b16 %v5398
    %v6750 = vunpack.c.h.b16 %v5398
    %v6751 = vunpack.c.l.b16 %v5399
    %v6752 = vunpack.c.h.b16 %v5399
    %v6753 = vunpack.c.l.b16 %v5400
    %v6754 = vunpack.c.h.b16 %v5400
    %v6755 = vunpack.c.l.b16 %v5401
    %v6756 = vunpack.c.h.b16 %v5401
    %v6757 = vunpack.c.l.b16 %v5402
    %v6758 = vunpack.c.h.b16 %v5402
    %v6759 = vunpack.c.l.b16 %v5403
    %v6760 = vunpack.c.h.b16 %v5403
    %v6761 = vunpack.c.l.b16 %v5404
    %v6762 = vunpack.c.h.b16 %v5404
    %v6763 = vunpack.c.l.b16 %v5405
    %v6764 = vunpack.c.h.b16 %v5405
    %v6765 = vunpack.c.l.b16 %v5406
    %v6766 = vunpack.c.h.b16 %v5406
    %v6767 = vunpack.c.l.b16 %v5407
    %v6768 = vunpack.c.h.b16 %v5407
    %v6769 = vunpack.c.l.b16 %v5408
    %v6770 = vunpack.c.h.b16 %v5408
    %v6771 = vunpack.c.l.b16 %v5409
    %v6772 = vunpack.c.h.b16 %v5409
    %v6773 = vunpack.c.l.b16 %v5410
    %v6774 = vunpack.c.h.b16 %v5410
    %v6775 = vunpack.c.l.b16 %v5411
    %v6776 = vunpack.c.h.b16 %v5411
    %v6777 = vunpack.c.l.b16 %v5412
    %v6778 = vunpack.c.h.b16 %v5412
    %v6779 = vunpack.c.l.b16 %v5413
    %v6780 = vunpack.c.h.b16 %v5413
    %v6781 = vunpack.c.l.b16 %v5414
    %v6782 = vunpack.c.h.b16 %v5414
    %v6783 = vunpack.c.l.b16 %v5415
    %v6784 = vunpack.c.h.b16 %v5415
    %v6785 = vunpack.c.l.b16 %v5416
    %v6786 = vunpack.c.h.b16 %v5416
    %v6787 = vunpack.c.l.b16 %v5417
    %v6788 = vunpack.c.h.b16 %v5417
    %v6789 = vunpack.c.l.b16 %v5418
    %v6790 = vunpack.c.h.b16 %v5418
    %v6791 = vunpack.c.l.b16 %v5419
    %v6792 = vunpack.c.h.b16 %v5419
    %v6793 = vunpack.c.l.b16 %v5420
    %v6794 = vunpack.c.h.b16 %v5420
    %v6795 = vunpack.c.l.b16 %v5421
    %v6796 = vunpack.c.h.b16 %v5421
    %v6797 = vunpack.c.l.b16 %v5422
    %v6798 = vunpack.c.h.b16 %v5422
    %v6799 = vunpack.c.l.b16 %v5423
    %v6800 = vunpack.c.h.b16 %v5423
    %v6801 = vunpack.c.l.b16 %v5424
    %v6802 = vunpack.c.h.b16 %v5424
    %v6803 = vunpack.c.l.b16 %v5425
    %v6804 = vunpack.c.h.b16 %v5425
    %v6805 = vunpack.c.l.b16 %v5426
    %v6806 = vunpack.c.h.b16 %v5426
    %v6807 = vunpack.c.l.b16 %v5427
    %v6808 = vunpack.c.h.b16 %v5427
    %v6809 = vunpack.c.l.b16 %v5428
    %v6810 = vunpack.c.h.b16 %v5428
    %v6811 = vunpack.c.l.b16 %v5429
    %v6812 = vunpack.c.h.b16 %v5429
    %v6813 = vunpack.c.l.b16 %v5430
    %v6814 = vunpack.c.h.b16 %v5430
    %v6815 = vunpack.c.l.b16 %v5431
    %v6816 = vunpack.c.h.b16 %v5431
    %v6817 = vunpack.c.l.b16 %v5432
    %v6818 = vunpack.c.h.b16 %v5432
    %v6819 = vunpack.c.l.b16 %v5433
    %v6820 = vunpack.c.h.b16 %v5433
    %v6821 = vunpack.c.l.b16 %v5434
    %v6822 = vunpack.c.h.b16 %v5434
    %v6823 = vunpack.c.l.b16 %v5435
    %v6824 = vunpack.c.h.b16 %v5435
    %v6825 = vunpack.c.l.b16 %v5436
    %v6826 = vunpack.c.h.b16 %v5436
    %v6827 = vunpack.c.l.b16 %v5437
    %v6828 = vunpack.c.h.b16 %v5437
    %v6829 = vunpack.c.l.b16 %v5438
    %v6830 = vunpack.c.h.b16 %v5438
    %v6831 = vunpack.c.l.b16 %v5439
    %v6832 = vunpack.c.h.b16 %v5439
    %v6833 = vunpack.c.l.b16 %v5440
    %v6834 = vunpack.c.h.b16 %v5440
    %v6835 = vunpack.c.l.b16 %v5441
    %v6836 = vunpack.c.h.b16 %v5441
    %v6837 = vunpack.c.l.b16 %v5442
    %v6838 = vunpack.c.h.b16 %v5442
    %v6839 = vunpack.c.l.b16 %v5443
    %v6840 = vunpack.c.h.b16 %v5443
    %v6841 = vunpack.c.l.b16 %v5444
    %v6842 = vunpack.c.h.b16 %v5444
    %v6843 = vunpack.c.l.b16 %v5445
    %v6844 = vunpack.c.h.b16 %v5445
    %v6845 = vunpack.c.l.b16 %v5446
    %v6846 = vunpack.c.h.b16 %v5446
    %v6847 = vunpack.c.l.b16 %v5447
    %v6848 = vunpack.c.h.b16 %v5447
    %v6849 = vunpack.c.l.b16 %v5448
    %v6850 = vunpack.c.h.b16 %v5448
    %v6851 = vunpack.c.l.b16 %v5449
    %v6852 = vunpack.c.h.b16 %v5449
    %v6853 = vunpack.c.l.b16 %v5450
    %v6854 = vunpack.c.h.b16 %v5450
    %v6855 = vunpack.c.l.b16 %v5451
    %v6856 = vunpack.c.h.b16 %v5451
    %v6857 = vunpack.c.l.b16 %v5452
    %v6858 = vunpack.c.h.b16 %v5452
    %v6859 = vunpack.c.l.b16 %v5453
    %v6860 = vunpack.c.h.b16 %v5453
    %v6861 = vunpack.c.l.b16 %v5454
    %v6862 = vunpack.c.h.b16 %v5454
    %v6863 = vunpack.c.l.b16 %v5455
    %v6864 = vunpack.c.h.b16 %v5455
    %v6865 = vunpack.c.l.b16 %v5456
    %v6866 = vunpack.c.h.b16 %v5456
    %v6867 = vunpack.c.l.b16 %v5457
    %v6868 = vunpack.c.h.b16 %v5457
    %v6869 = vunpack.c.l.b16 %v5458
    %v6870 = vunpack.c.h.b16 %v5458
    %v6871 = vunpack.c.l.b16 %v5459
    %v6872 = vunpack.c.h.b16 %v5459
    %v6873 = vunpack.c.l.b16 %v5460
    %v6874 = vunpack.c.h.b16 %v5460
    %v6875 = vunpack.c.l.b16 %v5461
    %v6876 = vunpack.c.h.b16 %v5461
    %v6877 = vunpack.c.l.b16 %v5462
    %v6878 = vunpack.c.h.b16 %v5462
    %v6879 = vunpack.c.l.b16 %v5463
    %v6880 = vunpack.c.h.b16 %v5463
    %v6881 = vunpack.c.l.b16 %v5464
    %v6882 = vunpack.c.h.b16 %v5464
    %v6883 = vunpack.c.l.b16 %v5465
    %v6884 = vunpack.c.h.b16 %v5465
    %v6885 = vunpack.c.l.b16 %v5466
    %v6886 = vunpack.c.h.b16 %v5466
    %v6887 = vunpack.c.l.b16 %v5467
    %v6888 = vunpack.c.h.b16 %v5467
    %v6889 = vunpack.c.l.b16 %v5468
    %v6890 = vunpack.c.h.b16 %v5468
    %v6891 = vunpack.c.l.b16 %v5469
    %v6892 = vunpack.c.h.b16 %v5469
    %v6893 = vunpack.c.l.b16 %v5470
    %v6894 = vunpack.c.h.b16 %v5470
    %v6895 = vunpack.c.l.b16 %v5471
    %v6896 = vunpack.c.h.b16 %v5471
    %v6897 = vunpack.c.l.b16 %v5472
    %v6898 = vunpack.c.h.b16 %v5472
    %v6899 = vunpack.c.l.b16 %v5473
    %v6900 = vunpack.c.h.b16 %v5473
    %v6901 = vunpack.c.l.b16 %v5474
    %v6902 = vunpack.c.h.b16 %v5474
    %v6903 = vunpack.c.l.b16 %v5475
    %v6904 = vunpack.c.h.b16 %v5475
    %v6905 = vunpack.c.l.b16 %v5476
    %v6906 = vunpack.c.h.b16 %v5476
    %v6907 = vunpack.c.l.b16 %v5477
    %v6908 = vunpack.c.h.b16 %v5477
    %v6909 = vunpack.c.l.b16 %v5478
    %v6910 = vunpack.c.h.b16 %v5478
    %v6911 = vunpack.c.l.b16 %v5479
    %v6912 = vunpack.c.h.b16 %v5479
    %v6913 = vunpack.c.l.b16 %v5480
    %v6914 = vunpack.c.h.b16 %v5480
    %v6915 = vunpack.c.l.b16 %v5481
    %v6916 = vunpack.c.h.b16 %v5481
    %v6917 = vunpack.c.l.b16 %v5482
    %v6918 = vunpack.c.h.b16 %v5482
    %v6919 = vunpack.c.l.b16 %v5483
    %v6920 = vunpack.c.h.b16 %v5483
    %v6921 = vunpack.c.l.b16 %v5484
    %v6922 = vunpack.c.h.b16 %v5484
    %v6923 = vunpack.c.l.b16 %v5485
    %v6924 = vunpack.c.h.b16 %v5485
    %v6925 = vunpack.c.l.b16 %v5486
    %v6926 = vunpack.c.h.b16 %v5486
    %v6927 = vunpack.c.l.b16 %v5487
    %v6928 = vunpack.c.h.b16 %v5487
    %v6929 = vunpack.c.l.b16 %v5488
    %v6930 = vunpack.c.h.b16 %v5488
    %v6931 = vunpack.c.l.b16 %v5489
    %v6932 = vunpack.c.h.b16 %v5489
    %v6933 = vunpack.c.l.b16 %v5490
    %v6934 = vunpack.c.h.b16 %v5490
    %v6935 = vunpack.c.l.b16 %v5491
    %v6936 = vunpack.c.h.b16 %v5491
    %v6937 = vunpack.c.l.b16 %v5492
    %v6938 = vunpack.c.h.b16 %v5492
    %v6939 = vunpack.c.l.b16 %v5493
    %v6940 = vunpack.c.h.b16 %v5493
    %v6941 = vunpack.c.l.b16 %v5494
    %v6942 = vunpack.c.h.b16 %v5494
    %v6943 = vunpack.c.l.b16 %v5495
    %v6944 = vunpack.c.h.b16 %v5495
    %v6945 = vunpack.c.l.b16 %v5496
    %v6946 = vunpack.c.h.b16 %v5496
    %v6947 = vunpack.c.l.b16 %v5497
    %v6948 = vunpack.c.h.b16 %v5497
    %v6949 = vunpack.c.l.b16 %v5498
    %v6950 = vunpack.c.h.b16 %v5498
    %v6951 = vunpack.c.l.b16 %v5499
    %v6952 = vunpack.c.h.b16 %v5499
    %v6953 = vunpack.c.l.b16 %v5500
    %v6954 = vunpack.c.h.b16 %v5500
    %v6955 = vunpack.c.l.b16 %v5501
    %v6956 = vunpack.c.h.b16 %v5501
    %v6957 = vunpack.c.l.b16 %v5502
    %v6958 = vunpack.c.h.b16 %v5502
    %v6959 = vunpack.c.l.b16 %v5503
    %v6960 = vunpack.c.h.b16 %v5503
    %v6961 = vunpack.c.l.b16 %v5504
    %v6962 = vunpack.c.h.b16 %v5504
    %v6963 = vunpack.c.l.b16 %v5505
    %v6964 = vunpack.c.h.b16 %v5505
    %v6965 = vunpack.c.l.b16 %v5506
    %v6966 = vunpack.c.h.b16 %v5506
    %v6967 = vunpack.c.l.b16 %v5507
    %v6968 = vunpack.c.h.b16 %v5507
    %v6969 = vunpack.c.l.b16 %v5508
    %v6970 = vunpack.c.h.b16 %v5508
    %v6971 = vunpack.c.l.b16 %v5509
    %v6972 = vunpack.c.h.b16 %v5509
    %v6973 = vunpack.c.l.b16 %v5510
    %v6974 = vunpack.c.h.b16 %v5510
    %v6975 = vunpack.c.l.b16 %v5511
    %v6976 = vunpack.c.h.b16 %v5511
    %v6977 = vunpack.c.l.b16 %v5512
    %v6978 = vunpack.c.h.b16 %v5512
    %v6979 = vunpack.c.l.b16 %v5513
    %v6980 = vunpack.c.h.b16 %v5513
    %v6981 = vunpack.c.l.b16 %v5514
    %v6982 = vunpack.c.h.b16 %v5514
    %v6983 = vunpack.c.l.b16 %v5515
    %v6984 = vunpack.c.h.b16 %v5515
    %v6985 = vunpack.c.l.b16 %v5516
    %v6986 = vunpack.c.h.b16 %v5516
    %v6987 = vunpack.c.l.b16 %v5517
    %v6988 = vunpack.c.h.b16 %v5517
    %v6989 = vunpack.c.l.b16 %v5518
    %v6990 = vunpack.c.h.b16 %v5518
    %v6991 = vunpack.c.l.b16 %v5519
    %v6992 = vunpack.c.h.b16 %v5519
    %v6993 = vunpack.c.l.b16 %v5520
    %v6994 = vunpack.c.h.b16 %v5520
    %v6995 = vunpack.c.l.b16 %v5521
    %v6996 = vunpack.c.h.b16 %v5521
    %v6997 = vunpack.c.l.b16 %v5522
    %v6998 = vunpack.c.h.b16 %v5522
    %v6999 = vunpack.c.l.b16 %v5523
    %v7000 = vunpack.c.h.b16 %v5523
    %v7001 = vunpack.c.l.b16 %v5524
    %v7002 = vunpack.c.h.b16 %v5524
    %v7003 = vunpack.c.l.b16 %v5525
    %v7004 = vunpack.c.h.b16 %v5525
    %v7005 = vunpack.c.l.b16 %v5526
    %v7006 = vunpack.c.h.b16 %v5526
    %v7007 = vunpack.c.l.b16 %v5527
    %v7008 = vunpack.c.h.b16 %v5527
    %v7009 = vunpack.c.l.b16 %v5528
    %v7010 = vunpack.c.h.b16 %v5528
    %v7011 = vunpack.c.l.b16 %v5529
    %v7012 = vunpack.c.h.b16 %v5529
    %v7013 = vunpack.c.l.b16 %v5530
    %v7014 = vunpack.c.h.b16 %v5530
    %v7015 = vunpack.c.l.b16 %v5531
    %v7016 = vunpack.c.h.b16 %v5531
    %v7017 = vunpack.c.l.b16 %v5532
    %v7018 = vunpack.c.h.b16 %v5532
    %v7019 = vunpack.c.l.b16 %v5533
    %v7020 = vunpack.c.h.b16 %v5533
    %v7021 = vunpack.c.l.b16 %v5534
    %v7022 = vunpack.c.h.b16 %v5534
    %v7023 = vunpack.c.l.b16 %v5535
    %v7024 = vunpack.c.h.b16 %v5535
    %v7025 = vunpack.c.l.b16 %v5536
    %v7026 = vunpack.c.h.b16 %v5536
    %v7027 = vunpack.c.l.b16 %v5537
    %v7028 = vunpack.c.h.b16 %v5537
    %v7029 = vunpack.c.l.b16 %v5538
    %v7030 = vunpack.c.h.b16 %v5538
    %v7031 = vunpack.c.l.b16 %v5539
    %v7032 = vunpack.c.h.b16 %v5539
    %v7033 = vunpack.c.l.b16 %v5540
    %v7034 = vunpack.c.h.b16 %v5540
    %v7035 = vunpack.c.l.b16 %v5541
    %v7036 = vunpack.c.h.b16 %v5541
    %v7037 = vunpack.c.l.b16 %v5542
    %v7038 = vunpack.c.h.b16 %v5542
    %v7039 = vunpack.c.l.b16 %v5543
    %v7040 = vunpack.c.h.b16 %v5543
    %v7041 = vunpack.c.l.b16 %v5544
    %v7042 = vunpack.c.h.b16 %v5544
    %v7043 = vunpack.c.l.b16 %v5545
    %v7044 = vunpack.c.h.b16 %v5545
    %v7045 = vunpack.c.l.b16 %v5546
    %v7046 = vunpack.c.h.b16 %v5546
    %v7047 = vunpack.c.l.b16 %v5547
    %v7048 = vunpack.c.h.b16 %v5547
    %v7049 = vunpack.c.l.b16 %v5548
    %v7050 = vunpack.c.h.b16 %v5548
    %v7051 = vunpack.c.l.b16 %v5549
    %v7052 = vunpack.c.h.b16 %v5549
    %v7053 = vunpack.c.l.b16 %v5550
    %v7054 = vunpack.c.h.b16 %v5550
    %v7055 = vunpack.c.l.b16 %v5551
    %v7056 = vunpack.c.h.b16 %v5551
    %v7057 = vunpack.c.l.b16 %v5552
    %v7058 = vunpack.c.h.b16 %v5552
    %v7059 = vunpack.c.l.b16 %v5553
    %v7060 = vunpack.c.h.b16 %v5553
    %v7061 = vunpack.c.l.b16 %v5554
    %v7062 = vunpack.c.h.b16 %v5554
    %v7063 = vunpack.c.l.b16 %v5555
    %v7064 = vunpack.c.h.b16 %v5555
    %v7065 = vunpack.c.l.b16 %v5556
    %v7066 = vunpack.c.h.b16 %v5556
    %v7067 = vunpack.c.l.b16 %v5557
    %v7068 = vunpack.c.h.b16 %v5557
    %v7069 = vunpack.c.l.b16 %v5558
    %v7070 = vunpack.c.h.b16 %v5558
    %v7071 = vpack.c.b16 %v6069, %v6063
    %v7072 = vpack.c.b16 %v6070, %v6064
    %v7073 = vpack.c.b16 %v6071, %v6065
    %v7074 = vpack.c.b16 %v6072, %v6066
    %v7075 = vpack.c.b16 %v6073, %v6067
    %v7076 = vpack.c.b16 %v6074, %v6068
    %v7077 = vpack.c.b16 %v6081, %v6075
    %v7078 = vpack.c.b16 %v6082, %v6076
    %v7079 = vpack.c.b16 %v6083, %v6077
    %v7080 = vpack.c.b16 %v6084, %v6078
    %v7081 = vpack.c.b16 %v6085, %v6079
    %v7082 = vpack.c.b16 %v6086, %v6080
    %v7083 = vpack.c.b16 %v6093, %v6087
    %v7084 = vpack.c.b16 %v6094, %v6088
    %v7085 = vpack.c.b16 %v6095, %v6089
    %v7086 = vpack.c.b16 %v6096, %v6090
    %v7087 = vpack.c.b16 %v6097, %v6091
    %v7088 = vpack.c.b16 %v6098, %v6092
    %v7089 = vpack.c.b16 %v6105, %v6099
    %v7090 = vpack.c.b16 %v6106, %v6100
    %v7091 = vpack.c.b16 %v6107, %v6101
    %v7092 = vpack.c.b16 %v6108, %v6102
    %v7093 = vpack.c.b16 %v6109, %v6103
    %v7094 = vpack.c.b16 %v6110, %v6104
    %v7095 = vpack.c.b16 %v6117, %v6111
    %v7096 = vpack.c.b16 %v6118, %v6112
    %v7097 = vpack.c.b16 %v6119, %v6113
    %v7098 = vpack.c.b16 %v6120, %v6114
    %v7099 = vpack.c.b16 %v6121, %v6115
    %v7100 = vpack.c.b16 %v6122, %v6116
    %v7101 = vpack.c.b16 %v6129, %v6123
    %v7102 = vpack.c.b16 %v6130, %v6124
    %v7103 = vpack.c.b16 %v6131, %v6125
    %v7104 = vpack.c.b16 %v6132, %v6126
    %v7105 = vpack.c.b16 %v6133, %v6127
    %v7106 = vpack.c.b16 %v6134, %v6128
    %v7107 = vpack.c.b16 %v6141, %v6135
    %v7108 = vpack.c.b16 %v6142, %v6136
    %v7109 = vpack.c.b16 %v6143, %v6137
    %v7110 = vpack.c.b16 %v6144, %v6138
    %v7111 = vpack.c.b16 %v6145, %v6139
    %v7112 = vpack.c.b16 %v6146, %v6140
    %v7113 = vpack.c.b16 %v6153, %v6147
    %v7114 = vpack.c.b16 %v6154, %v6148
    %v7115 = vpack.c.b16 %v6155, %v6149
    %v7116 = vpack.c.b16 %v6156, %v6150
    %v7117 = vpack.c.b16 %v6157, %v6151
    %v7118 = vpack.c.b16 %v6158, %v6152
    %v7119 = vpack.c.b16 %v6165, %v6159
    %v7120 = vpack.c.b16 %v6166, %v6160
    %v7121 = vpack.c.b16 %v6167, %v6161
    %v7122 = vpack.c.b16 %v6168, %v6162
    %v7123 = vpack.c.b16 %v6169, %v6163
    %v7124 = vpack.c.b16 %v6170, %v6164
    %v7125 = vpack.c.b16 %v6177, %v6171
    %v7126 = vpack.c.b16 %v6178, %v6172
    %v7127 = vpack.c.b16 %v6179, %v6173
    %v7128 = vpack.c.b16 %v6180, %v6174
    %v7129 = vpack.c.b16 %v6181, %v6175
    %v7130 = vpack.c.b16 %v6182, %v6176
    %v7131 = vpack.c.b16 %v6189, %v6183
    %v7132 = vpack.c.b16 %v6190, %v6184
    %v7133 = vpack.c.b16 %v6191, %v6185
    %v7134 = vpack.c.b16 %v6192, %v6186
    %v7135 = vpack.c.b16 %v6193, %v6187
    %v7136 = vpack.c.b16 %v6194, %v6188
    %v7137 = vpack.c.b16 %v6201, %v6195
    %v7138 = vpack.c.b16 %v6202, %v6196
    %v7139 = vpack.c.b16 %v6203, %v6197
    %v7140 = vpack.c.b16 %v6204, %v6198
    %v7141 = vpack.c.b16 %v6205, %v6199
    %v7142 = vpack.c.b16 %v6206, %v6200
    %v7143 = vpack.c.b16 %v6213, %v6207
    %v7144 = vpack.c.b16 %v6214, %v6208
    %v7145 = vpack.c.b16 %v6215, %v6209
    %v7146 = vpack.c.b16 %v6216, %v6210
    %v7147 = vpack.c.b16 %v6217, %v6211
    %v7148 = vpack.c.b16 %v6218, %v6212
    %v7149 = vpack.c.b16 %v6225, %v6219
    %v7150 = vpack.c.b16 %v6226, %v6220
    %v7151 = vpack.c.b16 %v6227, %v6221
    %v7152 = vpack.c.b16 %v6228, %v6222
    %v7153 = vpack.c.b16 %v6229, %v6223
    %v7154 = vpack.c.b16 %v6230, %v6224
    %v7155 = vpack.c.b16 %v6237, %v6231
    %v7156 = vpack.c.b16 %v6238, %v6232
    %v7157 = vpack.c.b16 %v6239, %v6233
    %v7158 = vpack.c.b16 %v6240, %v6234
    %v7159 = vpack.c.b16 %v6241, %v6235
    %v7160 = vpack.c.b16 %v6242, %v6236
    %v7161 = vpack.c.b16 %v6249, %v6243
    %v7162 = vpack.c.b16 %v6250, %v6244
    %v7163 = vpack.c.b16 %v6251, %v6245
    %v7164 = vpack.c.b16 %v6252, %v6246
    %v7165 = vpack.c.b16 %v6253, %v6247
    %v7166 = vpack.c.b16 %v6254, %v6248
    %v7167 = vpack.c.b16 %v6261, %v6255
    %v7168 = vpack.c.b16 %v6262, %v6256
    %v7169 = vpack.c.b16 %v6263, %v6257
    %v7170 = vpack.c.b16 %v6264, %v6258
    %v7171 = vpack.c.b16 %v6265, %v6259
    %v7172 = vpack.c.b16 %v6266, %v6260
    %v7173 = vpack.c.b16 %v6273, %v6267
    %v7174 = vpack.c.b16 %v6274, %v6268
    %v7175 = vpack.c.b16 %v6275, %v6269
    %v7176 = vpack.c.b16 %v6276, %v6270
    %v7177 = vpack.c.b16 %v6277, %v6271
    %v7178 = vpack.c.b16 %v6278, %v6272
    %v7179 = vpack.c.b16 %v6285, %v6279
    %v7180 = vpack.c.b16 %v6286, %v6280
    %v7181 = vpack.c.b16 %v6287, %v6281
    %v7182 = vpack.c.b16 %v6288, %v6282
    %v7183 = vpack.c.b16 %v6289, %v6283
    %v7184 = vpack.c.b16 %v6290, %v6284
    %v7185 = vpack.c.b16 %v6297, %v6291
    %v7186 = vpack.c.b16 %v6298, %v6292
    %v7187 = vpack.c.b16 %v6299, %v6293
    %v7188 = vpack.c.b16 %v6300, %v6294
    %v7189 = vpack.c.b16 %v6301, %v6295
    %v7190 = vpack.c.b16 %v6302, %v6296
    %v7191 = vpack.c.b16 %v6309, %v6303
    %v7192 = vpack.c.b16 %v6310, %v6304
    %v7193 = vpack.c.b16 %v6311, %v6305
    %v7194 = vpack.c.b16 %v6312, %v6306
    %v7195 = vpack.c.b16 %v6313, %v6307
    %v7196 = vpack.c.b16 %v6314, %v6308
    %v7197 = vpack.c.b16 %v6321, %v6315
    %v7198 = vpack.c.b16 %v6322, %v6316
    %v7199 = vpack.c.b16 %v6323, %v6317
    %v7200 = vpack.c.b16 %v6324, %v6318
    %v7201 = vpack.c.b16 %v6325, %v6319
    %v7202 = vpack.c.b16 %v6326, %v6320
    %v7203 = vpack.c.b16 %v6333, %v6327
    %v7204 = vpack.c.b16 %v6334, %v6328
    %v7205 = vpack.c.b16 %v6335, %v6329
    %v7206 = vpack.c.b16 %v6336, %v6330
    %v7207 = vpack.c.b16 %v6337, %v6331
    %v7208 = vpack.c.b16 %v6338, %v6332
    %v7209 = vpack.c.b16 %v6345, %v6339
    %v7210 = vpack.c.b16 %v6346, %v6340
    %v7211 = vpack.c.b16 %v6347, %v6341
    %v7212 = vpack.c.b16 %v6348, %v6342
    %v7213 = vpack.c.b16 %v6349, %v6343
    %v7214 = vpack.c.b16 %v6350, %v6344
    %v7215 = vpack.c.b16 %v6357, %v6351
    %v7216 = vpack.c.b16 %v6358, %v6352
    %v7217 = vpack.c.b16 %v6359, %v6353
    %v7218 = vpack.c.b16 %v6360, %v6354
    %v7219 = vpack.c.b16 %v6361, %v6355
    %v7220 = vpack.c.b16 %v6362, %v6356
    %v7221 = vpack.c.b16 %v6369, %v6363
    %v7222 = vpack.c.b16 %v6370, %v6364
    %v7223 = vpack.c.b16 %v6371, %v6365
    %v7224 = vpack.c.b16 %v6372, %v6366
    %v7225 = vpack.c.b16 %v6373, %v6367
    %v7226 = vpack.c.b16 %v6374, %v6368
    %v7227 = vpack.c.b16 %v6381, %v6375
    %v7228 = vpack.c.b16 %v6382, %v6376
    %v7229 = vpack.c.b16 %v6383, %v6377
    %v7230 = vpack.c.b16 %v6384, %v6378
    %v7231 = vpack.c.b16 %v6385, %v6379
    %v7232 = vpack.c.b16 %v6386, %v6380
    %v7233 = vpack.c.b16 %v6393, %v6387
    %v7234 = vpack.c.b16 %v6394, %v6388
    %v7235 = vpack.c.b16 %v6395, %v6389
    %v7236 = vpack.c.b16 %v6396, %v6390
    %v7237 = vpack.c.b16 %v6397, %v6391
    %v7238 = vpack.c.b16 %v6398, %v6392
    %v7239 = vpack.c.b16 %v6405, %v6399
    %v7240 = vpack.c.b16 %v6406, %v6400
    %v7241 = vpack.c.b16 %v6407, %v6401
    %v7242 = vpack.c.b16 %v6408, %v6402
    %v7243 = vpack.c.b16 %v6409, %v6403
    %v7244 = vpack.c.b16 %v6410, %v6404
    %v7245 = vpack.c.b16 %v6417, %v6411
    %v7246 = vpack.c.b16 %v6418, %v6412
    %v7247 = vpack.c.b16 %v6419, %v6413
    %v7248 = vpack.c.b16 %v6420, %v6414
    %v7249 = vpack.c.b16 %v6421, %v6415
    %v7250 = vpack.c.b16 %v6422, %v6416
    %v7251 = vpack.c.b16 %v6429, %v6423
    %v7252 = vpack.c.b16 %v6430, %v6424
    %v7253 = vpack.c.b16 %v6431, %v6425
    %v7254 = vpack.c.b16 %v6432, %v6426
    %v7255 = vpack.c.b16 %v6433, %v6427
    %v7256 = vpack.c.b16 %v6434, %v6428
    %v7257 = vpack.c.b16 %v6441, %v6435
    %v7258 = vpack.c.b16 %v6442, %v6436
    %v7259 = vpack.c.b16 %v6443, %v6437
    %v7260 = vpack.c.b16 %v6444, %v6438
    %v7261 = vpack.c.b16 %v6445, %v6439
    %v7262 = vpack.c.b16 %v6446, %v6440
    %v7263 = vpack.c.b16 %v6453, %v6447
    %v7264 = vpack.c.b16 %v6454, %v6448
    %v7265 = vpack.c.b16 %v6455, %v6449
    %v7266 = vpack.c.b16 %v6456, %v6450
    %v7267 = vpack.c.b16 %v6457, %v6451
    %v7268 = vpack.c.b16 %v6458, %v6452
    %v7269 = vpack.c.b16 %v6465, %v6459
    %v7270 = vpack.c.b16 %v6466, %v6460
    %v7271 = vpack.c.b16 %v6467, %v6461
    %v7272 = vpack.c.b16 %v6468, %v6462
    %v7273 = vpack.c.b16 %v6469, %v6463
    %v7274 = vpack.c.b16 %v6470, %v6464
    %v7275 = vpack.c.b16 %v6477, %v6471
    %v7276 = vpack.c.b16 %v6478, %v6472
    %v7277 = vpack.c.b16 %v6479, %v6473
    %v7278 = vpack.c.b16 %v6480, %v6474
    %v7279 = vpack.c.b16 %v6481, %v6475
    %v7280 = vpack.c.b16 %v6482, %v6476
    %v7281 = vpack.c.b16 %v6489, %v6483
    %v7282 = vpack.c.b16 %v6490, %v6484
    %v7283 = vpack.c.b16 %v6491, %v6485
    %v7284 = vpack.c.b16 %v6492, %v6486
    %v7285 = vpack.c.b16 %v6493, %v6487
    %v7286 = vpack.c.b16 %v6494, %v6488
    %v7287 = vpack.c.b16 %v6501, %v6495
    %v7288 = vpack.c.b16 %v6502, %v6496
    %v7289 = vpack.c.b16 %v6503, %v6497
    %v7290 = vpack.c.b16 %v6504, %v6498
    %v7291 = vpack.c.b16 %v6505, %v6499
    %v7292 = vpack.c.b16 %v6506, %v6500
    %v7293 = vpack.c.b16 %v6513, %v6507
    %v7294 = vpack.c.b16 %v6514, %v6508
    %v7295 = vpack.c.b16 %v6515, %v6509
    %v7296 = vpack.c.b16 %v6516, %v6510
    %v7297 = vpack.c.b16 %v6517, %v6511
    %v7298 = vpack.c.b16 %v6518, %v6512
    %v7299 = vpack.c.b16 %v6525, %v6519
    %v7300 = vpack.c.b16 %v6526, %v6520
    %v7301 = vpack.c.b16 %v6527, %v6521
    %v7302 = vpack.c.b16 %v6528, %v6522
    %v7303 = vpack.c.b16 %v6529, %v6523
    %v7304 = vpack.c.b16 %v6530, %v6524
    %v7305 = vpack.c.b16 %v6537, %v6531
    %v7306 = vpack.c.b16 %v6538, %v6532
    %v7307 = vpack.c.b16 %v6539, %v6533
    %v7308 = vpack.c.b16 %v6540, %v6534
    %v7309 = vpack.c.b16 %v6541, %v6535
    %v7310 = vpack.c.b16 %v6542, %v6536
    %v7311 = vpack.c.b16 %v6549, %v6543
    %v7312 = vpack.c.b16 %v6550, %v6544
    %v7313 = vpack.c.b16 %v6551, %v6545
    %v7314 = vpack.c.b16 %v6552, %v6546
    %v7315 = vpack.c.b16 %v6553, %v6547
    %v7316 = vpack.c.b16 %v6554, %v6548
    %v7317 = vpack.c.b16 %v6561, %v6555
    %v7318 = vpack.c.b16 %v6562, %v6556
    %v7319 = vpack.c.b16 %v6563, %v6557
    %v7320 = vpack.c.b16 %v6564, %v6558
    %v7321 = vpack.c.b16 %v6565, %v6559
    %v7322 = vpack.c.b16 %v6566, %v6560
    %v7323 = vpack.c.b16 %v6573, %v6567
    %v7324 = vpack.c.b16 %v6574, %v6568
    %v7325 = vpack.c.b16 %v6575, %v6569
    %v7326 = vpack.c.b16 %v6576, %v6570
    %v7327 = vpack.c.b16 %v6577, %v6571
    %v7328 = vpack.c.b16 %v6578, %v6572
    %v7329 = vpack.c.b16 %v6585, %v6579
    %v7330 = vpack.c.b16 %v6586, %v6580
    %v7331 = vpack.c.b16 %v6587, %v6581
    %v7332 = vpack.c.b16 %v6588, %v6582
    %v7333 = vpack.c.b16 %v6589, %v6583
    %v7334 = vpack.c.b16 %v6590, %v6584
    %v7335 = vpack.c.b16 %v6597, %v6591
    %v7336 = vpack.c.b16 %v6598, %v6592
    %v7337 = vpack.c.b16 %v6599, %v6593
    %v7338 = vpack.c.b16 %v6600, %v6594
    %v7339 = vpack.c.b16 %v6601, %v6595
    %v7340 = vpack.c.b16 %v6602, %v6596
    %v7341 = vpack.c.b16 %v6609, %v6603
    %v7342 = vpack.c.b16 %v6610, %v6604
    %v7343 = vpack.c.b16 %v6611, %v6605
    %v7344 = vpack.c.b16 %v6612, %v6606
    %v7345 = vpack.c.b16 %v6613, %v6607
    %v7346 = vpack.c.b16 %v6614, %v6608
    %v7347 = vpack.c.b16 %v6621, %v6615
    %v7348 = vpack.c.b16 %v6622, %v6616
    %v7349 = vpack.c.b16 %v6623, %v6617
    %v7350 = vpack.c.b16 %v6624, %v6618
    %v7351 = vpack.c.b16 %v6625, %v6619
    %v7352 = vpack.c.b16 %v6626, %v6620
    %v7353 = vpack.c.b16 %v6633, %v6627
    %v7354 = vpack.c.b16 %v6634, %v6628
    %v7355 = vpack.c.b16 %v6635, %v6629
    %v7356 = vpack.c.b16 %v6636, %v6630
    %v7357 = vpack.c.b16 %v6637, %v6631
    %v7358 = vpack.c.b16 %v6638, %v6632
    %v7359 = vpack.c.b16 %v6645, %v6639
    %v7360 = vpack.c.b16 %v6646, %v6640
    %v7361 = vpack.c.b16 %v6647, %v6641
    %v7362 = vpack.c.b16 %v6648, %v6642
    %v7363 = vpack.c.b16 %v6649, %v6643
    %v7364 = vpack.c.b16 %v6650, %v6644
    %v7365 = vpack.c.b16 %v6657, %v6651
    %v7366 = vpack.c.b16 %v6658, %v6652
    %v7367 = vpack.c.b16 %v6659, %v6653
    %v7368 = vpack.c.b16 %v6660, %v6654
    %v7369 = vpack.c.b16 %v6661, %v6655
    %v7370 = vpack.c.b16 %v6662, %v6656
    %v7371 = vpack.c.b16 %v6669, %v6663
    %v7372 = vpack.c.b16 %v6670, %v6664
    %v7373 = vpack.c.b16 %v6671, %v6665
    %v7374 = vpack.c.b16 %v6672, %v6666
    %v7375 = vpack.c.b16 %v6673, %v6667
    %v7376 = vpack.c.b16 %v6674, %v6668
    %v7377 = vpack.c.b16 %v6681, %v6675
    %v7378 = vpack.c.b16 %v6682, %v6676
    %v7379 = vpack.c.b16 %v6683, %v6677
    %v7380 = vpack.c.b16 %v6684, %v6678
    %v7381 = vpack.c.b16 %v6685, %v6679
    %v7382 = vpack.c.b16 %v6686, %v6680
    %v7383 = vpack.c.b16 %v6693, %v6687
    %v7384 = vpack.c.b16 %v6694, %v6688
    %v7385 = vpack.c.b16 %v6695, %v6689
    %v7386 = vpack.c.b16 %v6696, %v6690
    %v7387 = vpack.c.b16 %v6697, %v6691
    %v7388 = vpack.c.b16 %v6698, %v6692
    %v7389 = vpack.c.b16 %v6705, %v6699
    %v7390 = vpack.c.b16 %v6706, %v6700
    %v7391 = vpack.c.b16 %v6707, %v6701
    %v7392 = vpack.c.b16 %v6708, %v6702
    %v7393 = vpack.c.b16 %v6709, %v6703
    %v7394 = vpack.c.b16 %v6710, %v6704
    %v7395 = vpack.c.b16 %v6717, %v6711
    %v7396 = vpack.c.b16 %v6718, %v6712
    %v7397 = vpack.c.b16 %v6719, %v6713
    %v7398 = vpack.c.b16 %v6720, %v6714
    %v7399 = vpack.c.b16 %v6721, %v6715
    %v7400 = vpack.c.b16 %v6722, %v6716
    %v7401 = vpack.c.b16 %v6729, %v6723
    %v7402 = vpack.c.b16 %v6730, %v6724
    %v7403 = vpack.c.b16 %v6731, %v6725
    %v7404 = vpack.c.b16 %v6732, %v6726
    %v7405 = vpack.c.b16 %v6733, %v6727
    %v7406 = vpack.c.b16 %v6734, %v6728
    %v7407 = vpack.c.b16 %v6741, %v6735
    %v7408 = vpack.c.b16 %v6742, %v6736
    %v7409 = vpack.c.b16 %v6743, %v6737
    %v7410 = vpack.c.b16 %v6744, %v6738
    %v7411 = vpack.c.b16 %v6745, %v6739
    %v7412 = vpack.c.b16 %v6746, %v6740
    %v7413 = vpack.c.b16 %v6753, %v6747
    %v7414 = vpack.c.b16 %v6754, %v6748
    %v7415 = vpack.c.b16 %v6755, %v6749
    %v7416 = vpack.c.b16 %v6756, %v6750
    %v7417 = vpack.c.b16 %v6757, %v6751
    %v7418 = vpack.c.b16 %v6758, %v6752
    %v7419 = vpack.c.b16 %v6765, %v6759
    %v7420 = vpack.c.b16 %v6766, %v6760
    %v7421 = vpack.c.b16 %v6767, %v6761
    %v7422 = vpack.c.b16 %v6768, %v6762
    %v7423 = vpack.c.b16 %v6769, %v6763
    %v7424 = vpack.c.b16 %v6770, %v6764
    %v7425 = vpack.c.b16 %v6777, %v6771
    %v7426 = vpack.c.b16 %v6778, %v6772
    %v7427 = vpack.c.b16 %v6779, %v6773
    %v7428 = vpack.c.b16 %v6780, %v6774
    %v7429 = vpack.c.b16 %v6781, %v6775
    %v7430 = vpack.c.b16 %v6782, %v6776
    %v7431 = vpack.c.b16 %v6789, %v6783
    %v7432 = vpack.c.b16 %v6790, %v6784
    %v7433 = vpack.c.b16 %v6791, %v6785
    %v7434 = vpack.c.b16 %v6792, %v6786
    %v7435 = vpack.c.b16 %v6793, %v6787
    %v7436 = vpack.c.b16 %v6794, %v6788
    %v7437 = vpack.c.b16 %v6801, %v6795
    %v7438 = vpack.c.b16 %v6802, %v6796
    %v7439 = vpack.c.b16 %v6803, %v6797
    %v7440 = vpack.c.b16 %v6804, %v6798
    %v7441 = vpack.c.b16 %v6805, %v6799
    %v7442 = vpack.c.b16 %v6806, %v6800
    %v7443 = vpack.c.b16 %v6813, %v6807
    %v7444 = vpack.c.b16 %v6814, %v6808
    %v7445 = vpack.c.b16 %v6815, %v6809
    %v7446 = vpack.c.b16 %v6816, %v6810
    %v7447 = vpack.c.b16 %v6817, %v6811
    %v7448 = vpack.c.b16 %v6818, %v6812
    %v7449 = vpack.c.b16 %v6825, %v6819
    %v7450 = vpack.c.b16 %v6826, %v6820
    %v7451 = vpack.c.b16 %v6827, %v6821
    %v7452 = vpack.c.b16 %v6828, %v6822
    %v7453 = vpack.c.b16 %v6829, %v6823
    %v7454 = vpack.c.b16 %v6830, %v6824
    %v7455 = vpack.c.b16 %v6837, %v6831
    %v7456 = vpack.c.b16 %v6838, %v6832
    %v7457 = vpack.c.b16 %v6839, %v6833
    %v7458 = vpack.c.b16 %v6840, %v6834
    %v7459 = vpack.c.b16 %v6841, %v6835
    %v7460 = vpack.c.b16 %v6842, %v6836
    %v7461 = vpack.c.b16 %v6849, %v6843
    %v7462 = vpack.c.b16 %v6850, %v6844
    %v7463 = vpack.c.b16 %v6851, %v6845
    %v7464 = vpack.c.b16 %v6852, %v6846
    %v7465 = vpack.c.b16 %v6853, %v6847
    %v7466 = vpack.c.b16 %v6854, %v6848
    %v7467 = vpack.c.b16 %v6861, %v6855
    %v7468 = vpack.c.b16 %v6862, %v6856
    %v7469 = vpack.c.b16 %v6863, %v6857
    %v7470 = vpack.c.b16 %v6864, %v6858
    %v7471 = vpack.c.b16 %v6865, %v6859
    %v7472 = vpack.c.b16 %v6866, %v6860
    %v7473 = vpack.c.b16 %v6873, %v6867
    %v7474 = vpack.c.b16 %v6874, %v6868
    %v7475 = vpack.c.b16 %v6875, %v6869
    %v7476 = vpack.c.b16 %v6876, %v6870
    %v7477 = vpack.c.b16 %v6877, %v6871
    %v7478 = vpack.c.b16 %v6878, %v6872
    %v7479 = vpack.c.b16 %v6885, %v6879
    %v7480 = vpack.c.b16 %v6886, %v6880
    %v7481 = vpack.c.b16 %v6887, %v6881
    %v7482 = vpack.c.b16 %v6888, %v6882
    %v7483 = vpack.c.b16 %v6889, %v6883
    %v7484 = vpack.c.b16 %v6890, %v6884
    %v7485 = vpack.c.b16 %v6897, %v6891
    %v7486 = vpack.c.b16 %v6898, %v6892
    %v7487 = vpack.c.b16 %v6899, %v6893
    %v7488 = vpack.c.b16 %v6900, %v6894
    %v7489 = vpack.c.b16 %v6901, %v6895
    %v7490 = vpack.c.b16 %v6902, %v6896
    %v7491 = vpack.c.b16 %v6909, %v6903
    %v7492 = vpack.c.b16 %v6910, %v6904
    %v7493 = vpack.c.b16 %v6911, %v6905
    %v7494 = vpack.c.b16 %v6912, %v6906
    %v7495 = vpack.c.b16 %v6913, %v6907
    %v7496 = vpack.c.b16 %v6914, %v6908
    %v7497 = vpack.c.b16 %v6921, %v6915
    %v7498 = vpack.c.b16 %v6922, %v6916
    %v7499 = vpack.c.b16 %v6923, %v6917
    %v7500 = vpack.c.b16 %v6924, %v6918
    %v7501 = vpack.c.b16 %v6925, %v6919
    %v7502 = vpack.c.b16 %v6926, %v6920
    %v7503 = vpack.c.b16 %v6933, %v6927
    %v7504 = vpack.c.b16 %v6934, %v6928
    %v7505 = vpack.c.b16 %v6935, %v6929
    %v7506 = vpack.c.b16 %v6936, %v6930
    %v7507 = vpack.c.b16 %v6937, %v6931
    %v7508 = vpack.c.b16 %v6938, %v6932
    %v7509 = vpack.c.b16 %v6945, %v6939
    %v7510 = vpack.c.b16 %v6946, %v6940
    %v7511 = vpack.c.b16 %v6947, %v6941
    %v7512 = vpack.c.b16 %v6948, %v6942
    %v7513 = vpack.c.b16 %v6949, %v6943
    %v7514 = vpack.c.b16 %v6950, %v6944
    %v7515 = vpack.c.b16 %v6957, %v6951
    %v7516 = vpack.c.b16 %v6958, %v6952
    %v7517 = vpack.c.b16 %v6959, %v6953
    %v7518 = vpack.c.b16 %v6960, %v6954
    %v7519 = vpack.c.b16 %v6961, %v6955
    %v7520 = vpack.c.b16 %v6962, %v6956
    %v7521 = vpack.c.b16 %v6969, %v6963
    %v7522 = vpack.c.b16 %v6970, %v6964
    %v7523 = vpack.c.b16 %v6971, %v6965
    %v7524 = vpack.c.b16 %v6972, %v6966
    %v7525 = vpack.c.b16 %v6973, %v6967
    %v7526 = vpack.c.b16 %v6974, %v6968
    %v7527 = vpack.c.b16 %v6981, %v6975
    %v7528 = vpack.c.b16 %v6982, %v6976
    %v7529 = vpack.c.b16 %v6983, %v6977
    %v7530 = vpack.c.b16 %v6984, %v6978
    %v7531 = vpack.c.b16 %v6985, %v6979
    %v7532 = vpack.c.b16 %v6986, %v6980
    %v7533 = vpack.c.b16 %v6993, %v6987
    %v7534 = vpack.c.b16 %v6994, %v6988
    %v7535 = vpack.c.b16 %v6995, %v6989
    %v7536 = vpack.c.b16 %v6996, %v6990
    %v7537 = vpack.c.b16 %v6997, %v6991
    %v7538 = vpack.c.b16 %v6998, %v6992
    %v7539 = vpack.c.b16 %v7005, %v6999
    %v7540 = vpack.c.b16 %v7006, %v7000
    %v7541 = vpack.c.b16 %v7007, %v7001
    %v7542 = vpack.c.b16 %v7008, %v7002
    %v7543 = vpack.c.b16 %v7009, %v7003
    %v7544 = vpack.c.b16 %v7010, %v7004
    %v7545 = vpack.c.b16 %v7017, %v7011
    %v7546 = vpack.c.b16 %v7018, %v7012
    %v7547 = vpack.c.b16 %v7019, %v7013
    %v7548 = vpack.c.b16 %v7020, %v7014
    %v7549 = vpack.c.b16 %v7021, %v7015
    %v7550 = vpack.c.b16 %v7022, %v7016
    %v7551 = vpack.c.b16 %v7029, %v7023
    %v7552 = vpack.c.b16 %v7030, %v7024
    %v7553 = vpack.c.b16 %v7031, %v7025
    %v7554 = vpack.c.b16 %v7032, %v7026
    %v7555 = vpack.c.b16 %v7033, %v7027
    %v7556 = vpack.c.b16 %v7034, %v7028
    %v7557 = vpack.c.b16 %v7041, %v7035
    %v7558 = vpack.c.b16 %v7042, %v7036
    %v7559 = vpack.c.b16 %v7043, %v7037
    %v7560 = vpack.c.b16 %v7044, %v7038
    %v7561 = vpack.c.b16 %v7045, %v7039
    %v7562 = vpack.c.b16 %v7046, %v7040
    %v7563 = vpack.c.b16 %v7053, %v7047
    %v7564 = vpack.c.b16 %v7054, %v7048
    %v7565 = vpack.c.b16 %v7055, %v7049
    %v7566 = vpack.c.b16 %v7056, %v7050
    %v7567 = vpack.c.b16 %v7057, %v7051
    %v7568 = vpack.c.b16 %v7058, %v7052
    %v7569 = vpack.c.b16 %v7065, %v7059
    %v7570 = vpack.c.b16 %v7066, %v7060
    %v7571 = vpack.c.b16 %v7067, %v7061
    %v7572 = vpack.c.b16 %v7068, %v7062
    %v7573 = vpack.c.b16 %v7069, %v7063
    %v7574 = vpack.c.b16 %v7070, %v7064
    %v8080 = vsel %vm212, %v5043, 0
    %v8083 = vsel %vm212, %v5054, 0
    %8085 = vmatpush.bf16.msra.mxu0 %v7113
    %8086 = vmatpush.bf16.msra.mxu0 %v7107
    %8087 = vmatpush.bf16.msra.mxu0 %v7101
    %8088 = vmatpush.bf16.msra.mxu0 %v7095
    %8089 = vmatpush.bf16.msra.mxu0 %v7089
    %8090 = vmatpush.bf16.msra.mxu0 %v7083
    %8091 = vmatpush.bf16.msra.mxu0 %v7077
    %8092 = vmatpush.bf16.msra.mxu0 %v7071
    %8093 = vmatmul.bf16.gmra.mxu0 %v5033
    %v8094 = vpop.f32.mrf.mxu0
    %v8095 = vadd.f32 0.0, %v8094
    %v8096 = vpop.f32.mrf.mxu0
    %v8097 = vadd.f32 0.0, %v8096
    %8098 = vmatmul.bf16.gmra.mxu0 %v5044
    %v8099 = vpop.f32.mrf.mxu0
    %v8100 = vadd.f32 0.0, %v8099
    %v8101 = vpop.f32.mrf.mxu0
    %v8102 = vadd.f32 0.0, %v8101
    %8103 = vdwg.mxu0
    %8104 = vmatpush.bf16.msra.mxu0 %v7161
    %8105 = vmatpush.bf16.msra.mxu0 %v7155
    %8106 = vmatpush.bf16.msra.mxu0 %v7149
    %8107 = vmatpush.bf16.msra.mxu0 %v7143
    %8108 = vmatpush.bf16.msra.mxu0 %v7137
    %8109 = vmatpush.bf16.msra.mxu0 %v7131
    %8110 = vmatpush.bf16.msra.mxu0 %v7125
    %8111 = vmatpush.bf16.msra.mxu0 %v7119
    %8112 = vmatmul.bf16.gmra.mxu0 %v5034
    %v8113 = vpop.f32.mrf.mxu0
    %v8114 = vadd.f32 %v8095, %v8113
    %v8115 = vpop.f32.mrf.mxu0
    %v8116 = vadd.f32 %v8097, %v8115
    %8117 = vmatmul.bf16.gmra.mxu0 %v5045
    %v8118 = vpop.f32.mrf.mxu0
    %v8119 = vadd.f32 %v8100, %v8118
    %v8120 = vpop.f32.mrf.mxu0
    %v8121 = vadd.f32 %v8102, %v8120
    %8122 = vdwg.mxu0
    %8123 = vmatpush.bf16.msra.mxu0 %v7209
    %8124 = vmatpush.bf16.msra.mxu0 %v7203
    %8125 = vmatpush.bf16.msra.mxu0 %v7197
    %8126 = vmatpush.bf16.msra.mxu0 %v7191
    %8127 = vmatpush.bf16.msra.mxu0 %v7185
    %8128 = vmatpush.bf16.msra.mxu0 %v7179
    %8129 = vmatpush.bf16.msra.mxu0 %v7173
    %8130 = vmatpush.bf16.msra.mxu0 %v7167
    %8131 = vmatmul.bf16.gmra.mxu0 %v5035
    %v8132 = vpop.f32.mrf.mxu0
    %v8133 = vadd.f32 %v8114, %v8132
    %v8134 = vpop.f32.mrf.mxu0
    %v8135 = vadd.f32 %v8116, %v8134
    %8136 = vmatmul.bf16.gmra.mxu0 %v5046
    %v8137 = vpop.f32.mrf.mxu0
    %v8138 = vadd.f32 %v8119, %v8137
    %v8139 = vpop.f32.mrf.mxu0
    %v8140 = vadd.f32 %v8121, %v8139
    %8141 = vdwg.mxu0
    %8142 = vmatpush.bf16.msra.mxu0 %v7257
    %8143 = vmatpush.bf16.msra.mxu0 %v7251
    %8144 = vmatpush.bf16.msra.mxu0 %v7245
    %8145 = vmatpush.bf16.msra.mxu0 %v7239
    %8146 = vmatpush.bf16.msra.mxu0 %v7233
    %8147 = vmatpush.bf16.msra.mxu0 %v7227
    %8148 = vmatpush.bf16.msra.mxu0 %v7221
    %8149 = vmatpush.bf16.msra.mxu0 %v7215
    %8150 = vmatmul.bf16.gmra.mxu0 %v5036
    %v8151 = vpop.f32.mrf.mxu0
    %v8152 = vadd.f32 %v8133, %v8151
    %v8153 = vpop.f32.mrf.mxu0
    %v8154 = vadd.f32 %v8135, %v8153
    %8155 = vmatmul.bf16.gmra.mxu0 %v5047
    %v8156 = vpop.f32.mrf.mxu0
    %v8157 = vadd.f32 %v8138, %v8156
    %v8158 = vpop.f32.mrf.mxu0
    %v8159 = vadd.f32 %v8140, %v8158
    %8160 = vdwg.mxu0
    %8161 = vmatpush.bf16.msra.mxu0 %v7305
    %8162 = vmatpush.bf16.msra.mxu0 %v7299
    %8163 = vmatpush.bf16.msra.mxu0 %v7293
    %8164 = vmatpush.bf16.msra.mxu0 %v7287
    %8165 = vmatpush.bf16.msra.mxu0 %v7281
    %8166 = vmatpush.bf16.msra.mxu0 %v7275
    %8167 = vmatpush.bf16.msra.mxu0 %v7269
    %8168 = vmatpush.bf16.msra.mxu0 %v7263
    %8169 = vmatmul.bf16.gmra.mxu0 %v5037
    %v8170 = vpop.f32.mrf.mxu0
    %v8171 = vadd.f32 %v8152, %v8170
    %v8172 = vpop.f32.mrf.mxu0
    %v8173 = vadd.f32 %v8154, %v8172
    %8174 = vmatmul.bf16.gmra.mxu0 %v5048
    %v8175 = vpop.f32.mrf.mxu0
    %v8176 = vadd.f32 %v8157, %v8175
    %v8177 = vpop.f32.mrf.mxu0
    %v8178 = vadd.f32 %v8159, %v8177
    %8179 = vdwg.mxu0
    %8180 = vmatpush.bf16.msra.mxu0 %v7353
    %8181 = vmatpush.bf16.msra.mxu0 %v7347
    %8182 = vmatpush.bf16.msra.mxu0 %v7341
    %8183 = vmatpush.bf16.msra.mxu0 %v7335
    %8184 = vmatpush.bf16.msra.mxu0 %v7329
    %8185 = vmatpush.bf16.msra.mxu0 %v7323
    %8186 = vmatpush.bf16.msra.mxu0 %v7317
    %8187 = vmatpush.bf16.msra.mxu0 %v7311
    %8188 = vmatmul.bf16.gmra.mxu0 %v5038
    %v8189 = vpop.f32.mrf.mxu0
    %v8190 = vadd.f32 %v8171, %v8189
    %v8191 = vpop.f32.mrf.mxu0
    %v8192 = vadd.f32 %v8173, %v8191
    %8193 = vmatmul.bf16.gmra.mxu0 %v5049
    %v8194 = vpop.f32.mrf.mxu0
    %v8195 = vadd.f32 %v8176, %v8194
    %v8196 = vpop.f32.mrf.mxu0
    %v8197 = vadd.f32 %v8178, %v8196
    %8198 = vdwg.mxu0
    %8199 = vmatpush.bf16.msra.mxu0 %v7401
    %8200 = vmatpush.bf16.msra.mxu0 %v7395
    %8201 = vmatpush.bf16.msra.mxu0 %v7389
    %8202 = vmatpush.bf16.msra.mxu0 %v7383
    %8203 = vmatpush.bf16.msra.mxu0 %v7377
    %8204 = vmatpush.bf16.msra.mxu0 %v7371
    %8205 = vmatpush.bf16.msra.mxu0 %v7365
    %8206 = vmatpush.bf16.msra.mxu0 %v7359
    %8207 = vmatmul.bf16.gmra.mxu0 %v5039
    %v8208 = vpop.f32.mrf.mxu0
    %v8209 = vadd.f32 %v8190, %v8208
    %v8210 = vpop.f32.mrf.mxu0
    %v8211 = vadd.f32 %v8192, %v8210
    %8212 = vmatmul.bf16.gmra.mxu0 %v5050
    %v8213 = vpop.f32.mrf.mxu0
    %v8214 = vadd.f32 %v8195, %v8213
    %v8215 = vpop.f32.mrf.mxu0
    %v8216 = vadd.f32 %v8197, %v8215
    %8217 = vdwg.mxu0
    %8218 = vmatpush.bf16.msra.mxu0 %v7449
    %8219 = vmatpush.bf16.msra.mxu0 %v7443
    %8220 = vmatpush.bf16.msra.mxu0 %v7437
    %8221 = vmatpush.bf16.msra.mxu0 %v7431
    %8222 = vmatpush.bf16.msra.mxu0 %v7425
    %8223 = vmatpush.bf16.msra.mxu0 %v7419
    %8224 = vmatpush.bf16.msra.mxu0 %v7413
    %8225 = vmatpush.bf16.msra.mxu0 %v7407
    %8226 = vmatmul.bf16.gmra.mxu0 %v5040
    %v8227 = vpop.f32.mrf.mxu0
    %v8228 = vadd.f32 %v8209, %v8227
    %v8229 = vpop.f32.mrf.mxu0
    %v8230 = vadd.f32 %v8211, %v8229
    %8231 = vmatmul.bf16.gmra.mxu0 %v5051
    %v8232 = vpop.f32.mrf.mxu0
    %v8233 = vadd.f32 %v8214, %v8232
    %v8234 = vpop.f32.mrf.mxu0
    %v8235 = vadd.f32 %v8216, %v8234
    %8236 = vdwg.mxu0
    %8237 = vmatpush.bf16.msra.mxu0 %v7497
    %8238 = vmatpush.bf16.msra.mxu0 %v7491
    %8239 = vmatpush.bf16.msra.mxu0 %v7485
    %8240 = vmatpush.bf16.msra.mxu0 %v7479
    %8241 = vmatpush.bf16.msra.mxu0 %v7473
    %8242 = vmatpush.bf16.msra.mxu0 %v7467
    %8243 = vmatpush.bf16.msra.mxu0 %v7461
    %8244 = vmatpush.bf16.msra.mxu0 %v7455
    %8245 = vmatmul.bf16.gmra.mxu0 %v5041
    %v8246 = vpop.f32.mrf.mxu0
    %v8247 = vadd.f32 %v8228, %v8246
    %v8248 = vpop.f32.mrf.mxu0
    %v8249 = vadd.f32 %v8230, %v8248
    %8250 = vmatmul.bf16.gmra.mxu0 %v5052
    %v8251 = vpop.f32.mrf.mxu0
    %v8252 = vadd.f32 %v8233, %v8251
    %v8253 = vpop.f32.mrf.mxu0
    %v8254 = vadd.f32 %v8235, %v8253
    %8255 = vdwg.mxu0
    %8256 = vmatpush.bf16.msra.mxu0 %v7545
    %8257 = vmatpush.bf16.msra.mxu0 %v7539
    %8258 = vmatpush.bf16.msra.mxu0 %v7533
    %8259 = vmatpush.bf16.msra.mxu0 %v7527
    %8260 = vmatpush.bf16.msra.mxu0 %v7521
    %8261 = vmatpush.bf16.msra.mxu0 %v7515
    %8262 = vmatpush.bf16.msra.mxu0 %v7509
    %8263 = vmatpush.bf16.msra.mxu0 %v7503
    %8264 = vmatmul.bf16.gmra.mxu0 %v5042
    %v8265 = vpop.f32.mrf.mxu0
    %v8266 = vadd.f32 %v8247, %v8265
    %v8267 = vpop.f32.mrf.mxu0
    %v8268 = vadd.f32 %v8249, %v8267
    %8269 = vmatmul.bf16.gmra.mxu0 %v5053
    %v8270 = vpop.f32.mrf.mxu0
    %v8271 = vadd.f32 %v8252, %v8270
    %v8272 = vpop.f32.mrf.mxu0
    %v8273 = vadd.f32 %v8254, %v8272
    %8274 = vdwg.mxu0
    %8275 = vmatpush.bf16.msra.mxu0 0
    %8276 = vmatpush.bf16.msra.mxu0 0
    %8277 = vmatpush.bf16.msra.mxu0 0
    %8278 = vmatpush.bf16.msra.mxu0 0
    %8279 = vmatpush.bf16.msra.mxu0 %v7569
    %8280 = vmatpush.bf16.msra.mxu0 %v7563
    %8281 = vmatpush.bf16.msra.mxu0 %v7557
    %8282 = vmatpush.bf16.msra.mxu0 %v7551
    %8283 = vmatmul.bf16.gmra.mxu0 %v8080
    %v8284 = vpop.f32.mrf.mxu0
    %v8285 = vadd.f32 %v8266, %v8284
    %v8286 = vpop.f32.mrf.mxu0
    %v8287 = vadd.f32 %v8268, %v8286
    %8288 = vmatmul.bf16.gmra.mxu0 %v8083
    %v8289 = vpop.f32.mrf.mxu0
    %v8290 = vadd.f32 %v8271, %v8289
    %v8291 = vpop.f32.mrf.mxu0
    %v8292 = vadd.f32 %v8273, %v8291
    %8293 = vdwg.mxu0
    %8294 = vmatpush.bf16.msra.mxu0 %v7114
    %8295 = vmatpush.bf16.msra.mxu0 %v7108
    %8296 = vmatpush.bf16.msra.mxu0 %v7102
    %8297 = vmatpush.bf16.msra.mxu0 %v7096
    %8298 = vmatpush.bf16.msra.mxu0 %v7090
    %8299 = vmatpush.bf16.msra.mxu0 %v7084
    %8300 = vmatpush.bf16.msra.mxu0 %v7078
    %8301 = vmatpush.bf16.msra.mxu0 %v7072
    %8302 = vmatmul.bf16.gmra.mxu0 %v5033
    %v8303 = vpop.f32.mrf.mxu0
    %v8304 = vadd.f32 0.0, %v8303
    %v8305 = vpop.f32.mrf.mxu0
    %v8306 = vadd.f32 0.0, %v8305
    %8307 = vmatmul.bf16.gmra.mxu0 %v5044
    %v8308 = vpop.f32.mrf.mxu0
    %v8309 = vadd.f32 0.0, %v8308
    %v8310 = vpop.f32.mrf.mxu0
    %v8311 = vadd.f32 0.0, %v8310
    %8312 = vdwg.mxu0
    %8313 = vmatpush.bf16.msra.mxu0 %v7162
    %8314 = vmatpush.bf16.msra.mxu0 %v7156
    %8315 = vmatpush.bf16.msra.mxu0 %v7150
    %8316 = vmatpush.bf16.msra.mxu0 %v7144
    %8317 = vmatpush.bf16.msra.mxu0 %v7138
    %8318 = vmatpush.bf16.msra.mxu0 %v7132
    %8319 = vmatpush.bf16.msra.mxu0 %v7126
    %8320 = vmatpush.bf16.msra.mxu0 %v7120
    %8321 = vmatmul.bf16.gmra.mxu0 %v5034
    %v8322 = vpop.f32.mrf.mxu0
    %v8323 = vadd.f32 %v8304, %v8322
    %v8324 = vpop.f32.mrf.mxu0
    %v8325 = vadd.f32 %v8306, %v8324
    %8326 = vmatmul.bf16.gmra.mxu0 %v5045
    %v8327 = vpop.f32.mrf.mxu0
    %v8328 = vadd.f32 %v8309, %v8327
    %v8329 = vpop.f32.mrf.mxu0
    %v8330 = vadd.f32 %v8311, %v8329
    %8331 = vdwg.mxu0
    %8332 = vmatpush.bf16.msra.mxu0 %v7210
    %8333 = vmatpush.bf16.msra.mxu0 %v7204
    %8334 = vmatpush.bf16.msra.mxu0 %v7198
    %8335 = vmatpush.bf16.msra.mxu0 %v7192
    %8336 = vmatpush.bf16.msra.mxu0 %v7186
    %8337 = vmatpush.bf16.msra.mxu0 %v7180
    %8338 = vmatpush.bf16.msra.mxu0 %v7174
    %8339 = vmatpush.bf16.msra.mxu0 %v7168
    %8340 = vmatmul.bf16.gmra.mxu0 %v5035
    %v8341 = vpop.f32.mrf.mxu0
    %v8342 = vadd.f32 %v8323, %v8341
    %v8343 = vpop.f32.mrf.mxu0
    %v8344 = vadd.f32 %v8325, %v8343
    %8345 = vmatmul.bf16.gmra.mxu0 %v5046
    %v8346 = vpop.f32.mrf.mxu0
    %v8347 = vadd.f32 %v8328, %v8346
    %v8348 = vpop.f32.mrf.mxu0
    %v8349 = vadd.f32 %v8330, %v8348
    %8350 = vdwg.mxu0
    %8351 = vmatpush.bf16.msra.mxu0 %v7258
    %8352 = vmatpush.bf16.msra.mxu0 %v7252
    %8353 = vmatpush.bf16.msra.mxu0 %v7246
    %8354 = vmatpush.bf16.msra.mxu0 %v7240
    %8355 = vmatpush.bf16.msra.mxu0 %v7234
    %8356 = vmatpush.bf16.msra.mxu0 %v7228
    %8357 = vmatpush.bf16.msra.mxu0 %v7222
    %8358 = vmatpush.bf16.msra.mxu0 %v7216
    %8359 = vmatmul.bf16.gmra.mxu0 %v5036
    %v8360 = vpop.f32.mrf.mxu0
    %v8361 = vadd.f32 %v8342, %v8360
    %v8362 = vpop.f32.mrf.mxu0
    %v8363 = vadd.f32 %v8344, %v8362
    %8364 = vmatmul.bf16.gmra.mxu0 %v5047
    %v8365 = vpop.f32.mrf.mxu0
    %v8366 = vadd.f32 %v8347, %v8365
    %v8367 = vpop.f32.mrf.mxu0
    %v8368 = vadd.f32 %v8349, %v8367
    %8369 = vdwg.mxu0
    %8370 = vmatpush.bf16.msra.mxu0 %v7306
    %8371 = vmatpush.bf16.msra.mxu0 %v7300
    %8372 = vmatpush.bf16.msra.mxu0 %v7294
    %8373 = vmatpush.bf16.msra.mxu0 %v7288
    %8374 = vmatpush.bf16.msra.mxu0 %v7282
    %8375 = vmatpush.bf16.msra.mxu0 %v7276
    %8376 = vmatpush.bf16.msra.mxu0 %v7270
    %8377 = vmatpush.bf16.msra.mxu0 %v7264
    %8378 = vmatmul.bf16.gmra.mxu0 %v5037
    %v8379 = vpop.f32.mrf.mxu0
    %v8380 = vadd.f32 %v8361, %v8379
    %v8381 = vpop.f32.mrf.mxu0
    %v8382 = vadd.f32 %v8363, %v8381
    %8383 = vmatmul.bf16.gmra.mxu0 %v5048
    %v8384 = vpop.f32.mrf.mxu0
    %v8385 = vadd.f32 %v8366, %v8384
    %v8386 = vpop.f32.mrf.mxu0
    %v8387 = vadd.f32 %v8368, %v8386
    %8388 = vdwg.mxu0
    %8389 = vmatpush.bf16.msra.mxu0 %v7354
    %8390 = vmatpush.bf16.msra.mxu0 %v7348
    %8391 = vmatpush.bf16.msra.mxu0 %v7342
    %8392 = vmatpush.bf16.msra.mxu0 %v7336
    %8393 = vmatpush.bf16.msra.mxu0 %v7330
    %8394 = vmatpush.bf16.msra.mxu0 %v7324
    %8395 = vmatpush.bf16.msra.mxu0 %v7318
    %8396 = vmatpush.bf16.msra.mxu0 %v7312
    %8397 = vmatmul.bf16.gmra.mxu0 %v5038
    %v8398 = vpop.f32.mrf.mxu0
    %v8399 = vadd.f32 %v8380, %v8398
    %v8400 = vpop.f32.mrf.mxu0
    %v8401 = vadd.f32 %v8382, %v8400
    %8402 = vmatmul.bf16.gmra.mxu0 %v5049
    %v8403 = vpop.f32.mrf.mxu0
    %v8404 = vadd.f32 %v8385, %v8403
    %v8405 = vpop.f32.mrf.mxu0
    %v8406 = vadd.f32 %v8387, %v8405
    %8407 = vdwg.mxu0
    %8408 = vmatpush.bf16.msra.mxu0 %v7402
    %8409 = vmatpush.bf16.msra.mxu0 %v7396
    %8410 = vmatpush.bf16.msra.mxu0 %v7390
    %8411 = vmatpush.bf16.msra.mxu0 %v7384
    %8412 = vmatpush.bf16.msra.mxu0 %v7378
    %8413 = vmatpush.bf16.msra.mxu0 %v7372
    %8414 = vmatpush.bf16.msra.mxu0 %v7366
    %8415 = vmatpush.bf16.msra.mxu0 %v7360
    %8416 = vmatmul.bf16.gmra.mxu0 %v5039
    %v8417 = vpop.f32.mrf.mxu0
    %v8418 = vadd.f32 %v8399, %v8417
    %v8419 = vpop.f32.mrf.mxu0
    %v8420 = vadd.f32 %v8401, %v8419
    %8421 = vmatmul.bf16.gmra.mxu0 %v5050
    %v8422 = vpop.f32.mrf.mxu0
    %v8423 = vadd.f32 %v8404, %v8422
    %v8424 = vpop.f32.mrf.mxu0
    %v8425 = vadd.f32 %v8406, %v8424
    %8426 = vdwg.mxu0
    %8427 = vmatpush.bf16.msra.mxu0 %v7450
    %8428 = vmatpush.bf16.msra.mxu0 %v7444
    %8429 = vmatpush.bf16.msra.mxu0 %v7438
    %8430 = vmatpush.bf16.msra.mxu0 %v7432
    %8431 = vmatpush.bf16.msra.mxu0 %v7426
    %8432 = vmatpush.bf16.msra.mxu0 %v7420
    %8433 = vmatpush.bf16.msra.mxu0 %v7414
    %8434 = vmatpush.bf16.msra.mxu0 %v7408
    %8435 = vmatmul.bf16.gmra.mxu0 %v5040
    %v8436 = vpop.f32.mrf.mxu0
    %v8437 = vadd.f32 %v8418, %v8436
    %v8438 = vpop.f32.mrf.mxu0
    %v8439 = vadd.f32 %v8420, %v8438
    %8440 = vmatmul.bf16.gmra.mxu0 %v5051
    %v8441 = vpop.f32.mrf.mxu0
    %v8442 = vadd.f32 %v8423, %v8441
    %v8443 = vpop.f32.mrf.mxu0
    %v8444 = vadd.f32 %v8425, %v8443
    %8445 = vdwg.mxu0
    %8446 = vmatpush.bf16.msra.mxu0 %v7498
    %8447 = vmatpush.bf16.msra.mxu0 %v7492
    %8448 = vmatpush.bf16.msra.mxu0 %v7486
    %8449 = vmatpush.bf16.msra.mxu0 %v7480
    %8450 = vmatpush.bf16.msra.mxu0 %v7474
    %8451 = vmatpush.bf16.msra.mxu0 %v7468
    %8452 = vmatpush.bf16.msra.mxu0 %v7462
    %8453 = vmatpush.bf16.msra.mxu0 %v7456
    %8454 = vmatmul.bf16.gmra.mxu0 %v5041
    %v8455 = vpop.f32.mrf.mxu0
    %v8456 = vadd.f32 %v8437, %v8455
    %v8457 = vpop.f32.mrf.mxu0
    %v8458 = vadd.f32 %v8439, %v8457
    %8459 = vmatmul.bf16.gmra.mxu0 %v5052
    %v8460 = vpop.f32.mrf.mxu0
    %v8461 = vadd.f32 %v8442, %v8460
    %v8462 = vpop.f32.mrf.mxu0
    %v8463 = vadd.f32 %v8444, %v8462
    %8464 = vdwg.mxu0
    %8465 = vmatpush.bf16.msra.mxu0 %v7546
    %8466 = vmatpush.bf16.msra.mxu0 %v7540
    %8467 = vmatpush.bf16.msra.mxu0 %v7534
    %8468 = vmatpush.bf16.msra.mxu0 %v7528
    %8469 = vmatpush.bf16.msra.mxu0 %v7522
    %8470 = vmatpush.bf16.msra.mxu0 %v7516
    %8471 = vmatpush.bf16.msra.mxu0 %v7510
    %8472 = vmatpush.bf16.msra.mxu0 %v7504
    %8473 = vmatmul.bf16.gmra.mxu0 %v5042
    %v8474 = vpop.f32.mrf.mxu0
    %v8475 = vadd.f32 %v8456, %v8474
    %v8476 = vpop.f32.mrf.mxu0
    %v8477 = vadd.f32 %v8458, %v8476
    %8478 = vmatmul.bf16.gmra.mxu0 %v5053
    %v8479 = vpop.f32.mrf.mxu0
    %v8480 = vadd.f32 %v8461, %v8479
    %v8481 = vpop.f32.mrf.mxu0
    %v8482 = vadd.f32 %v8463, %v8481
    %8483 = vdwg.mxu0
    %8484 = vmatpush.bf16.msra.mxu0 0
    %8485 = vmatpush.bf16.msra.mxu0 0
    %8486 = vmatpush.bf16.msra.mxu0 0
    %8487 = vmatpush.bf16.msra.mxu0 0
    %8488 = vmatpush.bf16.msra.mxu0 %v7570
    %8489 = vmatpush.bf16.msra.mxu0 %v7564
    %8490 = vmatpush.bf16.msra.mxu0 %v7558
    %8491 = vmatpush.bf16.msra.mxu0 %v7552
    %8492 = vmatmul.bf16.gmra.mxu0 %v8080
    %v8493 = vpop.f32.mrf.mxu0
    %v8494 = vadd.f32 %v8475, %v8493
    %v8495 = vpop.f32.mrf.mxu0
    %v8496 = vadd.f32 %v8477, %v8495
    %8497 = vmatmul.bf16.gmra.mxu0 %v8083
    %v8498 = vpop.f32.mrf.mxu0
    %v8499 = vadd.f32 %v8480, %v8498
    %v8500 = vpop.f32.mrf.mxu0
    %v8501 = vadd.f32 %v8482, %v8500
    %8502 = vdwg.mxu0
    %8503 = vmatpush.bf16.msra.mxu0 %v7115
    %8504 = vmatpush.bf16.msra.mxu0 %v7109
    %8505 = vmatpush.bf16.msra.mxu0 %v7103
    %8506 = vmatpush.bf16.msra.mxu0 %v7097
    %8507 = vmatpush.bf16.msra.mxu0 %v7091
    %8508 = vmatpush.bf16.msra.mxu0 %v7085
    %8509 = vmatpush.bf16.msra.mxu0 %v7079
    %8510 = vmatpush.bf16.msra.mxu0 %v7073
    %8511 = vmatmul.bf16.gmra.mxu0 %v5033
    %v8512 = vpop.f32.mrf.mxu0
    %v8513 = vadd.f32 0.0, %v8512
    %v8514 = vpop.f32.mrf.mxu0
    %v8515 = vadd.f32 0.0, %v8514
    %8516 = vmatmul.bf16.gmra.mxu0 %v5044
    %v8517 = vpop.f32.mrf.mxu0
    %v8518 = vadd.f32 0.0, %v8517
    %v8519 = vpop.f32.mrf.mxu0
    %v8520 = vadd.f32 0.0, %v8519
    %8521 = vdwg.mxu0
    %8522 = vmatpush.bf16.msra.mxu0 %v7163
    %8523 = vmatpush.bf16.msra.mxu0 %v7157
    %8524 = vmatpush.bf16.msra.mxu0 %v7151
    %8525 = vmatpush.bf16.msra.mxu0 %v7145
    %8526 = vmatpush.bf16.msra.mxu0 %v7139
    %8527 = vmatpush.bf16.msra.mxu0 %v7133
    %8528 = vmatpush.bf16.msra.mxu0 %v7127
    %8529 = vmatpush.bf16.msra.mxu0 %v7121
    %8530 = vmatmul.bf16.gmra.mxu0 %v5034
    %v8531 = vpop.f32.mrf.mxu0
    %v8532 = vadd.f32 %v8513, %v8531
    %v8533 = vpop.f32.mrf.mxu0
    %v8534 = vadd.f32 %v8515, %v8533
    %8535 = vmatmul.bf16.gmra.mxu0 %v5045
    %v8536 = vpop.f32.mrf.mxu0
    %v8537 = vadd.f32 %v8518, %v8536
    %v8538 = vpop.f32.mrf.mxu0
    %v8539 = vadd.f32 %v8520, %v8538
    %8540 = vdwg.mxu0
    %8541 = vmatpush.bf16.msra.mxu0 %v7211
    %8542 = vmatpush.bf16.msra.mxu0 %v7205
    %8543 = vmatpush.bf16.msra.mxu0 %v7199
    %8544 = vmatpush.bf16.msra.mxu0 %v7193
    %8545 = vmatpush.bf16.msra.mxu0 %v7187
    %8546 = vmatpush.bf16.msra.mxu0 %v7181
    %8547 = vmatpush.bf16.msra.mxu0 %v7175
    %8548 = vmatpush.bf16.msra.mxu0 %v7169
    %8549 = vmatmul.bf16.gmra.mxu0 %v5035
    %v8550 = vpop.f32.mrf.mxu0
    %v8551 = vadd.f32 %v8532, %v8550
    %v8552 = vpop.f32.mrf.mxu0
    %v8553 = vadd.f32 %v8534, %v8552
    %8554 = vmatmul.bf16.gmra.mxu0 %v5046
    %v8555 = vpop.f32.mrf.mxu0
    %v8556 = vadd.f32 %v8537, %v8555
    %v8557 = vpop.f32.mrf.mxu0
    %v8558 = vadd.f32 %v8539, %v8557
    %8559 = vdwg.mxu0
    %8560 = vmatpush.bf16.msra.mxu0 %v7259
    %8561 = vmatpush.bf16.msra.mxu0 %v7253
    %8562 = vmatpush.bf16.msra.mxu0 %v7247
    %8563 = vmatpush.bf16.msra.mxu0 %v7241
    %8564 = vmatpush.bf16.msra.mxu0 %v7235
    %8565 = vmatpush.bf16.msra.mxu0 %v7229
    %8566 = vmatpush.bf16.msra.mxu0 %v7223
    %8567 = vmatpush.bf16.msra.mxu0 %v7217
    %8568 = vmatmul.bf16.gmra.mxu0 %v5036
    %v8569 = vpop.f32.mrf.mxu0
    %v8570 = vadd.f32 %v8551, %v8569
    %v8571 = vpop.f32.mrf.mxu0
    %v8572 = vadd.f32 %v8553, %v8571
    %8573 = vmatmul.bf16.gmra.mxu0 %v5047
    %v8574 = vpop.f32.mrf.mxu0
    %v8575 = vadd.f32 %v8556, %v8574
    %v8576 = vpop.f32.mrf.mxu0
    %v8577 = vadd.f32 %v8558, %v8576
    %8578 = vdwg.mxu0
    %8579 = vmatpush.bf16.msra.mxu0 %v7307
    %8580 = vmatpush.bf16.msra.mxu0 %v7301
    %8581 = vmatpush.bf16.msra.mxu0 %v7295
    %8582 = vmatpush.bf16.msra.mxu0 %v7289
    %8583 = vmatpush.bf16.msra.mxu0 %v7283
    %8584 = vmatpush.bf16.msra.mxu0 %v7277
    %8585 = vmatpush.bf16.msra.mxu0 %v7271
    %8586 = vmatpush.bf16.msra.mxu0 %v7265
    %8587 = vmatmul.bf16.gmra.mxu0 %v5037
    %v8588 = vpop.f32.mrf.mxu0
    %v8589 = vadd.f32 %v8570, %v8588
    %v8590 = vpop.f32.mrf.mxu0
    %v8591 = vadd.f32 %v8572, %v8590
    %8592 = vmatmul.bf16.gmra.mxu0 %v5048
    %v8593 = vpop.f32.mrf.mxu0
    %v8594 = vadd.f32 %v8575, %v8593
    %v8595 = vpop.f32.mrf.mxu0
    %v8596 = vadd.f32 %v8577, %v8595
    %8597 = vdwg.mxu0
    %8598 = vmatpush.bf16.msra.mxu0 %v7355
    %8599 = vmatpush.bf16.msra.mxu0 %v7349
    %8600 = vmatpush.bf16.msra.mxu0 %v7343
    %8601 = vmatpush.bf16.msra.mxu0 %v7337
    %8602 = vmatpush.bf16.msra.mxu0 %v7331
    %8603 = vmatpush.bf16.msra.mxu0 %v7325
    %8604 = vmatpush.bf16.msra.mxu0 %v7319
    %8605 = vmatpush.bf16.msra.mxu0 %v7313
    %8606 = vmatmul.bf16.gmra.mxu0 %v5038
    %v8607 = vpop.f32.mrf.mxu0
    %v8608 = vadd.f32 %v8589, %v8607
    %v8609 = vpop.f32.mrf.mxu0
    %v8610 = vadd.f32 %v8591, %v8609
    %8611 = vmatmul.bf16.gmra.mxu0 %v5049
    %v8612 = vpop.f32.mrf.mxu0
    %v8613 = vadd.f32 %v8594, %v8612
    %v8614 = vpop.f32.mrf.mxu0
    %v8615 = vadd.f32 %v8596, %v8614
    %8616 = vdwg.mxu0
    %8617 = vmatpush.bf16.msra.mxu0 %v7403
    %8618 = vmatpush.bf16.msra.mxu0 %v7397
    %8619 = vmatpush.bf16.msra.mxu0 %v7391
    %8620 = vmatpush.bf16.msra.mxu0 %v7385
    %8621 = vmatpush.bf16.msra.mxu0 %v7379
    %8622 = vmatpush.bf16.msra.mxu0 %v7373
    %8623 = vmatpush.bf16.msra.mxu0 %v7367
    %8624 = vmatpush.bf16.msra.mxu0 %v7361
    %8625 = vmatmul.bf16.gmra.mxu0 %v5039
    %v8626 = vpop.f32.mrf.mxu0
    %v8627 = vadd.f32 %v8608, %v8626
    %v8628 = vpop.f32.mrf.mxu0
    %v8629 = vadd.f32 %v8610, %v8628
    %8630 = vmatmul.bf16.gmra.mxu0 %v5050
    %v8631 = vpop.f32.mrf.mxu0
    %v8632 = vadd.f32 %v8613, %v8631
    %v8633 = vpop.f32.mrf.mxu0
    %v8634 = vadd.f32 %v8615, %v8633
    %8635 = vdwg.mxu0
    %8636 = vmatpush.bf16.msra.mxu0 %v7451
    %8637 = vmatpush.bf16.msra.mxu0 %v7445
    %8638 = vmatpush.bf16.msra.mxu0 %v7439
    %8639 = vmatpush.bf16.msra.mxu0 %v7433
    %8640 = vmatpush.bf16.msra.mxu0 %v7427
    %8641 = vmatpush.bf16.msra.mxu0 %v7421
    %8642 = vmatpush.bf16.msra.mxu0 %v7415
    %8643 = vmatpush.bf16.msra.mxu0 %v7409
    %8644 = vmatmul.bf16.gmra.mxu0 %v5040
    %v8645 = vpop.f32.mrf.mxu0
    %v8646 = vadd.f32 %v8627, %v8645
    %v8647 = vpop.f32.mrf.mxu0
    %v8648 = vadd.f32 %v8629, %v8647
    %8649 = vmatmul.bf16.gmra.mxu0 %v5051
    %v8650 = vpop.f32.mrf.mxu0
    %v8651 = vadd.f32 %v8632, %v8650
    %v8652 = vpop.f32.mrf.mxu0
    %v8653 = vadd.f32 %v8634, %v8652
    %8654 = vdwg.mxu0
    %8655 = vmatpush.bf16.msra.mxu0 %v7499
    %8656 = vmatpush.bf16.msra.mxu0 %v7493
    %8657 = vmatpush.bf16.msra.mxu0 %v7487
    %8658 = vmatpush.bf16.msra.mxu0 %v7481
    %8659 = vmatpush.bf16.msra.mxu0 %v7475
    %8660 = vmatpush.bf16.msra.mxu0 %v7469
    %8661 = vmatpush.bf16.msra.mxu0 %v7463
    %8662 = vmatpush.bf16.msra.mxu0 %v7457
    %8663 = vmatmul.bf16.gmra.mxu0 %v5041
    %v8664 = vpop.f32.mrf.mxu0
    %v8665 = vadd.f32 %v8646, %v8664
    %v8666 = vpop.f32.mrf.mxu0
    %v8667 = vadd.f32 %v8648, %v8666
    %8668 = vmatmul.bf16.gmra.mxu0 %v5052
    %v8669 = vpop.f32.mrf.mxu0
    %v8670 = vadd.f32 %v8651, %v8669
    %v8671 = vpop.f32.mrf.mxu0
    %v8672 = vadd.f32 %v8653, %v8671
    %8673 = vdwg.mxu0
    %8674 = vmatpush.bf16.msra.mxu0 %v7547
    %8675 = vmatpush.bf16.msra.mxu0 %v7541
    %8676 = vmatpush.bf16.msra.mxu0 %v7535
    %8677 = vmatpush.bf16.msra.mxu0 %v7529
    %8678 = vmatpush.bf16.msra.mxu0 %v7523
    %8679 = vmatpush.bf16.msra.mxu0 %v7517
    %8680 = vmatpush.bf16.msra.mxu0 %v7511
    %8681 = vmatpush.bf16.msra.mxu0 %v7505
    %8682 = vmatmul.bf16.gmra.mxu0 %v5042
    %v8683 = vpop.f32.mrf.mxu0
    %v8684 = vadd.f32 %v8665, %v8683
    %v8685 = vpop.f32.mrf.mxu0
    %v8686 = vadd.f32 %v8667, %v8685
    %8687 = vmatmul.bf16.gmra.mxu0 %v5053
    %v8688 = vpop.f32.mrf.mxu0
    %v8689 = vadd.f32 %v8670, %v8688
    %v8690 = vpop.f32.mrf.mxu0
    %v8691 = vadd.f32 %v8672, %v8690
    %8692 = vdwg.mxu0
    %8693 = vmatpush.bf16.msra.mxu0 0
    %8694 = vmatpush.bf16.msra.mxu0 0
    %8695 = vmatpush.bf16.msra.mxu0 0
    %8696 = vmatpush.bf16.msra.mxu0 0
    %8697 = vmatpush.bf16.msra.mxu0 %v7571
    %8698 = vmatpush.bf16.msra.mxu0 %v7565
    %8699 = vmatpush.bf16.msra.mxu0 %v7559
    %8700 = vmatpush.bf16.msra.mxu0 %v7553
    %8701 = vmatmul.bf16.gmra.mxu0 %v8080
    %v8702 = vpop.f32.mrf.mxu0
    %v8703 = vadd.f32 %v8684, %v8702
    %v8704 = vpop.f32.mrf.mxu0
    %v8705 = vadd.f32 %v8686, %v8704
    %8706 = vmatmul.bf16.gmra.mxu0 %v8083
    %v8707 = vpop.f32.mrf.mxu0
    %v8708 = vadd.f32 %v8689, %v8707
    %v8709 = vpop.f32.mrf.mxu0
    %v8710 = vadd.f32 %v8691, %v8709
    %8711 = vdwg.mxu0
    %8712 = vmatpush.bf16.msra.mxu0 %v7116
    %8713 = vmatpush.bf16.msra.mxu0 %v7110
    %8714 = vmatpush.bf16.msra.mxu0 %v7104
    %8715 = vmatpush.bf16.msra.mxu0 %v7098
    %8716 = vmatpush.bf16.msra.mxu0 %v7092
    %8717 = vmatpush.bf16.msra.mxu0 %v7086
    %8718 = vmatpush.bf16.msra.mxu0 %v7080
    %8719 = vmatpush.bf16.msra.mxu0 %v7074
    %8720 = vmatmul.bf16.gmra.mxu0 %v5033
    %v8721 = vpop.f32.mrf.mxu0
    %v8722 = vadd.f32 0.0, %v8721
    %v8723 = vpop.f32.mrf.mxu0
    %v8724 = vadd.f32 0.0, %v8723
    %8725 = vmatmul.bf16.gmra.mxu0 %v5044
    %v8726 = vpop.f32.mrf.mxu0
    %v8727 = vadd.f32 0.0, %v8726
    %v8728 = vpop.f32.mrf.mxu0
    %v8729 = vadd.f32 0.0, %v8728
    %8730 = vdwg.mxu0
    %8731 = vmatpush.bf16.msra.mxu0 %v7164
    %8732 = vmatpush.bf16.msra.mxu0 %v7158
    %8733 = vmatpush.bf16.msra.mxu0 %v7152
    %8734 = vmatpush.bf16.msra.mxu0 %v7146
    %8735 = vmatpush.bf16.msra.mxu0 %v7140
    %8736 = vmatpush.bf16.msra.mxu0 %v7134
    %8737 = vmatpush.bf16.msra.mxu0 %v7128
    %8738 = vmatpush.bf16.msra.mxu0 %v7122
    %8739 = vmatmul.bf16.gmra.mxu0 %v5034
    %v8740 = vpop.f32.mrf.mxu0
    %v8741 = vadd.f32 %v8722, %v8740
    %v8742 = vpop.f32.mrf.mxu0
    %v8743 = vadd.f32 %v8724, %v8742
    %8744 = vmatmul.bf16.gmra.mxu0 %v5045
    %v8745 = vpop.f32.mrf.mxu0
    %v8746 = vadd.f32 %v8727, %v8745
    %v8747 = vpop.f32.mrf.mxu0
    %v8748 = vadd.f32 %v8729, %v8747
    %8749 = vdwg.mxu0
    %8750 = vmatpush.bf16.msra.mxu0 %v7212
    %8751 = vmatpush.bf16.msra.mxu0 %v7206
    %8752 = vmatpush.bf16.msra.mxu0 %v7200
    %8753 = vmatpush.bf16.msra.mxu0 %v7194
    %8754 = vmatpush.bf16.msra.mxu0 %v7188
    %8755 = vmatpush.bf16.msra.mxu0 %v7182
    %8756 = vmatpush.bf16.msra.mxu0 %v7176
    %8757 = vmatpush.bf16.msra.mxu0 %v7170
    %8758 = vmatmul.bf16.gmra.mxu0 %v5035
    %v8759 = vpop.f32.mrf.mxu0
    %v8760 = vadd.f32 %v8741, %v8759
    %v8761 = vpop.f32.mrf.mxu0
    %v8762 = vadd.f32 %v8743, %v8761
    %8763 = vmatmul.bf16.gmra.mxu0 %v5046
    %v8764 = vpop.f32.mrf.mxu0
    %v8765 = vadd.f32 %v8746, %v8764
    %v8766 = vpop.f32.mrf.mxu0
    %v8767 = vadd.f32 %v8748, %v8766
    %8768 = vdwg.mxu0
    %8769 = vmatpush.bf16.msra.mxu0 %v7260
    %8770 = vmatpush.bf16.msra.mxu0 %v7254
    %8771 = vmatpush.bf16.msra.mxu0 %v7248
    %8772 = vmatpush.bf16.msra.mxu0 %v7242
    %8773 = vmatpush.bf16.msra.mxu0 %v7236
    %8774 = vmatpush.bf16.msra.mxu0 %v7230
    %8775 = vmatpush.bf16.msra.mxu0 %v7224
    %8776 = vmatpush.bf16.msra.mxu0 %v7218
    %8777 = vmatmul.bf16.gmra.mxu0 %v5036
    %v8778 = vpop.f32.mrf.mxu0
    %v8779 = vadd.f32 %v8760, %v8778
    %v8780 = vpop.f32.mrf.mxu0
    %v8781 = vadd.f32 %v8762, %v8780
    %8782 = vmatmul.bf16.gmra.mxu0 %v5047
    %v8783 = vpop.f32.mrf.mxu0
    %v8784 = vadd.f32 %v8765, %v8783
    %v8785 = vpop.f32.mrf.mxu0
    %v8786 = vadd.f32 %v8767, %v8785
    %8787 = vdwg.mxu0
    %8788 = vmatpush.bf16.msra.mxu0 %v7308
    %8789 = vmatpush.bf16.msra.mxu0 %v7302
    %8790 = vmatpush.bf16.msra.mxu0 %v7296
    %8791 = vmatpush.bf16.msra.mxu0 %v7290
    %8792 = vmatpush.bf16.msra.mxu0 %v7284
    %8793 = vmatpush.bf16.msra.mxu0 %v7278
    %8794 = vmatpush.bf16.msra.mxu0 %v7272
    %8795 = vmatpush.bf16.msra.mxu0 %v7266
    %8796 = vmatmul.bf16.gmra.mxu0 %v5037
    %v8797 = vpop.f32.mrf.mxu0
    %v8798 = vadd.f32 %v8779, %v8797
    %v8799 = vpop.f32.mrf.mxu0
    %v8800 = vadd.f32 %v8781, %v8799
    %8801 = vmatmul.bf16.gmra.mxu0 %v5048
    %v8802 = vpop.f32.mrf.mxu0
    %v8803 = vadd.f32 %v8784, %v8802
    %v8804 = vpop.f32.mrf.mxu0
    %v8805 = vadd.f32 %v8786, %v8804
    %8806 = vdwg.mxu0
    %8807 = vmatpush.bf16.msra.mxu0 %v7356
    %8808 = vmatpush.bf16.msra.mxu0 %v7350
    %8809 = vmatpush.bf16.msra.mxu0 %v7344
    %8810 = vmatpush.bf16.msra.mxu0 %v7338
    %8811 = vmatpush.bf16.msra.mxu0 %v7332
    %8812 = vmatpush.bf16.msra.mxu0 %v7326
    %8813 = vmatpush.bf16.msra.mxu0 %v7320
    %8814 = vmatpush.bf16.msra.mxu0 %v7314
    %8815 = vmatmul.bf16.gmra.mxu0 %v5038
    %v8816 = vpop.f32.mrf.mxu0
    %v8817 = vadd.f32 %v8798, %v8816
    %v8818 = vpop.f32.mrf.mxu0
    %v8819 = vadd.f32 %v8800, %v8818
    %8820 = vmatmul.bf16.gmra.mxu0 %v5049
    %v8821 = vpop.f32.mrf.mxu0
    %v8822 = vadd.f32 %v8803, %v8821
    %v8823 = vpop.f32.mrf.mxu0
    %v8824 = vadd.f32 %v8805, %v8823
    %8825 = vdwg.mxu0
    %8826 = vmatpush.bf16.msra.mxu0 %v7404
    %8827 = vmatpush.bf16.msra.mxu0 %v7398
    %8828 = vmatpush.bf16.msra.mxu0 %v7392
    %8829 = vmatpush.bf16.msra.mxu0 %v7386
    %8830 = vmatpush.bf16.msra.mxu0 %v7380
    %8831 = vmatpush.bf16.msra.mxu0 %v7374
    %8832 = vmatpush.bf16.msra.mxu0 %v7368
    %8833 = vmatpush.bf16.msra.mxu0 %v7362
    %8834 = vmatmul.bf16.gmra.mxu0 %v5039
    %v8835 = vpop.f32.mrf.mxu0
    %v8836 = vadd.f32 %v8817, %v8835
    %v8837 = vpop.f32.mrf.mxu0
    %v8838 = vadd.f32 %v8819, %v8837
    %8839 = vmatmul.bf16.gmra.mxu0 %v5050
    %v8840 = vpop.f32.mrf.mxu0
    %v8841 = vadd.f32 %v8822, %v8840
    %v8842 = vpop.f32.mrf.mxu0
    %v8843 = vadd.f32 %v8824, %v8842
    %8844 = vdwg.mxu0
    %8845 = vmatpush.bf16.msra.mxu0 %v7452
    %8846 = vmatpush.bf16.msra.mxu0 %v7446
    %8847 = vmatpush.bf16.msra.mxu0 %v7440
    %8848 = vmatpush.bf16.msra.mxu0 %v7434
    %8849 = vmatpush.bf16.msra.mxu0 %v7428
    %8850 = vmatpush.bf16.msra.mxu0 %v7422
    %8851 = vmatpush.bf16.msra.mxu0 %v7416
    %8852 = vmatpush.bf16.msra.mxu0 %v7410
    %8853 = vmatmul.bf16.gmra.mxu0 %v5040
    %v8854 = vpop.f32.mrf.mxu0
    %v8855 = vadd.f32 %v8836, %v8854
    %v8856 = vpop.f32.mrf.mxu0
    %v8857 = vadd.f32 %v8838, %v8856
    %8858 = vmatmul.bf16.gmra.mxu0 %v5051
    %v8859 = vpop.f32.mrf.mxu0
    %v8860 = vadd.f32 %v8841, %v8859
    %v8861 = vpop.f32.mrf.mxu0
    %v8862 = vadd.f32 %v8843, %v8861
    %8863 = vdwg.mxu0
    %8864 = vmatpush.bf16.msra.mxu0 %v7500
    %8865 = vmatpush.bf16.msra.mxu0 %v7494
    %8866 = vmatpush.bf16.msra.mxu0 %v7488
    %8867 = vmatpush.bf16.msra.mxu0 %v7482
    %8868 = vmatpush.bf16.msra.mxu0 %v7476
    %8869 = vmatpush.bf16.msra.mxu0 %v7470
    %8870 = vmatpush.bf16.msra.mxu0 %v7464
    %8871 = vmatpush.bf16.msra.mxu0 %v7458
    %8872 = vmatmul.bf16.gmra.mxu0 %v5041
    %v8873 = vpop.f32.mrf.mxu0
    %v8874 = vadd.f32 %v8855, %v8873
    %v8875 = vpop.f32.mrf.mxu0
    %v8876 = vadd.f32 %v8857, %v8875
    %8877 = vmatmul.bf16.gmra.mxu0 %v5052
    %v8878 = vpop.f32.mrf.mxu0
    %v8879 = vadd.f32 %v8860, %v8878
    %v8880 = vpop.f32.mrf.mxu0
    %v8881 = vadd.f32 %v8862, %v8880
    %8882 = vdwg.mxu0
    %8883 = vmatpush.bf16.msra.mxu0 %v7548
    %8884 = vmatpush.bf16.msra.mxu0 %v7542
    %8885 = vmatpush.bf16.msra.mxu0 %v7536
    %8886 = vmatpush.bf16.msra.mxu0 %v7530
    %8887 = vmatpush.bf16.msra.mxu0 %v7524
    %8888 = vmatpush.bf16.msra.mxu0 %v7518
    %8889 = vmatpush.bf16.msra.mxu0 %v7512
    %8890 = vmatpush.bf16.msra.mxu0 %v7506
    %8891 = vmatmul.bf16.gmra.mxu0 %v5042
    %v8892 = vpop.f32.mrf.mxu0
    %v8893 = vadd.f32 %v8874, %v8892
    %v8894 = vpop.f32.mrf.mxu0
    %v8895 = vadd.f32 %v8876, %v8894
    %8896 = vmatmul.bf16.gmra.mxu0 %v5053
    %v8897 = vpop.f32.mrf.mxu0
    %v8898 = vadd.f32 %v8879, %v8897
    %v8899 = vpop.f32.mrf.mxu0
    %v8900 = vadd.f32 %v8881, %v8899
    %8901 = vdwg.mxu0
    %8902 = vmatpush.bf16.msra.mxu0 0
    %8903 = vmatpush.bf16.msra.mxu0 0
    %8904 = vmatpush.bf16.msra.mxu0 0
    %8905 = vmatpush.bf16.msra.mxu0 0
    %8906 = vmatpush.bf16.msra.mxu0 %v7572
    %8907 = vmatpush.bf16.msra.mxu0 %v7566
    %8908 = vmatpush.bf16.msra.mxu0 %v7560
    %8909 = vmatpush.bf16.msra.mxu0 %v7554
    %8910 = vmatmul.bf16.gmra.mxu0 %v8080
    %v8911 = vpop.f32.mrf.mxu0
    %v8912 = vadd.f32 %v8893, %v8911
    %v8913 = vpop.f32.mrf.mxu0
    %v8914 = vadd.f32 %v8895, %v8913
    %8915 = vmatmul.bf16.gmra.mxu0 %v8083
    %v8916 = vpop.f32.mrf.mxu0
    %v8917 = vadd.f32 %v8898, %v8916
    %v8918 = vpop.f32.mrf.mxu0
    %v8919 = vadd.f32 %v8900, %v8918
    %8920 = vdwg.mxu0
    %8921 = vmatpush.bf16.msra.mxu0 %v7117
    %8922 = vmatpush.bf16.msra.mxu0 %v7111
    %8923 = vmatpush.bf16.msra.mxu0 %v7105
    %8924 = vmatpush.bf16.msra.mxu0 %v7099
    %8925 = vmatpush.bf16.msra.mxu0 %v7093
    %8926 = vmatpush.bf16.msra.mxu0 %v7087
    %8927 = vmatpush.bf16.msra.mxu0 %v7081
    %8928 = vmatpush.bf16.msra.mxu0 %v7075
    %8929 = vmatmul.bf16.gmra.mxu0 %v5033
    %v8930 = vpop.f32.mrf.mxu0
    %v8931 = vadd.f32 0.0, %v8930
    %v8932 = vpop.f32.mrf.mxu0
    %v8933 = vadd.f32 0.0, %v8932
    %8934 = vmatmul.bf16.gmra.mxu0 %v5044
    %v8935 = vpop.f32.mrf.mxu0
    %v8936 = vadd.f32 0.0, %v8935
    %v8937 = vpop.f32.mrf.mxu0
    %v8938 = vadd.f32 0.0, %v8937
    %8939 = vdwg.mxu0
    %8940 = vmatpush.bf16.msra.mxu0 %v7165
    %8941 = vmatpush.bf16.msra.mxu0 %v7159
    %8942 = vmatpush.bf16.msra.mxu0 %v7153
    %8943 = vmatpush.bf16.msra.mxu0 %v7147
    %8944 = vmatpush.bf16.msra.mxu0 %v7141
    %8945 = vmatpush.bf16.msra.mxu0 %v7135
    %8946 = vmatpush.bf16.msra.mxu0 %v7129
    %8947 = vmatpush.bf16.msra.mxu0 %v7123
    %8948 = vmatmul.bf16.gmra.mxu0 %v5034
    %v8949 = vpop.f32.mrf.mxu0
    %v8950 = vadd.f32 %v8931, %v8949
    %v8951 = vpop.f32.mrf.mxu0
    %v8952 = vadd.f32 %v8933, %v8951
    %8953 = vmatmul.bf16.gmra.mxu0 %v5045
    %v8954 = vpop.f32.mrf.mxu0
    %v8955 = vadd.f32 %v8936, %v8954
    %v8956 = vpop.f32.mrf.mxu0
    %v8957 = vadd.f32 %v8938, %v8956
    %8958 = vdwg.mxu0
    %8959 = vmatpush.bf16.msra.mxu0 %v7213
    %8960 = vmatpush.bf16.msra.mxu0 %v7207
    %8961 = vmatpush.bf16.msra.mxu0 %v7201
    %8962 = vmatpush.bf16.msra.mxu0 %v7195
    %8963 = vmatpush.bf16.msra.mxu0 %v7189
    %8964 = vmatpush.bf16.msra.mxu0 %v7183
    %8965 = vmatpush.bf16.msra.mxu0 %v7177
    %8966 = vmatpush.bf16.msra.mxu0 %v7171
    %8967 = vmatmul.bf16.gmra.mxu0 %v5035
    %v8968 = vpop.f32.mrf.mxu0
    %v8969 = vadd.f32 %v8950, %v8968
    %v8970 = vpop.f32.mrf.mxu0
    %v8971 = vadd.f32 %v8952, %v8970
    %8972 = vmatmul.bf16.gmra.mxu0 %v5046
    %v8973 = vpop.f32.mrf.mxu0
    %v8974 = vadd.f32 %v8955, %v8973
    %v8975 = vpop.f32.mrf.mxu0
    %v8976 = vadd.f32 %v8957, %v8975
    %8977 = vdwg.mxu0
    %8978 = vmatpush.bf16.msra.mxu0 %v7261
    %8979 = vmatpush.bf16.msra.mxu0 %v7255
    %8980 = vmatpush.bf16.msra.mxu0 %v7249
    %8981 = vmatpush.bf16.msra.mxu0 %v7243
    %8982 = vmatpush.bf16.msra.mxu0 %v7237
    %8983 = vmatpush.bf16.msra.mxu0 %v7231
    %8984 = vmatpush.bf16.msra.mxu0 %v7225
    %8985 = vmatpush.bf16.msra.mxu0 %v7219
    %8986 = vmatmul.bf16.gmra.mxu0 %v5036
    %v8987 = vpop.f32.mrf.mxu0
    %v8988 = vadd.f32 %v8969, %v8987
    %v8989 = vpop.f32.mrf.mxu0
    %v8990 = vadd.f32 %v8971, %v8989
    %8991 = vmatmul.bf16.gmra.mxu0 %v5047
    %v8992 = vpop.f32.mrf.mxu0
    %v8993 = vadd.f32 %v8974, %v8992
    %v8994 = vpop.f32.mrf.mxu0
    %v8995 = vadd.f32 %v8976, %v8994
    %8996 = vdwg.mxu0
    %8997 = vmatpush.bf16.msra.mxu0 %v7309
    %8998 = vmatpush.bf16.msra.mxu0 %v7303
    %8999 = vmatpush.bf16.msra.mxu0 %v7297
    %9000 = vmatpush.bf16.msra.mxu0 %v7291
    %9001 = vmatpush.bf16.msra.mxu0 %v7285
    %9002 = vmatpush.bf16.msra.mxu0 %v7279
    %9003 = vmatpush.bf16.msra.mxu0 %v7273
    %9004 = vmatpush.bf16.msra.mxu0 %v7267
    %9005 = vmatmul.bf16.gmra.mxu0 %v5037
    %v9006 = vpop.f32.mrf.mxu0
    %v9007 = vadd.f32 %v8988, %v9006
    %v9008 = vpop.f32.mrf.mxu0
    %v9009 = vadd.f32 %v8990, %v9008
    %9010 = vmatmul.bf16.gmra.mxu0 %v5048
    %v9011 = vpop.f32.mrf.mxu0
    %v9012 = vadd.f32 %v8993, %v9011
    %v9013 = vpop.f32.mrf.mxu0
    %v9014 = vadd.f32 %v8995, %v9013
    %9015 = vdwg.mxu0
    %9016 = vmatpush.bf16.msra.mxu0 %v7357
    %9017 = vmatpush.bf16.msra.mxu0 %v7351
    %9018 = vmatpush.bf16.msra.mxu0 %v7345
    %9019 = vmatpush.bf16.msra.mxu0 %v7339
    %9020 = vmatpush.bf16.msra.mxu0 %v7333
    %9021 = vmatpush.bf16.msra.mxu0 %v7327
    %9022 = vmatpush.bf16.msra.mxu0 %v7321
    %9023 = vmatpush.bf16.msra.mxu0 %v7315
    %9024 = vmatmul.bf16.gmra.mxu0 %v5038
    %v9025 = vpop.f32.mrf.mxu0
    %v9026 = vadd.f32 %v9007, %v9025
    %v9027 = vpop.f32.mrf.mxu0
    %v9028 = vadd.f32 %v9009, %v9027
    %9029 = vmatmul.bf16.gmra.mxu0 %v5049
    %v9030 = vpop.f32.mrf.mxu0
    %v9031 = vadd.f32 %v9012, %v9030
    %v9032 = vpop.f32.mrf.mxu0
    %v9033 = vadd.f32 %v9014, %v9032
    %9034 = vdwg.mxu0
    %9035 = vmatpush.bf16.msra.mxu0 %v7405
    %9036 = vmatpush.bf16.msra.mxu0 %v7399
    %9037 = vmatpush.bf16.msra.mxu0 %v7393
    %9038 = vmatpush.bf16.msra.mxu0 %v7387
    %9039 = vmatpush.bf16.msra.mxu0 %v7381
    %9040 = vmatpush.bf16.msra.mxu0 %v7375
    %9041 = vmatpush.bf16.msra.mxu0 %v7369
    %9042 = vmatpush.bf16.msra.mxu0 %v7363
    %9043 = vmatmul.bf16.gmra.mxu0 %v5039
    %v9044 = vpop.f32.mrf.mxu0
    %v9045 = vadd.f32 %v9026, %v9044
    %v9046 = vpop.f32.mrf.mxu0
    %v9047 = vadd.f32 %v9028, %v9046
    %9048 = vmatmul.bf16.gmra.mxu0 %v5050
    %v9049 = vpop.f32.mrf.mxu0
    %v9050 = vadd.f32 %v9031, %v9049
    %v9051 = vpop.f32.mrf.mxu0
    %v9052 = vadd.f32 %v9033, %v9051
    %9053 = vdwg.mxu0
    %9054 = vmatpush.bf16.msra.mxu0 %v7453
    %9055 = vmatpush.bf16.msra.mxu0 %v7447
    %9056 = vmatpush.bf16.msra.mxu0 %v7441
    %9057 = vmatpush.bf16.msra.mxu0 %v7435
    %9058 = vmatpush.bf16.msra.mxu0 %v7429
    %9059 = vmatpush.bf16.msra.mxu0 %v7423
    %9060 = vmatpush.bf16.msra.mxu0 %v7417
    %9061 = vmatpush.bf16.msra.mxu0 %v7411
    %9062 = vmatmul.bf16.gmra.mxu0 %v5040
    %v9063 = vpop.f32.mrf.mxu0
    %v9064 = vadd.f32 %v9045, %v9063
    %v9065 = vpop.f32.mrf.mxu0
    %v9066 = vadd.f32 %v9047, %v9065
    %9067 = vmatmul.bf16.gmra.mxu0 %v5051
    %v9068 = vpop.f32.mrf.mxu0
    %v9069 = vadd.f32 %v9050, %v9068
    %v9070 = vpop.f32.mrf.mxu0
    %v9071 = vadd.f32 %v9052, %v9070
    %9072 = vdwg.mxu0
    %9073 = vmatpush.bf16.msra.mxu0 %v7501
    %9074 = vmatpush.bf16.msra.mxu0 %v7495
    %9075 = vmatpush.bf16.msra.mxu0 %v7489
    %9076 = vmatpush.bf16.msra.mxu0 %v7483
    %9077 = vmatpush.bf16.msra.mxu0 %v7477
    %9078 = vmatpush.bf16.msra.mxu0 %v7471
    %9079 = vmatpush.bf16.msra.mxu0 %v7465
    %9080 = vmatpush.bf16.msra.mxu0 %v7459
    %9081 = vmatmul.bf16.gmra.mxu0 %v5041
    %v9082 = vpop.f32.mrf.mxu0
    %v9083 = vadd.f32 %v9064, %v9082
    %v9084 = vpop.f32.mrf.mxu0
    %v9085 = vadd.f32 %v9066, %v9084
    %9086 = vmatmul.bf16.gmra.mxu0 %v5052
    %v9087 = vpop.f32.mrf.mxu0
    %v9088 = vadd.f32 %v9069, %v9087
    %v9089 = vpop.f32.mrf.mxu0
    %v9090 = vadd.f32 %v9071, %v9089
    %9091 = vdwg.mxu0
    %9092 = vmatpush.bf16.msra.mxu0 %v7549
    %9093 = vmatpush.bf16.msra.mxu0 %v7543
    %9094 = vmatpush.bf16.msra.mxu0 %v7537
    %9095 = vmatpush.bf16.msra.mxu0 %v7531
    %9096 = vmatpush.bf16.msra.mxu0 %v7525
    %9097 = vmatpush.bf16.msra.mxu0 %v7519
    %9098 = vmatpush.bf16.msra.mxu0 %v7513
    %9099 = vmatpush.bf16.msra.mxu0 %v7507
    %9100 = vmatmul.bf16.gmra.mxu0 %v5042
    %v9101 = vpop.f32.mrf.mxu0
    %v9102 = vadd.f32 %v9083, %v9101
    %v9103 = vpop.f32.mrf.mxu0
    %v9104 = vadd.f32 %v9085, %v9103
    %9105 = vmatmul.bf16.gmra.mxu0 %v5053
    %v9106 = vpop.f32.mrf.mxu0
    %v9107 = vadd.f32 %v9088, %v9106
    %v9108 = vpop.f32.mrf.mxu0
    %v9109 = vadd.f32 %v9090, %v9108
    %9110 = vdwg.mxu0
    %9111 = vmatpush.bf16.msra.mxu0 0
    %9112 = vmatpush.bf16.msra.mxu0 0
    %9113 = vmatpush.bf16.msra.mxu0 0
    %9114 = vmatpush.bf16.msra.mxu0 0
    %9115 = vmatpush.bf16.msra.mxu0 %v7573
    %9116 = vmatpush.bf16.msra.mxu0 %v7567
    %9117 = vmatpush.bf16.msra.mxu0 %v7561
    %9118 = vmatpush.bf16.msra.mxu0 %v7555
    %9119 = vmatmul.bf16.gmra.mxu0 %v8080
    %v9120 = vpop.f32.mrf.mxu0
    %v9121 = vadd.f32 %v9102, %v9120
    %v9122 = vpop.f32.mrf.mxu0
    %v9123 = vadd.f32 %v9104, %v9122
    %9124 = vmatmul.bf16.gmra.mxu0 %v8083
    %v9125 = vpop.f32.mrf.mxu0
    %v9126 = vadd.f32 %v9107, %v9125
    %v9127 = vpop.f32.mrf.mxu0
    %v9128 = vadd.f32 %v9109, %v9127
    %9129 = vdwg.mxu0
    %9130 = vmatpush.bf16.msra.mxu0 %v7118
    %9131 = vmatpush.bf16.msra.mxu0 %v7112
    %9132 = vmatpush.bf16.msra.mxu0 %v7106
    %9133 = vmatpush.bf16.msra.mxu0 %v7100
    %9134 = vmatpush.bf16.msra.mxu0 %v7094
    %9135 = vmatpush.bf16.msra.mxu0 %v7088
    %9136 = vmatpush.bf16.msra.mxu0 %v7082
    %9137 = vmatpush.bf16.msra.mxu0 %v7076
    %9138 = vmatmul.bf16.gmra.mxu0 %v5033
    %v9139 = vpop.f32.mrf.mxu0
    %v9140 = vadd.f32 0.0, %v9139
    %v9141 = vpop.f32.mrf.mxu0
    %v9142 = vadd.f32 0.0, %v9141
    %9143 = vmatmul.bf16.gmra.mxu0 %v5044
    %v9144 = vpop.f32.mrf.mxu0
    %v9145 = vadd.f32 0.0, %v9144
    %v9146 = vpop.f32.mrf.mxu0
    %v9147 = vadd.f32 0.0, %v9146
    %9148 = vdwg.mxu0
    %9149 = vmatpush.bf16.msra.mxu0 %v7166
    %9150 = vmatpush.bf16.msra.mxu0 %v7160
    %9151 = vmatpush.bf16.msra.mxu0 %v7154
    %9152 = vmatpush.bf16.msra.mxu0 %v7148
    %9153 = vmatpush.bf16.msra.mxu0 %v7142
    %9154 = vmatpush.bf16.msra.mxu0 %v7136
    %9155 = vmatpush.bf16.msra.mxu0 %v7130
    %9156 = vmatpush.bf16.msra.mxu0 %v7124
    %9157 = vmatmul.bf16.gmra.mxu0 %v5034
    %v9158 = vpop.f32.mrf.mxu0
    %v9159 = vadd.f32 %v9140, %v9158
    %v9160 = vpop.f32.mrf.mxu0
    %v9161 = vadd.f32 %v9142, %v9160
    %9162 = vmatmul.bf16.gmra.mxu0 %v5045
    %v9163 = vpop.f32.mrf.mxu0
    %v9164 = vadd.f32 %v9145, %v9163
    %v9165 = vpop.f32.mrf.mxu0
    %v9166 = vadd.f32 %v9147, %v9165
    %9167 = vdwg.mxu0
    %9168 = vmatpush.bf16.msra.mxu0 %v7214
    %9169 = vmatpush.bf16.msra.mxu0 %v7208
    %9170 = vmatpush.bf16.msra.mxu0 %v7202
    %9171 = vmatpush.bf16.msra.mxu0 %v7196
    %9172 = vmatpush.bf16.msra.mxu0 %v7190
    %9173 = vmatpush.bf16.msra.mxu0 %v7184
    %9174 = vmatpush.bf16.msra.mxu0 %v7178
    %9175 = vmatpush.bf16.msra.mxu0 %v7172
    %9176 = vmatmul.bf16.gmra.mxu0 %v5035
    %v9177 = vpop.f32.mrf.mxu0
    %v9178 = vadd.f32 %v9159, %v9177
    %v9179 = vpop.f32.mrf.mxu0
    %v9180 = vadd.f32 %v9161, %v9179
    %9181 = vmatmul.bf16.gmra.mxu0 %v5046
    %v9182 = vpop.f32.mrf.mxu0
    %v9183 = vadd.f32 %v9164, %v9182
    %v9184 = vpop.f32.mrf.mxu0
    %v9185 = vadd.f32 %v9166, %v9184
    %9186 = vdwg.mxu0
    %9187 = vmatpush.bf16.msra.mxu0 %v7262
    %9188 = vmatpush.bf16.msra.mxu0 %v7256
    %9189 = vmatpush.bf16.msra.mxu0 %v7250
    %9190 = vmatpush.bf16.msra.mxu0 %v7244
    %9191 = vmatpush.bf16.msra.mxu0 %v7238
    %9192 = vmatpush.bf16.msra.mxu0 %v7232
    %9193 = vmatpush.bf16.msra.mxu0 %v7226
    %9194 = vmatpush.bf16.msra.mxu0 %v7220
    %9195 = vmatmul.bf16.gmra.mxu0 %v5036
    %v9196 = vpop.f32.mrf.mxu0
    %v9197 = vadd.f32 %v9178, %v9196
    %v9198 = vpop.f32.mrf.mxu0
    %v9199 = vadd.f32 %v9180, %v9198
    %9200 = vmatmul.bf16.gmra.mxu0 %v5047
    %v9201 = vpop.f32.mrf.mxu0
    %v9202 = vadd.f32 %v9183, %v9201
    %v9203 = vpop.f32.mrf.mxu0
    %v9204 = vadd.f32 %v9185, %v9203
    %9205 = vdwg.mxu0
    %9206 = vmatpush.bf16.msra.mxu0 %v7310
    %9207 = vmatpush.bf16.msra.mxu0 %v7304
    %9208 = vmatpush.bf16.msra.mxu0 %v7298
    %9209 = vmatpush.bf16.msra.mxu0 %v7292
    %9210 = vmatpush.bf16.msra.mxu0 %v7286
    %9211 = vmatpush.bf16.msra.mxu0 %v7280
    %9212 = vmatpush.bf16.msra.mxu0 %v7274
    %9213 = vmatpush.bf16.msra.mxu0 %v7268
    %9214 = vmatmul.bf16.gmra.mxu0 %v5037
    %v9215 = vpop.f32.mrf.mxu0
    %v9216 = vadd.f32 %v9197, %v9215
    %v9217 = vpop.f32.mrf.mxu0
    %v9218 = vadd.f32 %v9199, %v9217
    %9219 = vmatmul.bf16.gmra.mxu0 %v5048
    %v9220 = vpop.f32.mrf.mxu0
    %v9221 = vadd.f32 %v9202, %v9220
    %v9222 = vpop.f32.mrf.mxu0
    %v9223 = vadd.f32 %v9204, %v9222
    %9224 = vdwg.mxu0
    %9225 = vmatpush.bf16.msra.mxu0 %v7358
    %9226 = vmatpush.bf16.msra.mxu0 %v7352
    %9227 = vmatpush.bf16.msra.mxu0 %v7346
    %9228 = vmatpush.bf16.msra.mxu0 %v7340
    %9229 = vmatpush.bf16.msra.mxu0 %v7334
    %9230 = vmatpush.bf16.msra.mxu0 %v7328
    %9231 = vmatpush.bf16.msra.mxu0 %v7322
    %9232 = vmatpush.bf16.msra.mxu0 %v7316
    %9233 = vmatmul.bf16.gmra.mxu0 %v5038
    %v9234 = vpop.f32.mrf.mxu0
    %v9235 = vadd.f32 %v9216, %v9234
    %v9236 = vpop.f32.mrf.mxu0
    %v9237 = vadd.f32 %v9218, %v9236
    %9238 = vmatmul.bf16.gmra.mxu0 %v5049
    %v9239 = vpop.f32.mrf.mxu0
    %v9240 = vadd.f32 %v9221, %v9239
    %v9241 = vpop.f32.mrf.mxu0
    %v9242 = vadd.f32 %v9223, %v9241
    %9243 = vdwg.mxu0
    %9244 = vmatpush.bf16.msra.mxu0 %v7406
    %9245 = vmatpush.bf16.msra.mxu0 %v7400
    %9246 = vmatpush.bf16.msra.mxu0 %v7394
    %9247 = vmatpush.bf16.msra.mxu0 %v7388
    %9248 = vmatpush.bf16.msra.mxu0 %v7382
    %9249 = vmatpush.bf16.msra.mxu0 %v7376
    %9250 = vmatpush.bf16.msra.mxu0 %v7370
    %9251 = vmatpush.bf16.msra.mxu0 %v7364
    %9252 = vmatmul.bf16.gmra.mxu0 %v5039
    %v9253 = vpop.f32.mrf.mxu0
    %v9254 = vadd.f32 %v9235, %v9253
    %v9255 = vpop.f32.mrf.mxu0
    %v9256 = vadd.f32 %v9237, %v9255
    %9257 = vmatmul.bf16.gmra.mxu0 %v5050
    %v9258 = vpop.f32.mrf.mxu0
    %v9259 = vadd.f32 %v9240, %v9258
    %v9260 = vpop.f32.mrf.mxu0
    %v9261 = vadd.f32 %v9242, %v9260
    %9262 = vdwg.mxu0
    %9263 = vmatpush.bf16.msra.mxu0 %v7454
    %9264 = vmatpush.bf16.msra.mxu0 %v7448
    %9265 = vmatpush.bf16.msra.mxu0 %v7442
    %9266 = vmatpush.bf16.msra.mxu0 %v7436
    %9267 = vmatpush.bf16.msra.mxu0 %v7430
    %9268 = vmatpush.bf16.msra.mxu0 %v7424
    %9269 = vmatpush.bf16.msra.mxu0 %v7418
    %9270 = vmatpush.bf16.msra.mxu0 %v7412
    %9271 = vmatmul.bf16.gmra.mxu0 %v5040
    %v9272 = vpop.f32.mrf.mxu0
    %v9273 = vadd.f32 %v9254, %v9272
    %v9274 = vpop.f32.mrf.mxu0
    %v9275 = vadd.f32 %v9256, %v9274
    %9276 = vmatmul.bf16.gmra.mxu0 %v5051
    %v9277 = vpop.f32.mrf.mxu0
    %v9278 = vadd.f32 %v9259, %v9277
    %v9279 = vpop.f32.mrf.mxu0
    %v9280 = vadd.f32 %v9261, %v9279
    %9281 = vdwg.mxu0
    %9282 = vmatpush.bf16.msra.mxu0 %v7502
    %9283 = vmatpush.bf16.msra.mxu0 %v7496
    %9284 = vmatpush.bf16.msra.mxu0 %v7490
    %9285 = vmatpush.bf16.msra.mxu0 %v7484
    %9286 = vmatpush.bf16.msra.mxu0 %v7478
    %9287 = vmatpush.bf16.msra.mxu0 %v7472
    %9288 = vmatpush.bf16.msra.mxu0 %v7466
    %9289 = vmatpush.bf16.msra.mxu0 %v7460
    %9290 = vmatmul.bf16.gmra.mxu0 %v5041
    %v9291 = vpop.f32.mrf.mxu0
    %v9292 = vadd.f32 %v9273, %v9291
    %v9293 = vpop.f32.mrf.mxu0
    %v9294 = vadd.f32 %v9275, %v9293
    %9295 = vmatmul.bf16.gmra.mxu0 %v5052
    %v9296 = vpop.f32.mrf.mxu0
    %v9297 = vadd.f32 %v9278, %v9296
    %v9298 = vpop.f32.mrf.mxu0
    %v9299 = vadd.f32 %v9280, %v9298
    %9300 = vdwg.mxu0
    %9301 = vmatpush.bf16.msra.mxu0 %v7550
    %9302 = vmatpush.bf16.msra.mxu0 %v7544
    %9303 = vmatpush.bf16.msra.mxu0 %v7538
    %9304 = vmatpush.bf16.msra.mxu0 %v7532
    %9305 = vmatpush.bf16.msra.mxu0 %v7526
    %9306 = vmatpush.bf16.msra.mxu0 %v7520
    %9307 = vmatpush.bf16.msra.mxu0 %v7514
    %9308 = vmatpush.bf16.msra.mxu0 %v7508
    %9309 = vmatmul.bf16.gmra.mxu0 %v5042
    %v9310 = vpop.f32.mrf.mxu0
    %v9311 = vadd.f32 %v9292, %v9310
    %v9312 = vpop.f32.mrf.mxu0
    %v9313 = vadd.f32 %v9294, %v9312
    %9314 = vmatmul.bf16.gmra.mxu0 %v5053
    %v9315 = vpop.f32.mrf.mxu0
    %v9316 = vadd.f32 %v9297, %v9315
    %v9317 = vpop.f32.mrf.mxu0
    %v9318 = vadd.f32 %v9299, %v9317
    %9319 = vdwg.mxu0
    %9320 = vmatpush.bf16.msra.mxu0 0
    %9321 = vmatpush.bf16.msra.mxu0 0
    %9322 = vmatpush.bf16.msra.mxu0 0
    %9323 = vmatpush.bf16.msra.mxu0 0
    %9324 = vmatpush.bf16.msra.mxu0 %v7574
    %9325 = vmatpush.bf16.msra.mxu0 %v7568
    %9326 = vmatpush.bf16.msra.mxu0 %v7562
    %9327 = vmatpush.bf16.msra.mxu0 %v7556
    %9328 = vmatmul.bf16.gmra.mxu0 %v8080
    %v9329 = vpop.f32.mrf.mxu0
    %v9330 = vadd.f32 %v9311, %v9329
    %v9331 = vpop.f32.mrf.mxu0
    %v9332 = vadd.f32 %v9313, %v9331
    %9333 = vmatmul.bf16.gmra.mxu0 %v8083
    %v9334 = vpop.f32.mrf.mxu0
    %v9335 = vadd.f32 %v9316, %v9334
    %v9336 = vpop.f32.mrf.mxu0
    %v9337 = vadd.f32 %v9318, %v9336
    %9338 = vdwg.mxu0
    %v9339 = vmax.f32 %v8285, %v8912
    %v9340 = vmax.f32 %v8494, %v9121
    %v9341 = vmax.f32 %v8703, %v9330
    %v9342 = vmax.f32 %v8287, %v8914
    %v9343 = vmax.f32 %v8496, %v9123
    %v9344 = vmax.f32 %v8705, %v9332
    %v9345 = vmax.f32 %v8290, %v8917
    %v9346 = vmax.f32 %v8499, %v9126
    %v9347 = vmax.f32 %v8708, %v9335
    %v9348 = vmax.f32 %v8292, %v8919
    %v9349 = vmax.f32 %v8501, %v9128
    %v9350 = vmax.f32 %v8710, %v9337
    %v9351 = vld [vmem:[#allocation8] sm:$0x7]
    %v9353 = vperm.slane %v9351, 0
    %v9354 = vperm.slane %v9351, 1
    %v9355 = vperm.slane %v9351, 2
    %v9359 = vadd.f32 %v9339, %v9353
    %v9360 = vadd.f32 %v9340, %v9354
    %v9361 = vadd.f32 %v9341, %v9355
    %v9362 = vadd.f32 %v9342, %v9353
    %v9363 = vadd.f32 %v9343, %v9354
    %v9364 = vadd.f32 %v9344, %v9355
    %v9365 = vadd.f32 %v9345, %v9353
    %v9366 = vadd.f32 %v9346, %v9354
    %v9367 = vadd.f32 %v9347, %v9355
    %v9368 = vadd.f32 %v9348, %v9353
    %v9369 = vadd.f32 %v9349, %v9354
    %v9370 = vadd.f32 %v9350, %v9355
    %v9371 = vmax.f32 %v9359, 0.0
    %v9372 = vmax.f32 %v9360, 0.0
    %v9373 = vmax.f32 %v9361, 0.0
    %v9374 = vmax.f32 %v9362, 0.0
    %v9375 = vmax.f32 %v9363, 0.0
    %v9376 = vmax.f32 %v9364, 0.0
    %v9377 = vmax.f32 %v9365, 0.0
    %v9378 = vmax.f32 %v9366, 0.0
    %v9379 = vmax.f32 %v9367, 0.0
    %v9380 = vmax.f32 %v9368, 0.0
    %v9381 = vmax.f32 %v9369, 0.0
    %v9382 = vmax.f32 %v9370, 0.0
    %v9389 = vrot.slane %v9371, 1
    %v9390 = vrot.slane %v9372, 1
    %v9391 = vrot.slane %v9373, 1
    %v9392 = vrot.slane %v9377, 1
    %v9393 = vrot.slane %v9378, 1
    %v9394 = vrot.slane %v9379, 1
    %v9401 = vmax.f32 %v9371, %v9389
    %v9402 = vmax.f32 %v9372, %v9390
    %v9403 = vmax.f32 %v9373, %v9391
    %v9404 = vmax.f32 %v9377, %v9392
    %v9405 = vmax.f32 %v9378, %v9393
    %v9406 = vmax.f32 %v9379, %v9394
    %v9413 = vrot.slane %v9374, 1
    %v9414 = vrot.slane %v9375, 1
    %v9415 = vrot.slane %v9376, 1
    %v9416 = vrot.slane %v9380, 1
    %v9417 = vrot.slane %v9381, 1
    %v9418 = vrot.slane %v9382, 1
    %v9425 = vmax.f32 %v9374, %v9413
    %v9426 = vmax.f32 %v9375, %v9414
    %v9427 = vmax.f32 %v9376, %v9415
    %v9428 = vmax.f32 %v9380, %v9416
    %v9429 = vmax.f32 %v9381, %v9417
    %v9430 = vmax.f32 %v9382, %v9418
    %v9437 = vrot.slane %v9404, 7
    %vm9438 = vcmask 1041409
    %v9439 = vsel %vm9438, %v9437, %v9401
    %v9440 = vrot.slane %v9405, 7
    %v9441 = vsel %vm9438, %v9440, %v9402
    %v9442 = vrot.slane %v9406, 7
    %v9443 = vsel %vm9438, %v9442, %v9403
    %v9447 = vrot.slane %v9401, 2
    %v9448 = vrot.slane %v9404, 1
    %v9449 = vsel %vm9438, %v9448, %v9447
    %v9450 = vrot.slane %v9402, 2
    %v9451 = vrot.slane %v9405, 1
    %v9452 = vsel %vm9438, %v9451, %v9450
    %v9453 = vrot.slane %v9403, 2
    %v9454 = vrot.slane %v9406, 1
    %v9455 = vsel %vm9438, %v9454, %v9453
    %v9459 = vrot.slane %v9401, 4
    %v9460 = vrot.slane %v9404, 3
    %v9461 = vsel %vm9438, %v9460, %v9459
    %v9462 = vrot.slane %v9402, 4
    %v9463 = vrot.slane %v9405, 3
    %v9464 = vsel %vm9438, %v9463, %v9462
    %v9465 = vrot.slane %v9403, 4
    %v9466 = vrot.slane %v9406, 3
    %v9467 = vsel %vm9438, %v9466, %v9465
    %v9471 = vrot.slane %v9401, 6
    %v9472 = vrot.slane %v9404, 5
    %v9473 = vsel %vm9438, %v9472, %v9471
    %v9474 = vrot.slane %v9402, 6
    %v9475 = vrot.slane %v9405, 5
    %v9476 = vsel %vm9438, %v9475, %v9474
    %v9477 = vrot.slane %v9403, 6
    %v9478 = vrot.slane %v9406, 5
    %v9479 = vsel %vm9438, %v9478, %v9477
    %v9489 = vrot.slane %v9428, 7
    %v9490 = vsel %vm9438, %v9489, %v9425
    %v9491 = vrot.slane %v9429, 7
    %v9492 = vsel %vm9438, %v9491, %v9426
    %v9493 = vrot.slane %v9430, 7
    %v9494 = vsel %vm9438, %v9493, %v9427
    %v9498 = vrot.slane %v9425, 2
    %v9499 = vrot.slane %v9428, 1
    %v9500 = vsel %vm9438, %v9499, %v9498
    %v9501 = vrot.slane %v9426, 2
    %v9502 = vrot.slane %v9429, 1
    %v9503 = vsel %vm9438, %v9502, %v9501
    %v9504 = vrot.slane %v9427, 2
    %v9505 = vrot.slane %v9430, 1
    %v9506 = vsel %vm9438, %v9505, %v9504
    %v9510 = vpack.c.bf16 %v9439, %v9439
    %v9511 = vpack.c.bf16 %v9441, %v9441
    %v9512 = vpack.c.bf16 %v9443, %v9443
    %v9513 = vpack.c.bf16 %v9449, %v9449
    %v9514 = vpack.c.bf16 %v9452, %v9452
    %v9515 = vpack.c.bf16 %v9455, %v9455
    %v9516 = vpack.c.bf16 %v9461, %v9461
    %v9517 = vpack.c.bf16 %v9464, %v9464
    %v9518 = vpack.c.bf16 %v9467, %v9467
    %v9519 = vpack.c.bf16 %v9473, %v9473
    %v9520 = vpack.c.bf16 %v9476, %v9476
    %v9521 = vpack.c.bf16 %v9479, %v9479
    %v9522 = vpack.c.bf16 %v9490, %v9490
    %v9523 = vpack.c.bf16 %v9492, %v9492
    %v9524 = vpack.c.bf16 %v9494, %v9494
    %v9525 = vpack.c.bf16 %v9500, %v9500
    %v9526 = vpack.c.bf16 %v9503, %v9503
    %v9527 = vpack.c.bf16 %v9506, %v9506
    %v9528 = vld [vmem:[#allocation10] sm:$0xff]
    %v9529 = vld [vmem:[#allocation10 + $0x8] sm:$0xff]
    %v9530 = vld [vmem:[#allocation10 + $0x10] sm:$0xff]
    %v9531 = vld [vmem:[#allocation10 + $0x18] sm:$0xff]
    %v9532 = vld [vmem:[#allocation10 + $0x20] sm:$0xff]
    %v9533 = vld [vmem:[#allocation10 + $0x28] sm:$0xff]
    %v9534 = vld [vmem:[#allocation10 + $0x30] sm:$0xff]
    %v9535 = vld [vmem:[#allocation10 + $0x38] sm:$0xff]
    %v9536 = vld [vmem:[#allocation10 + $0x40] sm:$0xff]
    %v9537 = vld [vmem:[#allocation10 + $0x48] sm:$0xff]
    %v9538 = vld [vmem:[#allocation10 + $0x50] sm:$0xff]
    %v9539 = vld [vmem:[#allocation10 + $0x58] sm:$0xff]
    %v9540 = vld [vmem:[#allocation10 + $0x60] sm:$0xff]
    %v9541 = vld [vmem:[#allocation10 + $0x68] sm:$0xff]
    %v9542 = vld [vmem:[#allocation10 + $0x70] sm:$0xff]
    %v9543 = vld [vmem:[#allocation10 + $0x78] sm:$0xff]
    %v9544 = vld [vmem:[#allocation10 + $0x80] sm:$0xff]
    %v9545 = vld [vmem:[#allocation10 + $0x88] sm:$0xff]
    %v9546 = vld [vmem:[#allocation10 + $0x90] sm:$0xff]
    %v9547 = vld [vmem:[#allocation10 + $0x98] sm:$0xff]
    %v9548 = vld [vmem:[#allocation10 + $0xa0] sm:$0xff]
    %v9549 = vld [vmem:[#allocation10 + $0xa8] sm:$0xff]
    %v9550 = vld [vmem:[#allocation10 + $0xb0] sm:$0xff]
    %v9551 = vld [vmem:[#allocation10 + $0xb8] sm:$0xff]
    %v9552 = vld [vmem:[#allocation10 + $0xc0] sm:$0xff]
    %v9553 = vld [vmem:[#allocation10 + $0xc8] sm:$0xff]
    %v9554 = vld [vmem:[#allocation10 + $0xd0] sm:$0xff]
    %v9555 = vld [vmem:[#allocation10 + $0xd8] sm:$0xff]
    %v9556 = vld [vmem:[#allocation10 + $0xe0] sm:$0xff]
    %v9557 = vld [vmem:[#allocation10 + $0xe8] sm:$0xff]
    %v9558 = vld [vmem:[#allocation10 + $0xf0] sm:$0xff]
    %v9559 = vld [vmem:[#allocation10 + $0xf8] sm:$0xff]
    %v9560 = vld [vmem:[#allocation10 + $0x100] sm:$0xff]
    %v9561 = vld [vmem:[#allocation10 + $0x108] sm:$0xff]
    %v9562 = vld [vmem:[#allocation10 + $0x110] sm:$0xff]
    %v9563 = vld [vmem:[#allocation10 + $0x118] sm:$0xff]
    %v9564 = vld [vmem:[#allocation10 + $0x120] sm:$0xff]
    %v9565 = vld [vmem:[#allocation10 + $0x128] sm:$0xff]
    %v9566 = vld [vmem:[#allocation10 + $0x130] sm:$0xff]
    %v9567 = vld [vmem:[#allocation10 + $0x138] sm:$0xff]
    %v9568 = vld [vmem:[#allocation10 + $0x140] sm:$0xff]
    %v9569 = vld [vmem:[#allocation10 + $0x148] sm:$0xff]
    %v9570 = vld [vmem:[#allocation10 + $0x150] sm:$0xff]
    %v9571 = vld [vmem:[#allocation10 + $0x158] sm:$0xff]
    %v9572 = vld [vmem:[#allocation10 + $0x160] sm:$0xff]
    %v9573 = vld [vmem:[#allocation10 + $0x168] sm:$0xff]
    %v9574 = vld [vmem:[#allocation10 + $0x170] sm:$0xff]
    %v9575 = vld [vmem:[#allocation10 + $0x178] sm:$0xff]
    %v9576 = vld [vmem:[#allocation10 + $0x180] sm:$0xff]
    %v9577 = vld [vmem:[#allocation10 + $0x188] sm:$0xff]
    %v9578 = vld [vmem:[#allocation10 + $0x190] sm:$0xff]
    %v9579 = vld [vmem:[#allocation10 + $0x198] sm:$0xff]
    %v9580 = vld [vmem:[#allocation10 + $0x1a0] sm:$0xff]
    %v9581 = vld [vmem:[#allocation10 + $0x1a8] sm:$0xff]
    %v9582 = vld [vmem:[#allocation10 + $0x1b0] sm:$0xff]
    %v9583 = vld [vmem:[#allocation10 + $0x1b8] sm:$0xff]
    %v9584 = vld [vmem:[#allocation10 + $0x1c0] sm:$0xff]
    %v9585 = vld [vmem:[#allocation10 + $0x1c8] sm:$0xff]
    %v9586 = vld [vmem:[#allocation10 + $0x1d0] sm:$0xff]
    %v9587 = vld [vmem:[#allocation10 + $0x1d8] sm:$0xff]
    %v9588 = vld [vmem:[#allocation10 + $0x1e0] sm:$0xff]
    %v9589 = vld [vmem:[#allocation10 + $0x1e8] sm:$0xff]
    %v9590 = vld [vmem:[#allocation10 + $0x1f0] sm:$0xff]
    %v9591 = vld [vmem:[#allocation10 + $0x1f8] sm:$0xff]
    %v9592 = vld [vmem:[#allocation10 + $0x200] sm:$0xff]
    %v9593 = vld [vmem:[#allocation10 + $0x208] sm:$0xff]
    %v9594 = vld [vmem:[#allocation10 + $0x210] sm:$0xff]
    %v9595 = vld [vmem:[#allocation10 + $0x218] sm:$0xff]
    %v9596 = vld [vmem:[#allocation10 + $0x220] sm:$0xff]
    %v9597 = vld [vmem:[#allocation10 + $0x228] sm:$0xff]
    %v9598 = vld [vmem:[#allocation10 + $0x230] sm:$0xff]
    %v9599 = vld [vmem:[#allocation10 + $0x238] sm:$0xff]
    %v9600 = vld [vmem:[#allocation10 + $0x240] sm:$0xff]
    %v9601 = vld [vmem:[#allocation10 + $0x248] sm:$0xff]
    %v9602 = vld [vmem:[#allocation10 + $0x250] sm:$0xff]
    %v9603 = vld [vmem:[#allocation10 + $0x258] sm:$0xff]
    %v9604 = vld [vmem:[#allocation10 + $0x260] sm:$0xff]
    %v9605 = vld [vmem:[#allocation10 + $0x268] sm:$0xff]
    %v9606 = vld [vmem:[#allocation10 + $0x270] sm:$0xff]
    %v9607 = vld [vmem:[#allocation10 + $0x278] sm:$0xff]
    %v9608 = vld [vmem:[#allocation10 + $0x280] sm:$0xff]
    %v9609 = vld [vmem:[#allocation10 + $0x288] sm:$0xff]
    %v9610 = vld [vmem:[#allocation10 + $0x290] sm:$0xff]
    %v9611 = vld [vmem:[#allocation10 + $0x298] sm:$0xff]
    %v9612 = vld [vmem:[#allocation10 + $0x2a0] sm:$0xff]
    %v9613 = vld [vmem:[#allocation10 + $0x2a8] sm:$0xff]
    %v9614 = vld [vmem:[#allocation10 + $0x2b0] sm:$0xff]
    %v9615 = vld [vmem:[#allocation10 + $0x2b8] sm:$0xff]
    %v9616 = vld [vmem:[#allocation10 + $0x2c0] sm:$0xff]
    %v9617 = vld [vmem:[#allocation10 + $0x2c8] sm:$0xff]
    %v9618 = vld [vmem:[#allocation10 + $0x2d0] sm:$0xff]
    %v9619 = vld [vmem:[#allocation10 + $0x2d8] sm:$0xff]
    %v9620 = vld [vmem:[#allocation10 + $0x2e0] sm:$0xff]
    %v9621 = vld [vmem:[#allocation10 + $0x2e8] sm:$0xff]
    %v9622 = vld [vmem:[#allocation10 + $0x2f0] sm:$0xff]
    %v9623 = vld [vmem:[#allocation10 + $0x2f8] sm:$0xff]
    %v9624 = vld [vmem:[#allocation10 + $0x300] sm:$0xff]
    %v9625 = vld [vmem:[#allocation10 + $0x308] sm:$0xff]
    %v9626 = vld [vmem:[#allocation10 + $0x310] sm:$0xff]
    %v9627 = vld [vmem:[#allocation10 + $0x318] sm:$0xff]
    %v9628 = vld [vmem:[#allocation10 + $0x320] sm:$0xff]
    %v9629 = vld [vmem:[#allocation10 + $0x328] sm:$0xff]
    %v9630 = vld [vmem:[#allocation10 + $0x330] sm:$0xff]
    %v9631 = vld [vmem:[#allocation10 + $0x338] sm:$0xff]
    %v9632 = vld [vmem:[#allocation10 + $0x340] sm:$0xff]
    %v9633 = vld [vmem:[#allocation10 + $0x348] sm:$0xff]
    %v9634 = vld [vmem:[#allocation10 + $0x350] sm:$0xff]
    %v9635 = vld [vmem:[#allocation10 + $0x358] sm:$0xff]
    %v9636 = vld [vmem:[#allocation10 + $0x360] sm:$0xff]
    %v9637 = vld [vmem:[#allocation10 + $0x368] sm:$0xff]
    %v9638 = vld [vmem:[#allocation10 + $0x370] sm:$0xff]
    %v9639 = vld [vmem:[#allocation10 + $0x378] sm:$0xff]
    %v9640 = vld [vmem:[#allocation10 + $0x380] sm:$0xff]
    %v9641 = vld [vmem:[#allocation10 + $0x388] sm:$0xff]
    %v9642 = vld [vmem:[#allocation10 + $0x390] sm:$0xff]
    %v9643 = vld [vmem:[#allocation10 + $0x398] sm:$0xff]
    %v9644 = vld [vmem:[#allocation10 + $0x3a0] sm:$0xff]
    %v9645 = vld [vmem:[#allocation10 + $0x3a8] sm:$0xff]
    %v9646 = vld [vmem:[#allocation10 + $0x3b0] sm:$0xff]
    %v9647 = vld [vmem:[#allocation10 + $0x3b8] sm:$0xff]
    %v9648 = vld [vmem:[#allocation10 + $0x3c0] sm:$0xff]
    %v9649 = vld [vmem:[#allocation10 + $0x3c8] sm:$0xff]
    %v9650 = vld [vmem:[#allocation10 + $0x3d0] sm:$0xff]
    %v9651 = vld [vmem:[#allocation10 + $0x3d8] sm:$0xff]
    %v9652 = vld [vmem:[#allocation10 + $0x3e0] sm:$0xff]
    %v9653 = vld [vmem:[#allocation10 + $0x3e8] sm:$0xff]
    %v9654 = vld [vmem:[#allocation10 + $0x3f0] sm:$0xff]
    %v9655 = vld [vmem:[#allocation10 + $0x3f8] sm:$0xff]
    %v9656 = vld [vmem:[#allocation10 + $0x400] sm:$0xff]
    %v9657 = vld [vmem:[#allocation10 + $0x408] sm:$0xff]
    %v9658 = vld [vmem:[#allocation10 + $0x410] sm:$0xff]
    %v9659 = vld [vmem:[#allocation10 + $0x418] sm:$0xff]
    %v9660 = vld [vmem:[#allocation10 + $0x420] sm:$0xff]
    %v9661 = vld [vmem:[#allocation10 + $0x428] sm:$0xff]
    %v9662 = vld [vmem:[#allocation10 + $0x430] sm:$0xff]
    %v9663 = vld [vmem:[#allocation10 + $0x438] sm:$0xff]
    %v9664 = vld [vmem:[#allocation10 + $0x440] sm:$0xff]
    %v9665 = vld [vmem:[#allocation10 + $0x448] sm:$0xff]
    %v9666 = vld [vmem:[#allocation10 + $0x450] sm:$0xff]
    %v9667 = vld [vmem:[#allocation10 + $0x458] sm:$0xff]
    %v9668 = vld [vmem:[#allocation10 + $0x460] sm:$0xff]
    %v9669 = vld [vmem:[#allocation10 + $0x468] sm:$0xff]
    %v9670 = vld [vmem:[#allocation10 + $0x470] sm:$0xff]
    %v9671 = vld [vmem:[#allocation10 + $0x478] sm:$0xff]
    %v9672 = vld [vmem:[#allocation10 + $0x480] sm:$0xff]
    %v9673 = vld [vmem:[#allocation10 + $0x488] sm:$0xff]
    %v9674 = vld [vmem:[#allocation10 + $0x490] sm:$0xff]
    %v9675 = vld [vmem:[#allocation10 + $0x498] sm:$0xff]
    %v9676 = vld [vmem:[#allocation10 + $0x4a0] sm:$0xff]
    %v9677 = vld [vmem:[#allocation10 + $0x4a8] sm:$0xff]
    %v9678 = vld [vmem:[#allocation10 + $0x4b0] sm:$0xff]
    %v9679 = vld [vmem:[#allocation10 + $0x4b8] sm:$0xff]
    %v9680 = vld [vmem:[#allocation10 + $0x4c0] sm:$0xff]
    %v9681 = vld [vmem:[#allocation10 + $0x4c8] sm:$0xff]
    %v9682 = vld [vmem:[#allocation10 + $0x4d0] sm:$0xff]
    %v9683 = vld [vmem:[#allocation10 + $0x4d8] sm:$0xff]
    %v9684 = vld [vmem:[#allocation10 + $0x4e0] sm:$0xff]
    %v9685 = vld [vmem:[#allocation10 + $0x4e8] sm:$0xff]
    %v9686 = vld [vmem:[#allocation10 + $0x4f0] sm:$0xff]
    %v9687 = vld [vmem:[#allocation10 + $0x4f8] sm:$0xff]
    %v9688 = vld [vmem:[#allocation10 + $0x500] sm:$0xff]
    %v9689 = vld [vmem:[#allocation10 + $0x508] sm:$0xff]
    %v9690 = vld [vmem:[#allocation10 + $0x510] sm:$0xff]
    %v9691 = vld [vmem:[#allocation10 + $0x518] sm:$0xff]
    %v9692 = vld [vmem:[#allocation10 + $0x520] sm:$0xff]
    %v9693 = vld [vmem:[#allocation10 + $0x528] sm:$0xff]
    %v9694 = vld [vmem:[#allocation10 + $0x530] sm:$0xff]
    %v9695 = vld [vmem:[#allocation10 + $0x538] sm:$0xff]
    %v9696 = vld [vmem:[#allocation10 + $0x540] sm:$0xff]
    %v9697 = vld [vmem:[#allocation10 + $0x548] sm:$0xff]
    %v9698 = vld [vmem:[#allocation10 + $0x550] sm:$0xff]
    %v9699 = vld [vmem:[#allocation10 + $0x558] sm:$0xff]
    %v9700 = vld [vmem:[#allocation10 + $0x560] sm:$0xff]
    %v9701 = vld [vmem:[#allocation10 + $0x568] sm:$0xff]
    %v9702 = vld [vmem:[#allocation10 + $0x570] sm:$0xff]
    %v9703 = vld [vmem:[#allocation10 + $0x578] sm:$0xff]
    %v9704 = vld [vmem:[#allocation10 + $0x580] sm:$0xff]
    %v9705 = vld [vmem:[#allocation10 + $0x588] sm:$0xff]
    %v9706 = vld [vmem:[#allocation10 + $0x590] sm:$0xff]
    %v9707 = vld [vmem:[#allocation10 + $0x598] sm:$0xff]
    %v9708 = vld [vmem:[#allocation10 + $0x5a0] sm:$0xff]
    %v9709 = vld [vmem:[#allocation10 + $0x5a8] sm:$0xff]
    %v9710 = vld [vmem:[#allocation10 + $0x5b0] sm:$0xff]
    %v9711 = vld [vmem:[#allocation10 + $0x5b8] sm:$0xff]
    %v9712 = vld [vmem:[#allocation10 + $0x5c0] sm:$0xff]
    %v9713 = vld [vmem:[#allocation10 + $0x5c8] sm:$0xff]
    %v9714 = vld [vmem:[#allocation10 + $0x5d0] sm:$0xff]
    %v9715 = vld [vmem:[#allocation10 + $0x5d8] sm:$0xff]
    %v9716 = vld [vmem:[#allocation10 + $0x5e0] sm:$0xff]
    %v9717 = vld [vmem:[#allocation10 + $0x5e8] sm:$0xff]
    %v9718 = vld [vmem:[#allocation10 + $0x5f0] sm:$0xff]
    %v9719 = vld [vmem:[#allocation10 + $0x5f8] sm:$0xff]
    %v9720 = vld [vmem:[#allocation10 + $0x600] sm:$0xff]
    %v9721 = vld [vmem:[#allocation10 + $0x608] sm:$0xff]
    %v9722 = vld [vmem:[#allocation10 + $0x610] sm:$0xff]
    %v9723 = vld [vmem:[#allocation10 + $0x618] sm:$0xff]
    %v9724 = vld [vmem:[#allocation10 + $0x620] sm:$0xff]
    %v9725 = vld [vmem:[#allocation10 + $0x628] sm:$0xff]
    %v9726 = vld [vmem:[#allocation10 + $0x630] sm:$0xff]
    %v9727 = vld [vmem:[#allocation10 + $0x638] sm:$0xff]
    %v9728 = vld [vmem:[#allocation10 + $0x640] sm:$0xff]
    %v9729 = vld [vmem:[#allocation10 + $0x648] sm:$0xff]
    %v9730 = vld [vmem:[#allocation10 + $0x650] sm:$0xff]
    %v9731 = vld [vmem:[#allocation10 + $0x658] sm:$0xff]
    %v9732 = vld [vmem:[#allocation10 + $0x660] sm:$0xff]
    %v9733 = vld [vmem:[#allocation10 + $0x668] sm:$0xff]
    %v9734 = vld [vmem:[#allocation10 + $0x670] sm:$0xff]
    %v9735 = vld [vmem:[#allocation10 + $0x678] sm:$0xff]
    %v9736 = vld [vmem:[#allocation10 + $0x680] sm:$0xff]
    %v9737 = vld [vmem:[#allocation10 + $0x688] sm:$0xff]
    %v9738 = vld [vmem:[#allocation10 + $0x690] sm:$0xff]
    %v9739 = vld [vmem:[#allocation10 + $0x698] sm:$0xff]
    %v9740 = vld [vmem:[#allocation10 + $0x6a0] sm:$0xff]
    %v9741 = vld [vmem:[#allocation10 + $0x6a8] sm:$0xff]
    %v9742 = vld [vmem:[#allocation10 + $0x6b0] sm:$0xff]
    %v9743 = vld [vmem:[#allocation10 + $0x6b8] sm:$0xff]
    %v9744 = vld [vmem:[#allocation10 + $0x6c0] sm:$0xff]
    %v9745 = vld [vmem:[#allocation10 + $0x6c8] sm:$0xff]
    %v9746 = vld [vmem:[#allocation10 + $0x6d0] sm:$0xff]
    %v9747 = vld [vmem:[#allocation10 + $0x6d8] sm:$0xff]
    %v9748 = vld [vmem:[#allocation10 + $0x6e0] sm:$0xff]
    %v9749 = vld [vmem:[#allocation10 + $0x6e8] sm:$0xff]
    %v9750 = vld [vmem:[#allocation10 + $0x6f0] sm:$0xff]
    %v9751 = vld [vmem:[#allocation10 + $0x6f8] sm:$0xff]
    %v9752 = vld [vmem:[#allocation10 + $0x700] sm:$0xff]
    %v9753 = vld [vmem:[#allocation10 + $0x708] sm:$0xff]
    %v9754 = vld [vmem:[#allocation10 + $0x710] sm:$0xff]
    %v9755 = vld [vmem:[#allocation10 + $0x718] sm:$0xff]
    %v9756 = vld [vmem:[#allocation10 + $0x720] sm:$0xff]
    %v9757 = vld [vmem:[#allocation10 + $0x728] sm:$0xff]
    %v9758 = vld [vmem:[#allocation10 + $0x730] sm:$0xff]
    %v9759 = vld [vmem:[#allocation10 + $0x738] sm:$0xff]
    %v9760 = vld [vmem:[#allocation10 + $0x740] sm:$0xff]
    %v9761 = vld [vmem:[#allocation10 + $0x748] sm:$0xff]
    %v9762 = vld [vmem:[#allocation10 + $0x750] sm:$0xff]
    %v9763 = vld [vmem:[#allocation10 + $0x758] sm:$0xff]
    %v9764 = vld [vmem:[#allocation10 + $0x760] sm:$0xff]
    %v9765 = vld [vmem:[#allocation10 + $0x768] sm:$0xff]
    %v9766 = vld [vmem:[#allocation10 + $0x770] sm:$0xff]
    %v9767 = vld [vmem:[#allocation10 + $0x778] sm:$0xff]
    %v9768 = vld [vmem:[#allocation10 + $0x780] sm:$0xff]
    %v9769 = vld [vmem:[#allocation10 + $0x788] sm:$0xff]
    %v9770 = vld [vmem:[#allocation10 + $0x790] sm:$0xff]
    %v9771 = vld [vmem:[#allocation10 + $0x798] sm:$0xff]
    %v9772 = vld [vmem:[#allocation10 + $0x7a0] sm:$0xff]
    %v9773 = vld [vmem:[#allocation10 + $0x7a8] sm:$0xff]
    %v9774 = vld [vmem:[#allocation10 + $0x7b0] sm:$0xff]
    %v9775 = vld [vmem:[#allocation10 + $0x7b8] sm:$0xff]
    %v9776 = vld [vmem:[#allocation10 + $0x7c0] sm:$0xff]
    %v9777 = vld [vmem:[#allocation10 + $0x7c8] sm:$0xff]
    %v9778 = vld [vmem:[#allocation10 + $0x7d0] sm:$0xff]
    %v9779 = vld [vmem:[#allocation10 + $0x7d8] sm:$0xff]
    %v9780 = vld [vmem:[#allocation10 + $0x7e0] sm:$0xff]
    %v9781 = vld [vmem:[#allocation10 + $0x7e8] sm:$0xff]
    %v9782 = vld [vmem:[#allocation10 + $0x7f0] sm:$0xff]
    %v9783 = vld [vmem:[#allocation10 + $0x7f8] sm:$0xff]
    %v9784 = vld [vmem:[#allocation10 + $0x800] sm:$0xff]
    %v9785 = vld [vmem:[#allocation10 + $0x808] sm:$0xff]
    %v9786 = vld [vmem:[#allocation10 + $0x810] sm:$0xff]
    %v9787 = vld [vmem:[#allocation10 + $0x818] sm:$0xff]
    %v9788 = vld [vmem:[#allocation10 + $0x820] sm:$0xff]
    %v9789 = vld [vmem:[#allocation10 + $0x828] sm:$0xff]
    %v9790 = vld [vmem:[#allocation10 + $0x830] sm:$0xff]
    %v9791 = vld [vmem:[#allocation10 + $0x838] sm:$0xff]
    %v9792 = vld [vmem:[#allocation10 + $0x840] sm:$0xff]
    %v9793 = vld [vmem:[#allocation10 + $0x848] sm:$0xff]
    %v9794 = vld [vmem:[#allocation10 + $0x850] sm:$0xff]
    %v9795 = vld [vmem:[#allocation10 + $0x858] sm:$0xff]
    %v9796 = vld [vmem:[#allocation10 + $0x860] sm:$0xff]
    %v9797 = vld [vmem:[#allocation10 + $0x868] sm:$0xff]
    %v9798 = vld [vmem:[#allocation10 + $0x870] sm:$0xff]
    %v9799 = vld [vmem:[#allocation10 + $0x878] sm:$0xff]
    %v9800 = vld [vmem:[#allocation10 + $0x880] sm:$0xff]
    %v9801 = vld [vmem:[#allocation10 + $0x888] sm:$0xff]
    %v9802 = vld [vmem:[#allocation10 + $0x890] sm:$0xff]
    %v9803 = vld [vmem:[#allocation10 + $0x898] sm:$0xff]
    %v9804 = vld [vmem:[#allocation10 + $0x8a0] sm:$0xff]
    %v9805 = vld [vmem:[#allocation10 + $0x8a8] sm:$0xff]
    %v9806 = vld [vmem:[#allocation10 + $0x8b0] sm:$0xff]
    %v9807 = vld [vmem:[#allocation10 + $0x8b8] sm:$0xff]
    %v9808 = vld [vmem:[#allocation10 + $0x8c0] sm:$0xff]
    %v9809 = vld [vmem:[#allocation10 + $0x8c8] sm:$0xff]
    %v9810 = vld [vmem:[#allocation10 + $0x8d0] sm:$0xff]
    %v9811 = vld [vmem:[#allocation10 + $0x8d8] sm:$0xff]
    %v9812 = vld [vmem:[#allocation10 + $0x8e0] sm:$0xff]
    %v9813 = vld [vmem:[#allocation10 + $0x8e8] sm:$0xff]
    %v9814 = vld [vmem:[#allocation10 + $0x8f0] sm:$0xff]
    %v9815 = vld [vmem:[#allocation10 + $0x8f8] sm:$0xff]
    %v9816 = vld [vmem:[#allocation11] sm:$0x3]
    %v9818 = vperm.slane %v9816, 0
    %v9819 = vperm.slane %v9816, 1
    %v10110 = vunpack.c.l.b16 %v9528
    %v10111 = vunpack.c.h.b16 %v9528
    %v10112 = vunpack.c.l.b16 %v9529
    %v10113 = vunpack.c.h.b16 %v9529
    %v10114 = vunpack.c.l.b16 %v9530
    %v10115 = vunpack.c.h.b16 %v9530
    %v10116 = vunpack.c.l.b16 %v9531
    %v10117 = vunpack.c.h.b16 %v9531
    %v10118 = vunpack.c.l.b16 %v9532
    %v10119 = vunpack.c.h.b16 %v9532
    %v10120 = vunpack.c.l.b16 %v9533
    %v10121 = vunpack.c.h.b16 %v9533
    %v10122 = vunpack.c.l.b16 %v9534
    %v10123 = vunpack.c.h.b16 %v9534
    %v10124 = vunpack.c.l.b16 %v9535
    %v10125 = vunpack.c.h.b16 %v9535
    %v10126 = vunpack.c.l.b16 %v9536
    %v10127 = vunpack.c.h.b16 %v9536
    %v10128 = vunpack.c.l.b16 %v9537
    %v10129 = vunpack.c.h.b16 %v9537
    %v10130 = vunpack.c.l.b16 %v9538
    %v10131 = vunpack.c.h.b16 %v9538
    %v10132 = vunpack.c.l.b16 %v9539
    %v10133 = vunpack.c.h.b16 %v9539
    %v10134 = vunpack.c.l.b16 %v9540
    %v10135 = vunpack.c.h.b16 %v9540
    %v10136 = vunpack.c.l.b16 %v9541
    %v10137 = vunpack.c.h.b16 %v9541
    %v10138 = vunpack.c.l.b16 %v9542
    %v10139 = vunpack.c.h.b16 %v9542
    %v10140 = vunpack.c.l.b16 %v9543
    %v10141 = vunpack.c.h.b16 %v9543
    %v10142 = vunpack.c.l.b16 %v9544
    %v10143 = vunpack.c.h.b16 %v9544
    %v10144 = vunpack.c.l.b16 %v9545
    %v10145 = vunpack.c.h.b16 %v9545
    %v10146 = vunpack.c.l.b16 %v9546
    %v10147 = vunpack.c.h.b16 %v9546
    %v10148 = vunpack.c.l.b16 %v9547
    %v10149 = vunpack.c.h.b16 %v9547
    %v10150 = vunpack.c.l.b16 %v9548
    %v10151 = vunpack.c.h.b16 %v9548
    %v10152 = vunpack.c.l.b16 %v9549
    %v10153 = vunpack.c.h.b16 %v9549
    %v10154 = vunpack.c.l.b16 %v9550
    %v10155 = vunpack.c.h.b16 %v9550
    %v10156 = vunpack.c.l.b16 %v9551
    %v10157 = vunpack.c.h.b16 %v9551
    %v10158 = vunpack.c.l.b16 %v9552
    %v10159 = vunpack.c.h.b16 %v9552
    %v10160 = vunpack.c.l.b16 %v9553
    %v10161 = vunpack.c.h.b16 %v9553
    %v10162 = vunpack.c.l.b16 %v9554
    %v10163 = vunpack.c.h.b16 %v9554
    %v10164 = vunpack.c.l.b16 %v9555
    %v10165 = vunpack.c.h.b16 %v9555
    %v10166 = vunpack.c.l.b16 %v9556
    %v10167 = vunpack.c.h.b16 %v9556
    %v10168 = vunpack.c.l.b16 %v9557
    %v10169 = vunpack.c.h.b16 %v9557
    %v10170 = vunpack.c.l.b16 %v9558
    %v10171 = vunpack.c.h.b16 %v9558
    %v10172 = vunpack.c.l.b16 %v9559
    %v10173 = vunpack.c.h.b16 %v9559
    %v10174 = vunpack.c.l.b16 %v9560
    %v10175 = vunpack.c.h.b16 %v9560
    %v10176 = vunpack.c.l.b16 %v9561
    %v10177 = vunpack.c.h.b16 %v9561
    %v10178 = vunpack.c.l.b16 %v9562
    %v10179 = vunpack.c.h.b16 %v9562
    %v10180 = vunpack.c.l.b16 %v9563
    %v10181 = vunpack.c.h.b16 %v9563
    %v10182 = vunpack.c.l.b16 %v9564
    %v10183 = vunpack.c.h.b16 %v9564
    %v10184 = vunpack.c.l.b16 %v9565
    %v10185 = vunpack.c.h.b16 %v9565
    %v10186 = vunpack.c.l.b16 %v9566
    %v10187 = vunpack.c.h.b16 %v9566
    %v10188 = vunpack.c.l.b16 %v9567
    %v10189 = vunpack.c.h.b16 %v9567
    %v10190 = vunpack.c.l.b16 %v9568
    %v10191 = vunpack.c.h.b16 %v9568
    %v10192 = vunpack.c.l.b16 %v9569
    %v10193 = vunpack.c.h.b16 %v9569
    %v10194 = vunpack.c.l.b16 %v9570
    %v10195 = vunpack.c.h.b16 %v9570
    %v10196 = vunpack.c.l.b16 %v9571
    %v10197 = vunpack.c.h.b16 %v9571
    %v10198 = vunpack.c.l.b16 %v9572
    %v10199 = vunpack.c.h.b16 %v9572
    %v10200 = vunpack.c.l.b16 %v9573
    %v10201 = vunpack.c.h.b16 %v9573
    %v10202 = vunpack.c.l.b16 %v9574
    %v10203 = vunpack.c.h.b16 %v9574
    %v10204 = vunpack.c.l.b16 %v9575
    %v10205 = vunpack.c.h.b16 %v9575
    %v10206 = vunpack.c.l.b16 %v9576
    %v10207 = vunpack.c.h.b16 %v9576
    %v10208 = vunpack.c.l.b16 %v9577
    %v10209 = vunpack.c.h.b16 %v9577
    %v10210 = vunpack.c.l.b16 %v9578
    %v10211 = vunpack.c.h.b16 %v9578
    %v10212 = vunpack.c.l.b16 %v9579
    %v10213 = vunpack.c.h.b16 %v9579
    %v10214 = vunpack.c.l.b16 %v9580
    %v10215 = vunpack.c.h.b16 %v9580
    %v10216 = vunpack.c.l.b16 %v9581
    %v10217 = vunpack.c.h.b16 %v9581
    %v10218 = vunpack.c.l.b16 %v9582
    %v10219 = vunpack.c.h.b16 %v9582
    %v10220 = vunpack.c.l.b16 %v9583
    %v10221 = vunpack.c.h.b16 %v9583
    %v10222 = vunpack.c.l.b16 %v9584
    %v10223 = vunpack.c.h.b16 %v9584
    %v10224 = vunpack.c.l.b16 %v9585
    %v10225 = vunpack.c.h.b16 %v9585
    %v10226 = vunpack.c.l.b16 %v9586
    %v10227 = vunpack.c.h.b16 %v9586
    %v10228 = vunpack.c.l.b16 %v9587
    %v10229 = vunpack.c.h.b16 %v9587
    %v10230 = vunpack.c.l.b16 %v9588
    %v10231 = vunpack.c.h.b16 %v9588
    %v10232 = vunpack.c.l.b16 %v9589
    %v10233 = vunpack.c.h.b16 %v9589
    %v10234 = vunpack.c.l.b16 %v9590
    %v10235 = vunpack.c.h.b16 %v9590
    %v10236 = vunpack.c.l.b16 %v9591
    %v10237 = vunpack.c.h.b16 %v9591
    %v10238 = vunpack.c.l.b16 %v9592
    %v10239 = vunpack.c.h.b16 %v9592
    %v10240 = vunpack.c.l.b16 %v9593
    %v10241 = vunpack.c.h.b16 %v9593
    %v10242 = vunpack.c.l.b16 %v9594
    %v10243 = vunpack.c.h.b16 %v9594
    %v10244 = vunpack.c.l.b16 %v9595
    %v10245 = vunpack.c.h.b16 %v9595
    %v10246 = vunpack.c.l.b16 %v9596
    %v10247 = vunpack.c.h.b16 %v9596
    %v10248 = vunpack.c.l.b16 %v9597
    %v10249 = vunpack.c.h.b16 %v9597
    %v10250 = vunpack.c.l.b16 %v9598
    %v10251 = vunpack.c.h.b16 %v9598
    %v10252 = vunpack.c.l.b16 %v9599
    %v10253 = vunpack.c.h.b16 %v9599
    %v10254 = vunpack.c.l.b16 %v9600
    %v10255 = vunpack.c.h.b16 %v9600
    %v10256 = vunpack.c.l.b16 %v9601
    %v10257 = vunpack.c.h.b16 %v9601
    %v10258 = vunpack.c.l.b16 %v9602
    %v10259 = vunpack.c.h.b16 %v9602
    %v10260 = vunpack.c.l.b16 %v9603
    %v10261 = vunpack.c.h.b16 %v9603
    %v10262 = vunpack.c.l.b16 %v9604
    %v10263 = vunpack.c.h.b16 %v9604
    %v10264 = vunpack.c.l.b16 %v9605
    %v10265 = vunpack.c.h.b16 %v9605
    %v10266 = vunpack.c.l.b16 %v9606
    %v10267 = vunpack.c.h.b16 %v9606
    %v10268 = vunpack.c.l.b16 %v9607
    %v10269 = vunpack.c.h.b16 %v9607
    %v10270 = vunpack.c.l.b16 %v9608
    %v10271 = vunpack.c.h.b16 %v9608
    %v10272 = vunpack.c.l.b16 %v9609
    %v10273 = vunpack.c.h.b16 %v9609
    %v10274 = vunpack.c.l.b16 %v9610
    %v10275 = vunpack.c.h.b16 %v9610
    %v10276 = vunpack.c.l.b16 %v9611
    %v10277 = vunpack.c.h.b16 %v9611
    %v10278 = vunpack.c.l.b16 %v9612
    %v10279 = vunpack.c.h.b16 %v9612
    %v10280 = vunpack.c.l.b16 %v9613
    %v10281 = vunpack.c.h.b16 %v9613
    %v10282 = vunpack.c.l.b16 %v9614
    %v10283 = vunpack.c.h.b16 %v9614
    %v10284 = vunpack.c.l.b16 %v9615
    %v10285 = vunpack.c.h.b16 %v9615
    %v10286 = vunpack.c.l.b16 %v9616
    %v10287 = vunpack.c.h.b16 %v9616
    %v10288 = vunpack.c.l.b16 %v9617
    %v10289 = vunpack.c.h.b16 %v9617
    %v10290 = vunpack.c.l.b16 %v9618
    %v10291 = vunpack.c.h.b16 %v9618
    %v10292 = vunpack.c.l.b16 %v9619
    %v10293 = vunpack.c.h.b16 %v9619
    %v10294 = vunpack.c.l.b16 %v9620
    %v10295 = vunpack.c.h.b16 %v9620
    %v10296 = vunpack.c.l.b16 %v9621
    %v10297 = vunpack.c.h.b16 %v9621
    %v10298 = vunpack.c.l.b16 %v9622
    %v10299 = vunpack.c.h.b16 %v9622
    %v10300 = vunpack.c.l.b16 %v9623
    %v10301 = vunpack.c.h.b16 %v9623
    %v10302 = vunpack.c.l.b16 %v9624
    %v10303 = vunpack.c.h.b16 %v9624
    %v10304 = vunpack.c.l.b16 %v9625
    %v10305 = vunpack.c.h.b16 %v9625
    %v10306 = vunpack.c.l.b16 %v9626
    %v10307 = vunpack.c.h.b16 %v9626
    %v10308 = vunpack.c.l.b16 %v9627
    %v10309 = vunpack.c.h.b16 %v9627
    %v10310 = vunpack.c.l.b16 %v9628
    %v10311 = vunpack.c.h.b16 %v9628
    %v10312 = vunpack.c.l.b16 %v9629
    %v10313 = vunpack.c.h.b16 %v9629
    %v10314 = vunpack.c.l.b16 %v9630
    %v10315 = vunpack.c.h.b16 %v9630
    %v10316 = vunpack.c.l.b16 %v9631
    %v10317 = vunpack.c.h.b16 %v9631
    %v10318 = vunpack.c.l.b16 %v9632
    %v10319 = vunpack.c.h.b16 %v9632
    %v10320 = vunpack.c.l.b16 %v9633
    %v10321 = vunpack.c.h.b16 %v9633
    %v10322 = vunpack.c.l.b16 %v9634
    %v10323 = vunpack.c.h.b16 %v9634
    %v10324 = vunpack.c.l.b16 %v9635
    %v10325 = vunpack.c.h.b16 %v9635
    %v10326 = vunpack.c.l.b16 %v9636
    %v10327 = vunpack.c.h.b16 %v9636
    %v10328 = vunpack.c.l.b16 %v9637
    %v10329 = vunpack.c.h.b16 %v9637
    %v10330 = vunpack.c.l.b16 %v9638
    %v10331 = vunpack.c.h.b16 %v9638
    %v10332 = vunpack.c.l.b16 %v9639
    %v10333 = vunpack.c.h.b16 %v9639
    %v10334 = vunpack.c.l.b16 %v9640
    %v10335 = vunpack.c.h.b16 %v9640
    %v10336 = vunpack.c.l.b16 %v9641
    %v10337 = vunpack.c.h.b16 %v9641
    %v10338 = vunpack.c.l.b16 %v9642
    %v10339 = vunpack.c.h.b16 %v9642
    %v10340 = vunpack.c.l.b16 %v9643
    %v10341 = vunpack.c.h.b16 %v9643
    %v10342 = vunpack.c.l.b16 %v9644
    %v10343 = vunpack.c.h.b16 %v9644
    %v10344 = vunpack.c.l.b16 %v9645
    %v10345 = vunpack.c.h.b16 %v9645
    %v10346 = vunpack.c.l.b16 %v9646
    %v10347 = vunpack.c.h.b16 %v9646
    %v10348 = vunpack.c.l.b16 %v9647
    %v10349 = vunpack.c.h.b16 %v9647
    %v10350 = vunpack.c.l.b16 %v9648
    %v10351 = vunpack.c.h.b16 %v9648
    %v10352 = vunpack.c.l.b16 %v9649
    %v10353 = vunpack.c.h.b16 %v9649
    %v10354 = vunpack.c.l.b16 %v9650
    %v10355 = vunpack.c.h.b16 %v9650
    %v10356 = vunpack.c.l.b16 %v9651
    %v10357 = vunpack.c.h.b16 %v9651
    %v10358 = vunpack.c.l.b16 %v9652
    %v10359 = vunpack.c.h.b16 %v9652
    %v10360 = vunpack.c.l.b16 %v9653
    %v10361 = vunpack.c.h.b16 %v9653
    %v10362 = vunpack.c.l.b16 %v9654
    %v10363 = vunpack.c.h.b16 %v9654
    %v10364 = vunpack.c.l.b16 %v9655
    %v10365 = vunpack.c.h.b16 %v9655
    %v10366 = vunpack.c.l.b16 %v9656
    %v10367 = vunpack.c.h.b16 %v9656
    %v10368 = vunpack.c.l.b16 %v9657
    %v10369 = vunpack.c.h.b16 %v9657
    %v10370 = vunpack.c.l.b16 %v9658
    %v10371 = vunpack.c.h.b16 %v9658
    %v10372 = vunpack.c.l.b16 %v9659
    %v10373 = vunpack.c.h.b16 %v9659
    %v10374 = vunpack.c.l.b16 %v9660
    %v10375 = vunpack.c.h.b16 %v9660
    %v10376 = vunpack.c.l.b16 %v9661
    %v10377 = vunpack.c.h.b16 %v9661
    %v10378 = vunpack.c.l.b16 %v9662
    %v10379 = vunpack.c.h.b16 %v9662
    %v10380 = vunpack.c.l.b16 %v9663
    %v10381 = vunpack.c.h.b16 %v9663
    %v10382 = vunpack.c.l.b16 %v9664
    %v10383 = vunpack.c.h.b16 %v9664
    %v10384 = vunpack.c.l.b16 %v9665
    %v10385 = vunpack.c.h.b16 %v9665
    %v10386 = vunpack.c.l.b16 %v9666
    %v10387 = vunpack.c.h.b16 %v9666
    %v10388 = vunpack.c.l.b16 %v9667
    %v10389 = vunpack.c.h.b16 %v9667
    %v10390 = vunpack.c.l.b16 %v9668
    %v10391 = vunpack.c.h.b16 %v9668
    %v10392 = vunpack.c.l.b16 %v9669
    %v10393 = vunpack.c.h.b16 %v9669
    %v10394 = vunpack.c.l.b16 %v9670
    %v10395 = vunpack.c.h.b16 %v9670
    %v10396 = vunpack.c.l.b16 %v9671
    %v10397 = vunpack.c.h.b16 %v9671
    %v10398 = vunpack.c.l.b16 %v9672
    %v10399 = vunpack.c.h.b16 %v9672
    %v10400 = vunpack.c.l.b16 %v9673
    %v10401 = vunpack.c.h.b16 %v9673
    %v10402 = vunpack.c.l.b16 %v9674
    %v10403 = vunpack.c.h.b16 %v9674
    %v10404 = vunpack.c.l.b16 %v9675
    %v10405 = vunpack.c.h.b16 %v9675
    %v10406 = vunpack.c.l.b16 %v9676
    %v10407 = vunpack.c.h.b16 %v9676
    %v10408 = vunpack.c.l.b16 %v9677
    %v10409 = vunpack.c.h.b16 %v9677
    %v10410 = vunpack.c.l.b16 %v9678
    %v10411 = vunpack.c.h.b16 %v9678
    %v10412 = vunpack.c.l.b16 %v9679
    %v10413 = vunpack.c.h.b16 %v9679
    %v10414 = vunpack.c.l.b16 %v9680
    %v10415 = vunpack.c.h.b16 %v9680
    %v10416 = vunpack.c.l.b16 %v9681
    %v10417 = vunpack.c.h.b16 %v9681
    %v10418 = vunpack.c.l.b16 %v9682
    %v10419 = vunpack.c.h.b16 %v9682
    %v10420 = vunpack.c.l.b16 %v9683
    %v10421 = vunpack.c.h.b16 %v9683
    %v10422 = vunpack.c.l.b16 %v9684
    %v10423 = vunpack.c.h.b16 %v9684
    %v10424 = vunpack.c.l.b16 %v9685
    %v10425 = vunpack.c.h.b16 %v9685
    %v10426 = vunpack.c.l.b16 %v9686
    %v10427 = vunpack.c.h.b16 %v9686
    %v10428 = vunpack.c.l.b16 %v9687
    %v10429 = vunpack.c.h.b16 %v9687
    %v10430 = vunpack.c.l.b16 %v9688
    %v10431 = vunpack.c.h.b16 %v9688
    %v10432 = vunpack.c.l.b16 %v9689
    %v10433 = vunpack.c.h.b16 %v9689
    %v10434 = vunpack.c.l.b16 %v9690
    %v10435 = vunpack.c.h.b16 %v9690
    %v10436 = vunpack.c.l.b16 %v9691
    %v10437 = vunpack.c.h.b16 %v9691
    %v10438 = vunpack.c.l.b16 %v9692
    %v10439 = vunpack.c.h.b16 %v9692
    %v10440 = vunpack.c.l.b16 %v9693
    %v10441 = vunpack.c.h.b16 %v9693
    %v10442 = vunpack.c.l.b16 %v9694
    %v10443 = vunpack.c.h.b16 %v9694
    %v10444 = vunpack.c.l.b16 %v9695
    %v10445 = vunpack.c.h.b16 %v9695
    %v10446 = vunpack.c.l.b16 %v9696
    %v10447 = vunpack.c.h.b16 %v9696
    %v10448 = vunpack.c.l.b16 %v9697
    %v10449 = vunpack.c.h.b16 %v9697
    %v10450 = vunpack.c.l.b16 %v9698
    %v10451 = vunpack.c.h.b16 %v9698
    %v10452 = vunpack.c.l.b16 %v9699
    %v10453 = vunpack.c.h.b16 %v9699
    %v10454 = vunpack.c.l.b16 %v9700
    %v10455 = vunpack.c.h.b16 %v9700
    %v10456 = vunpack.c.l.b16 %v9701
    %v10457 = vunpack.c.h.b16 %v9701
    %v10458 = vunpack.c.l.b16 %v9702
    %v10459 = vunpack.c.h.b16 %v9702
    %v10460 = vunpack.c.l.b16 %v9703
    %v10461 = vunpack.c.h.b16 %v9703
    %v10462 = vunpack.c.l.b16 %v9704
    %v10463 = vunpack.c.h.b16 %v9704
    %v10464 = vunpack.c.l.b16 %v9705
    %v10465 = vunpack.c.h.b16 %v9705
    %v10466 = vunpack.c.l.b16 %v9706
    %v10467 = vunpack.c.h.b16 %v9706
    %v10468 = vunpack.c.l.b16 %v9707
    %v10469 = vunpack.c.h.b16 %v9707
    %v10470 = vunpack.c.l.b16 %v9708
    %v10471 = vunpack.c.h.b16 %v9708
    %v10472 = vunpack.c.l.b16 %v9709
    %v10473 = vunpack.c.h.b16 %v9709
    %v10474 = vunpack.c.l.b16 %v9710
    %v10475 = vunpack.c.h.b16 %v9710
    %v10476 = vunpack.c.l.b16 %v9711
    %v10477 = vunpack.c.h.b16 %v9711
    %v10478 = vunpack.c.l.b16 %v9712
    %v10479 = vunpack.c.h.b16 %v9712
    %v10480 = vunpack.c.l.b16 %v9713
    %v10481 = vunpack.c.h.b16 %v9713
    %v10482 = vunpack.c.l.b16 %v9714
    %v10483 = vunpack.c.h.b16 %v9714
    %v10484 = vunpack.c.l.b16 %v9715
    %v10485 = vunpack.c.h.b16 %v9715
    %v10486 = vunpack.c.l.b16 %v9716
    %v10487 = vunpack.c.h.b16 %v9716
    %v10488 = vunpack.c.l.b16 %v9717
    %v10489 = vunpack.c.h.b16 %v9717
    %v10490 = vunpack.c.l.b16 %v9718
    %v10491 = vunpack.c.h.b16 %v9718
    %v10492 = vunpack.c.l.b16 %v9719
    %v10493 = vunpack.c.h.b16 %v9719
    %v10494 = vunpack.c.l.b16 %v9720
    %v10495 = vunpack.c.h.b16 %v9720
    %v10496 = vunpack.c.l.b16 %v9721
    %v10497 = vunpack.c.h.b16 %v9721
    %v10498 = vunpack.c.l.b16 %v9722
    %v10499 = vunpack.c.h.b16 %v9722
    %v10500 = vunpack.c.l.b16 %v9723
    %v10501 = vunpack.c.h.b16 %v9723
    %v10502 = vunpack.c.l.b16 %v9724
    %v10503 = vunpack.c.h.b16 %v9724
    %v10504 = vunpack.c.l.b16 %v9725
    %v10505 = vunpack.c.h.b16 %v9725
    %v10506 = vunpack.c.l.b16 %v9726
    %v10507 = vunpack.c.h.b16 %v9726
    %v10508 = vunpack.c.l.b16 %v9727
    %v10509 = vunpack.c.h.b16 %v9727
    %v10510 = vunpack.c.l.b16 %v9728
    %v10511 = vunpack.c.h.b16 %v9728
    %v10512 = vunpack.c.l.b16 %v9729
    %v10513 = vunpack.c.h.b16 %v9729
    %v10514 = vunpack.c.l.b16 %v9730
    %v10515 = vunpack.c.h.b16 %v9730
    %v10516 = vunpack.c.l.b16 %v9731
    %v10517 = vunpack.c.h.b16 %v9731
    %v10518 = vunpack.c.l.b16 %v9732
    %v10519 = vunpack.c.h.b16 %v9732
    %v10520 = vunpack.c.l.b16 %v9733
    %v10521 = vunpack.c.h.b16 %v9733
    %v10522 = vunpack.c.l.b16 %v9734
    %v10523 = vunpack.c.h.b16 %v9734
    %v10524 = vunpack.c.l.b16 %v9735
    %v10525 = vunpack.c.h.b16 %v9735
    %v10526 = vunpack.c.l.b16 %v9736
    %v10527 = vunpack.c.h.b16 %v9736
    %v10528 = vunpack.c.l.b16 %v9737
    %v10529 = vunpack.c.h.b16 %v9737
    %v10530 = vunpack.c.l.b16 %v9738
    %v10531 = vunpack.c.h.b16 %v9738
    %v10532 = vunpack.c.l.b16 %v9739
    %v10533 = vunpack.c.h.b16 %v9739
    %v10534 = vunpack.c.l.b16 %v9740
    %v10535 = vunpack.c.h.b16 %v9740
    %v10536 = vunpack.c.l.b16 %v9741
    %v10537 = vunpack.c.h.b16 %v9741
    %v10538 = vunpack.c.l.b16 %v9742
    %v10539 = vunpack.c.h.b16 %v9742
    %v10540 = vunpack.c.l.b16 %v9743
    %v10541 = vunpack.c.h.b16 %v9743
    %v10542 = vunpack.c.l.b16 %v9744
    %v10543 = vunpack.c.h.b16 %v9744
    %v10544 = vunpack.c.l.b16 %v9745
    %v10545 = vunpack.c.h.b16 %v9745
    %v10546 = vunpack.c.l.b16 %v9746
    %v10547 = vunpack.c.h.b16 %v9746
    %v10548 = vunpack.c.l.b16 %v9747
    %v10549 = vunpack.c.h.b16 %v9747
    %v10550 = vunpack.c.l.b16 %v9748
    %v10551 = vunpack.c.h.b16 %v9748
    %v10552 = vunpack.c.l.b16 %v9749
    %v10553 = vunpack.c.h.b16 %v9749
    %v10554 = vunpack.c.l.b16 %v9750
    %v10555 = vunpack.c.h.b16 %v9750
    %v10556 = vunpack.c.l.b16 %v9751
    %v10557 = vunpack.c.h.b16 %v9751
    %v10558 = vunpack.c.l.b16 %v9752
    %v10559 = vunpack.c.h.b16 %v9752
    %v10560 = vunpack.c.l.b16 %v9753
    %v10561 = vunpack.c.h.b16 %v9753
    %v10562 = vunpack.c.l.b16 %v9754
    %v10563 = vunpack.c.h.b16 %v9754
    %v10564 = vunpack.c.l.b16 %v9755
    %v10565 = vunpack.c.h.b16 %v9755
    %v10566 = vunpack.c.l.b16 %v9756
    %v10567 = vunpack.c.h.b16 %v9756
    %v10568 = vunpack.c.l.b16 %v9757
    %v10569 = vunpack.c.h.b16 %v9757
    %v10570 = vunpack.c.l.b16 %v9758
    %v10571 = vunpack.c.h.b16 %v9758
    %v10572 = vunpack.c.l.b16 %v9759
    %v10573 = vunpack.c.h.b16 %v9759
    %v10574 = vunpack.c.l.b16 %v9760
    %v10575 = vunpack.c.h.b16 %v9760
    %v10576 = vunpack.c.l.b16 %v9761
    %v10577 = vunpack.c.h.b16 %v9761
    %v10578 = vunpack.c.l.b16 %v9762
    %v10579 = vunpack.c.h.b16 %v9762
    %v10580 = vunpack.c.l.b16 %v9763
    %v10581 = vunpack.c.h.b16 %v9763
    %v10582 = vunpack.c.l.b16 %v9764
    %v10583 = vunpack.c.h.b16 %v9764
    %v10584 = vunpack.c.l.b16 %v9765
    %v10585 = vunpack.c.h.b16 %v9765
    %v10586 = vunpack.c.l.b16 %v9766
    %v10587 = vunpack.c.h.b16 %v9766
    %v10588 = vunpack.c.l.b16 %v9767
    %v10589 = vunpack.c.h.b16 %v9767
    %v10590 = vunpack.c.l.b16 %v9768
    %v10591 = vunpack.c.h.b16 %v9768
    %v10592 = vunpack.c.l.b16 %v9769
    %v10593 = vunpack.c.h.b16 %v9769
    %v10594 = vunpack.c.l.b16 %v9770
    %v10595 = vunpack.c.h.b16 %v9770
    %v10596 = vunpack.c.l.b16 %v9771
    %v10597 = vunpack.c.h.b16 %v9771
    %v10598 = vunpack.c.l.b16 %v9772
    %v10599 = vunpack.c.h.b16 %v9772
    %v10600 = vunpack.c.l.b16 %v9773
    %v10601 = vunpack.c.h.b16 %v9773
    %v10602 = vunpack.c.l.b16 %v9774
    %v10603 = vunpack.c.h.b16 %v9774
    %v10604 = vunpack.c.l.b16 %v9775
    %v10605 = vunpack.c.h.b16 %v9775
    %v10606 = vunpack.c.l.b16 %v9776
    %v10607 = vunpack.c.h.b16 %v9776
    %v10608 = vunpack.c.l.b16 %v9777
    %v10609 = vunpack.c.h.b16 %v9777
    %v10610 = vunpack.c.l.b16 %v9778
    %v10611 = vunpack.c.h.b16 %v9778
    %v10612 = vunpack.c.l.b16 %v9779
    %v10613 = vunpack.c.h.b16 %v9779
    %v10614 = vunpack.c.l.b16 %v9780
    %v10615 = vunpack.c.h.b16 %v9780
    %v10616 = vunpack.c.l.b16 %v9781
    %v10617 = vunpack.c.h.b16 %v9781
    %v10618 = vunpack.c.l.b16 %v9782
    %v10619 = vunpack.c.h.b16 %v9782
    %v10620 = vunpack.c.l.b16 %v9783
    %v10621 = vunpack.c.h.b16 %v9783
    %v10622 = vunpack.c.l.b16 %v9784
    %v10623 = vunpack.c.h.b16 %v9784
    %v10624 = vunpack.c.l.b16 %v9785
    %v10625 = vunpack.c.h.b16 %v9785
    %v10626 = vunpack.c.l.b16 %v9786
    %v10627 = vunpack.c.h.b16 %v9786
    %v10628 = vunpack.c.l.b16 %v9787
    %v10629 = vunpack.c.h.b16 %v9787
    %v10630 = vunpack.c.l.b16 %v9788
    %v10631 = vunpack.c.h.b16 %v9788
    %v10632 = vunpack.c.l.b16 %v9789
    %v10633 = vunpack.c.h.b16 %v9789
    %v10634 = vunpack.c.l.b16 %v9790
    %v10635 = vunpack.c.h.b16 %v9790
    %v10636 = vunpack.c.l.b16 %v9791
    %v10637 = vunpack.c.h.b16 %v9791
    %v10638 = vunpack.c.l.b16 %v9792
    %v10639 = vunpack.c.h.b16 %v9792
    %v10640 = vunpack.c.l.b16 %v9793
    %v10641 = vunpack.c.h.b16 %v9793
    %v10642 = vunpack.c.l.b16 %v9794
    %v10643 = vunpack.c.h.b16 %v9794
    %v10644 = vunpack.c.l.b16 %v9795
    %v10645 = vunpack.c.h.b16 %v9795
    %v10646 = vunpack.c.l.b16 %v9796
    %v10647 = vunpack.c.h.b16 %v9796
    %v10648 = vunpack.c.l.b16 %v9797
    %v10649 = vunpack.c.h.b16 %v9797
    %v10650 = vunpack.c.l.b16 %v9798
    %v10651 = vunpack.c.h.b16 %v9798
    %v10652 = vunpack.c.l.b16 %v9799
    %v10653 = vunpack.c.h.b16 %v9799
    %v10654 = vunpack.c.l.b16 %v9800
    %v10655 = vunpack.c.h.b16 %v9800
    %v10656 = vunpack.c.l.b16 %v9801
    %v10657 = vunpack.c.h.b16 %v9801
    %v10658 = vunpack.c.l.b16 %v9802
    %v10659 = vunpack.c.h.b16 %v9802
    %v10660 = vunpack.c.l.b16 %v9803
    %v10661 = vunpack.c.h.b16 %v9803
    %v10662 = vunpack.c.l.b16 %v9804
    %v10663 = vunpack.c.h.b16 %v9804
    %v10664 = vunpack.c.l.b16 %v9805
    %v10665 = vunpack.c.h.b16 %v9805
    %v10666 = vunpack.c.l.b16 %v9806
    %v10667 = vunpack.c.h.b16 %v9806
    %v10668 = vunpack.c.l.b16 %v9807
    %v10669 = vunpack.c.h.b16 %v9807
    %v10670 = vunpack.c.l.b16 %v9808
    %v10671 = vunpack.c.h.b16 %v9808
    %v10672 = vunpack.c.l.b16 %v9809
    %v10673 = vunpack.c.h.b16 %v9809
    %v10674 = vunpack.c.l.b16 %v9810
    %v10675 = vunpack.c.h.b16 %v9810
    %v10676 = vunpack.c.l.b16 %v9811
    %v10677 = vunpack.c.h.b16 %v9811
    %v10678 = vunpack.c.l.b16 %v9812
    %v10679 = vunpack.c.h.b16 %v9812
    %v10680 = vunpack.c.l.b16 %v9813
    %v10681 = vunpack.c.h.b16 %v9813
    %v10682 = vunpack.c.l.b16 %v9814
    %v10683 = vunpack.c.h.b16 %v9814
    %v10684 = vunpack.c.l.b16 %v9815
    %v10685 = vunpack.c.h.b16 %v9815
    %v10686 = vpack.c.b16 %v10112, %v10110
    %v10687 = vpack.c.b16 %v10113, %v10111
    %v10688 = vpack.c.b16 %v10116, %v10114
    %v10689 = vpack.c.b16 %v10117, %v10115
    %v10690 = vpack.c.b16 %v10120, %v10118
    %v10691 = vpack.c.b16 %v10121, %v10119
    %v10692 = vpack.c.b16 %v10124, %v10122
    %v10693 = vpack.c.b16 %v10125, %v10123
    %v10694 = vpack.c.b16 %v10128, %v10126
    %v10695 = vpack.c.b16 %v10129, %v10127
    %v10696 = vpack.c.b16 %v10132, %v10130
    %v10697 = vpack.c.b16 %v10133, %v10131
    %v10698 = vpack.c.b16 %v10136, %v10134
    %v10699 = vpack.c.b16 %v10137, %v10135
    %v10700 = vpack.c.b16 %v10140, %v10138
    %v10701 = vpack.c.b16 %v10141, %v10139
    %v10702 = vpack.c.b16 %v10144, %v10142
    %v10703 = vpack.c.b16 %v10145, %v10143
    %v10704 = vpack.c.b16 %v10148, %v10146
    %v10705 = vpack.c.b16 %v10149, %v10147
    %v10706 = vpack.c.b16 %v10152, %v10150
    %v10707 = vpack.c.b16 %v10153, %v10151
    %v10708 = vpack.c.b16 %v10156, %v10154
    %v10709 = vpack.c.b16 %v10157, %v10155
    %v10710 = vpack.c.b16 %v10160, %v10158
    %v10711 = vpack.c.b16 %v10161, %v10159
    %v10712 = vpack.c.b16 %v10164, %v10162
    %v10713 = vpack.c.b16 %v10165, %v10163
    %v10714 = vpack.c.b16 %v10168, %v10166
    %v10715 = vpack.c.b16 %v10169, %v10167
    %v10716 = vpack.c.b16 %v10172, %v10170
    %v10717 = vpack.c.b16 %v10173, %v10171
    %v10718 = vpack.c.b16 %v10176, %v10174
    %v10719 = vpack.c.b16 %v10177, %v10175
    %v10720 = vpack.c.b16 %v10180, %v10178
    %v10721 = vpack.c.b16 %v10181, %v10179
    %v10722 = vpack.c.b16 %v10184, %v10182
    %v10723 = vpack.c.b16 %v10185, %v10183
    %v10724 = vpack.c.b16 %v10188, %v10186
    %v10725 = vpack.c.b16 %v10189, %v10187
    %v10726 = vpack.c.b16 %v10192, %v10190
    %v10727 = vpack.c.b16 %v10193, %v10191
    %v10728 = vpack.c.b16 %v10196, %v10194
    %v10729 = vpack.c.b16 %v10197, %v10195
    %v10730 = vpack.c.b16 %v10200, %v10198
    %v10731 = vpack.c.b16 %v10201, %v10199
    %v10732 = vpack.c.b16 %v10204, %v10202
    %v10733 = vpack.c.b16 %v10205, %v10203
    %v10734 = vpack.c.b16 %v10208, %v10206
    %v10735 = vpack.c.b16 %v10209, %v10207
    %v10736 = vpack.c.b16 %v10212, %v10210
    %v10737 = vpack.c.b16 %v10213, %v10211
    %v10738 = vpack.c.b16 %v10216, %v10214
    %v10739 = vpack.c.b16 %v10217, %v10215
    %v10740 = vpack.c.b16 %v10220, %v10218
    %v10741 = vpack.c.b16 %v10221, %v10219
    %v10742 = vpack.c.b16 %v10224, %v10222
    %v10743 = vpack.c.b16 %v10225, %v10223
    %v10744 = vpack.c.b16 %v10228, %v10226
    %v10745 = vpack.c.b16 %v10229, %v10227
    %v10746 = vpack.c.b16 %v10232, %v10230
    %v10747 = vpack.c.b16 %v10233, %v10231
    %v10748 = vpack.c.b16 %v10236, %v10234
    %v10749 = vpack.c.b16 %v10237, %v10235
    %v10750 = vpack.c.b16 %v10240, %v10238
    %v10751 = vpack.c.b16 %v10241, %v10239
    %v10752 = vpack.c.b16 %v10244, %v10242
    %v10753 = vpack.c.b16 %v10245, %v10243
    %v10754 = vpack.c.b16 %v10248, %v10246
    %v10755 = vpack.c.b16 %v10249, %v10247
    %v10756 = vpack.c.b16 %v10252, %v10250
    %v10757 = vpack.c.b16 %v10253, %v10251
    %v10758 = vpack.c.b16 %v10256, %v10254
    %v10759 = vpack.c.b16 %v10257, %v10255
    %v10760 = vpack.c.b16 %v10260, %v10258
    %v10761 = vpack.c.b16 %v10261, %v10259
    %v10762 = vpack.c.b16 %v10264, %v10262
    %v10763 = vpack.c.b16 %v10265, %v10263
    %v10764 = vpack.c.b16 %v10268, %v10266
    %v10765 = vpack.c.b16 %v10269, %v10267
    %v10766 = vpack.c.b16 %v10272, %v10270
    %v10767 = vpack.c.b16 %v10273, %v10271
    %v10768 = vpack.c.b16 %v10276, %v10274
    %v10769 = vpack.c.b16 %v10277, %v10275
    %v10770 = vpack.c.b16 %v10280, %v10278
    %v10771 = vpack.c.b16 %v10281, %v10279
    %v10772 = vpack.c.b16 %v10284, %v10282
    %v10773 = vpack.c.b16 %v10285, %v10283
    %v10774 = vpack.c.b16 %v10288, %v10286
    %v10775 = vpack.c.b16 %v10289, %v10287
    %v10776 = vpack.c.b16 %v10292, %v10290
    %v10777 = vpack.c.b16 %v10293, %v10291
    %v10778 = vpack.c.b16 %v10296, %v10294
    %v10779 = vpack.c.b16 %v10297, %v10295
    %v10780 = vpack.c.b16 %v10300, %v10298
    %v10781 = vpack.c.b16 %v10301, %v10299
    %v10782 = vpack.c.b16 %v10304, %v10302
    %v10783 = vpack.c.b16 %v10305, %v10303
    %v10784 = vpack.c.b16 %v10308, %v10306
    %v10785 = vpack.c.b16 %v10309, %v10307
    %v10786 = vpack.c.b16 %v10312, %v10310
    %v10787 = vpack.c.b16 %v10313, %v10311
    %v10788 = vpack.c.b16 %v10316, %v10314
    %v10789 = vpack.c.b16 %v10317, %v10315
    %v10790 = vpack.c.b16 %v10320, %v10318
    %v10791 = vpack.c.b16 %v10321, %v10319
    %v10792 = vpack.c.b16 %v10324, %v10322
    %v10793 = vpack.c.b16 %v10325, %v10323
    %v10794 = vpack.c.b16 %v10328, %v10326
    %v10795 = vpack.c.b16 %v10329, %v10327
    %v10796 = vpack.c.b16 %v10332, %v10330
    %v10797 = vpack.c.b16 %v10333, %v10331
    %v10798 = vpack.c.b16 %v10336, %v10334
    %v10799 = vpack.c.b16 %v10337, %v10335
    %v10800 = vpack.c.b16 %v10340, %v10338
    %v10801 = vpack.c.b16 %v10341, %v10339
    %v10802 = vpack.c.b16 %v10344, %v10342
    %v10803 = vpack.c.b16 %v10345, %v10343
    %v10804 = vpack.c.b16 %v10348, %v10346
    %v10805 = vpack.c.b16 %v10349, %v10347
    %v10806 = vpack.c.b16 %v10352, %v10350
    %v10807 = vpack.c.b16 %v10353, %v10351
    %v10808 = vpack.c.b16 %v10356, %v10354
    %v10809 = vpack.c.b16 %v10357, %v10355
    %v10810 = vpack.c.b16 %v10360, %v10358
    %v10811 = vpack.c.b16 %v10361, %v10359
    %v10812 = vpack.c.b16 %v10364, %v10362
    %v10813 = vpack.c.b16 %v10365, %v10363
    %v10814 = vpack.c.b16 %v10368, %v10366
    %v10815 = vpack.c.b16 %v10369, %v10367
    %v10816 = vpack.c.b16 %v10372, %v10370
    %v10817 = vpack.c.b16 %v10373, %v10371
    %v10818 = vpack.c.b16 %v10376, %v10374
    %v10819 = vpack.c.b16 %v10377, %v10375
    %v10820 = vpack.c.b16 %v10380, %v10378
    %v10821 = vpack.c.b16 %v10381, %v10379
    %v10822 = vpack.c.b16 %v10384, %v10382
    %v10823 = vpack.c.b16 %v10385, %v10383
    %v10824 = vpack.c.b16 %v10388, %v10386
    %v10825 = vpack.c.b16 %v10389, %v10387
    %v10826 = vpack.c.b16 %v10392, %v10390
    %v10827 = vpack.c.b16 %v10393, %v10391
    %v10828 = vpack.c.b16 %v10396, %v10394
    %v10829 = vpack.c.b16 %v10397, %v10395
    %v10830 = vpack.c.b16 %v10400, %v10398
    %v10831 = vpack.c.b16 %v10401, %v10399
    %v10832 = vpack.c.b16 %v10404, %v10402
    %v10833 = vpack.c.b16 %v10405, %v10403
    %v10834 = vpack.c.b16 %v10408, %v10406
    %v10835 = vpack.c.b16 %v10409, %v10407
    %v10836 = vpack.c.b16 %v10412, %v10410
    %v10837 = vpack.c.b16 %v10413, %v10411
    %v10838 = vpack.c.b16 %v10416, %v10414
    %v10839 = vpack.c.b16 %v10417, %v10415
    %v10840 = vpack.c.b16 %v10420, %v10418
    %v10841 = vpack.c.b16 %v10421, %v10419
    %v10842 = vpack.c.b16 %v10424, %v10422
    %v10843 = vpack.c.b16 %v10425, %v10423
    %v10844 = vpack.c.b16 %v10428, %v10426
    %v10845 = vpack.c.b16 %v10429, %v10427
    %v10846 = vpack.c.b16 %v10432, %v10430
    %v10847 = vpack.c.b16 %v10433, %v10431
    %v10848 = vpack.c.b16 %v10436, %v10434
    %v10849 = vpack.c.b16 %v10437, %v10435
    %v10850 = vpack.c.b16 %v10440, %v10438
    %v10851 = vpack.c.b16 %v10441, %v10439
    %v10852 = vpack.c.b16 %v10444, %v10442
    %v10853 = vpack.c.b16 %v10445, %v10443
    %v10854 = vpack.c.b16 %v10448, %v10446
    %v10855 = vpack.c.b16 %v10449, %v10447
    %v10856 = vpack.c.b16 %v10452, %v10450
    %v10857 = vpack.c.b16 %v10453, %v10451
    %v10858 = vpack.c.b16 %v10456, %v10454
    %v10859 = vpack.c.b16 %v10457, %v10455
    %v10860 = vpack.c.b16 %v10460, %v10458
    %v10861 = vpack.c.b16 %v10461, %v10459
    %v10862 = vpack.c.b16 %v10464, %v10462
    %v10863 = vpack.c.b16 %v10465, %v10463
    %v10864 = vpack.c.b16 %v10468, %v10466
    %v10865 = vpack.c.b16 %v10469, %v10467
    %v10866 = vpack.c.b16 %v10472, %v10470
    %v10867 = vpack.c.b16 %v10473, %v10471
    %v10868 = vpack.c.b16 %v10476, %v10474
    %v10869 = vpack.c.b16 %v10477, %v10475
    %v10870 = vpack.c.b16 %v10480, %v10478
    %v10871 = vpack.c.b16 %v10481, %v10479
    %v10872 = vpack.c.b16 %v10484, %v10482
    %v10873 = vpack.c.b16 %v10485, %v10483
    %v10874 = vpack.c.b16 %v10488, %v10486
    %v10875 = vpack.c.b16 %v10489, %v10487
    %v10876 = vpack.c.b16 %v10492, %v10490
    %v10877 = vpack.c.b16 %v10493, %v10491
    %v10878 = vpack.c.b16 %v10496, %v10494
    %v10879 = vpack.c.b16 %v10497, %v10495
    %v10880 = vpack.c.b16 %v10500, %v10498
    %v10881 = vpack.c.b16 %v10501, %v10499
    %v10882 = vpack.c.b16 %v10504, %v10502
    %v10883 = vpack.c.b16 %v10505, %v10503
    %v10884 = vpack.c.b16 %v10508, %v10506
    %v10885 = vpack.c.b16 %v10509, %v10507
    %v10886 = vpack.c.b16 %v10512, %v10510
    %v10887 = vpack.c.b16 %v10513, %v10511
    %v10888 = vpack.c.b16 %v10516, %v10514
    %v10889 = vpack.c.b16 %v10517, %v10515
    %v10890 = vpack.c.b16 %v10520, %v10518
    %v10891 = vpack.c.b16 %v10521, %v10519
    %v10892 = vpack.c.b16 %v10524, %v10522
    %v10893 = vpack.c.b16 %v10525, %v10523
    %v10894 = vpack.c.b16 %v10528, %v10526
    %v10895 = vpack.c.b16 %v10529, %v10527
    %v10896 = vpack.c.b16 %v10532, %v10530
    %v10897 = vpack.c.b16 %v10533, %v10531
    %v10898 = vpack.c.b16 %v10536, %v10534
    %v10899 = vpack.c.b16 %v10537, %v10535
    %v10900 = vpack.c.b16 %v10540, %v10538
    %v10901 = vpack.c.b16 %v10541, %v10539
    %v10902 = vpack.c.b16 %v10544, %v10542
    %v10903 = vpack.c.b16 %v10545, %v10543
    %v10904 = vpack.c.b16 %v10548, %v10546
    %v10905 = vpack.c.b16 %v10549, %v10547
    %v10906 = vpack.c.b16 %v10552, %v10550
    %v10907 = vpack.c.b16 %v10553, %v10551
    %v10908 = vpack.c.b16 %v10556, %v10554
    %v10909 = vpack.c.b16 %v10557, %v10555
    %v10910 = vpack.c.b16 %v10560, %v10558
    %v10911 = vpack.c.b16 %v10561, %v10559
    %v10912 = vpack.c.b16 %v10564, %v10562
    %v10913 = vpack.c.b16 %v10565, %v10563
    %v10914 = vpack.c.b16 %v10568, %v10566
    %v10915 = vpack.c.b16 %v10569, %v10567
    %v10916 = vpack.c.b16 %v10572, %v10570
    %v10917 = vpack.c.b16 %v10573, %v10571
    %v10918 = vpack.c.b16 %v10576, %v10574
    %v10919 = vpack.c.b16 %v10577, %v10575
    %v10920 = vpack.c.b16 %v10580, %v10578
    %v10921 = vpack.c.b16 %v10581, %v10579
    %v10922 = vpack.c.b16 %v10584, %v10582
    %v10923 = vpack.c.b16 %v10585, %v10583
    %v10924 = vpack.c.b16 %v10588, %v10586
    %v10925 = vpack.c.b16 %v10589, %v10587
    %v10926 = vpack.c.b16 %v10592, %v10590
    %v10927 = vpack.c.b16 %v10593, %v10591
    %v10928 = vpack.c.b16 %v10596, %v10594
    %v10929 = vpack.c.b16 %v10597, %v10595
    %v10930 = vpack.c.b16 %v10600, %v10598
    %v10931 = vpack.c.b16 %v10601, %v10599
    %v10932 = vpack.c.b16 %v10604, %v10602
    %v10933 = vpack.c.b16 %v10605, %v10603
    %v10934 = vpack.c.b16 %v10608, %v10606
    %v10935 = vpack.c.b16 %v10609, %v10607
    %v10936 = vpack.c.b16 %v10612, %v10610
    %v10937 = vpack.c.b16 %v10613, %v10611
    %v10938 = vpack.c.b16 %v10616, %v10614
    %v10939 = vpack.c.b16 %v10617, %v10615
    %v10940 = vpack.c.b16 %v10620, %v10618
    %v10941 = vpack.c.b16 %v10621, %v10619
    %v10942 = vpack.c.b16 %v10624, %v10622
    %v10943 = vpack.c.b16 %v10625, %v10623
    %v10944 = vpack.c.b16 %v10628, %v10626
    %v10945 = vpack.c.b16 %v10629, %v10627
    %v10946 = vpack.c.b16 %v10632, %v10630
    %v10947 = vpack.c.b16 %v10633, %v10631
    %v10948 = vpack.c.b16 %v10636, %v10634
    %v10949 = vpack.c.b16 %v10637, %v10635
    %v10950 = vpack.c.b16 %v10640, %v10638
    %v10951 = vpack.c.b16 %v10641, %v10639
    %v10952 = vpack.c.b16 %v10644, %v10642
    %v10953 = vpack.c.b16 %v10645, %v10643
    %v10954 = vpack.c.b16 %v10648, %v10646
    %v10955 = vpack.c.b16 %v10649, %v10647
    %v10956 = vpack.c.b16 %v10652, %v10650
    %v10957 = vpack.c.b16 %v10653, %v10651
    %v10958 = vpack.c.b16 %v10656, %v10654
    %v10959 = vpack.c.b16 %v10657, %v10655
    %v10960 = vpack.c.b16 %v10660, %v10658
    %v10961 = vpack.c.b16 %v10661, %v10659
    %v10962 = vpack.c.b16 %v10664, %v10662
    %v10963 = vpack.c.b16 %v10665, %v10663
    %v10964 = vpack.c.b16 %v10668, %v10666
    %v10965 = vpack.c.b16 %v10669, %v10667
    %v10966 = vpack.c.b16 %v10672, %v10670
    %v10967 = vpack.c.b16 %v10673, %v10671
    %v10968 = vpack.c.b16 %v10676, %v10674
    %v10969 = vpack.c.b16 %v10677, %v10675
    %v10970 = vpack.c.b16 %v10680, %v10678
    %v10971 = vpack.c.b16 %v10681, %v10679
    %v10972 = vpack.c.b16 %v10684, %v10682
    %v10973 = vpack.c.b16 %v10685, %v10683
    %11262 = vmatpush.bf16.msra.mxu0 %v10700
    %11263 = vmatpush.bf16.msra.mxu0 %v10698
    %11264 = vmatpush.bf16.msra.mxu0 %v10696
    %11265 = vmatpush.bf16.msra.mxu0 %v10694
    %11266 = vmatpush.bf16.msra.mxu0 %v10692
    %11267 = vmatpush.bf16.msra.mxu0 %v10690
    %11268 = vmatpush.bf16.msra.mxu0 %v10688
    %11269 = vmatpush.bf16.msra.mxu0 %v10686
    %11270 = vmatmul.bf16.gmra.mxu0 %v9510
    %v11271 = vpop.f32.mrf.mxu0
    %v11272 = vadd.f32 %v9818, %v11271
    %v11273 = vpop.f32.mrf.mxu0
    %11274 = vdwg.mxu0
    %11275 = vmatpush.bf16.msra.mxu0 %v10716
    %11276 = vmatpush.bf16.msra.mxu0 %v10714
    %11277 = vmatpush.bf16.msra.mxu0 %v10712
    %11278 = vmatpush.bf16.msra.mxu0 %v10710
    %11279 = vmatpush.bf16.msra.mxu0 %v10708
    %11280 = vmatpush.bf16.msra.mxu0 %v10706
    %11281 = vmatpush.bf16.msra.mxu0 %v10704
    %11282 = vmatpush.bf16.msra.mxu0 %v10702
    %11283 = vmatmul.bf16.gmra.mxu0 %v9511
    %v11284 = vpop.f32.mrf.mxu0
    %v11285 = vadd.f32 %v11272, %v11284
    %v11286 = vpop.f32.mrf.mxu0
    %11287 = vdwg.mxu0
    %11288 = vmatpush.bf16.msra.mxu0 %v10732
    %11289 = vmatpush.bf16.msra.mxu0 %v10730
    %11290 = vmatpush.bf16.msra.mxu0 %v10728
    %11291 = vmatpush.bf16.msra.mxu0 %v10726
    %11292 = vmatpush.bf16.msra.mxu0 %v10724
    %11293 = vmatpush.bf16.msra.mxu0 %v10722
    %11294 = vmatpush.bf16.msra.mxu0 %v10720
    %11295 = vmatpush.bf16.msra.mxu0 %v10718
    %11296 = vmatmul.bf16.gmra.mxu0 %v9512
    %v11297 = vpop.f32.mrf.mxu0
    %v11298 = vadd.f32 %v11285, %v11297
    %v11299 = vpop.f32.mrf.mxu0
    %11300 = vdwg.mxu0
    %11301 = vmatpush.bf16.msra.mxu0 %v10748
    %11302 = vmatpush.bf16.msra.mxu0 %v10746
    %11303 = vmatpush.bf16.msra.mxu0 %v10744
    %11304 = vmatpush.bf16.msra.mxu0 %v10742
    %11305 = vmatpush.bf16.msra.mxu0 %v10740
    %11306 = vmatpush.bf16.msra.mxu0 %v10738
    %11307 = vmatpush.bf16.msra.mxu0 %v10736
    %11308 = vmatpush.bf16.msra.mxu0 %v10734
    %11309 = vmatmul.bf16.gmra.mxu0 %v9513
    %v11310 = vpop.f32.mrf.mxu0
    %v11311 = vadd.f32 %v11298, %v11310
    %v11312 = vpop.f32.mrf.mxu0
    %11313 = vdwg.mxu0
    %11314 = vmatpush.bf16.msra.mxu0 %v10764
    %11315 = vmatpush.bf16.msra.mxu0 %v10762
    %11316 = vmatpush.bf16.msra.mxu0 %v10760
    %11317 = vmatpush.bf16.msra.mxu0 %v10758
    %11318 = vmatpush.bf16.msra.mxu0 %v10756
    %11319 = vmatpush.bf16.msra.mxu0 %v10754
    %11320 = vmatpush.bf16.msra.mxu0 %v10752
    %11321 = vmatpush.bf16.msra.mxu0 %v10750
    %11322 = vmatmul.bf16.gmra.mxu0 %v9514
    %v11323 = vpop.f32.mrf.mxu0
    %v11324 = vadd.f32 %v11311, %v11323
    %v11325 = vpop.f32.mrf.mxu0
    %11326 = vdwg.mxu0
    %11327 = vmatpush.bf16.msra.mxu0 %v10780
    %11328 = vmatpush.bf16.msra.mxu0 %v10778
    %11329 = vmatpush.bf16.msra.mxu0 %v10776
    %11330 = vmatpush.bf16.msra.mxu0 %v10774
    %11331 = vmatpush.bf16.msra.mxu0 %v10772
    %11332 = vmatpush.bf16.msra.mxu0 %v10770
    %11333 = vmatpush.bf16.msra.mxu0 %v10768
    %11334 = vmatpush.bf16.msra.mxu0 %v10766
    %11335 = vmatmul.bf16.gmra.mxu0 %v9515
    %v11336 = vpop.f32.mrf.mxu0
    %v11337 = vadd.f32 %v11324, %v11336
    %v11338 = vpop.f32.mrf.mxu0
    %11339 = vdwg.mxu0
    %11340 = vmatpush.bf16.msra.mxu0 %v10796
    %11341 = vmatpush.bf16.msra.mxu0 %v10794
    %11342 = vmatpush.bf16.msra.mxu0 %v10792
    %11343 = vmatpush.bf16.msra.mxu0 %v10790
    %11344 = vmatpush.bf16.msra.mxu0 %v10788
    %11345 = vmatpush.bf16.msra.mxu0 %v10786
    %11346 = vmatpush.bf16.msra.mxu0 %v10784
    %11347 = vmatpush.bf16.msra.mxu0 %v10782
    %11348 = vmatmul.bf16.gmra.mxu0 %v9516
    %v11349 = vpop.f32.mrf.mxu0
    %v11350 = vadd.f32 %v11337, %v11349
    %v11351 = vpop.f32.mrf.mxu0
    %11352 = vdwg.mxu0
    %11353 = vmatpush.bf16.msra.mxu0 %v10812
    %11354 = vmatpush.bf16.msra.mxu0 %v10810
    %11355 = vmatpush.bf16.msra.mxu0 %v10808
    %11356 = vmatpush.bf16.msra.mxu0 %v10806
    %11357 = vmatpush.bf16.msra.mxu0 %v10804
    %11358 = vmatpush.bf16.msra.mxu0 %v10802
    %11359 = vmatpush.bf16.msra.mxu0 %v10800
    %11360 = vmatpush.bf16.msra.mxu0 %v10798
    %11361 = vmatmul.bf16.gmra.mxu0 %v9517
    %v11362 = vpop.f32.mrf.mxu0
    %v11363 = vadd.f32 %v11350, %v11362
    %v11364 = vpop.f32.mrf.mxu0
    %11365 = vdwg.mxu0
    %11366 = vmatpush.bf16.msra.mxu0 %v10828
    %11367 = vmatpush.bf16.msra.mxu0 %v10826
    %11368 = vmatpush.bf16.msra.mxu0 %v10824
    %11369 = vmatpush.bf16.msra.mxu0 %v10822
    %11370 = vmatpush.bf16.msra.mxu0 %v10820
    %11371 = vmatpush.bf16.msra.mxu0 %v10818
    %11372 = vmatpush.bf16.msra.mxu0 %v10816
    %11373 = vmatpush.bf16.msra.mxu0 %v10814
    %11374 = vmatmul.bf16.gmra.mxu0 %v9518
    %v11375 = vpop.f32.mrf.mxu0
    %v11376 = vadd.f32 %v11363, %v11375
    %v11377 = vpop.f32.mrf.mxu0
    %11378 = vdwg.mxu0
    %11379 = vmatpush.bf16.msra.mxu0 %v10844
    %11380 = vmatpush.bf16.msra.mxu0 %v10842
    %11381 = vmatpush.bf16.msra.mxu0 %v10840
    %11382 = vmatpush.bf16.msra.mxu0 %v10838
    %11383 = vmatpush.bf16.msra.mxu0 %v10836
    %11384 = vmatpush.bf16.msra.mxu0 %v10834
    %11385 = vmatpush.bf16.msra.mxu0 %v10832
    %11386 = vmatpush.bf16.msra.mxu0 %v10830
    %11387 = vmatmul.bf16.gmra.mxu0 %v9519
    %v11388 = vpop.f32.mrf.mxu0
    %v11389 = vadd.f32 %v11376, %v11388
    %v11390 = vpop.f32.mrf.mxu0
    %11391 = vdwg.mxu0
    %11392 = vmatpush.bf16.msra.mxu0 %v10860
    %11393 = vmatpush.bf16.msra.mxu0 %v10858
    %11394 = vmatpush.bf16.msra.mxu0 %v10856
    %11395 = vmatpush.bf16.msra.mxu0 %v10854
    %11396 = vmatpush.bf16.msra.mxu0 %v10852
    %11397 = vmatpush.bf16.msra.mxu0 %v10850
    %11398 = vmatpush.bf16.msra.mxu0 %v10848
    %11399 = vmatpush.bf16.msra.mxu0 %v10846
    %11400 = vmatmul.bf16.gmra.mxu0 %v9520
    %v11401 = vpop.f32.mrf.mxu0
    %v11402 = vadd.f32 %v11389, %v11401
    %v11403 = vpop.f32.mrf.mxu0
    %11404 = vdwg.mxu0
    %11405 = vmatpush.bf16.msra.mxu0 %v10876
    %11406 = vmatpush.bf16.msra.mxu0 %v10874
    %11407 = vmatpush.bf16.msra.mxu0 %v10872
    %11408 = vmatpush.bf16.msra.mxu0 %v10870
    %11409 = vmatpush.bf16.msra.mxu0 %v10868
    %11410 = vmatpush.bf16.msra.mxu0 %v10866
    %11411 = vmatpush.bf16.msra.mxu0 %v10864
    %11412 = vmatpush.bf16.msra.mxu0 %v10862
    %11413 = vmatmul.bf16.gmra.mxu0 %v9521
    %v11414 = vpop.f32.mrf.mxu0
    %v11415 = vadd.f32 %v11402, %v11414
    %v11416 = vpop.f32.mrf.mxu0
    %11417 = vdwg.mxu0
    %11418 = vmatpush.bf16.msra.mxu0 %v10892
    %11419 = vmatpush.bf16.msra.mxu0 %v10890
    %11420 = vmatpush.bf16.msra.mxu0 %v10888
    %11421 = vmatpush.bf16.msra.mxu0 %v10886
    %11422 = vmatpush.bf16.msra.mxu0 %v10884
    %11423 = vmatpush.bf16.msra.mxu0 %v10882
    %11424 = vmatpush.bf16.msra.mxu0 %v10880
    %11425 = vmatpush.bf16.msra.mxu0 %v10878
    %11426 = vmatmul.bf16.gmra.mxu0 %v9522
    %v11427 = vpop.f32.mrf.mxu0
    %v11428 = vadd.f32 %v11415, %v11427
    %v11429 = vpop.f32.mrf.mxu0
    %11430 = vdwg.mxu0
    %11431 = vmatpush.bf16.msra.mxu0 %v10908
    %11432 = vmatpush.bf16.msra.mxu0 %v10906
    %11433 = vmatpush.bf16.msra.mxu0 %v10904
    %11434 = vmatpush.bf16.msra.mxu0 %v10902
    %11435 = vmatpush.bf16.msra.mxu0 %v10900
    %11436 = vmatpush.bf16.msra.mxu0 %v10898
    %11437 = vmatpush.bf16.msra.mxu0 %v10896
    %11438 = vmatpush.bf16.msra.mxu0 %v10894
    %11439 = vmatmul.bf16.gmra.mxu0 %v9523
    %v11440 = vpop.f32.mrf.mxu0
    %v11441 = vadd.f32 %v11428, %v11440
    %v11442 = vpop.f32.mrf.mxu0
    %11443 = vdwg.mxu0
    %11444 = vmatpush.bf16.msra.mxu0 %v10924
    %11445 = vmatpush.bf16.msra.mxu0 %v10922
    %11446 = vmatpush.bf16.msra.mxu0 %v10920
    %11447 = vmatpush.bf16.msra.mxu0 %v10918
    %11448 = vmatpush.bf16.msra.mxu0 %v10916
    %11449 = vmatpush.bf16.msra.mxu0 %v10914
    %11450 = vmatpush.bf16.msra.mxu0 %v10912
    %11451 = vmatpush.bf16.msra.mxu0 %v10910
    %11452 = vmatmul.bf16.gmra.mxu0 %v9524
    %v11453 = vpop.f32.mrf.mxu0
    %v11454 = vadd.f32 %v11441, %v11453
    %v11455 = vpop.f32.mrf.mxu0
    %11456 = vdwg.mxu0
    %11457 = vmatpush.bf16.msra.mxu0 %v10940
    %11458 = vmatpush.bf16.msra.mxu0 %v10938
    %11459 = vmatpush.bf16.msra.mxu0 %v10936
    %11460 = vmatpush.bf16.msra.mxu0 %v10934
    %11461 = vmatpush.bf16.msra.mxu0 %v10932
    %11462 = vmatpush.bf16.msra.mxu0 %v10930
    %11463 = vmatpush.bf16.msra.mxu0 %v10928
    %11464 = vmatpush.bf16.msra.mxu0 %v10926
    %11465 = vmatmul.bf16.gmra.mxu0 %v9525
    %v11466 = vpop.f32.mrf.mxu0
    %v11467 = vadd.f32 %v11454, %v11466
    %v11468 = vpop.f32.mrf.mxu0
    %11469 = vdwg.mxu0
    %11470 = vmatpush.bf16.msra.mxu0 %v10956
    %11471 = vmatpush.bf16.msra.mxu0 %v10954
    %11472 = vmatpush.bf16.msra.mxu0 %v10952
    %11473 = vmatpush.bf16.msra.mxu0 %v10950
    %11474 = vmatpush.bf16.msra.mxu0 %v10948
    %11475 = vmatpush.bf16.msra.mxu0 %v10946
    %11476 = vmatpush.bf16.msra.mxu0 %v10944
    %11477 = vmatpush.bf16.msra.mxu0 %v10942
    %11478 = vmatmul.bf16.gmra.mxu0 %v9526
    %v11479 = vpop.f32.mrf.mxu0
    %v11480 = vadd.f32 %v11467, %v11479
    %v11481 = vpop.f32.mrf.mxu0
    %11482 = vdwg.mxu0
    %11483 = vmatpush.bf16.msra.mxu0 %v10972
    %11484 = vmatpush.bf16.msra.mxu0 %v10970
    %11485 = vmatpush.bf16.msra.mxu0 %v10968
    %11486 = vmatpush.bf16.msra.mxu0 %v10966
    %11487 = vmatpush.bf16.msra.mxu0 %v10964
    %11488 = vmatpush.bf16.msra.mxu0 %v10962
    %11489 = vmatpush.bf16.msra.mxu0 %v10960
    %11490 = vmatpush.bf16.msra.mxu0 %v10958
    %11491 = vmatmul.bf16.gmra.mxu0 %v9527
    %v11492 = vpop.f32.mrf.mxu0
    %v11493 = vadd.f32 %v11480, %v11492
    %v11494 = vpop.f32.mrf.mxu0
    %11495 = vdwg.mxu0
    %11496 = vmatpush.bf16.msra.mxu0 %v10701
    %11497 = vmatpush.bf16.msra.mxu0 %v10699
    %11498 = vmatpush.bf16.msra.mxu0 %v10697
    %11499 = vmatpush.bf16.msra.mxu0 %v10695
    %11500 = vmatpush.bf16.msra.mxu0 %v10693
    %11501 = vmatpush.bf16.msra.mxu0 %v10691
    %11502 = vmatpush.bf16.msra.mxu0 %v10689
    %11503 = vmatpush.bf16.msra.mxu0 %v10687
    %11504 = vmatmul.bf16.gmra.mxu0 %v9510
    %v11505 = vpop.f32.mrf.mxu0
    %v11506 = vadd.f32 %v9819, %v11505
    %v11507 = vpop.f32.mrf.mxu0
    %11508 = vdwg.mxu0
    %11509 = vmatpush.bf16.msra.mxu0 %v10717
    %11510 = vmatpush.bf16.msra.mxu0 %v10715
    %11511 = vmatpush.bf16.msra.mxu0 %v10713
    %11512 = vmatpush.bf16.msra.mxu0 %v10711
    %11513 = vmatpush.bf16.msra.mxu0 %v10709
    %11514 = vmatpush.bf16.msra.mxu0 %v10707
    %11515 = vmatpush.bf16.msra.mxu0 %v10705
    %11516 = vmatpush.bf16.msra.mxu0 %v10703
    %11517 = vmatmul.bf16.gmra.mxu0 %v9511
    %v11518 = vpop.f32.mrf.mxu0
    %v11519 = vadd.f32 %v11506, %v11518
    %v11520 = vpop.f32.mrf.mxu0
    %11521 = vdwg.mxu0
    %11522 = vmatpush.bf16.msra.mxu0 %v10733
    %11523 = vmatpush.bf16.msra.mxu0 %v10731
    %11524 = vmatpush.bf16.msra.mxu0 %v10729
    %11525 = vmatpush.bf16.msra.mxu0 %v10727
    %11526 = vmatpush.bf16.msra.mxu0 %v10725
    %11527 = vmatpush.bf16.msra.mxu0 %v10723
    %11528 = vmatpush.bf16.msra.mxu0 %v10721
    %11529 = vmatpush.bf16.msra.mxu0 %v10719
    %11530 = vmatmul.bf16.gmra.mxu0 %v9512
    %v11531 = vpop.f32.mrf.mxu0
    %v11532 = vadd.f32 %v11519, %v11531
    %v11533 = vpop.f32.mrf.mxu0
    %11534 = vdwg.mxu0
    %11535 = vmatpush.bf16.msra.mxu0 %v10749
    %11536 = vmatpush.bf16.msra.mxu0 %v10747
    %11537 = vmatpush.bf16.msra.mxu0 %v10745
    %11538 = vmatpush.bf16.msra.mxu0 %v10743
    %11539 = vmatpush.bf16.msra.mxu0 %v10741
    %11540 = vmatpush.bf16.msra.mxu0 %v10739
    %11541 = vmatpush.bf16.msra.mxu0 %v10737
    %11542 = vmatpush.bf16.msra.mxu0 %v10735
    %11543 = vmatmul.bf16.gmra.mxu0 %v9513
    %v11544 = vpop.f32.mrf.mxu0
    %v11545 = vadd.f32 %v11532, %v11544
    %v11546 = vpop.f32.mrf.mxu0
    %11547 = vdwg.mxu0
    %11548 = vmatpush.bf16.msra.mxu0 %v10765
    %11549 = vmatpush.bf16.msra.mxu0 %v10763
    %11550 = vmatpush.bf16.msra.mxu0 %v10761
    %11551 = vmatpush.bf16.msra.mxu0 %v10759
    %11552 = vmatpush.bf16.msra.mxu0 %v10757
    %11553 = vmatpush.bf16.msra.mxu0 %v10755
    %11554 = vmatpush.bf16.msra.mxu0 %v10753
    %11555 = vmatpush.bf16.msra.mxu0 %v10751
    %11556 = vmatmul.bf16.gmra.mxu0 %v9514
    %v11557 = vpop.f32.mrf.mxu0
    %v11558 = vadd.f32 %v11545, %v11557
    %v11559 = vpop.f32.mrf.mxu0
    %11560 = vdwg.mxu0
    %11561 = vmatpush.bf16.msra.mxu0 %v10781
    %11562 = vmatpush.bf16.msra.mxu0 %v10779
    %11563 = vmatpush.bf16.msra.mxu0 %v10777
    %11564 = vmatpush.bf16.msra.mxu0 %v10775
    %11565 = vmatpush.bf16.msra.mxu0 %v10773
    %11566 = vmatpush.bf16.msra.mxu0 %v10771
    %11567 = vmatpush.bf16.msra.mxu0 %v10769
    %11568 = vmatpush.bf16.msra.mxu0 %v10767
    %11569 = vmatmul.bf16.gmra.mxu0 %v9515
    %v11570 = vpop.f32.mrf.mxu0
    %v11571 = vadd.f32 %v11558, %v11570
    %v11572 = vpop.f32.mrf.mxu0
    %11573 = vdwg.mxu0
    %11574 = vmatpush.bf16.msra.mxu0 %v10797
    %11575 = vmatpush.bf16.msra.mxu0 %v10795
    %11576 = vmatpush.bf16.msra.mxu0 %v10793
    %11577 = vmatpush.bf16.msra.mxu0 %v10791
    %11578 = vmatpush.bf16.msra.mxu0 %v10789
    %11579 = vmatpush.bf16.msra.mxu0 %v10787
    %11580 = vmatpush.bf16.msra.mxu0 %v10785
    %11581 = vmatpush.bf16.msra.mxu0 %v10783
    %11582 = vmatmul.bf16.gmra.mxu0 %v9516
    %v11583 = vpop.f32.mrf.mxu0
    %v11584 = vadd.f32 %v11571, %v11583
    %v11585 = vpop.f32.mrf.mxu0
    %11586 = vdwg.mxu0
    %11587 = vmatpush.bf16.msra.mxu0 %v10813
    %11588 = vmatpush.bf16.msra.mxu0 %v10811
    %11589 = vmatpush.bf16.msra.mxu0 %v10809
    %11590 = vmatpush.bf16.msra.mxu0 %v10807
    %11591 = vmatpush.bf16.msra.mxu0 %v10805
    %11592 = vmatpush.bf16.msra.mxu0 %v10803
    %11593 = vmatpush.bf16.msra.mxu0 %v10801
    %11594 = vmatpush.bf16.msra.mxu0 %v10799
    %11595 = vmatmul.bf16.gmra.mxu0 %v9517
    %v11596 = vpop.f32.mrf.mxu0
    %v11597 = vadd.f32 %v11584, %v11596
    %v11598 = vpop.f32.mrf.mxu0
    %11599 = vdwg.mxu0
    %11600 = vmatpush.bf16.msra.mxu0 %v10829
    %11601 = vmatpush.bf16.msra.mxu0 %v10827
    %11602 = vmatpush.bf16.msra.mxu0 %v10825
    %11603 = vmatpush.bf16.msra.mxu0 %v10823
    %11604 = vmatpush.bf16.msra.mxu0 %v10821
    %11605 = vmatpush.bf16.msra.mxu0 %v10819
    %11606 = vmatpush.bf16.msra.mxu0 %v10817
    %11607 = vmatpush.bf16.msra.mxu0 %v10815
    %11608 = vmatmul.bf16.gmra.mxu0 %v9518
    %v11609 = vpop.f32.mrf.mxu0
    %v11610 = vadd.f32 %v11597, %v11609
    %v11611 = vpop.f32.mrf.mxu0
    %11612 = vdwg.mxu0
    %11613 = vmatpush.bf16.msra.mxu0 %v10845
    %11614 = vmatpush.bf16.msra.mxu0 %v10843
    %11615 = vmatpush.bf16.msra.mxu0 %v10841
    %11616 = vmatpush.bf16.msra.mxu0 %v10839
    %11617 = vmatpush.bf16.msra.mxu0 %v10837
    %11618 = vmatpush.bf16.msra.mxu0 %v10835
    %11619 = vmatpush.bf16.msra.mxu0 %v10833
    %11620 = vmatpush.bf16.msra.mxu0 %v10831
    %11621 = vmatmul.bf16.gmra.mxu0 %v9519
    %v11622 = vpop.f32.mrf.mxu0
    %v11623 = vadd.f32 %v11610, %v11622
    %v11624 = vpop.f32.mrf.mxu0
    %11625 = vdwg.mxu0
    %11626 = vmatpush.bf16.msra.mxu0 %v10861
    %11627 = vmatpush.bf16.msra.mxu0 %v10859
    %11628 = vmatpush.bf16.msra.mxu0 %v10857
    %11629 = vmatpush.bf16.msra.mxu0 %v10855
    %11630 = vmatpush.bf16.msra.mxu0 %v10853
    %11631 = vmatpush.bf16.msra.mxu0 %v10851
    %11632 = vmatpush.bf16.msra.mxu0 %v10849
    %11633 = vmatpush.bf16.msra.mxu0 %v10847
    %11634 = vmatmul.bf16.gmra.mxu0 %v9520
    %v11635 = vpop.f32.mrf.mxu0
    %v11636 = vadd.f32 %v11623, %v11635
    %v11637 = vpop.f32.mrf.mxu0
    %11638 = vdwg.mxu0
    %11639 = vmatpush.bf16.msra.mxu0 %v10877
    %11640 = vmatpush.bf16.msra.mxu0 %v10875
    %11641 = vmatpush.bf16.msra.mxu0 %v10873
    %11642 = vmatpush.bf16.msra.mxu0 %v10871
    %11643 = vmatpush.bf16.msra.mxu0 %v10869
    %11644 = vmatpush.bf16.msra.mxu0 %v10867
    %11645 = vmatpush.bf16.msra.mxu0 %v10865
    %11646 = vmatpush.bf16.msra.mxu0 %v10863
    %11647 = vmatmul.bf16.gmra.mxu0 %v9521
    %v11648 = vpop.f32.mrf.mxu0
    %v11649 = vadd.f32 %v11636, %v11648
    %v11650 = vpop.f32.mrf.mxu0
    %11651 = vdwg.mxu0
    %11652 = vmatpush.bf16.msra.mxu0 %v10893
    %11653 = vmatpush.bf16.msra.mxu0 %v10891
    %11654 = vmatpush.bf16.msra.mxu0 %v10889
    %11655 = vmatpush.bf16.msra.mxu0 %v10887
    %11656 = vmatpush.bf16.msra.mxu0 %v10885
    %11657 = vmatpush.bf16.msra.mxu0 %v10883
    %11658 = vmatpush.bf16.msra.mxu0 %v10881
    %11659 = vmatpush.bf16.msra.mxu0 %v10879
    %11660 = vmatmul.bf16.gmra.mxu0 %v9522
    %v11661 = vpop.f32.mrf.mxu0
    %v11662 = vadd.f32 %v11649, %v11661
    %v11663 = vpop.f32.mrf.mxu0
    %11664 = vdwg.mxu0
    %11665 = vmatpush.bf16.msra.mxu0 %v10909
    %11666 = vmatpush.bf16.msra.mxu0 %v10907
    %11667 = vmatpush.bf16.msra.mxu0 %v10905
    %11668 = vmatpush.bf16.msra.mxu0 %v10903
    %11669 = vmatpush.bf16.msra.mxu0 %v10901
    %11670 = vmatpush.bf16.msra.mxu0 %v10899
    %11671 = vmatpush.bf16.msra.mxu0 %v10897
    %11672 = vmatpush.bf16.msra.mxu0 %v10895
    %11673 = vmatmul.bf16.gmra.mxu0 %v9523
    %v11674 = vpop.f32.mrf.mxu0
    %v11675 = vadd.f32 %v11662, %v11674
    %v11676 = vpop.f32.mrf.mxu0
    %11677 = vdwg.mxu0
    %11678 = vmatpush.bf16.msra.mxu0 %v10925
    %11679 = vmatpush.bf16.msra.mxu0 %v10923
    %11680 = vmatpush.bf16.msra.mxu0 %v10921
    %11681 = vmatpush.bf16.msra.mxu0 %v10919
    %11682 = vmatpush.bf16.msra.mxu0 %v10917
    %11683 = vmatpush.bf16.msra.mxu0 %v10915
    %11684 = vmatpush.bf16.msra.mxu0 %v10913
    %11685 = vmatpush.bf16.msra.mxu0 %v10911
    %11686 = vmatmul.bf16.gmra.mxu0 %v9524
    %v11687 = vpop.f32.mrf.mxu0
    %v11688 = vadd.f32 %v11675, %v11687
    %v11689 = vpop.f32.mrf.mxu0
    %11690 = vdwg.mxu0
    %11691 = vmatpush.bf16.msra.mxu0 %v10941
    %11692 = vmatpush.bf16.msra.mxu0 %v10939
    %11693 = vmatpush.bf16.msra.mxu0 %v10937
    %11694 = vmatpush.bf16.msra.mxu0 %v10935
    %11695 = vmatpush.bf16.msra.mxu0 %v10933
    %11696 = vmatpush.bf16.msra.mxu0 %v10931
    %11697 = vmatpush.bf16.msra.mxu0 %v10929
    %11698 = vmatpush.bf16.msra.mxu0 %v10927
    %11699 = vmatmul.bf16.gmra.mxu0 %v9525
    %v11700 = vpop.f32.mrf.mxu0
    %v11701 = vadd.f32 %v11688, %v11700
    %v11702 = vpop.f32.mrf.mxu0
    %11703 = vdwg.mxu0
    %11704 = vmatpush.bf16.msra.mxu0 %v10957
    %11705 = vmatpush.bf16.msra.mxu0 %v10955
    %11706 = vmatpush.bf16.msra.mxu0 %v10953
    %11707 = vmatpush.bf16.msra.mxu0 %v10951
    %11708 = vmatpush.bf16.msra.mxu0 %v10949
    %11709 = vmatpush.bf16.msra.mxu0 %v10947
    %11710 = vmatpush.bf16.msra.mxu0 %v10945
    %11711 = vmatpush.bf16.msra.mxu0 %v10943
    %11712 = vmatmul.bf16.gmra.mxu0 %v9526
    %v11713 = vpop.f32.mrf.mxu0
    %v11714 = vadd.f32 %v11701, %v11713
    %v11715 = vpop.f32.mrf.mxu0
    %11716 = vdwg.mxu0
    %11717 = vmatpush.bf16.msra.mxu0 %v10973
    %11718 = vmatpush.bf16.msra.mxu0 %v10971
    %11719 = vmatpush.bf16.msra.mxu0 %v10969
    %11720 = vmatpush.bf16.msra.mxu0 %v10967
    %11721 = vmatpush.bf16.msra.mxu0 %v10965
    %11722 = vmatpush.bf16.msra.mxu0 %v10963
    %11723 = vmatpush.bf16.msra.mxu0 %v10961
    %11724 = vmatpush.bf16.msra.mxu0 %v10959
    %11725 = vmatmul.bf16.gmra.mxu0 %v9527
    %v11726 = vpop.f32.mrf.mxu0
    %v11727 = vadd.f32 %v11714, %v11726
    %v11728 = vpop.f32.mrf.mxu0
    %11729 = vdwg.mxu0
    %v11730 = vmax.f32 %v11493, 0.0
    %v11731 = vmax.f32 %v11727, 0.0
    %v11732 = vpack.c.bf16 %v11730, %v11730
    %v11733 = vpack.c.bf16 %v11731, %v11731
    %v11734 = vld [vmem:[#allocation13] sm:$0xf]
    %v11735 = vld [vmem:[#allocation13 + $0x4] sm:$0xf]
    %v11736 = vld [vmem:[#allocation13 + $0x8] sm:$0xf]
    %v11737 = vld [vmem:[#allocation13 + $0xc] sm:$0xf]
    %v11738 = vld [vmem:[#allocation13 + $0x10] sm:$0xf]
    %v11739 = vld [vmem:[#allocation13 + $0x14] sm:$0xf]
    %v11740 = vld [vmem:[#allocation13 + $0x18] sm:$0xf]
    %v11741 = vld [vmem:[#allocation13 + $0x1c] sm:$0xf]
    %v11742 = vld [vmem:[#allocation13 + $0x20] sm:$0xf]
    %v11743 = vld [vmem:[#allocation13 + $0x24] sm:$0xf]
    %v11744 = vld [vmem:[#allocation13 + $0x28] sm:$0xf]
    %v11745 = vld [vmem:[#allocation13 + $0x2c] sm:$0xf]
    %v11746 = vld [vmem:[#allocation13 + $0x30] sm:$0xf]
    %v11747 = vld [vmem:[#allocation13 + $0x34] sm:$0xf]
    %v11748 = vld [vmem:[#allocation13 + $0x38] sm:$0xf]
    %v11749 = vld [vmem:[#allocation13 + $0x3c] sm:$0xf]
    %v11750 = vld [vmem:[#allocation13 + $0x40] sm:$0xf]
    %v11751 = vld [vmem:[#allocation13 + $0x44] sm:$0xf]
    %v11752 = vld [vmem:[#allocation13 + $0x48] sm:$0xf]
    %v11753 = vld [vmem:[#allocation13 + $0x4c] sm:$0xf]
    %v11754 = vld [vmem:[#allocation13 + $0x50] sm:$0xf]
    %v11755 = vld [vmem:[#allocation13 + $0x54] sm:$0xf]
    %v11756 = vld [vmem:[#allocation13 + $0x58] sm:$0xf]
    %v11757 = vld [vmem:[#allocation13 + $0x5c] sm:$0xf]
    %v11758 = vld [vmem:[#allocation13 + $0x60] sm:$0xf]
    %v11759 = vld [vmem:[#allocation13 + $0x64] sm:$0xf]
    %v11760 = vld [vmem:[#allocation13 + $0x68] sm:$0xf]
    %v11761 = vld [vmem:[#allocation13 + $0x6c] sm:$0xf]
    %v11762 = vld [vmem:[#allocation13 + $0x70] sm:$0xf]
    %v11763 = vld [vmem:[#allocation13 + $0x74] sm:$0xf]
    %v11764 = vld [vmem:[#allocation13 + $0x78] sm:$0xf]
    %v11765 = vld [vmem:[#allocation13 + $0x7c] sm:$0xf]
    %v11766 = vld [vmem:[#allocation14] sm:$0x1]
    %v11768 = vperm.slane %v11766, 0
    %v11802 = vunpack.c.l.b16 %v11734
    %v11803 = vunpack.c.l.b16 %v11735
    %v11804 = vunpack.c.l.b16 %v11736
    %v11805 = vunpack.c.l.b16 %v11737
    %v11806 = vunpack.c.l.b16 %v11738
    %v11807 = vunpack.c.l.b16 %v11739
    %v11808 = vunpack.c.l.b16 %v11740
    %v11809 = vunpack.c.l.b16 %v11741
    %v11810 = vunpack.c.l.b16 %v11742
    %v11811 = vunpack.c.l.b16 %v11743
    %v11812 = vunpack.c.l.b16 %v11744
    %v11813 = vunpack.c.l.b16 %v11745
    %v11814 = vunpack.c.l.b16 %v11746
    %v11815 = vunpack.c.l.b16 %v11747
    %v11816 = vunpack.c.l.b16 %v11748
    %v11817 = vunpack.c.l.b16 %v11749
    %v11818 = vunpack.c.l.b16 %v11750
    %v11819 = vunpack.c.l.b16 %v11751
    %v11820 = vunpack.c.l.b16 %v11752
    %v11821 = vunpack.c.l.b16 %v11753
    %v11822 = vunpack.c.l.b16 %v11754
    %v11823 = vunpack.c.l.b16 %v11755
    %v11824 = vunpack.c.l.b16 %v11756
    %v11825 = vunpack.c.l.b16 %v11757
    %v11826 = vunpack.c.l.b16 %v11758
    %v11827 = vunpack.c.l.b16 %v11759
    %v11828 = vunpack.c.l.b16 %v11760
    %v11829 = vunpack.c.l.b16 %v11761
    %v11830 = vunpack.c.l.b16 %v11762
    %v11831 = vunpack.c.l.b16 %v11763
    %v11832 = vunpack.c.l.b16 %v11764
    %v11833 = vunpack.c.l.b16 %v11765
    %v11834 = vpack.c.b16 %v11803, %v11802
    %v11835 = vpack.c.b16 %v11805, %v11804
    %v11836 = vpack.c.b16 %v11807, %v11806
    %v11837 = vpack.c.b16 %v11809, %v11808
    %v11838 = vpack.c.b16 %v11811, %v11810
    %v11839 = vpack.c.b16 %v11813, %v11812
    %v11840 = vpack.c.b16 %v11815, %v11814
    %v11841 = vpack.c.b16 %v11817, %v11816
    %v11842 = vpack.c.b16 %v11819, %v11818
    %v11843 = vpack.c.b16 %v11821, %v11820
    %v11844 = vpack.c.b16 %v11823, %v11822
    %v11845 = vpack.c.b16 %v11825, %v11824
    %v11846 = vpack.c.b16 %v11827, %v11826
    %v11847 = vpack.c.b16 %v11829, %v11828
    %v11848 = vpack.c.b16 %v11831, %v11830
    %v11849 = vpack.c.b16 %v11833, %v11832
    %11866 = vmatpush.bf16.msra.mxu0 %v11841
    %11867 = vmatpush.bf16.msra.mxu0 %v11840
    %11868 = vmatpush.bf16.msra.mxu0 %v11839
    %11869 = vmatpush.bf16.msra.mxu0 %v11838
    %11870 = vmatpush.bf16.msra.mxu0 %v11837
    %11871 = vmatpush.bf16.msra.mxu0 %v11836
    %11872 = vmatpush.bf16.msra.mxu0 %v11835
    %11873 = vmatpush.bf16.msra.mxu0 %v11834
    %11874 = vmatmul.bf16.gmra.mxu0 %v11732
    %v11875 = vpop.f32.mrf.mxu0
    %v11876 = vadd.f32 %v11768, %v11875
    %v11877 = vpop.f32.mrf.mxu0
    %11878 = vdwg.mxu0
    %11879 = vmatpush.bf16.msra.mxu0 %v11849
    %11880 = vmatpush.bf16.msra.mxu0 %v11848
    %11881 = vmatpush.bf16.msra.mxu0 %v11847
    %11882 = vmatpush.bf16.msra.mxu0 %v11846
    %11883 = vmatpush.bf16.msra.mxu0 %v11845
    %11884 = vmatpush.bf16.msra.mxu0 %v11844
    %11885 = vmatpush.bf16.msra.mxu0 %v11843
    %11886 = vmatpush.bf16.msra.mxu0 %v11842
    %11887 = vmatmul.bf16.gmra.mxu0 %v11733
    %v11888 = vpop.f32.mrf.mxu0
    %v11889 = vadd.f32 %v11876, %v11888
    %v11890 = vpop.f32.mrf.mxu0
    %11891 = vdwg.mxu0
    %11892 = vst [vmem:[#allocation16] sm:$0x3] %v11889
    // Predicated region
    $region70: #{embedding_net_forward_fn.1} parent=1 // pred_check
      _
    $region71: #{embedding_net_forward_fn.1} parent=1 // pred_check_branch
      %11894 = sbr.rel (0) target = $region73
    $region72: #{embedding_net_forward_fn.1} parent=1 // pred_region
      %11896 = vsyncadd [#allocation4], 0
      %s11898 = sshll.u32 [#allocation16], 4
      %s11899 = int_to_ptr.vmem [resolvable:$true] %s11898
      %s11900 = sshll.u32 %s9, 4
      %s11901 = int_to_ptr.hbm [resolvable:$true] %s11900
      %11903 = dma.vmem_to_hbm [thread:$0]  %s11899, 32, %s11901, [#allocation4]
    $region73: #{embedding_net_forward_fn.1} parent=1 // pred_fallthru
      _
    // Predicated region
    $region74: #{embedding_net_forward_fn.1} parent=1 // pred_check
      _
    $region75: #{embedding_net_forward_fn.1} parent=1 // pred_check_branch
      %11905 = sbr.rel (0) target = $region77
    $region76: #{embedding_net_forward_fn.1} parent=1 // pred_region
      %11907 = dma.done [#allocation4], 32
    $region77: #{embedding_net_forward_fn.1} parent=1 // pred_fallthru
      _
    %11908 = vsyncpa [#allocation3], 1
    %11909 = vsyncpa [#allocation6], 1
    %11910 = vsyncpa [#allocation9], 1
    %11911 = vsyncpa [#allocation12], 1
    %11912 = vsyncpa [#allocation15], 1
    %11913 = vsyncpa [#allocation4], 1

</llo_original>
